<compile_context>
chip_gen: v7x
topology: tpu7x:2x2x1
jax: 0.10.0
libtpu: 0.0.40
codegen_flags: <defaults>
</compile_context>

<pallas_src>
import functools

import jax
import jax.numpy as jnp
import numpy as np
from jax.experimental import pallas as pl
from jax.experimental.pallas import tpu as pltpu

_NEG = -1e30  # finite stand-in for -inf in the masked segment-max


def _round_up(x, m):
    return ((x + m - 1) // m) * m


def _sigmoid(x):
    # explicit formula so kernel and reference use identical math
    return 1.0 / (1.0 + jnp.exp(-x))


# ------------------------ kernel 1: pooling + MLP + sigmoid -------------------
def _pool_att_kernel(feats_ref, bidx_ref, invc_ref, w1_ref, b1_ref, w2_ref,
                     b2_ref, att_ref, sum_acc, max_acc):
    i = pl.program_id(0)

    @pl.when(i == 0)
    def _():
        sum_acc[...] = jnp.zeros_like(sum_acc)
        max_acc[...] = jnp.full_like(max_acc, _NEG)

    f = feats_ref[...].astype(jnp.float32)            # (tile, C)
    b = bidx_ref[...]                                 # (tile, 1) int32
    tile = f.shape[0]
    b_pad = att_ref.shape[0]

    # segment-sum via MXU: onehot^T @ feats  -> (B_pad, C)
    onehot = (b == jax.lax.broadcasted_iota(jnp.int32, (tile, b_pad), 1)
              ).astype(jnp.float32)                   # (tile, B_pad)
    sum_acc[...] += jax.lax.dot_general(
        onehot, f, (((0,), (0,)), ((), ())),
        preferred_element_type=jnp.float32)

    # segment-max: masked cross-sublane reduce per batch slot (B_pad is small)
    rows = []
    for bb in range(b_pad):
        rows.append(jnp.max(jnp.where(b == bb, f, _NEG), axis=0, keepdims=True))
    max_acc[...] = jnp.maximum(max_acc[...], jnp.concatenate(rows, axis=0))

    @pl.when(i == pl.num_programs(0) - 1)
    def _():
        avg = sum_acc[...] * invc_ref[...]            # (B_pad, C)
        mx = max_acc[...]

        def fc(v):
            h = jnp.dot(v, w1_ref[...], preferred_element_type=jnp.float32)
            h = jnp.maximum(h + b1_ref[...], 0.0)
            return jnp.dot(h, w2_ref[...],
                           preferred_element_type=jnp.float32) + b2_ref[...]

        att_ref[...] = _sigmoid(fc(avg) + fc(mx)).astype(att_ref.dtype)


# --------------------------- kernel 2: apply attention ------------------------
def _apply_kernel(att_ref, feats_ref, bidx_ref, out_ref):
    b = bidx_ref[...]                                 # (tile, 1) int32
    tile = feats_ref.shape[0]
    b_pad = att_ref.shape[0]
    onehot = (b == jax.lax.broadcasted_iota(jnp.int32, (tile, b_pad), 1)
              ).astype(jnp.float32)
    att_rows = jnp.dot(onehot, att_ref[...],
                       preferred_element_type=jnp.float32)   # (tile, C)
    out_ref[...] = (feats_ref[...].astype(jnp.float32) * att_rows
                    ).astype(out_ref.dtype)


# ----------------------------------- wrapper ---------------------------------
@functools.partial(jax.jit, static_argnames=("num_batches", "tile_m"))
def channel_attention_forward(feats, batch_index, params, *, num_batches,
                              tile_m=512):
    """feats: (N, C) f32, batch_index: (N,) int32 -> (N, C) attended features."""
    N, C = feats.shape
    w1, b1, w2, b2 = params["w1"], params["b1"], params["w2"], params["b2"]
    cr = w1.shape[1]

    b_pad = _round_up(num_batches + 1, 8)   # +1 spare slot for padded rows
    n_pad = _round_up(N, tile_m)

    feats_p = jnp.pad(feats, ((0, n_pad - N), (0, 0)))
    bidx_p = jnp.pad(batch_index.astype(jnp.int32), (0, n_pad - N),
                     constant_values=num_batches).reshape(n_pad, 1)

    # Per-batch point counts: O(N) scalar work stays in the wrapper; kernels
    # handle the O(N*C) streams.
    counts = jnp.zeros((b_pad,), jnp.float32).at[bidx_p[:, 0]].add(1.0)
    inv_cnt = (1.0 / jnp.maximum(counts, 1.0)).reshape(b_pad, 1)

    grid = (n_pad // tile_m,)
    row_spec = pl.BlockSpec((tile_m, C), lambda i: (i, 0))
    idx_spec = pl.BlockSpec((tile_m, 1), lambda i: (i, 0))
    const = lambda shape: pl.BlockSpec(shape, lambda i: (0, 0))

    att = pl.pallas_call(
        _pool_att_kernel,
        out_shape=jax.ShapeDtypeStruct((b_pad, C), jnp.float32),
        grid=grid,
        in_specs=[row_spec, idx_spec, const((b_pad, 1)), const((C, cr)),
                  const((1, cr)), const((cr, C)), const((1, C))],
        out_specs=const((b_pad, C)),
        scratch_shapes=[pltpu.VMEM((b_pad, C), jnp.float32),
                        pltpu.VMEM((b_pad, C), jnp.float32)],
        compiler_params=pltpu.CompilerParams(
            dimension_semantics=("arbitrary",)),
    )(feats_p, bidx_p, inv_cnt, w1, b1.reshape(1, cr), w2, b2.reshape(1, C))

    out_p = pl.pallas_call(
        _apply_kernel,
        out_shape=jax.ShapeDtypeStruct((n_pad, C), feats.dtype),
        grid=grid,
        in_specs=[const((b_pad, C)), row_spec, idx_spec],
        out_specs=row_spec,
        compiler_params=pltpu.CompilerParams(
            dimension_semantics=("parallel",)),
    )(att, feats_p, bidx_p)

    return out_p[:N]


# ---------------------------- pure-JAX reference ------------------------------
def channel_attention_reference(feats, batch_index, params, num_batches):
    w1, b1, w2, b2 = params["w1"], params["b1"], params["w2"], params["b2"]
    onehot = (batch_index[:, None] == jnp.arange(num_batches)[None, :]
              ).astype(feats.dtype)                    # (N, B)
    counts = onehot.sum(axis=0)
    avg = (onehot.T @ feats) / counts[:, None]
    mx = jnp.stack(
        [jnp.max(jnp.where(batch_index[:, None] == b, feats, -jnp.inf), axis=0)
         for b in range(num_batches)], axis=0)

    def fc(v):
        return jnp.maximum(v @ w1 + b1, 0.0) @ w2 + b2

    att = _sigmoid(fc(avg) + fc(mx))
    return feats * att[batch_index]


# ------------------------------------ main ------------------------------------
if __name__ == "__main__":
    num_batches = 2
    channel = 128            # lane-dense output (multiple of 128)
    reduction = 16
    n_points = 1900          # uneven -> exercises the row-padding path

    key = jax.random.PRNGKey(0)
    kf, kw1, kb1, kw2, kb2 = jax.random.split(key, 5)

    feats = jax.random.normal(kf, (n_points, channel), dtype=jnp.float32)
    # concatenated point clouds: first 900 points -> batch 0, rest -> batch 1
    batch_index = jnp.concatenate(
        [jnp.zeros((900,), jnp.int32),
         jnp.ones((n_points - 900,), jnp.int32)])

    cr = channel // reduction
    params = {
        # (in, out) layout; a PyTorch nn.Linear weight would be the transpose.
        "w1": jax.random.normal(kw1, (channel, cr), jnp.float32) * 0.1,
        "b1": jax.random.normal(kb1, (cr,), jnp.float32) * 0.1,
        "w2": jax.random.normal(kw2, (cr, channel), jnp.float32) * 0.1,
        "b2": jax.random.normal(kb2, (channel,), jnp.float32) * 0.1,
    }

    out = channel_attention_forward(feats, batch_index, params,
                                    num_batches=num_batches, tile_m=512)
    out = jax.block_until_ready(out)

    ref = channel_attention_reference(feats, batch_index, params, num_batches)
    np.testing.assert_allclose(np.asarray(out), np.asarray(ref),
                               rtol=1e-5, atol=1e-5)
    assert out.shape == (n_points, channel)
    print("KERNEL_OK")
</pallas_src>

<mosaic_0001>
module attributes {stable_mosaic.version = 11 : i64} {
  func.func private @main(%arg0: i32) attributes {dimension_semantics = [#tpu.dimension_semantics<core_parallel>], iteration_bounds = array<i64: 2>, tpu.core_type = #tpu.core_type<sc_scalar_subcore>, window_params = []} {
    return
  }
}

module attributes {stable_mosaic.version = 11 : i64} {
  func.func private @main(%arg0: i32) attributes {dimension_semantics = [#tpu.dimension_semantics<core_parallel>], iteration_bounds = array<i64: 2>, tpu.core_type = #tpu.core_type<sc_scalar_subcore>, window_params = []} {
    return
  }
}

module attributes {stable_mosaic.version = 11 : i64} {
  func.func @_pool_att_kernel(%arg0: i32, %arg1: memref<512x128xf32, #tpu.memory_space<vmem>>, %arg2: memref<512x1xi32, #tpu.memory_space<vmem>>, %arg3: memref<8x1xf32, #tpu.memory_space<vmem>>, %arg4: memref<128x8xf32, #tpu.memory_space<vmem>>, %arg5: memref<1x8xf32, #tpu.memory_space<vmem>>, %arg6: memref<8x128xf32, #tpu.memory_space<vmem>>, %arg7: memref<1x128xf32, #tpu.memory_space<vmem>>, %arg8: memref<8x128xf32, #tpu.memory_space<vmem>>, %arg9: memref<8x128xf32, #tpu.memory_space<vmem>>, %arg10: memref<8x128xf32, #tpu.memory_space<vmem>>) attributes {dimension_semantics = [#tpu.dimension_semantics<arbitrary>], iteration_bounds = array<i64: 4>, scalar_prefetch = 0 : i64, scratch_operands = 2 : i64, tpu.core_type = #tpu.core_type<tc>, window_params = [{transform_indices = @transform_0, window_bounds = array<i64: 512, 128>}, {transform_indices = @transform_1, window_bounds = array<i64: 512, 1>}, {pipeline_mode = #tpu.pipeline_mode<synchronous>, transform_indices = @transform_2, window_bounds = array<i64: 8, 1>}, {pipeline_mode = #tpu.pipeline_mode<synchronous>, transform_indices = @transform_3, window_bounds = array<i64: 128, 8>}, {pipeline_mode = #tpu.pipeline_mode<synchronous>, transform_indices = @transform_4, window_bounds = array<i64: 1, 8>}, {pipeline_mode = #tpu.pipeline_mode<synchronous>, transform_indices = @transform_5, window_bounds = array<i64: 8, 128>}, {pipeline_mode = #tpu.pipeline_mode<synchronous>, transform_indices = @transform_6, window_bounds = array<i64: 1, 128>}, {pipeline_mode = #tpu.pipeline_mode<synchronous>, transform_indices = @transform_7, window_bounds = array<i64: 8, 128>}]} {
    %c0_i32 = arith.constant 0 : i32
    %0 = arith.cmpi eq, %arg0, %c0_i32 : i32
    %1 = arith.extui %0 : i1 to i32
    %c0_i32_0 = arith.constant 0 : i32
    %2 = arith.cmpi ne, %1, %c0_i32_0 : i32
    scf.if %2 {
      %cst_31 = arith.constant 0.000000e+00 : f32
      %85 = vector.broadcast %cst_31 : f32 to vector<8x128xf32>
      %c0_32 = arith.constant 0 : index
      %c0_33 = arith.constant 0 : index
      %86 = vector.load %arg9[%c0_32, %c0_33] : memref<8x128xf32, #tpu.memory_space<vmem>>, vector<8x128xf32>
      tpu.vector_store %arg9[%c0_32, %c0_33], %85 {strides = array<i32>} : memref<8x128xf32, #tpu.memory_space<vmem>>, vector<8x128xf32>,
      %cst_34 = arith.constant -1.000000e+30 : f32
      %87 = vector.broadcast %cst_34 : f32 to vector<8x128xf32>
      %c0_35 = arith.constant 0 : index
      %c0_36 = arith.constant 0 : index
      %88 = vector.load %arg10[%c0_35, %c0_36] : memref<8x128xf32, #tpu.memory_space<vmem>>, vector<8x128xf32>
      tpu.vector_store %arg10[%c0_35, %c0_36], %87 {strides = array<i32>} : memref<8x128xf32, #tpu.memory_space<vmem>>, vector<8x128xf32>,
    } else {
    }
    %c0 = arith.constant 0 : index
    %c0_1 = arith.constant 0 : index
    %3 = vector.load %arg1[%c0, %c0_1] : memref<512x128xf32, #tpu.memory_space<vmem>>, vector<512x128xf32>
    %c0_2 = arith.constant 0 : index
    %c0_3 = arith.constant 0 : index
    %4 = vector.load %arg2[%c0_2, %c0_3] : memref<512x1xi32, #tpu.memory_space<vmem>>, vector<512x1xi32>
    %5 = tpu.iota {dimensions = array<i32: 1>} : vector<512x8xi32>
    %6 = vector.broadcast %4 : vector<512x1xi32> to vector<512x8xi32>
    %7 = arith.cmpi eq, %6, %5 : vector<512x8xi32>
    %8 = arith.extui %7 : vector<512x8xi1> to vector<512x8xi32>
    %9 = arith.sitofp %8 : vector<512x8xi32> to vector<512x8xf32>
    %c0_4 = arith.constant 0 : index
    %c0_5 = arith.constant 0 : index
    %10 = vector.load %arg9[%c0_4, %c0_5] : memref<8x128xf32, #tpu.memory_space<vmem>>, vector<8x128xf32>
    %cst = arith.constant dense<0.000000e+00> : vector<8x128xf32>
    %11 = tpu.matmul %9, %3, %cst {dimension_numbers = #tpu.dot_dimension_numbers<[0], [0], [1], [1], [0, 1, 1, 1], [], []>} : vector<512x8xf32>, vector<512x128xf32>, vector<8x128xf32> -> vector<8x128xf32>
    %12 = arith.addf %10, %11 : vector<8x128xf32>
    %c0_6 = arith.constant 0 : index
    %c0_7 = arith.constant 0 : index
    %13 = vector.load %arg9[%c0_6, %c0_7] : memref<8x128xf32, #tpu.memory_space<vmem>>, vector<8x128xf32>
    tpu.vector_store %arg9[%c0_6, %c0_7], %12 {strides = array<i32>} : memref<8x128xf32, #tpu.memory_space<vmem>>, vector<8x128xf32>,
    %c0_i32_8 = arith.constant 0 : i32
    %14 = vector.broadcast %c0_i32_8 : i32 to vector<512x1xi32>
    %15 = arith.cmpi eq, %4, %14 : vector<512x1xi32>
    %cst_9 = arith.constant -1.000000e+30 : f32
    %16 = vector.shape_cast %15 : vector<512x1xi1> to vector<512x1xi1>
    %17 = vector.broadcast %16 : vector<512x1xi1> to vector<512x128xi1>
    %18 = vector.broadcast %cst_9 : f32 to vector<512x128xf32>
    %19 = arith.select %17, %3, %18 : vector<512x128xi1>, vector<512x128xf32>
    %cst_10 = arith.constant dense<0xFF800000> : vector<128xf32>
    %20 = vector.multi_reduction <maximumf>, %19, %cst_10 [0] : vector<512x128xf32> to vector<128xf32>
    %21 = vector.shape_cast %20 : vector<128xf32> to vector<1x128xf32>
    %c1_i32 = arith.constant 1 : i32
    %22 = vector.broadcast %c1_i32 : i32 to vector<512x1xi32>
    %23 = arith.cmpi eq, %4, %22 : vector<512x1xi32>
    %cst_11 = arith.constant -1.000000e+30 : f32
    %24 = vector.shape_cast %23 : vector<512x1xi1> to vector<512x1xi1>
    %25 = vector.broadcast %24 : vector<512x1xi1> to vector<512x128xi1>
    %26 = vector.broadcast %cst_11 : f32 to vector<512x128xf32>
    %27 = arith.select %25, %3, %26 : vector<512x128xi1>, vector<512x128xf32>
    %cst_12 = arith.constant dense<0xFF800000> : vector<128xf32>
    %28 = vector.multi_reduction <maximumf>, %27, %cst_12 [0] : vector<512x128xf32> to vector<128xf32>
    %29 = vector.shape_cast %28 : vector<128xf32> to vector<1x128xf32>
    %c2_i32 = arith.constant 2 : i32
    %30 = vector.broadcast %c2_i32 : i32 to vector<512x1xi32>
    %31 = arith.cmpi eq, %4, %30 : vector<512x1xi32>
    %cst_13 = arith.constant -1.000000e+30 : f32
    %32 = vector.shape_cast %31 : vector<512x1xi1> to vector<512x1xi1>
    %33 = vector.broadcast %32 : vector<512x1xi1> to vector<512x128xi1>
    %34 = vector.broadcast %cst_13 : f32 to vector<512x128xf32>
    %35 = arith.select %33, %3, %34 : vector<512x128xi1>, vector<512x128xf32>
    %cst_14 = arith.constant dense<0xFF800000> : vector<128xf32>
    %36 = vector.multi_reduction <maximumf>, %35, %cst_14 [0] : vector<512x128xf32> to vector<128xf32>
    %37 = vector.shape_cast %36 : vector<128xf32> to vector<1x128xf32>
    %c3_i32 = arith.constant 3 : i32
    %38 = vector.broadcast %c3_i32 : i32 to vector<512x1xi32>
    %39 = arith.cmpi eq, %4, %38 : vector<512x1xi32>
    %cst_15 = arith.constant -1.000000e+30 : f32
    %40 = vector.shape_cast %39 : vector<512x1xi1> to vector<512x1xi1>
    %41 = vector.broadcast %40 : vector<512x1xi1> to vector<512x128xi1>
    %42 = vector.broadcast %cst_15 : f32 to vector<512x128xf32>
    %43 = arith.select %41, %3, %42 : vector<512x128xi1>, vector<512x128xf32>
    %cst_16 = arith.constant dense<0xFF800000> : vector<128xf32>
    %44 = vector.multi_reduction <maximumf>, %43, %cst_16 [0] : vector<512x128xf32> to vector<128xf32>
    %45 = vector.shape_cast %44 : vector<128xf32> to vector<1x128xf32>
    %c4_i32 = arith.constant 4 : i32
    %46 = vector.broadcast %c4_i32 : i32 to vector<512x1xi32>
    %47 = arith.cmpi eq, %4, %46 : vector<512x1xi32>
    %cst_17 = arith.constant -1.000000e+30 : f32
    %48 = vector.shape_cast %47 : vector<512x1xi1> to vector<512x1xi1>
    %49 = vector.broadcast %48 : vector<512x1xi1> to vector<512x128xi1>
    %50 = vector.broadcast %cst_17 : f32 to vector<512x128xf32>
    %51 = arith.select %49, %3, %50 : vector<512x128xi1>, vector<512x128xf32>
    %cst_18 = arith.constant dense<0xFF800000> : vector<128xf32>
    %52 = vector.multi_reduction <maximumf>, %51, %cst_18 [0] : vector<512x128xf32> to vector<128xf32>
    %53 = vector.shape_cast %52 : vector<128xf32> to vector<1x128xf32>
    %c5_i32 = arith.constant 5 : i32
    %54 = vector.broadcast %c5_i32 : i32 to vector<512x1xi32>
    %55 = arith.cmpi eq, %4, %54 : vector<512x1xi32>
    %cst_19 = arith.constant -1.000000e+30 : f32
    %56 = vector.shape_cast %55 : vector<512x1xi1> to vector<512x1xi1>
    %57 = vector.broadcast %56 : vector<512x1xi1> to vector<512x128xi1>
    %58 = vector.broadcast %cst_19 : f32 to vector<512x128xf32>
    %59 = arith.select %57, %3, %58 : vector<512x128xi1>, vector<512x128xf32>
    %cst_20 = arith.constant dense<0xFF800000> : vector<128xf32>
    %60 = vector.multi_reduction <maximumf>, %59, %cst_20 [0] : vector<512x128xf32> to vector<128xf32>
    %61 = vector.shape_cast %60 : vector<128xf32> to vector<1x128xf32>
    %c6_i32 = arith.constant 6 : i32
    %62 = vector.broadcast %c6_i32 : i32 to vector<512x1xi32>
    %63 = arith.cmpi eq, %4, %62 : vector<512x1xi32>
    %cst_21 = arith.constant -1.000000e+30 : f32
    %64 = vector.shape_cast %63 : vector<512x1xi1> to vector<512x1xi1>
    %65 = vector.broadcast %64 : vector<512x1xi1> to vector<512x128xi1>
    %66 = vector.broadcast %cst_21 : f32 to vector<512x128xf32>
    %67 = arith.select %65, %3, %66 : vector<512x128xi1>, vector<512x128xf32>
    %cst_22 = arith.constant dense<0xFF800000> : vector<128xf32>
    %68 = vector.multi_reduction <maximumf>, %67, %cst_22 [0] : vector<512x128xf32> to vector<128xf32>
    %69 = vector.shape_cast %68 : vector<128xf32> to vector<1x128xf32>
    %c7_i32 = arith.constant 7 : i32
    %70 = vector.broadcast %c7_i32 : i32 to vector<512x1xi32>
    %71 = arith.cmpi eq, %4, %70 : vector<512x1xi32>
    %cst_23 = arith.constant -1.000000e+30 : f32
    %72 = vector.shape_cast %71 : vector<512x1xi1> to vector<512x1xi1>
    %73 = vector.broadcast %72 : vector<512x1xi1> to vector<512x128xi1>
    %74 = vector.broadcast %cst_23 : f32 to vector<512x128xf32>
    %75 = arith.select %73, %3, %74 : vector<512x128xi1>, vector<512x128xf32>
    %cst_24 = arith.constant dense<0xFF800000> : vector<128xf32>
    %76 = vector.multi_reduction <maximumf>, %75, %cst_24 [0] : vector<512x128xf32> to vector<128xf32>
    %77 = vector.shape_cast %76 : vector<128xf32> to vector<1x128xf32>
    %c0_25 = arith.constant 0 : index
    %c0_26 = arith.constant 0 : index
    %78 = vector.load %arg10[%c0_25, %c0_26] : memref<8x128xf32, #tpu.memory_space<vmem>>, vector<8x128xf32>
    %79 = tpu.concatenate %21, %29, %37, %45, %53, %61, %69, %77 in 0 : vector<1x128xf32>, vector<1x128xf32>, vector<1x128xf32>, vector<1x128xf32>, vector<1x128xf32>, vector<1x128xf32>, vector<1x128xf32>, vector<1x128xf32> -> vector<8x128xf32>
    %80 = arith.maximumf %78, %79 : vector<8x128xf32>
    %c0_27 = arith.constant 0 : index
    %c0_28 = arith.constant 0 : index
    %81 = vector.load %arg10[%c0_27, %c0_28] : memref<8x128xf32, #tpu.memory_space<vmem>>, vector<8x128xf32>
    tpu.vector_store %arg10[%c0_27, %c0_28], %80 {strides = array<i32>} : memref<8x128xf32, #tpu.memory_space<vmem>>, vector<8x128xf32>,
    %c3_i32_29 = arith.constant 3 : i32
    %82 = arith.cmpi eq, %arg0, %c3_i32_29 : i32
    %83 = arith.extui %82 : i1 to i32
    %c0_i32_30 = arith.constant 0 : i32
    %84 = arith.cmpi ne, %83, %c0_i32_30 : i32
    scf.if %84 {
      %c0_31 = arith.constant 0 : index
      %c0_32 = arith.constant 0 : index
      %85 = vector.load %arg9[%c0_31, %c0_32] : memref<8x128xf32, #tpu.memory_space<vmem>>, vector<8x128xf32>
      %c0_33 = arith.constant 0 : index
      %c0_34 = arith.constant 0 : index
      %86 = vector.load %arg3[%c0_33, %c0_34] : memref<8x1xf32, #tpu.memory_space<vmem>>, vector<8x1xf32>
      %87 = vector.broadcast %86 : vector<8x1xf32> to vector<8x128xf32>
      %88 = arith.mulf %85, %87 : vector<8x128xf32>
      %c0_35 = arith.constant 0 : index
      %c0_36 = arith.constant 0 : index
      %89 = vector.load %arg10[%c0_35, %c0_36] : memref<8x128xf32, #tpu.memory_space<vmem>>, vector<8x128xf32>
      %c0_37 = arith.constant 0 : index
      %c0_38 = arith.constant 0 : index
      %90 = vector.load %arg4[%c0_37, %c0_38] : memref<128x8xf32, #tpu.memory_space<vmem>>, vector<128x8xf32>
      %cst_39 = arith.constant dense<0.000000e+00> : vector<8x8xf32>
      %91 = tpu.matmul %88, %90, %cst_39 {dimension_numbers = #tpu.dot_dimension_numbers<[1], [0], [0], [1], [0, 0, 1, 1], [], []>} : vector<8x128xf32>, vector<128x8xf32>, vector<8x8xf32> -> vector<8x8xf32>
      %c0_40 = arith.constant 0 : index
      %c0_41 = arith.constant 0 : index
      %92 = vector.load %arg5[%c0_40, %c0_41] : memref<1x8xf32, #tpu.memory_space<vmem>>, vector<1x8xf32>
      %93 = vector.broadcast %92 : vector<1x8xf32> to vector<8x8xf32>
      %94 = arith.addf %91, %93 : vector<8x8xf32>
      %cst_42 = arith.constant 0.000000e+00 : f32
      %95 = vector.broadcast %cst_42 : f32 to vector<8x8xf32>
      %96 = arith.maximumf %94, %95 : vector<8x8xf32>
      %c0_43 = arith.constant 0 : index
      %c0_44 = arith.constant 0 : index
      %97 = vector.load %arg6[%c0_43, %c0_44] : memref<8x128xf32, #tpu.memory_space<vmem>>, vector<8x128xf32>
      %cst_45 = arith.constant dense<0.000000e+00> : vector<8x128xf32>
      %98 = tpu.matmul %96, %97, %cst_45 {dimension_numbers = #tpu.dot_dimension_numbers<[1], [0], [0], [1], [0, 0, 1, 1], [], []>} : vector<8x8xf32>, vector<8x128xf32>, vector<8x128xf32> -> vector<8x128xf32>
      %c0_46 = arith.constant 0 : index
      %c0_47 = arith.constant 0 : index
      %99 = vector.load %arg7[%c0_46, %c0_47] : memref<1x128xf32, #tpu.memory_space<vmem>>, vector<1x128xf32>
      %100 = vector.broadcast %99 : vector<1x128xf32> to vector<8x128xf32>
      %101 = arith.addf %98, %100 : vector<8x128xf32>
      %c0_48 = arith.constant 0 : index
      %c0_49 = arith.constant 0 : index
      %102 = vector.load %arg4[%c0_48, %c0_49] : memref<128x8xf32, #tpu.memory_space<vmem>>, vector<128x8xf32>
      %cst_50 = arith.constant dense<0.000000e+00> : vector<8x8xf32>
      %103 = tpu.matmul %89, %102, %cst_50 {dimension_numbers = #tpu.dot_dimension_numbers<[1], [0], [0], [1], [0, 0, 1, 1], [], []>} : vector<8x128xf32>, vector<128x8xf32>, vector<8x8xf32> -> vector<8x8xf32>
      %c0_51 = arith.constant 0 : index
      %c0_52 = arith.constant 0 : index
      %104 = vector.load %arg5[%c0_51, %c0_52] : memref<1x8xf32, #tpu.memory_space<vmem>>, vector<1x8xf32>
      %105 = vector.broadcast %104 : vector<1x8xf32> to vector<8x8xf32>
      %106 = arith.addf %103, %105 : vector<8x8xf32>
      %cst_53 = arith.constant 0.000000e+00 : f32
      %107 = vector.broadcast %cst_53 : f32 to vector<8x8xf32>
      %108 = arith.maximumf %106, %107 : vector<8x8xf32>
      %c0_54 = arith.constant 0 : index
      %c0_55 = arith.constant 0 : index
      %109 = vector.load %arg6[%c0_54, %c0_55] : memref<8x128xf32, #tpu.memory_space<vmem>>, vector<8x128xf32>
      %cst_56 = arith.constant dense<0.000000e+00> : vector<8x128xf32>
      %110 = tpu.matmul %108, %109, %cst_56 {dimension_numbers = #tpu.dot_dimension_numbers<[1], [0], [0], [1], [0, 0, 1, 1], [], []>} : vector<8x8xf32>, vector<8x128xf32>, vector<8x128xf32> -> vector<8x128xf32>
      %c0_57 = arith.constant 0 : index
      %c0_58 = arith.constant 0 : index
      %111 = vector.load %arg7[%c0_57, %c0_58] : memref<1x128xf32, #tpu.memory_space<vmem>>, vector<1x128xf32>
      %112 = vector.broadcast %111 : vector<1x128xf32> to vector<8x128xf32>
      %113 = arith.addf %110, %112 : vector<8x128xf32>
      %114 = arith.addf %101, %113 : vector<8x128xf32>
      %cst_59 = arith.constant 0.000000e+00 : f32
      %115 = vector.broadcast %cst_59 : f32 to vector<8x128xf32>
      %116 = arith.subf %115, %114 : vector<8x128xf32>
      %117 = math.exp %116 : vector<8x128xf32>
      %cst_60 = arith.constant 1.000000e+00 : f32
      %118 = vector.broadcast %cst_60 : f32 to vector<8x128xf32>
      %119 = arith.addf %118, %117 : vector<8x128xf32>
      %cst_61 = arith.constant 1.000000e+00 : f32
      %120 = vector.broadcast %cst_61 : f32 to vector<8x128xf32>
      %121 = arith.divf %120, %119 : vector<8x128xf32>
      %c0_62 = arith.constant 0 : index
      %c0_63 = arith.constant 0 : index
      %122 = vector.load %arg8[%c0_62, %c0_63] : memref<8x128xf32, #tpu.memory_space<vmem>>, vector<8x128xf32>
      tpu.vector_store %arg8[%c0_62, %c0_63], %121 {strides = array<i32>} : memref<8x128xf32, #tpu.memory_space<vmem>>, vector<8x128xf32>,
    } else {
    }
    return
  }
  func.func @transform_0(%arg0: i32) -> (i32, i32) {
    %c0_i32 = arith.constant 0 : i32
    %c0_i32_0 = arith.constant 0 : i32
    return %arg0, %c0_i32 : i32, i32
  }
  func.func @transform_1(%arg0: i32) -> (i32, i32) {
    %c0_i32 = arith.constant 0 : i32
    %c0_i32_0 = arith.constant 0 : i32
    return %arg0, %c0_i32 : i32, i32
  }
  func.func @transform_2(%arg0: i32) -> (i32, i32) {
    %c0_i32 = arith.constant 0 : i32
    %c0_i32_0 = arith.constant 0 : i32
    %c0_i32_1 = arith.constant 0 : i32
    return %c0_i32, %c0_i32_0 : i32, i32
  }
  func.func @transform_3(%arg0: i32) -> (i32, i32) {
    %c0_i32 = arith.constant 0 : i32
    %c0_i32_0 = arith.constant 0 : i32
    %c0_i32_1 = arith.constant 0 : i32
    return %c0_i32, %c0_i32_0 : i32, i32
  }
  func.func @transform_4(%arg0: i32) -> (i32, i32) {
    %c0_i32 = arith.constant 0 : i32
    %c0_i32_0 = arith.constant 0 : i32
    %c0_i32_1 = arith.constant 0 : i32
    return %c0_i32, %c0_i32_0 : i32, i32
  }
  func.func @transform_5(%arg0: i32) -> (i32, i32) {
    %c0_i32 = arith.constant 0 : i32
    %c0_i32_0 = arith.constant 0 : i32
    %c0_i32_1 = arith.constant 0 : i32
    return %c0_i32, %c0_i32_0 : i32, i32
  }
  func.func @transform_6(%arg0: i32) -> (i32, i32) {
    %c0_i32 = arith.constant 0 : i32
    %c0_i32_0 = arith.constant 0 : i32
    %c0_i32_1 = arith.constant 0 : i32
    return %c0_i32, %c0_i32_0 : i32, i32
  }
  func.func @transform_7(%arg0: i32) -> (i32, i32) {
    %c0_i32 = arith.constant 0 : i32
    %c0_i32_0 = arith.constant 0 : i32
    %c0_i32_1 = arith.constant 0 : i32
    return %c0_i32, %c0_i32_0 : i32, i32
  }
}

module attributes {stable_mosaic.version = 11 : i64} {
  func.func @_apply_kernel(%arg0: i32, %arg1: memref<8x128xf32, #tpu.memory_space<vmem>>, %arg2: memref<512x128xf32, #tpu.memory_space<vmem>>, %arg3: memref<512x1xi32, #tpu.memory_space<vmem>>, %arg4: memref<512x128xf32, #tpu.memory_space<vmem>>) attributes {dimension_semantics = [#tpu.dimension_semantics<parallel>], iteration_bounds = array<i64: 4>, scalar_prefetch = 0 : i64, scratch_operands = 0 : i64, tpu.core_type = #tpu.core_type<tc>, window_params = [{pipeline_mode = #tpu.pipeline_mode<synchronous>, transform_indices = @transform_0, window_bounds = array<i64: 8, 128>}, {transform_indices = @transform_1, window_bounds = array<i64: 512, 128>}, {transform_indices = @transform_2, window_bounds = array<i64: 512, 1>}, {transform_indices = @transform_3, window_bounds = array<i64: 512, 128>}]} {
    %c0 = arith.constant 0 : index
    %c0_0 = arith.constant 0 : index
    %0 = vector.load %arg3[%c0, %c0_0] : memref<512x1xi32, #tpu.memory_space<vmem>>, vector<512x1xi32>
    %1 = tpu.iota {dimensions = array<i32: 1>} : vector<512x8xi32>
    %2 = vector.broadcast %0 : vector<512x1xi32> to vector<512x8xi32>
    %3 = arith.cmpi eq, %2, %1 : vector<512x8xi32>
    %4 = arith.extui %3 : vector<512x8xi1> to vector<512x8xi32>
    %5 = arith.sitofp %4 : vector<512x8xi32> to vector<512x8xf32>
    %c0_1 = arith.constant 0 : index
    %c0_2 = arith.constant 0 : index
    %6 = vector.load %arg1[%c0_1, %c0_2] : memref<8x128xf32, #tpu.memory_space<vmem>>, vector<8x128xf32>
    %cst = arith.constant dense<0.000000e+00> : vector<512x128xf32>
    %7 = tpu.matmul %5, %6, %cst {dimension_numbers = #tpu.dot_dimension_numbers<[1], [0], [0], [1], [0, 0, 1, 1], [], []>} : vector<512x8xf32>, vector<8x128xf32>, vector<512x128xf32> -> vector<512x128xf32>
    %c0_3 = arith.constant 0 : index
    %c0_4 = arith.constant 0 : index
    %8 = vector.load %arg2[%c0_3, %c0_4] : memref<512x128xf32, #tpu.memory_space<vmem>>, vector<512x128xf32>
    %9 = arith.mulf %8, %7 : vector<512x128xf32>
    %c0_5 = arith.constant 0 : index
    %c0_6 = arith.constant 0 : index
    %10 = vector.load %arg4[%c0_5, %c0_6] : memref<512x128xf32, #tpu.memory_space<vmem>>, vector<512x128xf32>
    tpu.vector_store %arg4[%c0_5, %c0_6], %9 {strides = array<i32>} : memref<512x128xf32, #tpu.memory_space<vmem>>, vector<512x128xf32>,
    return
  }
  func.func @transform_0(%arg0: i32) -> (i32, i32) {
    %c0_i32 = arith.constant 0 : i32
    %c0_i32_0 = arith.constant 0 : i32
    %c0_i32_1 = arith.constant 0 : i32
    return %c0_i32, %c0_i32_0 : i32, i32
  }
  func.func @transform_1(%arg0: i32) -> (i32, i32) {
    %c0_i32 = arith.constant 0 : i32
    %c0_i32_0 = arith.constant 0 : i32
    return %arg0, %c0_i32 : i32, i32
  }
  func.func @transform_2(%arg0: i32) -> (i32, i32) {
    %c0_i32 = arith.constant 0 : i32
    %c0_i32_0 = arith.constant 0 : i32
    return %arg0, %c0_i32 : i32, i32
  }
  func.func @transform_3(%arg0: i32) -> (i32, i32) {
    %c0_i32 = arith.constant 0 : i32
    %c0_i32_0 = arith.constant 0 : i32
    return %arg0, %c0_i32 : i32, i32
  }
}

</mosaic_0001>

<llo_original>
// kernel: channel_attention_forward.3
$region0: #{channel_attention_forward.3}
  #allocation0 [shape = 'u32[]', space=smem, size = 0x4, offset = 0x4, fixed_abs, tag = 'smem constant byte address 0x4 - core index']
  #allocation1 [shape = 'u32[144,128]{1,0:T(1,128)}', space=vmem, size = 0x12000, scoped, tag = 'internal scratch']
  %s0 = inlined_call_operand.vmem [shape: f32[8,128], index: 0, kind: input, shape index: {}]
  %s1 = inlined_call_operand.vmem [shape: f32[2048,128], index: 1, kind: input, shape index: {}]
  %s2 = inlined_call_operand.vmem [shape: s32[2048,1], index: 2, kind: input, shape index: {}]
  %s3 = inlined_call_operand.vmem [shape: f32[2048,128], index: 3, kind: output, shape index: {}]
  %s4 = sld [smem:[#allocation0]]
  $region45: #{channel_attention_forward.3} parent=0
    _
  %s6 = ssub.s32 1, %s4
  %s7 = scalar_select 0, %s6, %s4
  loop: start=0, step=1, limit=6
  $region2: #{channel_attention_forward.3} parent=0 // loop_pre_header
    _
  $region3: #{channel_attention_forward.3} parent=0 // loop_header
    %s9 = sphi 0, %s13
    %p10 = scmp.ge.s32.totalorder %s9, 6
    %s17 = sphi 0, %s17
    %s19 = sphi 0, %s17
    %s20 = sphi 0, %s19
    %s34 = sphi 0, %s20
    %s40 = sphi 0, %s42
    %s43 = sphi 0, %s40
    %s44 = sphi 0, %s43
    %s60 = sphi 0, %s44
    %s66 = sphi 0, %s68
    %s69 = sphi 0, %s66
    %s70 = sphi 0, %s69
    %s86 = sphi 0, %s70
    %s92 = sphi 0, %s94
    %s95 = sphi 0, %s92
    %s96 = sphi 0, %s95
    %s112 = sphi 0, %s96
  $region4: #{channel_attention_forward.3} parent=0 // loop_header_branch
    %12 = sbr.rel (%p10) target = $region8
  $region5: #{channel_attention_forward.3} parent=0 // loop_body
    %s14 = ssub.s32 %s9, 1
    %s15 = ssub.s32 %s9, 2
    %s16 = sadd.s32 %s9, 1
    %s18 = sadd.s32 %s17, 1
    %p21 = scmp.eq.s32.totalorder %s9, 3
    %p22 = scmp.ne.s32.totalorder %s17, %s19
    %p23 = scmp.eq.s32.totalorder %s9, 0
    %p24 = por %p22, %p23
    %p25 = scmp.ne.s32.totalorder %s17, %s19
    %p26 = scmp.eq.s32.totalorder %s14, 3
    %p27 = por %p25, %p26
    %p28 = scmp.ne.s32.totalorder %s19, %s20
    %p29 = scmp.eq.s32.totalorder %s14, 0
    %p30 = por %p28, %p29
    %p31 = scmp.ne.s32.totalorder %s19, %s20
    %p32 = scmp.eq.s32.totalorder %s15, 3
    %p33 = por %p31, %p32
    %p35 = scmp.ne.s32.totalorder %s20, %s34
    %p36 = scmp.eq.s32.totalorder %s15, 0
    %p37 = por %p35, %p36
    %s38 = ssub.s32 %s9, %s16
    %p39 = scmp.eq.s32.totalorder %s38, 0
    %s41 = sadd.s32 %s40, 1
    %s42 = scalar_select %p39, %s40, %s41
    %p45 = pneg %p39
    %p46 = scmp.eq.s32.totalorder %s9, 3
    %p47 = por %p45, %p46
    %p48 = scmp.ne.s32.totalorder %s40, %s43
    %p49 = scmp.eq.s32.totalorder %s9, 0
    %p50 = por %p48, %p49
    %p51 = scmp.ne.s32.totalorder %s40, %s43
    %p52 = scmp.eq.s32.totalorder %s14, 3
    %p53 = por %p51, %p52
    %p54 = scmp.ne.s32.totalorder %s43, %s44
    %p55 = scmp.eq.s32.totalorder %s14, 0
    %p56 = por %p54, %p55
    %p57 = scmp.ne.s32.totalorder %s43, %s44
    %p58 = scmp.eq.s32.totalorder %s15, 3
    %p59 = por %p57, %p58
    %p61 = scmp.ne.s32.totalorder %s44, %s60
    %p62 = scmp.eq.s32.totalorder %s15, 0
    %p63 = por %p61, %p62
    %s64 = ssub.s32 %s9, %s16
    %p65 = scmp.eq.s32.totalorder %s64, 0
    %s67 = sadd.s32 %s66, 1
    %s68 = scalar_select %p65, %s66, %s67
    %p71 = pneg %p65
    %p72 = scmp.eq.s32.totalorder %s9, 3
    %p73 = por %p71, %p72
    %p74 = scmp.ne.s32.totalorder %s66, %s69
    %p75 = scmp.eq.s32.totalorder %s9, 0
    %p76 = por %p74, %p75
    %p77 = scmp.ne.s32.totalorder %s66, %s69
    %p78 = scmp.eq.s32.totalorder %s14, 3
    %p79 = por %p77, %p78
    %p80 = scmp.ne.s32.totalorder %s69, %s70
    %p81 = scmp.eq.s32.totalorder %s14, 0
    %p82 = por %p80, %p81
    %p83 = scmp.ne.s32.totalorder %s69, %s70
    %p84 = scmp.eq.s32.totalorder %s15, 3
    %p85 = por %p83, %p84
    %p87 = scmp.ne.s32.totalorder %s70, %s86
    %p88 = scmp.eq.s32.totalorder %s15, 0
    %p89 = por %p87, %p88
    %s90 = ssub.s32 %s9, %s16
    %p91 = scmp.eq.s32.totalorder %s90, 0
    %s93 = sadd.s32 %s92, 1
    %s94 = scalar_select %p91, %s92, %s93
    %p97 = pneg %p91
    %p98 = scmp.eq.s32.totalorder %s9, 3
    %p99 = por %p97, %p98
    %p100 = scmp.ne.s32.totalorder %s92, %s95
    %p101 = scmp.eq.s32.totalorder %s9, 0
    %p102 = por %p100, %p101
    %p103 = scmp.ne.s32.totalorder %s92, %s95
    %p104 = scmp.eq.s32.totalorder %s14, 3
    %p105 = por %p103, %p104
    %p106 = scmp.ne.s32.totalorder %s95, %s96
    %p107 = scmp.eq.s32.totalorder %s14, 0
    %p108 = por %p106, %p107
    %p109 = scmp.ne.s32.totalorder %s95, %s96
    %p110 = scmp.eq.s32.totalorder %s15, 3
    %p111 = por %p109, %p110
    %p113 = scmp.ne.s32.totalorder %s96, %s112
    %p114 = scmp.eq.s32.totalorder %s15, 0
    %p115 = por %p113, %p114
    %p116 = scmp.le.s32.totalorder 1, %s9
    %p117 = scmp.lt.s32.totalorder %s9, 5
    %p118 = pnand %p116, %p117
    %p119 = pneg %p118
    // Predicated region
    $region9: #{channel_attention_forward.3} parent=5 // pred_check
      _
    $region10: #{channel_attention_forward.3} parent=5 // pred_check_branch
      %121 = sbr.rel (%p118) target = $region12
    $region11: #{channel_attention_forward.3} parent=5 // pred_region
      %s122 = ssub.s32 %s9, 1
      // Predicated region
      $region13: #{channel_attention_forward.3} parent=11 // pred_check
        %p123 = pneg %p30
      $region14: #{channel_attention_forward.3} parent=11 // pred_check_branch
        %125 = sbr.rel (%p123) target = $region16
      $region15: #{channel_attention_forward.3} parent=11 // pred_region
        _
      $region16: #{channel_attention_forward.3} parent=11 // pred_fallthru
        _
    $region12: #{channel_attention_forward.3} parent=5 // pred_fallthru
      _
    %p126 = scmp.lt.s32.totalorder %s9, 4
    // Predicated region
    $region17: #{channel_attention_forward.3} parent=5 // pred_check
      %p127 = pneg %p126
    $region18: #{channel_attention_forward.3} parent=5 // pred_check_branch
      %129 = sbr.rel (%p127) target = $region20
    $region19: #{channel_attention_forward.3} parent=5 // pred_region
      // Predicated region
      $region21: #{channel_attention_forward.3} parent=19 // pred_check
        %p130 = pneg %p50
      $region22: #{channel_attention_forward.3} parent=19 // pred_check_branch
        %132 = sbr.rel (%p130) target = $region24
      $region23: #{channel_attention_forward.3} parent=19 // pred_region
        %s133 = smul.u32 64, %s9
        %p134 = scmp.lt.s32.totalorder %s133, 255
        %s135 = scalar_select %p134, %s133, 255
        %s136 = smul.addr %s135, 8
        %s137 = scalar_lea.vmem %s1, %s136
        %s138 = smul.u32 64, %s9
      $region24: #{channel_attention_forward.3} parent=19 // pred_fallthru
        _
      // Predicated region
      $region25: #{channel_attention_forward.3} parent=19 // pred_check
        %p139 = pneg %p76
      $region26: #{channel_attention_forward.3} parent=19 // pred_check_branch
        %141 = sbr.rel (%p139) target = $region28
      $region27: #{channel_attention_forward.3} parent=19 // pred_region
        %s142 = smul.u32 64, %s9
        %p143 = scmp.lt.s32.totalorder %s142, 255
        %s144 = scalar_select %p143, %s142, 255
        %s145 = smul.addr %s144, 8
        %s146 = scalar_lea.vmem %s2, %s145
        %s147 = smul.u32 64, %s9
      $region28: #{channel_attention_forward.3} parent=19 // pred_fallthru
        _
    $region20: #{channel_attention_forward.3} parent=5 // pred_fallthru
      _
    %p148 = scmp.le.s32.totalorder 1, %s9
    %p149 = scmp.lt.s32.totalorder %s9, 5
    %p150 = pnand %p148, %p149
    %p151 = pneg %p150
    // Predicated region
    $region29: #{channel_attention_forward.3} parent=5 // pred_check
      _
    $region30: #{channel_attention_forward.3} parent=5 // pred_check_branch
      %153 = sbr.rel (%p150) target = $region32
    $region31: #{channel_attention_forward.3} parent=5 // pred_region
      %s154 = ssub.s32 %s9, 1
      %p155 = pneg %p30
      %p156 = pneg %p27
      %s157 = smul.u32 64, %s14
      %p158 = scmp.lt.s32.totalorder %s157, 255
      %s159 = scalar_select %p158, %s157, 255
      %s160 = smul.addr %s159, 8
      %s161 = scalar_lea.vmem %s1, %s160
      %p162 = pneg %p56
      %p163 = pneg %p53
      %s164 = smul.u32 64, %s14
      %p165 = scmp.lt.s32.totalorder %s164, 255
      %s166 = scalar_select %p165, %s164, 255
      %s167 = smul.addr %s166, 8
      %s168 = scalar_lea.vmem %s2, %s167
      %p169 = pneg %p82
      %p170 = pneg %p79
      %p171 = pneg %p108
      %p172 = pneg %p105
      %s173 = smul.u32 64, %s14
      %p174 = scmp.lt.s32.totalorder %s173, 255
      %s175 = scalar_select %p174, %s173, 255
      %s176 = smul.addr %s175, 8
      %s177 = scalar_lea.vmem %s3, %s176
      %s178 = smul.u32 64, %s14
      %p179 = scmp.lt.s32.totalorder %s178, 255
      %s180 = scalar_select %p179, %s178, 255
      %s181 = smul.addr %s180, 8
      %s182 = scalar_lea.vmem %s1, %s181
      %s183 = smul.u32 64, %s14
      %s184 = smul.u32 64, %s14
      %p185 = scmp.lt.s32.totalorder %s184, 255
      %s186 = scalar_select %p185, %s184, 255
      %s187 = smul.addr %s186, 8
      %s188 = scalar_lea.vmem %s2, %s187
      %s189 = smul.u32 64, %s14
      %s190 = smul.u32 64, %s14
      %p191 = scmp.lt.s32.totalorder %s190, 255
      %s192 = scalar_select %p191, %s190, 255
      %s193 = smul.addr %s192, 8
      %s194 = scalar_lea.vmem %s3, %s193
      %s195 = smul.u32 64, %s14
      %v196 = vld [vmem:[%s188] sm:$0xff]
      %v197 = vld [vmem:[%s188 + $0x8] sm:$0xff]
      %v198 = vld [vmem:[%s188 + $0x10] sm:$0xff]
      %v199 = vld [vmem:[%s188 + $0x18] sm:$0xff]
      %v200 = vld [vmem:[%s188 + $0x20] sm:$0xff]
      %v201 = vld [vmem:[%s188 + $0x28] sm:$0xff]
      %v202 = vld [vmem:[%s188 + $0x30] sm:$0xff]
      %v203 = vld [vmem:[%s188 + $0x38] sm:$0xff]
      %v204 = vld [vmem:[%s188 + $0x40] sm:$0xff]
      %v205 = vld [vmem:[%s188 + $0x48] sm:$0xff]
      %v206 = vld [vmem:[%s188 + $0x50] sm:$0xff]
      %v207 = vld [vmem:[%s188 + $0x58] sm:$0xff]
      %v208 = vld [vmem:[%s188 + $0x60] sm:$0xff]
      %v209 = vld [vmem:[%s188 + $0x68] sm:$0xff]
      %v210 = vld [vmem:[%s188 + $0x70] sm:$0xff]
      %v211 = vld [vmem:[%s188 + $0x78] sm:$0xff]
      %v212 = vld [vmem:[%s188 + $0x80] sm:$0xff]
      %v213 = vld [vmem:[%s188 + $0x88] sm:$0xff]
      %v214 = vld [vmem:[%s188 + $0x90] sm:$0xff]
      %v215 = vld [vmem:[%s188 + $0x98] sm:$0xff]
      %v216 = vld [vmem:[%s188 + $0xa0] sm:$0xff]
      %v217 = vld [vmem:[%s188 + $0xa8] sm:$0xff]
      %v218 = vld [vmem:[%s188 + $0xb0] sm:$0xff]
      %v219 = vld [vmem:[%s188 + $0xb8] sm:$0xff]
      %v220 = vld [vmem:[%s188 + $0xc0] sm:$0xff]
      %v221 = vld [vmem:[%s188 + $0xc8] sm:$0xff]
      %v222 = vld [vmem:[%s188 + $0xd0] sm:$0xff]
      %v223 = vld [vmem:[%s188 + $0xd8] sm:$0xff]
      %v224 = vld [vmem:[%s188 + $0xe0] sm:$0xff]
      %v225 = vld [vmem:[%s188 + $0xe8] sm:$0xff]
      %v226 = vld [vmem:[%s188 + $0xf0] sm:$0xff]
      %v227 = vld [vmem:[%s188 + $0xf8] sm:$0xff]
      %v228 = vld [vmem:[%s188 + $0x100] sm:$0xff]
      %v229 = vld [vmem:[%s188 + $0x108] sm:$0xff]
      %v230 = vld [vmem:[%s188 + $0x110] sm:$0xff]
      %v231 = vld [vmem:[%s188 + $0x118] sm:$0xff]
      %v232 = vld [vmem:[%s188 + $0x120] sm:$0xff]
      %v233 = vld [vmem:[%s188 + $0x128] sm:$0xff]
      %v234 = vld [vmem:[%s188 + $0x130] sm:$0xff]
      %v235 = vld [vmem:[%s188 + $0x138] sm:$0xff]
      %v236 = vld [vmem:[%s188 + $0x140] sm:$0xff]
      %v237 = vld [vmem:[%s188 + $0x148] sm:$0xff]
      %v238 = vld [vmem:[%s188 + $0x150] sm:$0xff]
      %v239 = vld [vmem:[%s188 + $0x158] sm:$0xff]
      %v240 = vld [vmem:[%s188 + $0x160] sm:$0xff]
      %v241 = vld [vmem:[%s188 + $0x168] sm:$0xff]
      %v242 = vld [vmem:[%s188 + $0x170] sm:$0xff]
      %v243 = vld [vmem:[%s188 + $0x178] sm:$0xff]
      %v244 = vld [vmem:[%s188 + $0x180] sm:$0xff]
      %v245 = vld [vmem:[%s188 + $0x188] sm:$0xff]
      %v246 = vld [vmem:[%s188 + $0x190] sm:$0xff]
      %v247 = vld [vmem:[%s188 + $0x198] sm:$0xff]
      %v248 = vld [vmem:[%s188 + $0x1a0] sm:$0xff]
      %v249 = vld [vmem:[%s188 + $0x1a8] sm:$0xff]
      %v250 = vld [vmem:[%s188 + $0x1b0] sm:$0xff]
      %v251 = vld [vmem:[%s188 + $0x1b8] sm:$0xff]
      %v252 = vld [vmem:[%s188 + $0x1c0] sm:$0xff]
      %v253 = vld [vmem:[%s188 + $0x1c8] sm:$0xff]
      %v254 = vld [vmem:[%s188 + $0x1d0] sm:$0xff]
      %v255 = vld [vmem:[%s188 + $0x1d8] sm:$0xff]
      %v256 = vld [vmem:[%s188 + $0x1e0] sm:$0xff]
      %v257 = vld [vmem:[%s188 + $0x1e8] sm:$0xff]
      %v258 = vld [vmem:[%s188 + $0x1f0] sm:$0xff]
      %v259 = vld [vmem:[%s188 + $0x1f8] sm:$0xff]
      %v260 = vlaneseq
      %v261 = vand.u32 %v260, 127
      %262 = vset.pattern.permute.xlu0 0
      %263 = vperm.xlu0 %262, %v196
      %v264 = vpop.permute.xlu0 %263
      %265 = vset.pattern.permute.xlu0 0
      %266 = vperm.xlu0 %265, %v197
      %v267 = vpop.permute.xlu0 %266
      %268 = vset.pattern.permute.xlu0 0
      %269 = vperm.xlu0 %268, %v198
      %v270 = vpop.permute.xlu0 %269
      %271 = vset.pattern.permute.xlu0 0
      %272 = vperm.xlu0 %271, %v199
      %v273 = vpop.permute.xlu0 %272
      %274 = vset.pattern.permute.xlu0 0
      %275 = vperm.xlu0 %274, %v200
      %v276 = vpop.permute.xlu0 %275
      %277 = vset.pattern.permute.xlu0 0
      %278 = vperm.xlu0 %277, %v201
      %v279 = vpop.permute.xlu0 %278
      %280 = vset.pattern.permute.xlu0 0
      %281 = vperm.xlu0 %280, %v202
      %v282 = vpop.permute.xlu0 %281
      %283 = vset.pattern.permute.xlu0 0
      %284 = vperm.xlu0 %283, %v203
      %v285 = vpop.permute.xlu0 %284
      %286 = vset.pattern.permute.xlu0 0
      %287 = vperm.xlu0 %286, %v204
      %v288 = vpop.permute.xlu0 %287
      %289 = vset.pattern.permute.xlu0 0
      %290 = vperm.xlu0 %289, %v205
      %v291 = vpop.permute.xlu0 %290
      %292 = vset.pattern.permute.xlu0 0
      %293 = vperm.xlu0 %292, %v206
      %v294 = vpop.permute.xlu0 %293
      %295 = vset.pattern.permute.xlu0 0
      %296 = vperm.xlu0 %295, %v207
      %v297 = vpop.permute.xlu0 %296
      %298 = vset.pattern.permute.xlu0 0
      %299 = vperm.xlu0 %298, %v208
      %v300 = vpop.permute.xlu0 %299
      %301 = vset.pattern.permute.xlu0 0
      %302 = vperm.xlu0 %301, %v209
      %v303 = vpop.permute.xlu0 %302
      %304 = vset.pattern.permute.xlu0 0
      %305 = vperm.xlu0 %304, %v210
      %v306 = vpop.permute.xlu0 %305
      %307 = vset.pattern.permute.xlu0 0
      %308 = vperm.xlu0 %307, %v211
      %v309 = vpop.permute.xlu0 %308
      %310 = vset.pattern.permute.xlu0 0
      %311 = vperm.xlu0 %310, %v212
      %v312 = vpop.permute.xlu0 %311
      %313 = vset.pattern.permute.xlu0 0
      %314 = vperm.xlu0 %313, %v213
      %v315 = vpop.permute.xlu0 %314
      %316 = vset.pattern.permute.xlu0 0
      %317 = vperm.xlu0 %316, %v214
      %v318 = vpop.permute.xlu0 %317
      %319 = vset.pattern.permute.xlu0 0
      %320 = vperm.xlu0 %319, %v215
      %v321 = vpop.permute.xlu0 %320
      %322 = vset.pattern.permute.xlu0 0
      %323 = vperm.xlu0 %322, %v216
      %v324 = vpop.permute.xlu0 %323
      %325 = vset.pattern.permute.xlu0 0
      %326 = vperm.xlu0 %325, %v217
      %v327 = vpop.permute.xlu0 %326
      %328 = vset.pattern.permute.xlu0 0
      %329 = vperm.xlu0 %328, %v218
      %v330 = vpop.permute.xlu0 %329
      %331 = vset.pattern.permute.xlu0 0
      %332 = vperm.xlu0 %331, %v219
      %v333 = vpop.permute.xlu0 %332
      %334 = vset.pattern.permute.xlu0 0
      %335 = vperm.xlu0 %334, %v220
      %v336 = vpop.permute.xlu0 %335
      %337 = vset.pattern.permute.xlu0 0
      %338 = vperm.xlu0 %337, %v221
      %v339 = vpop.permute.xlu0 %338
      %340 = vset.pattern.permute.xlu0 0
      %341 = vperm.xlu0 %340, %v222
      %v342 = vpop.permute.xlu0 %341
      %343 = vset.pattern.permute.xlu0 0
      %344 = vperm.xlu0 %343, %v223
      %v345 = vpop.permute.xlu0 %344
      %346 = vset.pattern.permute.xlu0 0
      %347 = vperm.xlu0 %346, %v224
      %v348 = vpop.permute.xlu0 %347
      %349 = vset.pattern.permute.xlu0 0
      %350 = vperm.xlu0 %349, %v225
      %v351 = vpop.permute.xlu0 %350
      %352 = vset.pattern.permute.xlu0 0
      %353 = vperm.xlu0 %352, %v226
      %v354 = vpop.permute.xlu0 %353
      %355 = vset.pattern.permute.xlu0 0
      %356 = vperm.xlu0 %355, %v227
      %v357 = vpop.permute.xlu0 %356
      %358 = vset.pattern.permute.xlu0 0
      %359 = vperm.xlu0 %358, %v228
      %v360 = vpop.permute.xlu0 %359
      %361 = vset.pattern.permute.xlu0 0
      %362 = vperm.xlu0 %361, %v229
      %v363 = vpop.permute.xlu0 %362
      %364 = vset.pattern.permute.xlu0 0
      %365 = vperm.xlu0 %364, %v230
      %v366 = vpop.permute.xlu0 %365
      %367 = vset.pattern.permute.xlu0 0
      %368 = vperm.xlu0 %367, %v231
      %v369 = vpop.permute.xlu0 %368
      %370 = vset.pattern.permute.xlu0 0
      %371 = vperm.xlu0 %370, %v232
      %v372 = vpop.permute.xlu0 %371
      %373 = vset.pattern.permute.xlu0 0
      %374 = vperm.xlu0 %373, %v233
      %v375 = vpop.permute.xlu0 %374
      %376 = vset.pattern.permute.xlu0 0
      %377 = vperm.xlu0 %376, %v234
      %v378 = vpop.permute.xlu0 %377
      %379 = vset.pattern.permute.xlu0 0
      %380 = vperm.xlu0 %379, %v235
      %v381 = vpop.permute.xlu0 %380
      %382 = vset.pattern.permute.xlu0 0
      %383 = vperm.xlu0 %382, %v236
      %v384 = vpop.permute.xlu0 %383
      %385 = vset.pattern.permute.xlu0 0
      %386 = vperm.xlu0 %385, %v237
      %v387 = vpop.permute.xlu0 %386
      %388 = vset.pattern.permute.xlu0 0
      %389 = vperm.xlu0 %388, %v238
      %v390 = vpop.permute.xlu0 %389
      %391 = vset.pattern.permute.xlu0 0
      %392 = vperm.xlu0 %391, %v239
      %v393 = vpop.permute.xlu0 %392
      %394 = vset.pattern.permute.xlu0 0
      %395 = vperm.xlu0 %394, %v240
      %v396 = vpop.permute.xlu0 %395
      %397 = vset.pattern.permute.xlu0 0
      %398 = vperm.xlu0 %397, %v241
      %v399 = vpop.permute.xlu0 %398
      %400 = vset.pattern.permute.xlu0 0
      %401 = vperm.xlu0 %400, %v242
      %v402 = vpop.permute.xlu0 %401
      %403 = vset.pattern.permute.xlu0 0
      %404 = vperm.xlu0 %403, %v243
      %v405 = vpop.permute.xlu0 %404
      %406 = vset.pattern.permute.xlu0 0
      %407 = vperm.xlu0 %406, %v244
      %v408 = vpop.permute.xlu0 %407
      %409 = vset.pattern.permute.xlu0 0
      %410 = vperm.xlu0 %409, %v245
      %v411 = vpop.permute.xlu0 %410
      %412 = vset.pattern.permute.xlu0 0
      %413 = vperm.xlu0 %412, %v246
      %v414 = vpop.permute.xlu0 %413
      %415 = vset.pattern.permute.xlu0 0
      %416 = vperm.xlu0 %415, %v247
      %v417 = vpop.permute.xlu0 %416
      %418 = vset.pattern.permute.xlu0 0
      %419 = vperm.xlu0 %418, %v248
      %v420 = vpop.permute.xlu0 %419
      %421 = vset.pattern.permute.xlu0 0
      %422 = vperm.xlu0 %421, %v249
      %v423 = vpop.permute.xlu0 %422
      %424 = vset.pattern.permute.xlu0 0
      %425 = vperm.xlu0 %424, %v250
      %v426 = vpop.permute.xlu0 %425
      %427 = vset.pattern.permute.xlu0 0
      %428 = vperm.xlu0 %427, %v251
      %v429 = vpop.permute.xlu0 %428
      %430 = vset.pattern.permute.xlu0 0
      %431 = vperm.xlu0 %430, %v252
      %v432 = vpop.permute.xlu0 %431
      %433 = vset.pattern.permute.xlu0 0
      %434 = vperm.xlu0 %433, %v253
      %v435 = vpop.permute.xlu0 %434
      %436 = vset.pattern.permute.xlu0 0
      %437 = vperm.xlu0 %436, %v254
      %v438 = vpop.permute.xlu0 %437
      %439 = vset.pattern.permute.xlu0 0
      %440 = vperm.xlu0 %439, %v255
      %v441 = vpop.permute.xlu0 %440
      %442 = vset.pattern.permute.xlu0 0
      %443 = vperm.xlu0 %442, %v256
      %v444 = vpop.permute.xlu0 %443
      %445 = vset.pattern.permute.xlu0 0
      %446 = vperm.xlu0 %445, %v257
      %v447 = vpop.permute.xlu0 %446
      %448 = vset.pattern.permute.xlu0 0
      %449 = vperm.xlu0 %448, %v258
      %v450 = vpop.permute.xlu0 %449
      %451 = vset.pattern.permute.xlu0 0
      %452 = vperm.xlu0 %451, %v259
      %v453 = vpop.permute.xlu0 %452
      %vm454 = vcmp.eq.s32.totalorder %v264, %v261
      %vm455 = vcmp.eq.s32.totalorder %v267, %v261
      %vm456 = vcmp.eq.s32.totalorder %v270, %v261
      %vm457 = vcmp.eq.s32.totalorder %v273, %v261
      %vm458 = vcmp.eq.s32.totalorder %v276, %v261
      %vm459 = vcmp.eq.s32.totalorder %v279, %v261
      %vm460 = vcmp.eq.s32.totalorder %v282, %v261
      %vm461 = vcmp.eq.s32.totalorder %v285, %v261
      %vm462 = vcmp.eq.s32.totalorder %v288, %v261
      %vm463 = vcmp.eq.s32.totalorder %v291, %v261
      %vm464 = vcmp.eq.s32.totalorder %v294, %v261
      %vm465 = vcmp.eq.s32.totalorder %v297, %v261
      %vm466 = vcmp.eq.s32.totalorder %v300, %v261
      %vm467 = vcmp.eq.s32.totalorder %v303, %v261
      %vm468 = vcmp.eq.s32.totalorder %v306, %v261
      %vm469 = vcmp.eq.s32.totalorder %v309, %v261
      %vm470 = vcmp.eq.s32.totalorder %v312, %v261
      %vm471 = vcmp.eq.s32.totalorder %v315, %v261
      %vm472 = vcmp.eq.s32.totalorder %v318, %v261
      %vm473 = vcmp.eq.s32.totalorder %v321, %v261
      %vm474 = vcmp.eq.s32.totalorder %v324, %v261
      %vm475 = vcmp.eq.s32.totalorder %v327, %v261
      %vm476 = vcmp.eq.s32.totalorder %v330, %v261
      %vm477 = vcmp.eq.s32.totalorder %v333, %v261
      %vm478 = vcmp.eq.s32.totalorder %v336, %v261
      %vm479 = vcmp.eq.s32.totalorder %v339, %v261
      %vm480 = vcmp.eq.s32.totalorder %v342, %v261
      %vm481 = vcmp.eq.s32.totalorder %v345, %v261
      %vm482 = vcmp.eq.s32.totalorder %v348, %v261
      %vm483 = vcmp.eq.s32.totalorder %v351, %v261
      %vm484 = vcmp.eq.s32.totalorder %v354, %v261
      %vm485 = vcmp.eq.s32.totalorder %v357, %v261
      %vm486 = vcmp.eq.s32.totalorder %v360, %v261
      %vm487 = vcmp.eq.s32.totalorder %v363, %v261
      %vm488 = vcmp.eq.s32.totalorder %v366, %v261
      %vm489 = vcmp.eq.s32.totalorder %v369, %v261
      %vm490 = vcmp.eq.s32.totalorder %v372, %v261
      %vm491 = vcmp.eq.s32.totalorder %v375, %v261
      %vm492 = vcmp.eq.s32.totalorder %v378, %v261
      %vm493 = vcmp.eq.s32.totalorder %v381, %v261
      %vm494 = vcmp.eq.s32.totalorder %v384, %v261
      %vm495 = vcmp.eq.s32.totalorder %v387, %v261
      %vm496 = vcmp.eq.s32.totalorder %v390, %v261
      %vm497 = vcmp.eq.s32.totalorder %v393, %v261
      %vm498 = vcmp.eq.s32.totalorder %v396, %v261
      %vm499 = vcmp.eq.s32.totalorder %v399, %v261
      %vm500 = vcmp.eq.s32.totalorder %v402, %v261
      %vm501 = vcmp.eq.s32.totalorder %v405, %v261
      %vm502 = vcmp.eq.s32.totalorder %v408, %v261
      %vm503 = vcmp.eq.s32.totalorder %v411, %v261
      %vm504 = vcmp.eq.s32.totalorder %v414, %v261
      %vm505 = vcmp.eq.s32.totalorder %v417, %v261
      %vm506 = vcmp.eq.s32.totalorder %v420, %v261
      %vm507 = vcmp.eq.s32.totalorder %v423, %v261
      %vm508 = vcmp.eq.s32.totalorder %v426, %v261
      %vm509 = vcmp.eq.s32.totalorder %v429, %v261
      %vm510 = vcmp.eq.s32.totalorder %v432, %v261
      %vm511 = vcmp.eq.s32.totalorder %v435, %v261
      %vm512 = vcmp.eq.s32.totalorder %v438, %v261
      %vm513 = vcmp.eq.s32.totalorder %v441, %v261
      %vm514 = vcmp.eq.s32.totalorder %v444, %v261
      %vm515 = vcmp.eq.s32.totalorder %v447, %v261
      %vm516 = vcmp.eq.s32.totalorder %v450, %v261
      %vm517 = vcmp.eq.s32.totalorder %v453, %v261
      %v518 = vsel %vm454, 1, 0
      %v519 = vsel %vm455, 1, 0
      %v520 = vsel %vm456, 1, 0
      %v521 = vsel %vm457, 1, 0
      %v522 = vsel %vm458, 1, 0
      %v523 = vsel %vm459, 1, 0
      %v524 = vsel %vm460, 1, 0
      %v525 = vsel %vm461, 1, 0
      %v526 = vsel %vm462, 1, 0
      %v527 = vsel %vm463, 1, 0
      %v528 = vsel %vm464, 1, 0
      %v529 = vsel %vm465, 1, 0
      %v530 = vsel %vm466, 1, 0
      %v531 = vsel %vm467, 1, 0
      %v532 = vsel %vm468, 1, 0
      %v533 = vsel %vm469, 1, 0
      %v534 = vsel %vm470, 1, 0
      %v535 = vsel %vm471, 1, 0
      %v536 = vsel %vm472, 1, 0
      %v537 = vsel %vm473, 1, 0
      %v538 = vsel %vm474, 1, 0
      %v539 = vsel %vm475, 1, 0
      %v540 = vsel %vm476, 1, 0
      %v541 = vsel %vm477, 1, 0
      %v542 = vsel %vm478, 1, 0
      %v543 = vsel %vm479, 1, 0
      %v544 = vsel %vm480, 1, 0
      %v545 = vsel %vm481, 1, 0
      %v546 = vsel %vm482, 1, 0
      %v547 = vsel %vm483, 1, 0
      %v548 = vsel %vm484, 1, 0
      %v549 = vsel %vm485, 1, 0
      %v550 = vsel %vm486, 1, 0
      %v551 = vsel %vm487, 1, 0
      %v552 = vsel %vm488, 1, 0
      %v553 = vsel %vm489, 1, 0
      %v554 = vsel %vm490, 1, 0
      %v555 = vsel %vm491, 1, 0
      %v556 = vsel %vm492, 1, 0
      %v557 = vsel %vm493, 1, 0
      %v558 = vsel %vm494, 1, 0
      %v559 = vsel %vm495, 1, 0
      %v560 = vsel %vm496, 1, 0
      %v561 = vsel %vm497, 1, 0
      %v562 = vsel %vm498, 1, 0
      %v563 = vsel %vm499, 1, 0
      %v564 = vsel %vm500, 1, 0
      %v565 = vsel %vm501, 1, 0
      %v566 = vsel %vm502, 1, 0
      %v567 = vsel %vm503, 1, 0
      %v568 = vsel %vm504, 1, 0
      %v569 = vsel %vm505, 1, 0
      %v570 = vsel %vm506, 1, 0
      %v571 = vsel %vm507, 1, 0
      %v572 = vsel %vm508, 1, 0
      %v573 = vsel %vm509, 1, 0
      %v574 = vsel %vm510, 1, 0
      %v575 = vsel %vm511, 1, 0
      %v576 = vsel %vm512, 1, 0
      %v577 = vsel %vm513, 1, 0
      %v578 = vsel %vm514, 1, 0
      %v579 = vsel %vm515, 1, 0
      %v580 = vsel %vm516, 1, 0
      %v581 = vsel %vm517, 1, 0
      %v582 = vcvt.s32.f32 %v518
      %v583 = vcvt.s32.f32 %v519
      %v584 = vcvt.s32.f32 %v520
      %v585 = vcvt.s32.f32 %v521
      %v586 = vcvt.s32.f32 %v522
      %v587 = vcvt.s32.f32 %v523
      %v588 = vcvt.s32.f32 %v524
      %v589 = vcvt.s32.f32 %v525
      %v590 = vcvt.s32.f32 %v526
      %v591 = vcvt.s32.f32 %v527
      %v592 = vcvt.s32.f32 %v528
      %v593 = vcvt.s32.f32 %v529
      %v594 = vcvt.s32.f32 %v530
      %v595 = vcvt.s32.f32 %v531
      %v596 = vcvt.s32.f32 %v532
      %v597 = vcvt.s32.f32 %v533
      %v598 = vcvt.s32.f32 %v534
      %v599 = vcvt.s32.f32 %v535
      %v600 = vcvt.s32.f32 %v536
      %v601 = vcvt.s32.f32 %v537
      %v602 = vcvt.s32.f32 %v538
      %v603 = vcvt.s32.f32 %v539
      %v604 = vcvt.s32.f32 %v540
      %v605 = vcvt.s32.f32 %v541
      %v606 = vcvt.s32.f32 %v542
      %v607 = vcvt.s32.f32 %v543
      %v608 = vcvt.s32.f32 %v544
      %v609 = vcvt.s32.f32 %v545
      %v610 = vcvt.s32.f32 %v546
      %v611 = vcvt.s32.f32 %v547
      %v612 = vcvt.s32.f32 %v548
      %v613 = vcvt.s32.f32 %v549
      %v614 = vcvt.s32.f32 %v550
      %v615 = vcvt.s32.f32 %v551
      %v616 = vcvt.s32.f32 %v552
      %v617 = vcvt.s32.f32 %v553
      %v618 = vcvt.s32.f32 %v554
      %v619 = vcvt.s32.f32 %v555
      %v620 = vcvt.s32.f32 %v556
      %v621 = vcvt.s32.f32 %v557
      %v622 = vcvt.s32.f32 %v558
      %v623 = vcvt.s32.f32 %v559
      %v624 = vcvt.s32.f32 %v560
      %v625 = vcvt.s32.f32 %v561
      %v626 = vcvt.s32.f32 %v562
      %v627 = vcvt.s32.f32 %v563
      %v628 = vcvt.s32.f32 %v564
      %v629 = vcvt.s32.f32 %v565
      %v630 = vcvt.s32.f32 %v566
      %v631 = vcvt.s32.f32 %v567
      %v632 = vcvt.s32.f32 %v568
      %v633 = vcvt.s32.f32 %v569
      %v634 = vcvt.s32.f32 %v570
      %v635 = vcvt.s32.f32 %v571
      %v636 = vcvt.s32.f32 %v572
      %v637 = vcvt.s32.f32 %v573
      %v638 = vcvt.s32.f32 %v574
      %v639 = vcvt.s32.f32 %v575
      %v640 = vcvt.s32.f32 %v576
      %v641 = vcvt.s32.f32 %v577
      %v642 = vcvt.s32.f32 %v578
      %v643 = vcvt.s32.f32 %v579
      %v644 = vcvt.s32.f32 %v580
      %v645 = vcvt.s32.f32 %v581
      %v646 = vld [vmem:[%s0] sm:$0xff]
      %vm647 = vcmask 64512
      %v649 = vsel %vm647, %v582, 0
      %v652 = vsel %vm647, %v583, 0
      %v655 = vsel %vm647, %v584, 0
      %v658 = vsel %vm647, %v585, 0
      %v661 = vsel %vm647, %v586, 0
      %v664 = vsel %vm647, %v587, 0
      %v667 = vsel %vm647, %v588, 0
      %v670 = vsel %vm647, %v589, 0
      %v673 = vsel %vm647, %v590, 0
      %v676 = vsel %vm647, %v591, 0
      %v679 = vsel %vm647, %v592, 0
      %v682 = vsel %vm647, %v593, 0
      %v685 = vsel %vm647, %v594, 0
      %v688 = vsel %vm647, %v595, 0
      %v691 = vsel %vm647, %v596, 0
      %v694 = vsel %vm647, %v597, 0
      %v697 = vsel %vm647, %v598, 0
      %v700 = vsel %vm647, %v599, 0
      %v703 = vsel %vm647, %v600, 0
      %v706 = vsel %vm647, %v601, 0
      %v709 = vsel %vm647, %v602, 0
      %v712 = vsel %vm647, %v603, 0
      %v715 = vsel %vm647, %v604, 0
      %v718 = vsel %vm647, %v605, 0
      %v721 = vsel %vm647, %v606, 0
      %v724 = vsel %vm647, %v607, 0
      %v727 = vsel %vm647, %v608, 0
      %v730 = vsel %vm647, %v609, 0
      %v733 = vsel %vm647, %v610, 0
      %v736 = vsel %vm647, %v611, 0
      %v739 = vsel %vm647, %v612, 0
      %v742 = vsel %vm647, %v613, 0
      %v745 = vsel %vm647, %v614, 0
      %v748 = vsel %vm647, %v615, 0
      %v751 = vsel %vm647, %v616, 0
      %v754 = vsel %vm647, %v617, 0
      %v757 = vsel %vm647, %v618, 0
      %v760 = vsel %vm647, %v619, 0
      %v763 = vsel %vm647, %v620, 0
      %v766 = vsel %vm647, %v621, 0
      %v769 = vsel %vm647, %v622, 0
      %v772 = vsel %vm647, %v623, 0
      %v775 = vsel %vm647, %v624, 0
      %v778 = vsel %vm647, %v625, 0
      %v781 = vsel %vm647, %v626, 0
      %v784 = vsel %vm647, %v627, 0
      %v787 = vsel %vm647, %v628, 0
      %v790 = vsel %vm647, %v629, 0
      %v793 = vsel %vm647, %v630, 0
      %v796 = vsel %vm647, %v631, 0
      %v799 = vsel %vm647, %v632, 0
      %v802 = vsel %vm647, %v633, 0
      %v805 = vsel %vm647, %v634, 0
      %v808 = vsel %vm647, %v635, 0
      %v811 = vsel %vm647, %v636, 0
      %v814 = vsel %vm647, %v637, 0
      %v817 = vsel %vm647, %v638, 0
      %v820 = vsel %vm647, %v639, 0
      %v823 = vsel %vm647, %v640, 0
      %v826 = vsel %vm647, %v641, 0
      %v829 = vsel %vm647, %v642, 0
      %v832 = vsel %vm647, %v643, 0
      %v835 = vsel %vm647, %v644, 0
      %v838 = vsel %vm647, %v645, 0
      %840 = vmatprep.subr.mxu0 0.0
      %841 = vmatpush1.msra.mxu0 %v646
      %842 = vmatprep.subr.mxu0 0.0
      %843 = vmatpush1.msra.mxu0 0.0
      %844 = vmatprep.subr.mxu0 0.0
      %845 = vmatpush1.msra.mxu0 0.0
      %846 = vmatprep.subr.mxu0 0.0
      %847 = vmatpush1.msra.mxu0 0.0
      %848 = vmatprep.subr.mxu0 0.0
      %849 = vmatpush1.msra.mxu0 0.0
      %850 = vmatprep.subr.mxu0 0.0
      %851 = vmatpush1.msra.mxu0 0.0
      %852 = vmatprep.subr.mxu0 0.0
      %853 = vmatpush1.msra.mxu0 0.0
      %854 = vmatprep.subr.mxu0 0.0
      %855 = vmatpush1.msra.mxu0 0.0
      %856 = vmatprep.subr.mxu0 0.0
      %857 = vmatpush1.msra.mxu0 0.0
      %858 = vmatprep.subr.mxu0 0.0
      %859 = vmatpush1.msra.mxu0 0.0
      %860 = vmatprep.subr.mxu0 0.0
      %861 = vmatpush1.msra.mxu0 0.0
      %862 = vmatprep.subr.mxu0 0.0
      %863 = vmatpush1.msra.mxu0 0.0
      %864 = vmatprep.subr.mxu0 0.0
      %865 = vmatpush1.msra.mxu0 0.0
      %866 = vmatprep.subr.mxu0 0.0
      %867 = vmatpush1.msra.mxu0 0.0
      %868 = vmatprep.subr.mxu0 0.0
      %869 = vmatpush1.msra.mxu0 0.0
      %870 = vmatprep.subr.mxu0 0.0
      %871 = vmatpush1.msra.mxu0 0.0
      %872 = vmatprep.subr.mxu0 0.0
      %873 = vmatpush1.msra.mxu0 0.0
      %874 = vmatprep.subr.mxu0 0.0
      %875 = vmatpush1.msra.mxu0 0.0
      %876 = vmatprep.subr.mxu0 0.0
      %877 = vmatpush1.msra.mxu0 0.0
      %878 = vmatprep.subr.mxu0 0.0
      %879 = vmatpush1.msra.mxu0 0.0
      %880 = vmatprep.subr.mxu0 0.0
      %881 = vmatpush1.msra.mxu0 0.0
      %882 = vmatprep.subr.mxu0 0.0
      %883 = vmatpush1.msra.mxu0 0.0
      %884 = vmatprep.subr.mxu0 0.0
      %885 = vmatpush1.msra.mxu0 0.0
      %886 = vmatprep.subr.mxu0 0.0
      %887 = vmatpush1.msra.mxu0 0.0
      %888 = vmatprep.subr.mxu0 0.0
      %889 = vmatpush1.msra.mxu0 0.0
      %890 = vmatprep.subr.mxu0 0.0
      %891 = vmatpush1.msra.mxu0 0.0
      %892 = vmatprep.subr.mxu0 0.0
      %893 = vmatpush1.msra.mxu0 0.0
      %894 = vmatprep.subr.mxu0 0.0
      %895 = vmatpush1.msra.mxu0 0.0
      %896 = vmatprep.subr.mxu0 0.0
      %897 = vmatpush1.msra.mxu0 0.0
      %898 = vmatprep.subr.mxu0 0.0
      %899 = vmatpush1.msra.mxu0 0.0
      %900 = vmatprep.subr.mxu0 0.0
      %901 = vmatpush1.msra.mxu0 0.0
      %902 = vmatprep.subr.mxu0 0.0
      %903 = vmatpush1.msra.mxu0 0.0
      %904 = vmatprep.mubr.f32.mxu0 0.0
      %905 = vmatmul.mubr.f32.gmra.mrb[0].mxu0 %v649
      %v906 = vpop.f32.mrb[0].mxu0
      %v907 = vadd.f32 0.0, %v906
      %v908 = vpop.f32.mrb[0].mxu0
      %909 = vmatprep.mubr.f32.mxu0 0.0
      %910 = vmatmul.mubr.f32.gmra.mrb[0].mxu0 %v652
      %v911 = vpop.f32.mrb[0].mxu0
      %v912 = vadd.f32 0.0, %v911
      %v913 = vpop.f32.mrb[0].mxu0
      %914 = vmatprep.mubr.f32.mxu0 0.0
      %915 = vmatmul.mubr.f32.gmra.mrb[0].mxu0 %v655
      %v916 = vpop.f32.mrb[0].mxu0
      %v917 = vadd.f32 0.0, %v916
      %v918 = vpop.f32.mrb[0].mxu0
      %919 = vmatprep.mubr.f32.mxu0 0.0
      %920 = vmatmul.mubr.f32.gmra.mrb[0].mxu0 %v658
      %v921 = vpop.f32.mrb[0].mxu0
      %v922 = vadd.f32 0.0, %v921
      %v923 = vpop.f32.mrb[0].mxu0
      %924 = vmatprep.mubr.f32.mxu0 0.0
      %925 = vmatmul.mubr.f32.gmra.mrb[0].mxu0 %v661
      %v926 = vpop.f32.mrb[0].mxu0
      %v927 = vadd.f32 0.0, %v926
      %v928 = vpop.f32.mrb[0].mxu0
      %929 = vmatprep.mubr.f32.mxu0 0.0
      %930 = vmatmul.mubr.f32.gmra.mrb[0].mxu0 %v664
      %v931 = vpop.f32.mrb[0].mxu0
      %v932 = vadd.f32 0.0, %v931
      %v933 = vpop.f32.mrb[0].mxu0
      %934 = vmatprep.mubr.f32.mxu0 0.0
      %935 = vmatmul.mubr.f32.gmra.mrb[0].mxu0 %v667
      %v936 = vpop.f32.mrb[0].mxu0
      %v937 = vadd.f32 0.0, %v936
      %v938 = vpop.f32.mrb[0].mxu0
      %939 = vmatprep.mubr.f32.mxu0 0.0
      %940 = vmatmul.mubr.f32.gmra.mrb[0].mxu0 %v670
      %v941 = vpop.f32.mrb[0].mxu0
      %v942 = vadd.f32 0.0, %v941
      %v943 = vpop.f32.mrb[0].mxu0
      %944 = vmatprep.mubr.f32.mxu0 0.0
      %945 = vmatmul.mubr.f32.gmra.mrb[0].mxu0 %v673
      %v946 = vpop.f32.mrb[0].mxu0
      %v947 = vadd.f32 0.0, %v946
      %v948 = vpop.f32.mrb[0].mxu0
      %949 = vmatprep.mubr.f32.mxu0 0.0
      %950 = vmatmul.mubr.f32.gmra.mrb[0].mxu0 %v676
      %v951 = vpop.f32.mrb[0].mxu0
      %v952 = vadd.f32 0.0, %v951
      %v953 = vpop.f32.mrb[0].mxu0
      %954 = vmatprep.mubr.f32.mxu0 0.0
      %955 = vmatmul.mubr.f32.gmra.mrb[0].mxu0 %v679
      %v956 = vpop.f32.mrb[0].mxu0
      %v957 = vadd.f32 0.0, %v956
      %v958 = vpop.f32.mrb[0].mxu0
      %959 = vmatprep.mubr.f32.mxu0 0.0
      %960 = vmatmul.mubr.f32.gmra.mrb[0].mxu0 %v682
      %v961 = vpop.f32.mrb[0].mxu0
      %v962 = vadd.f32 0.0, %v961
      %v963 = vpop.f32.mrb[0].mxu0
      %964 = vmatprep.mubr.f32.mxu0 0.0
      %965 = vmatmul.mubr.f32.gmra.mrb[0].mxu0 %v685
      %v966 = vpop.f32.mrb[0].mxu0
      %v967 = vadd.f32 0.0, %v966
      %v968 = vpop.f32.mrb[0].mxu0
      %969 = vmatprep.mubr.f32.mxu0 0.0
      %970 = vmatmul.mubr.f32.gmra.mrb[0].mxu0 %v688
      %v971 = vpop.f32.mrb[0].mxu0
      %v972 = vadd.f32 0.0, %v971
      %v973 = vpop.f32.mrb[0].mxu0
      %974 = vmatprep.mubr.f32.mxu0 0.0
      %975 = vmatmul.mubr.f32.gmra.mrb[0].mxu0 %v691
      %v976 = vpop.f32.mrb[0].mxu0
      %v977 = vadd.f32 0.0, %v976
      %v978 = vpop.f32.mrb[0].mxu0
      %979 = vmatprep.mubr.f32.mxu0 0.0
      %980 = vmatmul.mubr.f32.gmra.mrb[0].mxu0 %v694
      %v981 = vpop.f32.mrb[0].mxu0
      %v982 = vadd.f32 0.0, %v981
      %v983 = vpop.f32.mrb[0].mxu0
      %984 = vmatprep.mubr.f32.mxu0 0.0
      %985 = vmatmul.mubr.f32.gmra.mrb[0].mxu0 %v697
      %v986 = vpop.f32.mrb[0].mxu0
      %v987 = vadd.f32 0.0, %v986
      %v988 = vpop.f32.mrb[0].mxu0
      %989 = vmatprep.mubr.f32.mxu0 0.0
      %990 = vmatmul.mubr.f32.gmra.mrb[0].mxu0 %v700
      %v991 = vpop.f32.mrb[0].mxu0
      %v992 = vadd.f32 0.0, %v991
      %v993 = vpop.f32.mrb[0].mxu0
      %994 = vmatprep.mubr.f32.mxu0 0.0
      %995 = vmatmul.mubr.f32.gmra.mrb[0].mxu0 %v703
      %v996 = vpop.f32.mrb[0].mxu0
      %v997 = vadd.f32 0.0, %v996
      %v998 = vpop.f32.mrb[0].mxu0
      %999 = vmatprep.mubr.f32.mxu0 0.0
      %1000 = vmatmul.mubr.f32.gmra.mrb[0].mxu0 %v706
      %v1001 = vpop.f32.mrb[0].mxu0
      %v1002 = vadd.f32 0.0, %v1001
      %v1003 = vpop.f32.mrb[0].mxu0
      %1004 = vmatprep.mubr.f32.mxu0 0.0
      %1005 = vmatmul.mubr.f32.gmra.mrb[0].mxu0 %v709
      %v1006 = vpop.f32.mrb[0].mxu0
      %v1007 = vadd.f32 0.0, %v1006
      %v1008 = vpop.f32.mrb[0].mxu0
      %1009 = vmatprep.mubr.f32.mxu0 0.0
      %1010 = vmatmul.mubr.f32.gmra.mrb[0].mxu0 %v712
      %v1011 = vpop.f32.mrb[0].mxu0
      %v1012 = vadd.f32 0.0, %v1011
      %v1013 = vpop.f32.mrb[0].mxu0
      %1014 = vmatprep.mubr.f32.mxu0 0.0
      %1015 = vmatmul.mubr.f32.gmra.mrb[0].mxu0 %v715
      %v1016 = vpop.f32.mrb[0].mxu0
      %v1017 = vadd.f32 0.0, %v1016
      %v1018 = vpop.f32.mrb[0].mxu0
      %1019 = vmatprep.mubr.f32.mxu0 0.0
      %1020 = vmatmul.mubr.f32.gmra.mrb[0].mxu0 %v718
      %v1021 = vpop.f32.mrb[0].mxu0
      %v1022 = vadd.f32 0.0, %v1021
      %v1023 = vpop.f32.mrb[0].mxu0
      %1024 = vmatprep.mubr.f32.mxu0 0.0
      %1025 = vmatmul.mubr.f32.gmra.mrb[0].mxu0 %v721
      %v1026 = vpop.f32.mrb[0].mxu0
      %v1027 = vadd.f32 0.0, %v1026
      %v1028 = vpop.f32.mrb[0].mxu0
      %1029 = vmatprep.mubr.f32.mxu0 0.0
      %1030 = vmatmul.mubr.f32.gmra.mrb[0].mxu0 %v724
      %v1031 = vpop.f32.mrb[0].mxu0
      %v1032 = vadd.f32 0.0, %v1031
      %v1033 = vpop.f32.mrb[0].mxu0
      %1034 = vmatprep.mubr.f32.mxu0 0.0
      %1035 = vmatmul.mubr.f32.gmra.mrb[0].mxu0 %v727
      %v1036 = vpop.f32.mrb[0].mxu0
      %v1037 = vadd.f32 0.0, %v1036
      %v1038 = vpop.f32.mrb[0].mxu0
      %1039 = vmatprep.mubr.f32.mxu0 0.0
      %1040 = vmatmul.mubr.f32.gmra.mrb[0].mxu0 %v730
      %v1041 = vpop.f32.mrb[0].mxu0
      %v1042 = vadd.f32 0.0, %v1041
      %v1043 = vpop.f32.mrb[0].mxu0
      %1044 = vmatprep.mubr.f32.mxu0 0.0
      %1045 = vmatmul.mubr.f32.gmra.mrb[0].mxu0 %v733
      %v1046 = vpop.f32.mrb[0].mxu0
      %v1047 = vadd.f32 0.0, %v1046
      %v1048 = vpop.f32.mrb[0].mxu0
      %1049 = vmatprep.mubr.f32.mxu0 0.0
      %1050 = vmatmul.mubr.f32.gmra.mrb[0].mxu0 %v736
      %v1051 = vpop.f32.mrb[0].mxu0
      %v1052 = vadd.f32 0.0, %v1051
      %v1053 = vpop.f32.mrb[0].mxu0
      %1054 = vmatprep.mubr.f32.mxu0 0.0
      %1055 = vmatmul.mubr.f32.gmra.mrb[0].mxu0 %v739
      %v1056 = vpop.f32.mrb[0].mxu0
      %v1057 = vadd.f32 0.0, %v1056
      %v1058 = vpop.f32.mrb[0].mxu0
      %1059 = vmatprep.mubr.f32.mxu0 0.0
      %1060 = vmatmul.mubr.f32.gmra.mrb[0].mxu0 %v742
      %v1061 = vpop.f32.mrb[0].mxu0
      %v1062 = vadd.f32 0.0, %v1061
      %v1063 = vpop.f32.mrb[0].mxu0
      %1064 = vmatprep.mubr.f32.mxu0 0.0
      %1065 = vmatmul.mubr.f32.gmra.mrb[0].mxu0 %v745
      %v1066 = vpop.f32.mrb[0].mxu0
      %v1067 = vadd.f32 0.0, %v1066
      %v1068 = vpop.f32.mrb[0].mxu0
      %1069 = vmatprep.mubr.f32.mxu0 0.0
      %1070 = vmatmul.mubr.f32.gmra.mrb[0].mxu0 %v748
      %v1071 = vpop.f32.mrb[0].mxu0
      %v1072 = vadd.f32 0.0, %v1071
      %v1073 = vpop.f32.mrb[0].mxu0
      %1074 = vmatprep.mubr.f32.mxu0 0.0
      %1075 = vmatmul.mubr.f32.gmra.mrb[0].mxu0 %v751
      %v1076 = vpop.f32.mrb[0].mxu0
      %v1077 = vadd.f32 0.0, %v1076
      %v1078 = vpop.f32.mrb[0].mxu0
      %1079 = vmatprep.mubr.f32.mxu0 0.0
      %1080 = vmatmul.mubr.f32.gmra.mrb[0].mxu0 %v754
      %v1081 = vpop.f32.mrb[0].mxu0
      %v1082 = vadd.f32 0.0, %v1081
      %v1083 = vpop.f32.mrb[0].mxu0
      %1084 = vmatprep.mubr.f32.mxu0 0.0
      %1085 = vmatmul.mubr.f32.gmra.mrb[0].mxu0 %v757
      %v1086 = vpop.f32.mrb[0].mxu0
      %v1087 = vadd.f32 0.0, %v1086
      %v1088 = vpop.f32.mrb[0].mxu0
      %1089 = vmatprep.mubr.f32.mxu0 0.0
      %1090 = vmatmul.mubr.f32.gmra.mrb[0].mxu0 %v760
      %v1091 = vpop.f32.mrb[0].mxu0
      %v1092 = vadd.f32 0.0, %v1091
      %v1093 = vpop.f32.mrb[0].mxu0
      %1094 = vmatprep.mubr.f32.mxu0 0.0
      %1095 = vmatmul.mubr.f32.gmra.mrb[0].mxu0 %v763
      %v1096 = vpop.f32.mrb[0].mxu0
      %v1097 = vadd.f32 0.0, %v1096
      %v1098 = vpop.f32.mrb[0].mxu0
      %1099 = vmatprep.mubr.f32.mxu0 0.0
      %1100 = vmatmul.mubr.f32.gmra.mrb[0].mxu0 %v766
      %v1101 = vpop.f32.mrb[0].mxu0
      %v1102 = vadd.f32 0.0, %v1101
      %v1103 = vpop.f32.mrb[0].mxu0
      %1104 = vmatprep.mubr.f32.mxu0 0.0
      %1105 = vmatmul.mubr.f32.gmra.mrb[0].mxu0 %v769
      %v1106 = vpop.f32.mrb[0].mxu0
      %v1107 = vadd.f32 0.0, %v1106
      %v1108 = vpop.f32.mrb[0].mxu0
      %1109 = vmatprep.mubr.f32.mxu0 0.0
      %1110 = vmatmul.mubr.f32.gmra.mrb[0].mxu0 %v772
      %v1111 = vpop.f32.mrb[0].mxu0
      %v1112 = vadd.f32 0.0, %v1111
      %v1113 = vpop.f32.mrb[0].mxu0
      %1114 = vmatprep.mubr.f32.mxu0 0.0
      %1115 = vmatmul.mubr.f32.gmra.mrb[0].mxu0 %v775
      %v1116 = vpop.f32.mrb[0].mxu0
      %v1117 = vadd.f32 0.0, %v1116
      %v1118 = vpop.f32.mrb[0].mxu0
      %1119 = vmatprep.mubr.f32.mxu0 0.0
      %1120 = vmatmul.mubr.f32.gmra.mrb[0].mxu0 %v778
      %v1121 = vpop.f32.mrb[0].mxu0
      %v1122 = vadd.f32 0.0, %v1121
      %v1123 = vpop.f32.mrb[0].mxu0
      %1124 = vmatprep.mubr.f32.mxu0 0.0
      %1125 = vmatmul.mubr.f32.gmra.mrb[0].mxu0 %v781
      %v1126 = vpop.f32.mrb[0].mxu0
      %v1127 = vadd.f32 0.0, %v1126
      %v1128 = vpop.f32.mrb[0].mxu0
      %1129 = vmatprep.mubr.f32.mxu0 0.0
      %1130 = vmatmul.mubr.f32.gmra.mrb[0].mxu0 %v784
      %v1131 = vpop.f32.mrb[0].mxu0
      %v1132 = vadd.f32 0.0, %v1131
      %v1133 = vpop.f32.mrb[0].mxu0
      %1134 = vmatprep.mubr.f32.mxu0 0.0
      %1135 = vmatmul.mubr.f32.gmra.mrb[0].mxu0 %v787
      %v1136 = vpop.f32.mrb[0].mxu0
      %v1137 = vadd.f32 0.0, %v1136
      %v1138 = vpop.f32.mrb[0].mxu0
      %1139 = vmatprep.mubr.f32.mxu0 0.0
      %1140 = vmatmul.mubr.f32.gmra.mrb[0].mxu0 %v790
      %v1141 = vpop.f32.mrb[0].mxu0
      %v1142 = vadd.f32 0.0, %v1141
      %v1143 = vpop.f32.mrb[0].mxu0
      %1144 = vmatprep.mubr.f32.mxu0 0.0
      %1145 = vmatmul.mubr.f32.gmra.mrb[0].mxu0 %v793
      %v1146 = vpop.f32.mrb[0].mxu0
      %v1147 = vadd.f32 0.0, %v1146
      %v1148 = vpop.f32.mrb[0].mxu0
      %1149 = vmatprep.mubr.f32.mxu0 0.0
      %1150 = vmatmul.mubr.f32.gmra.mrb[0].mxu0 %v796
      %v1151 = vpop.f32.mrb[0].mxu0
      %v1152 = vadd.f32 0.0, %v1151
      %v1153 = vpop.f32.mrb[0].mxu0
      %1154 = vmatprep.mubr.f32.mxu0 0.0
      %1155 = vmatmul.mubr.f32.gmra.mrb[0].mxu0 %v799
      %v1156 = vpop.f32.mrb[0].mxu0
      %v1157 = vadd.f32 0.0, %v1156
      %v1158 = vpop.f32.mrb[0].mxu0
      %1159 = vmatprep.mubr.f32.mxu0 0.0
      %1160 = vmatmul.mubr.f32.gmra.mrb[0].mxu0 %v802
      %v1161 = vpop.f32.mrb[0].mxu0
      %v1162 = vadd.f32 0.0, %v1161
      %v1163 = vpop.f32.mrb[0].mxu0
      %1164 = vmatprep.mubr.f32.mxu0 0.0
      %1165 = vmatmul.mubr.f32.gmra.mrb[0].mxu0 %v805
      %v1166 = vpop.f32.mrb[0].mxu0
      %v1167 = vadd.f32 0.0, %v1166
      %v1168 = vpop.f32.mrb[0].mxu0
      %1169 = vmatprep.mubr.f32.mxu0 0.0
      %1170 = vmatmul.mubr.f32.gmra.mrb[0].mxu0 %v808
      %v1171 = vpop.f32.mrb[0].mxu0
      %v1172 = vadd.f32 0.0, %v1171
      %v1173 = vpop.f32.mrb[0].mxu0
      %1174 = vmatprep.mubr.f32.mxu0 0.0
      %1175 = vmatmul.mubr.f32.gmra.mrb[0].mxu0 %v811
      %v1176 = vpop.f32.mrb[0].mxu0
      %v1177 = vadd.f32 0.0, %v1176
      %v1178 = vpop.f32.mrb[0].mxu0
      %1179 = vmatprep.mubr.f32.mxu0 0.0
      %1180 = vmatmul.mubr.f32.gmra.mrb[0].mxu0 %v814
      %v1181 = vpop.f32.mrb[0].mxu0
      %v1182 = vadd.f32 0.0, %v1181
      %v1183 = vpop.f32.mrb[0].mxu0
      %1184 = vmatprep.mubr.f32.mxu0 0.0
      %1185 = vmatmul.mubr.f32.gmra.mrb[0].mxu0 %v817
      %v1186 = vpop.f32.mrb[0].mxu0
      %v1187 = vadd.f32 0.0, %v1186
      %v1188 = vpop.f32.mrb[0].mxu0
      %1189 = vmatprep.mubr.f32.mxu0 0.0
      %1190 = vmatmul.mubr.f32.gmra.mrb[0].mxu0 %v820
      %v1191 = vpop.f32.mrb[0].mxu0
      %v1192 = vadd.f32 0.0, %v1191
      %v1193 = vpop.f32.mrb[0].mxu0
      %1194 = vmatprep.mubr.f32.mxu0 0.0
      %1195 = vmatmul.mubr.f32.gmra.mrb[0].mxu0 %v823
      %v1196 = vpop.f32.mrb[0].mxu0
      %v1197 = vadd.f32 0.0, %v1196
      %v1198 = vpop.f32.mrb[0].mxu0
      %1199 = vmatprep.mubr.f32.mxu0 0.0
      %1200 = vmatmul.mubr.f32.gmra.mrb[0].mxu0 %v826
      %v1201 = vpop.f32.mrb[0].mxu0
      %v1202 = vadd.f32 0.0, %v1201
      %v1203 = vpop.f32.mrb[0].mxu0
      %1204 = vmatprep.mubr.f32.mxu0 0.0
      %1205 = vmatmul.mubr.f32.gmra.mrb[0].mxu0 %v829
      %v1206 = vpop.f32.mrb[0].mxu0
      %v1207 = vadd.f32 0.0, %v1206
      %v1208 = vpop.f32.mrb[0].mxu0
      %1209 = vmatprep.mubr.f32.mxu0 0.0
      %1210 = vmatmul.mubr.f32.gmra.mrb[0].mxu0 %v832
      %v1211 = vpop.f32.mrb[0].mxu0
      %v1212 = vadd.f32 0.0, %v1211
      %v1213 = vpop.f32.mrb[0].mxu0
      %1214 = vmatprep.mubr.f32.mxu0 0.0
      %1215 = vmatmul.mubr.f32.gmra.mrb[0].mxu0 %v835
      %v1216 = vpop.f32.mrb[0].mxu0
      %v1217 = vadd.f32 0.0, %v1216
      %v1218 = vpop.f32.mrb[0].mxu0
      %1219 = vmatprep.mubr.f32.mxu0 0.0
      %1220 = vmatmul.mubr.f32.gmra.mrb[0].mxu0 %v838
      %v1221 = vpop.f32.mrb[0].mxu0
      %v1222 = vadd.f32 0.0, %v1221
      %v1223 = vpop.f32.mrb[0].mxu0
      %1224 = vdwg.mxu0
      %v1225 = vld [vmem:[%s182] sm:$0xff]
      %v1226 = vld [vmem:[%s182 + $0x8] sm:$0xff]
      %v1227 = vld [vmem:[%s182 + $0x10] sm:$0xff]
      %v1228 = vld [vmem:[%s182 + $0x18] sm:$0xff]
      %v1229 = vld [vmem:[%s182 + $0x20] sm:$0xff]
      %v1230 = vld [vmem:[%s182 + $0x28] sm:$0xff]
      %v1231 = vld [vmem:[%s182 + $0x30] sm:$0xff]
      %v1232 = vld [vmem:[%s182 + $0x38] sm:$0xff]
      %v1233 = vld [vmem:[%s182 + $0x40] sm:$0xff]
      %v1234 = vld [vmem:[%s182 + $0x48] sm:$0xff]
      %v1235 = vld [vmem:[%s182 + $0x50] sm:$0xff]
      %v1236 = vld [vmem:[%s182 + $0x58] sm:$0xff]
      %v1237 = vld [vmem:[%s182 + $0x60] sm:$0xff]
      %v1238 = vld [vmem:[%s182 + $0x68] sm:$0xff]
      %v1239 = vld [vmem:[%s182 + $0x70] sm:$0xff]
      %v1240 = vld [vmem:[%s182 + $0x78] sm:$0xff]
      %v1241 = vld [vmem:[%s182 + $0x80] sm:$0xff]
      %v1242 = vld [vmem:[%s182 + $0x88] sm:$0xff]
      %v1243 = vld [vmem:[%s182 + $0x90] sm:$0xff]
      %v1244 = vld [vmem:[%s182 + $0x98] sm:$0xff]
      %v1245 = vld [vmem:[%s182 + $0xa0] sm:$0xff]
      %v1246 = vld [vmem:[%s182 + $0xa8] sm:$0xff]
      %v1247 = vld [vmem:[%s182 + $0xb0] sm:$0xff]
      %v1248 = vld [vmem:[%s182 + $0xb8] sm:$0xff]
      %v1249 = vld [vmem:[%s182 + $0xc0] sm:$0xff]
      %v1250 = vld [vmem:[%s182 + $0xc8] sm:$0xff]
      %v1251 = vld [vmem:[%s182 + $0xd0] sm:$0xff]
      %v1252 = vld [vmem:[%s182 + $0xd8] sm:$0xff]
      %v1253 = vld [vmem:[%s182 + $0xe0] sm:$0xff]
      %v1254 = vld [vmem:[%s182 + $0xe8] sm:$0xff]
      %v1255 = vld [vmem:[%s182 + $0xf0] sm:$0xff]
      %v1256 = vld [vmem:[%s182 + $0xf8] sm:$0xff]
      %v1257 = vld [vmem:[%s182 + $0x100] sm:$0xff]
      %v1258 = vld [vmem:[%s182 + $0x108] sm:$0xff]
      %v1259 = vld [vmem:[%s182 + $0x110] sm:$0xff]
      %v1260 = vld [vmem:[%s182 + $0x118] sm:$0xff]
      %v1261 = vld [vmem:[%s182 + $0x120] sm:$0xff]
      %v1262 = vld [vmem:[%s182 + $0x128] sm:$0xff]
      %v1263 = vld [vmem:[%s182 + $0x130] sm:$0xff]
      %v1264 = vld [vmem:[%s182 + $0x138] sm:$0xff]
      %v1265 = vld [vmem:[%s182 + $0x140] sm:$0xff]
      %v1266 = vld [vmem:[%s182 + $0x148] sm:$0xff]
      %v1267 = vld [vmem:[%s182 + $0x150] sm:$0xff]
      %v1268 = vld [vmem:[%s182 + $0x158] sm:$0xff]
      %v1269 = vld [vmem:[%s182 + $0x160] sm:$0xff]
      %v1270 = vld [vmem:[%s182 + $0x168] sm:$0xff]
      %v1271 = vld [vmem:[%s182 + $0x170] sm:$0xff]
      %v1272 = vld [vmem:[%s182 + $0x178] sm:$0xff]
      %v1273 = vld [vmem:[%s182 + $0x180] sm:$0xff]
      %v1274 = vld [vmem:[%s182 + $0x188] sm:$0xff]
      %v1275 = vld [vmem:[%s182 + $0x190] sm:$0xff]
      %v1276 = vld [vmem:[%s182 + $0x198] sm:$0xff]
      %v1277 = vld [vmem:[%s182 + $0x1a0] sm:$0xff]
      %v1278 = vld [vmem:[%s182 + $0x1a8] sm:$0xff]
      %v1279 = vld [vmem:[%s182 + $0x1b0] sm:$0xff]
      %v1280 = vld [vmem:[%s182 + $0x1b8] sm:$0xff]
      %v1281 = vld [vmem:[%s182 + $0x1c0] sm:$0xff]
      %v1282 = vld [vmem:[%s182 + $0x1c8] sm:$0xff]
      %v1283 = vld [vmem:[%s182 + $0x1d0] sm:$0xff]
      %v1284 = vld [vmem:[%s182 + $0x1d8] sm:$0xff]
      %v1285 = vld [vmem:[%s182 + $0x1e0] sm:$0xff]
      %v1286 = vld [vmem:[%s182 + $0x1e8] sm:$0xff]
      %v1287 = vld [vmem:[%s182 + $0x1f0] sm:$0xff]
      %v1288 = vld [vmem:[%s182 + $0x1f8] sm:$0xff]
      %v1289 = vmul.f32 %v1225, %v907
      %v1290 = vmul.f32 %v1226, %v912
      %v1291 = vmul.f32 %v1227, %v917
      %v1292 = vmul.f32 %v1228, %v922
      %v1293 = vmul.f32 %v1229, %v927
      %v1294 = vmul.f32 %v1230, %v932
      %v1295 = vmul.f32 %v1231, %v937
      %v1296 = vmul.f32 %v1232, %v942
      %v1297 = vmul.f32 %v1233, %v947
      %v1298 = vmul.f32 %v1234, %v952
      %v1299 = vmul.f32 %v1235, %v957
      %v1300 = vmul.f32 %v1236, %v962
      %v1301 = vmul.f32 %v1237, %v967
      %v1302 = vmul.f32 %v1238, %v972
      %v1303 = vmul.f32 %v1239, %v977
      %v1304 = vmul.f32 %v1240, %v982
      %v1305 = vmul.f32 %v1241, %v987
      %v1306 = vmul.f32 %v1242, %v992
      %v1307 = vmul.f32 %v1243, %v997
      %v1308 = vmul.f32 %v1244, %v1002
      %v1309 = vmul.f32 %v1245, %v1007
      %v1310 = vmul.f32 %v1246, %v1012
      %v1311 = vmul.f32 %v1247, %v1017
      %v1312 = vmul.f32 %v1248, %v1022
      %v1313 = vmul.f32 %v1249, %v1027
      %v1314 = vmul.f32 %v1250, %v1032
      %v1315 = vmul.f32 %v1251, %v1037
      %v1316 = vmul.f32 %v1252, %v1042
      %v1317 = vmul.f32 %v1253, %v1047
      %v1318 = vmul.f32 %v1254, %v1052
      %v1319 = vmul.f32 %v1255, %v1057
      %v1320 = vmul.f32 %v1256, %v1062
      %v1321 = vmul.f32 %v1257, %v1067
      %v1322 = vmul.f32 %v1258, %v1072
      %v1323 = vmul.f32 %v1259, %v1077
      %v1324 = vmul.f32 %v1260, %v1082
      %v1325 = vmul.f32 %v1261, %v1087
      %v1326 = vmul.f32 %v1262, %v1092
      %v1327 = vmul.f32 %v1263, %v1097
      %v1328 = vmul.f32 %v1264, %v1102
      %v1329 = vmul.f32 %v1265, %v1107
      %v1330 = vmul.f32 %v1266, %v1112
      %v1331 = vmul.f32 %v1267, %v1117
      %v1332 = vmul.f32 %v1268, %v1122
      %v1333 = vmul.f32 %v1269, %v1127
      %v1334 = vmul.f32 %v1270, %v1132
      %v1335 = vmul.f32 %v1271, %v1137
      %v1336 = vmul.f32 %v1272, %v1142
      %v1337 = vmul.f32 %v1273, %v1147
      %v1338 = vmul.f32 %v1274, %v1152
      %v1339 = vmul.f32 %v1275, %v1157
      %v1340 = vmul.f32 %v1276, %v1162
      %v1341 = vmul.f32 %v1277, %v1167
      %v1342 = vmul.f32 %v1278, %v1172
      %v1343 = vmul.f32 %v1279, %v1177
      %v1344 = vmul.f32 %v1280, %v1182
      %v1345 = vmul.f32 %v1281, %v1187
      %v1346 = vmul.f32 %v1282, %v1192
      %v1347 = vmul.f32 %v1283, %v1197
      %v1348 = vmul.f32 %v1284, %v1202
      %v1349 = vmul.f32 %v1285, %v1207
      %v1350 = vmul.f32 %v1286, %v1212
      %v1351 = vmul.f32 %v1287, %v1217
      %v1352 = vmul.f32 %v1288, %v1222
      %1353 = vst [vmem:[%s194] sm:$0xff] %v1289
      %1354 = vst [vmem:[%s194 + $0x8] sm:$0xff] %v1290
      %1355 = vst [vmem:[%s194 + $0x10] sm:$0xff] %v1291
      %1356 = vst [vmem:[%s194 + $0x18] sm:$0xff] %v1292
      %1357 = vst [vmem:[%s194 + $0x20] sm:$0xff] %v1293
      %1358 = vst [vmem:[%s194 + $0x28] sm:$0xff] %v1294
      %1359 = vst [vmem:[%s194 + $0x30] sm:$0xff] %v1295
      %1360 = vst [vmem:[%s194 + $0x38] sm:$0xff] %v1296
      %1361 = vst [vmem:[%s194 + $0x40] sm:$0xff] %v1297
      %1362 = vst [vmem:[%s194 + $0x48] sm:$0xff] %v1298
      %1363 = vst [vmem:[%s194 + $0x50] sm:$0xff] %v1299
      %1364 = vst [vmem:[%s194 + $0x58] sm:$0xff] %v1300
      %1365 = vst [vmem:[%s194 + $0x60] sm:$0xff] %v1301
      %1366 = vst [vmem:[%s194 + $0x68] sm:$0xff] %v1302
      %1367 = vst [vmem:[%s194 + $0x70] sm:$0xff] %v1303
      %1368 = vst [vmem:[%s194 + $0x78] sm:$0xff] %v1304
      %1369 = vst [vmem:[%s194 + $0x80] sm:$0xff] %v1305
      %1370 = vst [vmem:[%s194 + $0x88] sm:$0xff] %v1306
      %1371 = vst [vmem:[%s194 + $0x90] sm:$0xff] %v1307
      %1372 = vst [vmem:[%s194 + $0x98] sm:$0xff] %v1308
      %1373 = vst [vmem:[%s194 + $0xa0] sm:$0xff] %v1309
      %1374 = vst [vmem:[%s194 + $0xa8] sm:$0xff] %v1310
      %1375 = vst [vmem:[%s194 + $0xb0] sm:$0xff] %v1311
      %1376 = vst [vmem:[%s194 + $0xb8] sm:$0xff] %v1312
      %1377 = vst [vmem:[%s194 + $0xc0] sm:$0xff] %v1313
      %1378 = vst [vmem:[%s194 + $0xc8] sm:$0xff] %v1314
      %1379 = vst [vmem:[%s194 + $0xd0] sm:$0xff] %v1315
      %1380 = vst [vmem:[%s194 + $0xd8] sm:$0xff] %v1316
      %1381 = vst [vmem:[%s194 + $0xe0] sm:$0xff] %v1317
      %1382 = vst [vmem:[%s194 + $0xe8] sm:$0xff] %v1318
      %1383 = vst [vmem:[%s194 + $0xf0] sm:$0xff] %v1319
      %1384 = vst [vmem:[%s194 + $0xf8] sm:$0xff] %v1320
      %1385 = vst [vmem:[%s194 + $0x100] sm:$0xff] %v1321
      %1386 = vst [vmem:[%s194 + $0x108] sm:$0xff] %v1322
      %1387 = vst [vmem:[%s194 + $0x110] sm:$0xff] %v1323
      %1388 = vst [vmem:[%s194 + $0x118] sm:$0xff] %v1324
      %1389 = vst [vmem:[%s194 + $0x120] sm:$0xff] %v1325
      %1390 = vst [vmem:[%s194 + $0x128] sm:$0xff] %v1326
      %1391 = vst [vmem:[%s194 + $0x130] sm:$0xff] %v1327
      %1392 = vst [vmem:[%s194 + $0x138] sm:$0xff] %v1328
      %1393 = vst [vmem:[%s194 + $0x140] sm:$0xff] %v1329
      %1394 = vst [vmem:[%s194 + $0x148] sm:$0xff] %v1330
      %1395 = vst [vmem:[%s194 + $0x150] sm:$0xff] %v1331
      %1396 = vst [vmem:[%s194 + $0x158] sm:$0xff] %v1332
      %1397 = vst [vmem:[%s194 + $0x160] sm:$0xff] %v1333
      %1398 = vst [vmem:[%s194 + $0x168] sm:$0xff] %v1334
      %1399 = vst [vmem:[%s194 + $0x170] sm:$0xff] %v1335
      %1400 = vst [vmem:[%s194 + $0x178] sm:$0xff] %v1336
      %1401 = vst [vmem:[%s194 + $0x180] sm:$0xff] %v1337
      %1402 = vst [vmem:[%s194 + $0x188] sm:$0xff] %v1338
      %1403 = vst [vmem:[%s194 + $0x190] sm:$0xff] %v1339
      %1404 = vst [vmem:[%s194 + $0x198] sm:$0xff] %v1340
      %1405 = vst [vmem:[%s194 + $0x1a0] sm:$0xff] %v1341
      %1406 = vst [vmem:[%s194 + $0x1a8] sm:$0xff] %v1342
      %1407 = vst [vmem:[%s194 + $0x1b0] sm:$0xff] %v1343
      %1408 = vst [vmem:[%s194 + $0x1b8] sm:$0xff] %v1344
      %1409 = vst [vmem:[%s194 + $0x1c0] sm:$0xff] %v1345
      %1410 = vst [vmem:[%s194 + $0x1c8] sm:$0xff] %v1346
      %1411 = vst [vmem:[%s194 + $0x1d0] sm:$0xff] %v1347
      %1412 = vst [vmem:[%s194 + $0x1d8] sm:$0xff] %v1348
      %1413 = vst [vmem:[%s194 + $0x1e0] sm:$0xff] %v1349
      %1414 = vst [vmem:[%s194 + $0x1e8] sm:$0xff] %v1350
      %1415 = vst [vmem:[%s194 + $0x1f0] sm:$0xff] %v1351
      %1416 = vst [vmem:[%s194 + $0x1f8] sm:$0xff] %v1352
      %s1417 = smul.u32 64, %s14
      %p1418 = scmp.lt.s32.totalorder %s1417, 255
      %s1419 = scalar_select %p1418, %s1417, 255
      %s1420 = smul.addr %s1419, 8
      %s1421 = scalar_lea.vmem %s3, %s1420
      // Predicated region
      $region33: #{channel_attention_forward.3} parent=31 // pred_check
        %p1422 = pneg %p105
      $region34: #{channel_attention_forward.3} parent=31 // pred_check_branch
        %1424 = sbr.rel (%p1422) target = $region36
      $region35: #{channel_attention_forward.3} parent=31 // pred_region
        %s1425 = smul.u32 64, %s14
      $region36: #{channel_attention_forward.3} parent=31 // pred_fallthru
        _
    $region32: #{channel_attention_forward.3} parent=5 // pred_fallthru
      _
    %p1426 = scmp.le.s32.totalorder 2, %s9
    // Predicated region
    $region37: #{channel_attention_forward.3} parent=5 // pred_check
      %p1427 = pneg %p1426
    $region38: #{channel_attention_forward.3} parent=5 // pred_check_branch
      %1429 = sbr.rel (%p1427) target = $region40
    $region39: #{channel_attention_forward.3} parent=5 // pred_region
      %s1430 = ssub.s32 %s9, 2
      // Predicated region
      $region41: #{channel_attention_forward.3} parent=39 // pred_check
        %p1431 = pneg %p111
      $region42: #{channel_attention_forward.3} parent=39 // pred_check_branch
        %1433 = sbr.rel (%p1431) target = $region44
      $region43: #{channel_attention_forward.3} parent=39 // pred_region
        %s1434 = smul.u32 64, %s15
        %p1435 = scmp.lt.s32.totalorder %s1434, 255
        %s1436 = scalar_select %p1435, %s1434, 255
        %s1437 = smul.addr %s1436, 8
        %s1438 = scalar_lea.vmem %s3, %s1437
      $region44: #{channel_attention_forward.3} parent=39 // pred_fallthru
        _
    $region40: #{channel_attention_forward.3} parent=5 // pred_fallthru
      _
  $region6: #{channel_attention_forward.3} parent=0 // loop_footer
    %s13 = sadd.s32 1, %s9
  $region7: #{channel_attention_forward.3} parent=0 // loop_footer_branch
    %8 = sbr.rel target = $region3
  $region8: #{channel_attention_forward.3} parent=0 // loop_exit
    _

// kernel: channel_attention_forward.2
$region0: #{channel_attention_forward.2}
  #allocation0 [shape = 'u32[]', space=smem, size = 0x4, offset = 0x4, fixed_abs, tag = 'smem constant byte address 0x4 - core index']
  #allocation1 [shape = 'u32[144,128]{1,0:T(1,128)}', space=vmem, size = 0x12000, scoped, tag = 'internal scratch']
  #allocation2 [shape = 'f32[8,128]{1,0:T(8,128)}', space=vmem, size = 0x1000, scoped, tag = 'scratch operand']
  #allocation3 [shape = 'f32[8,128]{1,0:T(8,128)}', space=vmem, size = 0x1000, scoped, tag = 'scratch operand']
  %s0 = inlined_call_operand.vmem [shape: f32[2048,128], index: 0, kind: input, shape index: {}]
  %s1 = inlined_call_operand.vmem [shape: s32[2048,1], index: 1, kind: input, shape index: {}]
  %s2 = inlined_call_operand.vmem [shape: f32[8,1], index: 2, kind: input, shape index: {}]
  %s3 = inlined_call_operand.vmem [shape: f32[128,8], index: 3, kind: input, shape index: {}]
  %s4 = inlined_call_operand.vmem [shape: f32[1,8], index: 4, kind: input, shape index: {}]
  %s5 = inlined_call_operand.vmem [shape: f32[8,128], index: 5, kind: input, shape index: {}]
  %s6 = inlined_call_operand.vmem [shape: f32[1,128], index: 6, kind: input, shape index: {}]
  %s7 = inlined_call_operand.vmem [shape: f32[8,128], index: 7, kind: output, shape index: {}]
  %s8 = sld [smem:[#allocation0]]
  $region69: #{channel_attention_forward.2} parent=0
    _
  %s10 = ssub.s32 1, %s8
  %s11 = scalar_select 0, %s10, %s8
  loop: start=0, step=1, limit=6
  $region2: #{channel_attention_forward.2} parent=0 // loop_pre_header
    _
  $region3: #{channel_attention_forward.2} parent=0 // loop_header
    %s13 = sphi 0, %s17
    %p14 = scmp.ge.s32.totalorder %s13, 6
    %s23 = sphi 0, %s25
    %s26 = sphi 0, %s23
    %s27 = sphi 0, %s26
    %s43 = sphi 0, %s27
    %s49 = sphi 0, %s51
    %s52 = sphi 0, %s49
    %s53 = sphi 0, %s52
    %s69 = sphi 0, %s53
    %s73 = sphi 0, %s73
    %s75 = sphi 0, %s73
    %s76 = sphi 0, %s75
    %s90 = sphi 0, %s76
    %s94 = sphi 0, %s94
    %s96 = sphi 0, %s94
    %s97 = sphi 0, %s96
    %s111 = sphi 0, %s97
    %s115 = sphi 0, %s115
    %s117 = sphi 0, %s115
    %s118 = sphi 0, %s117
    %s132 = sphi 0, %s118
    %s136 = sphi 0, %s136
    %s138 = sphi 0, %s136
    %s139 = sphi 0, %s138
    %s153 = sphi 0, %s139
    %s157 = sphi 0, %s157
    %s159 = sphi 0, %s157
    %s160 = sphi 0, %s159
    %s174 = sphi 0, %s160
    %s178 = sphi 0, %s178
    %s180 = sphi 0, %s178
    %s181 = sphi 0, %s180
    %s195 = sphi 0, %s181
  $region4: #{channel_attention_forward.2} parent=0 // loop_header_branch
    %16 = sbr.rel (%p14) target = $region8
  $region5: #{channel_attention_forward.2} parent=0 // loop_body
    %s18 = ssub.s32 %s13, 1
    %s19 = ssub.s32 %s13, 2
    %s20 = sadd.s32 %s13, 1
    %s21 = ssub.s32 %s13, %s20
    %p22 = scmp.eq.s32.totalorder %s21, 0
    %s24 = sadd.s32 %s23, 1
    %s25 = scalar_select %p22, %s23, %s24
    %p28 = pneg %p22
    %p29 = scmp.eq.s32.totalorder %s13, 3
    %p30 = por %p28, %p29
    %p31 = scmp.ne.s32.totalorder %s23, %s26
    %p32 = scmp.eq.s32.totalorder %s13, 0
    %p33 = por %p31, %p32
    %p34 = scmp.ne.s32.totalorder %s23, %s26
    %p35 = scmp.eq.s32.totalorder %s18, 3
    %p36 = por %p34, %p35
    %p37 = scmp.ne.s32.totalorder %s26, %s27
    %p38 = scmp.eq.s32.totalorder %s18, 0
    %p39 = por %p37, %p38
    %p40 = scmp.ne.s32.totalorder %s26, %s27
    %p41 = scmp.eq.s32.totalorder %s19, 3
    %p42 = por %p40, %p41
    %p44 = scmp.ne.s32.totalorder %s27, %s43
    %p45 = scmp.eq.s32.totalorder %s19, 0
    %p46 = por %p44, %p45
    %s47 = ssub.s32 %s13, %s20
    %p48 = scmp.eq.s32.totalorder %s47, 0
    %s50 = sadd.s32 %s49, 1
    %s51 = scalar_select %p48, %s49, %s50
    %p54 = pneg %p48
    %p55 = scmp.eq.s32.totalorder %s13, 3
    %p56 = por %p54, %p55
    %p57 = scmp.ne.s32.totalorder %s49, %s52
    %p58 = scmp.eq.s32.totalorder %s13, 0
    %p59 = por %p57, %p58
    %p60 = scmp.ne.s32.totalorder %s49, %s52
    %p61 = scmp.eq.s32.totalorder %s18, 3
    %p62 = por %p60, %p61
    %p63 = scmp.ne.s32.totalorder %s52, %s53
    %p64 = scmp.eq.s32.totalorder %s18, 0
    %p65 = por %p63, %p64
    %p66 = scmp.ne.s32.totalorder %s52, %s53
    %p67 = scmp.eq.s32.totalorder %s19, 3
    %p68 = por %p66, %p67
    %p70 = scmp.ne.s32.totalorder %s53, %s69
    %p71 = scmp.eq.s32.totalorder %s19, 0
    %p72 = por %p70, %p71
    %s74 = sadd.s32 %s73, 1
    %p77 = scmp.eq.s32.totalorder %s13, 3
    %p78 = scmp.ne.s32.totalorder %s73, %s75
    %p79 = scmp.eq.s32.totalorder %s13, 0
    %p80 = por %p78, %p79
    %p81 = scmp.ne.s32.totalorder %s73, %s75
    %p82 = scmp.eq.s32.totalorder %s18, 3
    %p83 = por %p81, %p82
    %p84 = scmp.ne.s32.totalorder %s75, %s76
    %p85 = scmp.eq.s32.totalorder %s18, 0
    %p86 = por %p84, %p85
    %p87 = scmp.ne.s32.totalorder %s75, %s76
    %p88 = scmp.eq.s32.totalorder %s19, 3
    %p89 = por %p87, %p88
    %p91 = scmp.ne.s32.totalorder %s76, %s90
    %p92 = scmp.eq.s32.totalorder %s19, 0
    %p93 = por %p91, %p92
    %s95 = sadd.s32 %s94, 1
    %p98 = scmp.eq.s32.totalorder %s13, 3
    %p99 = scmp.ne.s32.totalorder %s94, %s96
    %p100 = scmp.eq.s32.totalorder %s13, 0
    %p101 = por %p99, %p100
    %p102 = scmp.ne.s32.totalorder %s94, %s96
    %p103 = scmp.eq.s32.totalorder %s18, 3
    %p104 = por %p102, %p103
    %p105 = scmp.ne.s32.totalorder %s96, %s97
    %p106 = scmp.eq.s32.totalorder %s18, 0
    %p107 = por %p105, %p106
    %p108 = scmp.ne.s32.totalorder %s96, %s97
    %p109 = scmp.eq.s32.totalorder %s19, 3
    %p110 = por %p108, %p109
    %p112 = scmp.ne.s32.totalorder %s97, %s111
    %p113 = scmp.eq.s32.totalorder %s19, 0
    %p114 = por %p112, %p113
    %s116 = sadd.s32 %s115, 1
    %p119 = scmp.eq.s32.totalorder %s13, 3
    %p120 = scmp.ne.s32.totalorder %s115, %s117
    %p121 = scmp.eq.s32.totalorder %s13, 0
    %p122 = por %p120, %p121
    %p123 = scmp.ne.s32.totalorder %s115, %s117
    %p124 = scmp.eq.s32.totalorder %s18, 3
    %p125 = por %p123, %p124
    %p126 = scmp.ne.s32.totalorder %s117, %s118
    %p127 = scmp.eq.s32.totalorder %s18, 0
    %p128 = por %p126, %p127
    %p129 = scmp.ne.s32.totalorder %s117, %s118
    %p130 = scmp.eq.s32.totalorder %s19, 3
    %p131 = por %p129, %p130
    %p133 = scmp.ne.s32.totalorder %s118, %s132
    %p134 = scmp.eq.s32.totalorder %s19, 0
    %p135 = por %p133, %p134
    %s137 = sadd.s32 %s136, 1
    %p140 = scmp.eq.s32.totalorder %s13, 3
    %p141 = scmp.ne.s32.totalorder %s136, %s138
    %p142 = scmp.eq.s32.totalorder %s13, 0
    %p143 = por %p141, %p142
    %p144 = scmp.ne.s32.totalorder %s136, %s138
    %p145 = scmp.eq.s32.totalorder %s18, 3
    %p146 = por %p144, %p145
    %p147 = scmp.ne.s32.totalorder %s138, %s139
    %p148 = scmp.eq.s32.totalorder %s18, 0
    %p149 = por %p147, %p148
    %p150 = scmp.ne.s32.totalorder %s138, %s139
    %p151 = scmp.eq.s32.totalorder %s19, 3
    %p152 = por %p150, %p151
    %p154 = scmp.ne.s32.totalorder %s139, %s153
    %p155 = scmp.eq.s32.totalorder %s19, 0
    %p156 = por %p154, %p155
    %s158 = sadd.s32 %s157, 1
    %p161 = scmp.eq.s32.totalorder %s13, 3
    %p162 = scmp.ne.s32.totalorder %s157, %s159
    %p163 = scmp.eq.s32.totalorder %s13, 0
    %p164 = por %p162, %p163
    %p165 = scmp.ne.s32.totalorder %s157, %s159
    %p166 = scmp.eq.s32.totalorder %s18, 3
    %p167 = por %p165, %p166
    %p168 = scmp.ne.s32.totalorder %s159, %s160
    %p169 = scmp.eq.s32.totalorder %s18, 0
    %p170 = por %p168, %p169
    %p171 = scmp.ne.s32.totalorder %s159, %s160
    %p172 = scmp.eq.s32.totalorder %s19, 3
    %p173 = por %p171, %p172
    %p175 = scmp.ne.s32.totalorder %s160, %s174
    %p176 = scmp.eq.s32.totalorder %s19, 0
    %p177 = por %p175, %p176
    %s179 = sadd.s32 %s178, 1
    %p182 = scmp.eq.s32.totalorder %s13, 3
    %p183 = scmp.ne.s32.totalorder %s178, %s180
    %p184 = scmp.eq.s32.totalorder %s13, 0
    %p185 = por %p183, %p184
    %p186 = scmp.ne.s32.totalorder %s178, %s180
    %p187 = scmp.eq.s32.totalorder %s18, 3
    %p188 = por %p186, %p187
    %p189 = scmp.ne.s32.totalorder %s180, %s181
    %p190 = scmp.eq.s32.totalorder %s18, 0
    %p191 = por %p189, %p190
    %p192 = scmp.ne.s32.totalorder %s180, %s181
    %p193 = scmp.eq.s32.totalorder %s19, 3
    %p194 = por %p192, %p193
    %p196 = scmp.ne.s32.totalorder %s181, %s195
    %p197 = scmp.eq.s32.totalorder %s19, 0
    %p198 = por %p196, %p197
    %p199 = scmp.le.s32.totalorder 1, %s13
    %p200 = scmp.lt.s32.totalorder %s13, 5
    %p201 = pnand %p199, %p200
    %p202 = pneg %p201
    // Predicated region
    $region9: #{channel_attention_forward.2} parent=5 // pred_check
      _
    $region10: #{channel_attention_forward.2} parent=5 // pred_check_branch
      %204 = sbr.rel (%p201) target = $region12
    $region11: #{channel_attention_forward.2} parent=5 // pred_region
      %s205 = ssub.s32 %s13, 1
      // Predicated region
      $region13: #{channel_attention_forward.2} parent=11 // pred_check
        %p206 = pneg %p86
      $region14: #{channel_attention_forward.2} parent=11 // pred_check_branch
        %208 = sbr.rel (%p206) target = $region16
      $region15: #{channel_attention_forward.2} parent=11 // pred_region
        _
      $region16: #{channel_attention_forward.2} parent=11 // pred_fallthru
        _
      // Predicated region
      $region17: #{channel_attention_forward.2} parent=11 // pred_check
        %p209 = pneg %p107
      $region18: #{channel_attention_forward.2} parent=11 // pred_check_branch
        %211 = sbr.rel (%p209) target = $region20
      $region19: #{channel_attention_forward.2} parent=11 // pred_region
        _
      $region20: #{channel_attention_forward.2} parent=11 // pred_fallthru
        _
      // Predicated region
      $region21: #{channel_attention_forward.2} parent=11 // pred_check
        %p212 = pneg %p128
      $region22: #{channel_attention_forward.2} parent=11 // pred_check_branch
        %214 = sbr.rel (%p212) target = $region24
      $region23: #{channel_attention_forward.2} parent=11 // pred_region
        _
      $region24: #{channel_attention_forward.2} parent=11 // pred_fallthru
        _
      // Predicated region
      $region25: #{channel_attention_forward.2} parent=11 // pred_check
        %p215 = pneg %p149
      $region26: #{channel_attention_forward.2} parent=11 // pred_check_branch
        %217 = sbr.rel (%p215) target = $region28
      $region27: #{channel_attention_forward.2} parent=11 // pred_region
        _
      $region28: #{channel_attention_forward.2} parent=11 // pred_fallthru
        _
      // Predicated region
      $region29: #{channel_attention_forward.2} parent=11 // pred_check
        %p218 = pneg %p170
      $region30: #{channel_attention_forward.2} parent=11 // pred_check_branch
        %220 = sbr.rel (%p218) target = $region32
      $region31: #{channel_attention_forward.2} parent=11 // pred_region
        _
      $region32: #{channel_attention_forward.2} parent=11 // pred_fallthru
        _
    $region12: #{channel_attention_forward.2} parent=5 // pred_fallthru
      _
    %p221 = scmp.lt.s32.totalorder %s13, 4
    // Predicated region
    $region33: #{channel_attention_forward.2} parent=5 // pred_check
      %p222 = pneg %p221
    $region34: #{channel_attention_forward.2} parent=5 // pred_check_branch
      %224 = sbr.rel (%p222) target = $region36
    $region35: #{channel_attention_forward.2} parent=5 // pred_region
      // Predicated region
      $region37: #{channel_attention_forward.2} parent=35 // pred_check
        %p225 = pneg %p33
      $region38: #{channel_attention_forward.2} parent=35 // pred_check_branch
        %227 = sbr.rel (%p225) target = $region40
      $region39: #{channel_attention_forward.2} parent=35 // pred_region
        %s228 = smul.u32 64, %s13
        %p229 = scmp.lt.s32.totalorder %s228, 255
        %s230 = scalar_select %p229, %s228, 255
        %s231 = smul.addr %s230, 8
        %s232 = scalar_lea.vmem %s0, %s231
        %s233 = smul.u32 64, %s13
      $region40: #{channel_attention_forward.2} parent=35 // pred_fallthru
        _
      // Predicated region
      $region41: #{channel_attention_forward.2} parent=35 // pred_check
        %p234 = pneg %p59
      $region42: #{channel_attention_forward.2} parent=35 // pred_check_branch
        %236 = sbr.rel (%p234) target = $region44
      $region43: #{channel_attention_forward.2} parent=35 // pred_region
        %s237 = smul.u32 64, %s13
        %p238 = scmp.lt.s32.totalorder %s237, 255
        %s239 = scalar_select %p238, %s237, 255
        %s240 = smul.addr %s239, 8
        %s241 = scalar_lea.vmem %s1, %s240
        %s242 = smul.u32 64, %s13
      $region44: #{channel_attention_forward.2} parent=35 // pred_fallthru
        _
    $region36: #{channel_attention_forward.2} parent=5 // pred_fallthru
      _
    %p243 = scmp.le.s32.totalorder 1, %s13
    %p244 = scmp.lt.s32.totalorder %s13, 5
    %p245 = pnand %p243, %p244
    %p246 = pneg %p245
    // Predicated region
    $region45: #{channel_attention_forward.2} parent=5 // pred_check
      _
    $region46: #{channel_attention_forward.2} parent=5 // pred_check_branch
      %248 = sbr.rel (%p245) target = $region48
    $region47: #{channel_attention_forward.2} parent=5 // pred_region
      %s249 = ssub.s32 %s13, 1
      %s250 = smul.u32 64, %s18
      %p251 = scmp.lt.s32.totalorder %s250, 255
      %s252 = scalar_select %p251, %s250, 255
      %s253 = smul.addr %s252, 8
      %s254 = scalar_lea.vmem %s0, %s253
      %p255 = pneg %p39
      %p256 = pneg %p36
      %s257 = smul.u32 64, %s18
      %p258 = scmp.lt.s32.totalorder %s257, 255
      %s259 = scalar_select %p258, %s257, 255
      %s260 = smul.addr %s259, 8
      %s261 = scalar_lea.vmem %s1, %s260
      %p262 = pneg %p65
      %p263 = pneg %p62
      %p264 = pneg %p86
      %p265 = pneg %p83
      %p266 = pneg %p107
      %p267 = pneg %p104
      %p268 = pneg %p128
      %p269 = pneg %p125
      %p270 = pneg %p149
      %p271 = pneg %p146
      %p272 = pneg %p170
      %p273 = pneg %p167
      %p274 = pneg %p191
      %p275 = pneg %p188
      %s276 = smul.u32 64, %s18
      %p277 = scmp.lt.s32.totalorder %s276, 255
      %s278 = scalar_select %p277, %s276, 255
      %s279 = smul.addr %s278, 8
      %s280 = scalar_lea.vmem %s0, %s279
      %s281 = smul.u32 64, %s18
      %s282 = smul.u32 64, %s18
      %p283 = scmp.lt.s32.totalorder %s282, 255
      %s284 = scalar_select %p283, %s282, 255
      %s285 = smul.addr %s284, 8
      %s286 = scalar_lea.vmem %s1, %s285
      %s287 = smul.u32 64, %s18
      %p288 = scmp.eq.s32.totalorder %s18, 0
      // Predicated region
      $region49: #{channel_attention_forward.2} parent=47 // pred_check
        %p289 = pneg %p288
      $region50: #{channel_attention_forward.2} parent=47 // pred_check_branch
        %291 = sbr.rel (%p289) target = $region52
      $region51: #{channel_attention_forward.2} parent=47 // pred_region
        %292 = vst [vmem:[#allocation2] sm:$0xff] 0.0
        %293 = vst [vmem:[#allocation3] sm:$0xff] -1e+30
      $region52: #{channel_attention_forward.2} parent=47 // pred_fallthru
        _
      %v294 = vld [vmem:[%s280] sm:$0xff]
      %v295 = vld [vmem:[%s280 + $0x8] sm:$0xff]
      %v296 = vld [vmem:[%s280 + $0x10] sm:$0xff]
      %v297 = vld [vmem:[%s280 + $0x18] sm:$0xff]
      %v298 = vld [vmem:[%s280 + $0x20] sm:$0xff]
      %v299 = vld [vmem:[%s280 + $0x28] sm:$0xff]
      %v300 = vld [vmem:[%s280 + $0x30] sm:$0xff]
      %v301 = vld [vmem:[%s280 + $0x38] sm:$0xff]
      %v302 = vld [vmem:[%s280 + $0x40] sm:$0xff]
      %v303 = vld [vmem:[%s280 + $0x48] sm:$0xff]
      %v304 = vld [vmem:[%s280 + $0x50] sm:$0xff]
      %v305 = vld [vmem:[%s280 + $0x58] sm:$0xff]
      %v306 = vld [vmem:[%s280 + $0x60] sm:$0xff]
      %v307 = vld [vmem:[%s280 + $0x68] sm:$0xff]
      %v308 = vld [vmem:[%s280 + $0x70] sm:$0xff]
      %v309 = vld [vmem:[%s280 + $0x78] sm:$0xff]
      %v310 = vld [vmem:[%s280 + $0x80] sm:$0xff]
      %v311 = vld [vmem:[%s280 + $0x88] sm:$0xff]
      %v312 = vld [vmem:[%s280 + $0x90] sm:$0xff]
      %v313 = vld [vmem:[%s280 + $0x98] sm:$0xff]
      %v314 = vld [vmem:[%s280 + $0xa0] sm:$0xff]
      %v315 = vld [vmem:[%s280 + $0xa8] sm:$0xff]
      %v316 = vld [vmem:[%s280 + $0xb0] sm:$0xff]
      %v317 = vld [vmem:[%s280 + $0xb8] sm:$0xff]
      %v318 = vld [vmem:[%s280 + $0xc0] sm:$0xff]
      %v319 = vld [vmem:[%s280 + $0xc8] sm:$0xff]
      %v320 = vld [vmem:[%s280 + $0xd0] sm:$0xff]
      %v321 = vld [vmem:[%s280 + $0xd8] sm:$0xff]
      %v322 = vld [vmem:[%s280 + $0xe0] sm:$0xff]
      %v323 = vld [vmem:[%s280 + $0xe8] sm:$0xff]
      %v324 = vld [vmem:[%s280 + $0xf0] sm:$0xff]
      %v325 = vld [vmem:[%s280 + $0xf8] sm:$0xff]
      %v326 = vld [vmem:[%s280 + $0x100] sm:$0xff]
      %v327 = vld [vmem:[%s280 + $0x108] sm:$0xff]
      %v328 = vld [vmem:[%s280 + $0x110] sm:$0xff]
      %v329 = vld [vmem:[%s280 + $0x118] sm:$0xff]
      %v330 = vld [vmem:[%s280 + $0x120] sm:$0xff]
      %v331 = vld [vmem:[%s280 + $0x128] sm:$0xff]
      %v332 = vld [vmem:[%s280 + $0x130] sm:$0xff]
      %v333 = vld [vmem:[%s280 + $0x138] sm:$0xff]
      %v334 = vld [vmem:[%s280 + $0x140] sm:$0xff]
      %v335 = vld [vmem:[%s280 + $0x148] sm:$0xff]
      %v336 = vld [vmem:[%s280 + $0x150] sm:$0xff]
      %v337 = vld [vmem:[%s280 + $0x158] sm:$0xff]
      %v338 = vld [vmem:[%s280 + $0x160] sm:$0xff]
      %v339 = vld [vmem:[%s280 + $0x168] sm:$0xff]
      %v340 = vld [vmem:[%s280 + $0x170] sm:$0xff]
      %v341 = vld [vmem:[%s280 + $0x178] sm:$0xff]
      %v342 = vld [vmem:[%s280 + $0x180] sm:$0xff]
      %v343 = vld [vmem:[%s280 + $0x188] sm:$0xff]
      %v344 = vld [vmem:[%s280 + $0x190] sm:$0xff]
      %v345 = vld [vmem:[%s280 + $0x198] sm:$0xff]
      %v346 = vld [vmem:[%s280 + $0x1a0] sm:$0xff]
      %v347 = vld [vmem:[%s280 + $0x1a8] sm:$0xff]
      %v348 = vld [vmem:[%s280 + $0x1b0] sm:$0xff]
      %v349 = vld [vmem:[%s280 + $0x1b8] sm:$0xff]
      %v350 = vld [vmem:[%s280 + $0x1c0] sm:$0xff]
      %v351 = vld [vmem:[%s280 + $0x1c8] sm:$0xff]
      %v352 = vld [vmem:[%s280 + $0x1d0] sm:$0xff]
      %v353 = vld [vmem:[%s280 + $0x1d8] sm:$0xff]
      %v354 = vld [vmem:[%s280 + $0x1e0] sm:$0xff]
      %v355 = vld [vmem:[%s280 + $0x1e8] sm:$0xff]
      %v356 = vld [vmem:[%s280 + $0x1f0] sm:$0xff]
      %v357 = vld [vmem:[%s280 + $0x1f8] sm:$0xff]
      %v358 = vld [vmem:[%s286] sm:$0xff]
      %v359 = vld [vmem:[%s286 + $0x8] sm:$0xff]
      %v360 = vld [vmem:[%s286 + $0x10] sm:$0xff]
      %v361 = vld [vmem:[%s286 + $0x18] sm:$0xff]
      %v362 = vld [vmem:[%s286 + $0x20] sm:$0xff]
      %v363 = vld [vmem:[%s286 + $0x28] sm:$0xff]
      %v364 = vld [vmem:[%s286 + $0x30] sm:$0xff]
      %v365 = vld [vmem:[%s286 + $0x38] sm:$0xff]
      %v366 = vld [vmem:[%s286 + $0x40] sm:$0xff]
      %v367 = vld [vmem:[%s286 + $0x48] sm:$0xff]
      %v368 = vld [vmem:[%s286 + $0x50] sm:$0xff]
      %v369 = vld [vmem:[%s286 + $0x58] sm:$0xff]
      %v370 = vld [vmem:[%s286 + $0x60] sm:$0xff]
      %v371 = vld [vmem:[%s286 + $0x68] sm:$0xff]
      %v372 = vld [vmem:[%s286 + $0x70] sm:$0xff]
      %v373 = vld [vmem:[%s286 + $0x78] sm:$0xff]
      %v374 = vld [vmem:[%s286 + $0x80] sm:$0xff]
      %v375 = vld [vmem:[%s286 + $0x88] sm:$0xff]
      %v376 = vld [vmem:[%s286 + $0x90] sm:$0xff]
      %v377 = vld [vmem:[%s286 + $0x98] sm:$0xff]
      %v378 = vld [vmem:[%s286 + $0xa0] sm:$0xff]
      %v379 = vld [vmem:[%s286 + $0xa8] sm:$0xff]
      %v380 = vld [vmem:[%s286 + $0xb0] sm:$0xff]
      %v381 = vld [vmem:[%s286 + $0xb8] sm:$0xff]
      %v382 = vld [vmem:[%s286 + $0xc0] sm:$0xff]
      %v383 = vld [vmem:[%s286 + $0xc8] sm:$0xff]
      %v384 = vld [vmem:[%s286 + $0xd0] sm:$0xff]
      %v385 = vld [vmem:[%s286 + $0xd8] sm:$0xff]
      %v386 = vld [vmem:[%s286 + $0xe0] sm:$0xff]
      %v387 = vld [vmem:[%s286 + $0xe8] sm:$0xff]
      %v388 = vld [vmem:[%s286 + $0xf0] sm:$0xff]
      %v389 = vld [vmem:[%s286 + $0xf8] sm:$0xff]
      %v390 = vld [vmem:[%s286 + $0x100] sm:$0xff]
      %v391 = vld [vmem:[%s286 + $0x108] sm:$0xff]
      %v392 = vld [vmem:[%s286 + $0x110] sm:$0xff]
      %v393 = vld [vmem:[%s286 + $0x118] sm:$0xff]
      %v394 = vld [vmem:[%s286 + $0x120] sm:$0xff]
      %v395 = vld [vmem:[%s286 + $0x128] sm:$0xff]
      %v396 = vld [vmem:[%s286 + $0x130] sm:$0xff]
      %v397 = vld [vmem:[%s286 + $0x138] sm:$0xff]
      %v398 = vld [vmem:[%s286 + $0x140] sm:$0xff]
      %v399 = vld [vmem:[%s286 + $0x148] sm:$0xff]
      %v400 = vld [vmem:[%s286 + $0x150] sm:$0xff]
      %v401 = vld [vmem:[%s286 + $0x158] sm:$0xff]
      %v402 = vld [vmem:[%s286 + $0x160] sm:$0xff]
      %v403 = vld [vmem:[%s286 + $0x168] sm:$0xff]
      %v404 = vld [vmem:[%s286 + $0x170] sm:$0xff]
      %v405 = vld [vmem:[%s286 + $0x178] sm:$0xff]
      %v406 = vld [vmem:[%s286 + $0x180] sm:$0xff]
      %v407 = vld [vmem:[%s286 + $0x188] sm:$0xff]
      %v408 = vld [vmem:[%s286 + $0x190] sm:$0xff]
      %v409 = vld [vmem:[%s286 + $0x198] sm:$0xff]
      %v410 = vld [vmem:[%s286 + $0x1a0] sm:$0xff]
      %v411 = vld [vmem:[%s286 + $0x1a8] sm:$0xff]
      %v412 = vld [vmem:[%s286 + $0x1b0] sm:$0xff]
      %v413 = vld [vmem:[%s286 + $0x1b8] sm:$0xff]
      %v414 = vld [vmem:[%s286 + $0x1c0] sm:$0xff]
      %v415 = vld [vmem:[%s286 + $0x1c8] sm:$0xff]
      %v416 = vld [vmem:[%s286 + $0x1d0] sm:$0xff]
      %v417 = vld [vmem:[%s286 + $0x1d8] sm:$0xff]
      %v418 = vld [vmem:[%s286 + $0x1e0] sm:$0xff]
      %v419 = vld [vmem:[%s286 + $0x1e8] sm:$0xff]
      %v420 = vld [vmem:[%s286 + $0x1f0] sm:$0xff]
      %v421 = vld [vmem:[%s286 + $0x1f8] sm:$0xff]
      %v422 = vlaneseq
      %v423 = vand.u32 %v422, 127
      %424 = vset.pattern.permute.xlu0 0
      %425 = vperm.xlu0 %424, %v358
      %v426 = vpop.permute.xlu0 %425
      %427 = vset.pattern.permute.xlu0 0
      %428 = vperm.xlu0 %427, %v359
      %v429 = vpop.permute.xlu0 %428
      %430 = vset.pattern.permute.xlu0 0
      %431 = vperm.xlu0 %430, %v360
      %v432 = vpop.permute.xlu0 %431
      %433 = vset.pattern.permute.xlu0 0
      %434 = vperm.xlu0 %433, %v361
      %v435 = vpop.permute.xlu0 %434
      %436 = vset.pattern.permute.xlu0 0
      %437 = vperm.xlu0 %436, %v362
      %v438 = vpop.permute.xlu0 %437
      %439 = vset.pattern.permute.xlu0 0
      %440 = vperm.xlu0 %439, %v363
      %v441 = vpop.permute.xlu0 %440
      %442 = vset.pattern.permute.xlu0 0
      %443 = vperm.xlu0 %442, %v364
      %v444 = vpop.permute.xlu0 %443
      %445 = vset.pattern.permute.xlu0 0
      %446 = vperm.xlu0 %445, %v365
      %v447 = vpop.permute.xlu0 %446
      %448 = vset.pattern.permute.xlu0 0
      %449 = vperm.xlu0 %448, %v366
      %v450 = vpop.permute.xlu0 %449
      %451 = vset.pattern.permute.xlu0 0
      %452 = vperm.xlu0 %451, %v367
      %v453 = vpop.permute.xlu0 %452
      %454 = vset.pattern.permute.xlu0 0
      %455 = vperm.xlu0 %454, %v368
      %v456 = vpop.permute.xlu0 %455
      %457 = vset.pattern.permute.xlu0 0
      %458 = vperm.xlu0 %457, %v369
      %v459 = vpop.permute.xlu0 %458
      %460 = vset.pattern.permute.xlu0 0
      %461 = vperm.xlu0 %460, %v370
      %v462 = vpop.permute.xlu0 %461
      %463 = vset.pattern.permute.xlu0 0
      %464 = vperm.xlu0 %463, %v371
      %v465 = vpop.permute.xlu0 %464
      %466 = vset.pattern.permute.xlu0 0
      %467 = vperm.xlu0 %466, %v372
      %v468 = vpop.permute.xlu0 %467
      %469 = vset.pattern.permute.xlu0 0
      %470 = vperm.xlu0 %469, %v373
      %v471 = vpop.permute.xlu0 %470
      %472 = vset.pattern.permute.xlu0 0
      %473 = vperm.xlu0 %472, %v374
      %v474 = vpop.permute.xlu0 %473
      %475 = vset.pattern.permute.xlu0 0
      %476 = vperm.xlu0 %475, %v375
      %v477 = vpop.permute.xlu0 %476
      %478 = vset.pattern.permute.xlu0 0
      %479 = vperm.xlu0 %478, %v376
      %v480 = vpop.permute.xlu0 %479
      %481 = vset.pattern.permute.xlu0 0
      %482 = vperm.xlu0 %481, %v377
      %v483 = vpop.permute.xlu0 %482
      %484 = vset.pattern.permute.xlu0 0
      %485 = vperm.xlu0 %484, %v378
      %v486 = vpop.permute.xlu0 %485
      %487 = vset.pattern.permute.xlu0 0
      %488 = vperm.xlu0 %487, %v379
      %v489 = vpop.permute.xlu0 %488
      %490 = vset.pattern.permute.xlu0 0
      %491 = vperm.xlu0 %490, %v380
      %v492 = vpop.permute.xlu0 %491
      %493 = vset.pattern.permute.xlu0 0
      %494 = vperm.xlu0 %493, %v381
      %v495 = vpop.permute.xlu0 %494
      %496 = vset.pattern.permute.xlu0 0
      %497 = vperm.xlu0 %496, %v382
      %v498 = vpop.permute.xlu0 %497
      %499 = vset.pattern.permute.xlu0 0
      %500 = vperm.xlu0 %499, %v383
      %v501 = vpop.permute.xlu0 %500
      %502 = vset.pattern.permute.xlu0 0
      %503 = vperm.xlu0 %502, %v384
      %v504 = vpop.permute.xlu0 %503
      %505 = vset.pattern.permute.xlu0 0
      %506 = vperm.xlu0 %505, %v385
      %v507 = vpop.permute.xlu0 %506
      %508 = vset.pattern.permute.xlu0 0
      %509 = vperm.xlu0 %508, %v386
      %v510 = vpop.permute.xlu0 %509
      %511 = vset.pattern.permute.xlu0 0
      %512 = vperm.xlu0 %511, %v387
      %v513 = vpop.permute.xlu0 %512
      %514 = vset.pattern.permute.xlu0 0
      %515 = vperm.xlu0 %514, %v388
      %v516 = vpop.permute.xlu0 %515
      %517 = vset.pattern.permute.xlu0 0
      %518 = vperm.xlu0 %517, %v389
      %v519 = vpop.permute.xlu0 %518
      %520 = vset.pattern.permute.xlu0 0
      %521 = vperm.xlu0 %520, %v390
      %v522 = vpop.permute.xlu0 %521
      %523 = vset.pattern.permute.xlu0 0
      %524 = vperm.xlu0 %523, %v391
      %v525 = vpop.permute.xlu0 %524
      %526 = vset.pattern.permute.xlu0 0
      %527 = vperm.xlu0 %526, %v392
      %v528 = vpop.permute.xlu0 %527
      %529 = vset.pattern.permute.xlu0 0
      %530 = vperm.xlu0 %529, %v393
      %v531 = vpop.permute.xlu0 %530
      %532 = vset.pattern.permute.xlu0 0
      %533 = vperm.xlu0 %532, %v394
      %v534 = vpop.permute.xlu0 %533
      %535 = vset.pattern.permute.xlu0 0
      %536 = vperm.xlu0 %535, %v395
      %v537 = vpop.permute.xlu0 %536
      %538 = vset.pattern.permute.xlu0 0
      %539 = vperm.xlu0 %538, %v396
      %v540 = vpop.permute.xlu0 %539
      %541 = vset.pattern.permute.xlu0 0
      %542 = vperm.xlu0 %541, %v397
      %v543 = vpop.permute.xlu0 %542
      %544 = vset.pattern.permute.xlu0 0
      %545 = vperm.xlu0 %544, %v398
      %v546 = vpop.permute.xlu0 %545
      %547 = vset.pattern.permute.xlu0 0
      %548 = vperm.xlu0 %547, %v399
      %v549 = vpop.permute.xlu0 %548
      %550 = vset.pattern.permute.xlu0 0
      %551 = vperm.xlu0 %550, %v400
      %v552 = vpop.permute.xlu0 %551
      %553 = vset.pattern.permute.xlu0 0
      %554 = vperm.xlu0 %553, %v401
      %v555 = vpop.permute.xlu0 %554
      %556 = vset.pattern.permute.xlu0 0
      %557 = vperm.xlu0 %556, %v402
      %v558 = vpop.permute.xlu0 %557
      %559 = vset.pattern.permute.xlu0 0
      %560 = vperm.xlu0 %559, %v403
      %v561 = vpop.permute.xlu0 %560
      %562 = vset.pattern.permute.xlu0 0
      %563 = vperm.xlu0 %562, %v404
      %v564 = vpop.permute.xlu0 %563
      %565 = vset.pattern.permute.xlu0 0
      %566 = vperm.xlu0 %565, %v405
      %v567 = vpop.permute.xlu0 %566
      %568 = vset.pattern.permute.xlu0 0
      %569 = vperm.xlu0 %568, %v406
      %v570 = vpop.permute.xlu0 %569
      %571 = vset.pattern.permute.xlu0 0
      %572 = vperm.xlu0 %571, %v407
      %v573 = vpop.permute.xlu0 %572
      %574 = vset.pattern.permute.xlu0 0
      %575 = vperm.xlu0 %574, %v408
      %v576 = vpop.permute.xlu0 %575
      %577 = vset.pattern.permute.xlu0 0
      %578 = vperm.xlu0 %577, %v409
      %v579 = vpop.permute.xlu0 %578
      %580 = vset.pattern.permute.xlu0 0
      %581 = vperm.xlu0 %580, %v410
      %v582 = vpop.permute.xlu0 %581
      %583 = vset.pattern.permute.xlu0 0
      %584 = vperm.xlu0 %583, %v411
      %v585 = vpop.permute.xlu0 %584
      %586 = vset.pattern.permute.xlu0 0
      %587 = vperm.xlu0 %586, %v412
      %v588 = vpop.permute.xlu0 %587
      %589 = vset.pattern.permute.xlu0 0
      %590 = vperm.xlu0 %589, %v413
      %v591 = vpop.permute.xlu0 %590
      %592 = vset.pattern.permute.xlu0 0
      %593 = vperm.xlu0 %592, %v414
      %v594 = vpop.permute.xlu0 %593
      %595 = vset.pattern.permute.xlu0 0
      %596 = vperm.xlu0 %595, %v415
      %v597 = vpop.permute.xlu0 %596
      %598 = vset.pattern.permute.xlu0 0
      %599 = vperm.xlu0 %598, %v416
      %v600 = vpop.permute.xlu0 %599
      %601 = vset.pattern.permute.xlu0 0
      %602 = vperm.xlu0 %601, %v417
      %v603 = vpop.permute.xlu0 %602
      %604 = vset.pattern.permute.xlu0 0
      %605 = vperm.xlu0 %604, %v418
      %v606 = vpop.permute.xlu0 %605
      %607 = vset.pattern.permute.xlu0 0
      %608 = vperm.xlu0 %607, %v419
      %v609 = vpop.permute.xlu0 %608
      %610 = vset.pattern.permute.xlu0 0
      %611 = vperm.xlu0 %610, %v420
      %v612 = vpop.permute.xlu0 %611
      %613 = vset.pattern.permute.xlu0 0
      %614 = vperm.xlu0 %613, %v421
      %v615 = vpop.permute.xlu0 %614
      %vm616 = vcmp.eq.s32.totalorder %v426, %v423
      %vm617 = vcmp.eq.s32.totalorder %v429, %v423
      %vm618 = vcmp.eq.s32.totalorder %v432, %v423
      %vm619 = vcmp.eq.s32.totalorder %v435, %v423
      %vm620 = vcmp.eq.s32.totalorder %v438, %v423
      %vm621 = vcmp.eq.s32.totalorder %v441, %v423
      %vm622 = vcmp.eq.s32.totalorder %v444, %v423
      %vm623 = vcmp.eq.s32.totalorder %v447, %v423
      %vm624 = vcmp.eq.s32.totalorder %v450, %v423
      %vm625 = vcmp.eq.s32.totalorder %v453, %v423
      %vm626 = vcmp.eq.s32.totalorder %v456, %v423
      %vm627 = vcmp.eq.s32.totalorder %v459, %v423
      %vm628 = vcmp.eq.s32.totalorder %v462, %v423
      %vm629 = vcmp.eq.s32.totalorder %v465, %v423
      %vm630 = vcmp.eq.s32.totalorder %v468, %v423
      %vm631 = vcmp.eq.s32.totalorder %v471, %v423
      %vm632 = vcmp.eq.s32.totalorder %v474, %v423
      %vm633 = vcmp.eq.s32.totalorder %v477, %v423
      %vm634 = vcmp.eq.s32.totalorder %v480, %v423
      %vm635 = vcmp.eq.s32.totalorder %v483, %v423
      %vm636 = vcmp.eq.s32.totalorder %v486, %v423
      %vm637 = vcmp.eq.s32.totalorder %v489, %v423
      %vm638 = vcmp.eq.s32.totalorder %v492, %v423
      %vm639 = vcmp.eq.s32.totalorder %v495, %v423
      %vm640 = vcmp.eq.s32.totalorder %v498, %v423
      %vm641 = vcmp.eq.s32.totalorder %v501, %v423
      %vm642 = vcmp.eq.s32.totalorder %v504, %v423
      %vm643 = vcmp.eq.s32.totalorder %v507, %v423
      %vm644 = vcmp.eq.s32.totalorder %v510, %v423
      %vm645 = vcmp.eq.s32.totalorder %v513, %v423
      %vm646 = vcmp.eq.s32.totalorder %v516, %v423
      %vm647 = vcmp.eq.s32.totalorder %v519, %v423
      %vm648 = vcmp.eq.s32.totalorder %v522, %v423
      %vm649 = vcmp.eq.s32.totalorder %v525, %v423
      %vm650 = vcmp.eq.s32.totalorder %v528, %v423
      %vm651 = vcmp.eq.s32.totalorder %v531, %v423
      %vm652 = vcmp.eq.s32.totalorder %v534, %v423
      %vm653 = vcmp.eq.s32.totalorder %v537, %v423
      %vm654 = vcmp.eq.s32.totalorder %v540, %v423
      %vm655 = vcmp.eq.s32.totalorder %v543, %v423
      %vm656 = vcmp.eq.s32.totalorder %v546, %v423
      %vm657 = vcmp.eq.s32.totalorder %v549, %v423
      %vm658 = vcmp.eq.s32.totalorder %v552, %v423
      %vm659 = vcmp.eq.s32.totalorder %v555, %v423
      %vm660 = vcmp.eq.s32.totalorder %v558, %v423
      %vm661 = vcmp.eq.s32.totalorder %v561, %v423
      %vm662 = vcmp.eq.s32.totalorder %v564, %v423
      %vm663 = vcmp.eq.s32.totalorder %v567, %v423
      %vm664 = vcmp.eq.s32.totalorder %v570, %v423
      %vm665 = vcmp.eq.s32.totalorder %v573, %v423
      %vm666 = vcmp.eq.s32.totalorder %v576, %v423
      %vm667 = vcmp.eq.s32.totalorder %v579, %v423
      %vm668 = vcmp.eq.s32.totalorder %v582, %v423
      %vm669 = vcmp.eq.s32.totalorder %v585, %v423
      %vm670 = vcmp.eq.s32.totalorder %v588, %v423
      %vm671 = vcmp.eq.s32.totalorder %v591, %v423
      %vm672 = vcmp.eq.s32.totalorder %v594, %v423
      %vm673 = vcmp.eq.s32.totalorder %v597, %v423
      %vm674 = vcmp.eq.s32.totalorder %v600, %v423
      %vm675 = vcmp.eq.s32.totalorder %v603, %v423
      %vm676 = vcmp.eq.s32.totalorder %v606, %v423
      %vm677 = vcmp.eq.s32.totalorder %v609, %v423
      %vm678 = vcmp.eq.s32.totalorder %v612, %v423
      %vm679 = vcmp.eq.s32.totalorder %v615, %v423
      %v680 = vsel %vm616, 1, 0
      %v681 = vsel %vm617, 1, 0
      %v682 = vsel %vm618, 1, 0
      %v683 = vsel %vm619, 1, 0
      %v684 = vsel %vm620, 1, 0
      %v685 = vsel %vm621, 1, 0
      %v686 = vsel %vm622, 1, 0
      %v687 = vsel %vm623, 1, 0
      %v688 = vsel %vm624, 1, 0
      %v689 = vsel %vm625, 1, 0
      %v690 = vsel %vm626, 1, 0
      %v691 = vsel %vm627, 1, 0
      %v692 = vsel %vm628, 1, 0
      %v693 = vsel %vm629, 1, 0
      %v694 = vsel %vm630, 1, 0
      %v695 = vsel %vm631, 1, 0
      %v696 = vsel %vm632, 1, 0
      %v697 = vsel %vm633, 1, 0
      %v698 = vsel %vm634, 1, 0
      %v699 = vsel %vm635, 1, 0
      %v700 = vsel %vm636, 1, 0
      %v701 = vsel %vm637, 1, 0
      %v702 = vsel %vm638, 1, 0
      %v703 = vsel %vm639, 1, 0
      %v704 = vsel %vm640, 1, 0
      %v705 = vsel %vm641, 1, 0
      %v706 = vsel %vm642, 1, 0
      %v707 = vsel %vm643, 1, 0
      %v708 = vsel %vm644, 1, 0
      %v709 = vsel %vm645, 1, 0
      %v710 = vsel %vm646, 1, 0
      %v711 = vsel %vm647, 1, 0
      %v712 = vsel %vm648, 1, 0
      %v713 = vsel %vm649, 1, 0
      %v714 = vsel %vm650, 1, 0
      %v715 = vsel %vm651, 1, 0
      %v716 = vsel %vm652, 1, 0
      %v717 = vsel %vm653, 1, 0
      %v718 = vsel %vm654, 1, 0
      %v719 = vsel %vm655, 1, 0
      %v720 = vsel %vm656, 1, 0
      %v721 = vsel %vm657, 1, 0
      %v722 = vsel %vm658, 1, 0
      %v723 = vsel %vm659, 1, 0
      %v724 = vsel %vm660, 1, 0
      %v725 = vsel %vm661, 1, 0
      %v726 = vsel %vm662, 1, 0
      %v727 = vsel %vm663, 1, 0
      %v728 = vsel %vm664, 1, 0
      %v729 = vsel %vm665, 1, 0
      %v730 = vsel %vm666, 1, 0
      %v731 = vsel %vm667, 1, 0
      %v732 = vsel %vm668, 1, 0
      %v733 = vsel %vm669, 1, 0
      %v734 = vsel %vm670, 1, 0
      %v735 = vsel %vm671, 1, 0
      %v736 = vsel %vm672, 1, 0
      %v737 = vsel %vm673, 1, 0
      %v738 = vsel %vm674, 1, 0
      %v739 = vsel %vm675, 1, 0
      %v740 = vsel %vm676, 1, 0
      %v741 = vsel %vm677, 1, 0
      %v742 = vsel %vm678, 1, 0
      %v743 = vsel %vm679, 1, 0
      %v744 = vcvt.s32.f32 %v680
      %v745 = vcvt.s32.f32 %v681
      %v746 = vcvt.s32.f32 %v682
      %v747 = vcvt.s32.f32 %v683
      %v748 = vcvt.s32.f32 %v684
      %v749 = vcvt.s32.f32 %v685
      %v750 = vcvt.s32.f32 %v686
      %v751 = vcvt.s32.f32 %v687
      %v752 = vcvt.s32.f32 %v688
      %v753 = vcvt.s32.f32 %v689
      %v754 = vcvt.s32.f32 %v690
      %v755 = vcvt.s32.f32 %v691
      %v756 = vcvt.s32.f32 %v692
      %v757 = vcvt.s32.f32 %v693
      %v758 = vcvt.s32.f32 %v694
      %v759 = vcvt.s32.f32 %v695
      %v760 = vcvt.s32.f32 %v696
      %v761 = vcvt.s32.f32 %v697
      %v762 = vcvt.s32.f32 %v698
      %v763 = vcvt.s32.f32 %v699
      %v764 = vcvt.s32.f32 %v700
      %v765 = vcvt.s32.f32 %v701
      %v766 = vcvt.s32.f32 %v702
      %v767 = vcvt.s32.f32 %v703
      %v768 = vcvt.s32.f32 %v704
      %v769 = vcvt.s32.f32 %v705
      %v770 = vcvt.s32.f32 %v706
      %v771 = vcvt.s32.f32 %v707
      %v772 = vcvt.s32.f32 %v708
      %v773 = vcvt.s32.f32 %v709
      %v774 = vcvt.s32.f32 %v710
      %v775 = vcvt.s32.f32 %v711
      %v776 = vcvt.s32.f32 %v712
      %v777 = vcvt.s32.f32 %v713
      %v778 = vcvt.s32.f32 %v714
      %v779 = vcvt.s32.f32 %v715
      %v780 = vcvt.s32.f32 %v716
      %v781 = vcvt.s32.f32 %v717
      %v782 = vcvt.s32.f32 %v718
      %v783 = vcvt.s32.f32 %v719
      %v784 = vcvt.s32.f32 %v720
      %v785 = vcvt.s32.f32 %v721
      %v786 = vcvt.s32.f32 %v722
      %v787 = vcvt.s32.f32 %v723
      %v788 = vcvt.s32.f32 %v724
      %v789 = vcvt.s32.f32 %v725
      %v790 = vcvt.s32.f32 %v726
      %v791 = vcvt.s32.f32 %v727
      %v792 = vcvt.s32.f32 %v728
      %v793 = vcvt.s32.f32 %v729
      %v794 = vcvt.s32.f32 %v730
      %v795 = vcvt.s32.f32 %v731
      %v796 = vcvt.s32.f32 %v732
      %v797 = vcvt.s32.f32 %v733
      %v798 = vcvt.s32.f32 %v734
      %v799 = vcvt.s32.f32 %v735
      %v800 = vcvt.s32.f32 %v736
      %v801 = vcvt.s32.f32 %v737
      %v802 = vcvt.s32.f32 %v738
      %v803 = vcvt.s32.f32 %v739
      %v804 = vcvt.s32.f32 %v740
      %v805 = vcvt.s32.f32 %v741
      %v806 = vcvt.s32.f32 %v742
      %v807 = vcvt.s32.f32 %v743
      %v808 = vld [vmem:[#allocation2] sm:$0xff]
      %809 = vxpose.xlu0.b32.start [1/16] %v744, 128
      %810 = vxpose.xlu0.b32.cont [2/16] %v745, 128
      %811 = vxpose.xlu0.b32.cont [3/16] %v746, 128
      %812 = vxpose.xlu0.b32.cont [4/16] %v747, 128
      %813 = vxpose.xlu0.b32.cont [5/16] %v748, 128
      %814 = vxpose.xlu0.b32.cont [6/16] %v749, 128
      %815 = vxpose.xlu0.b32.cont [7/16] %v750, 128
      %816 = vxpose.xlu0.b32.cont [8/16] %v751, 128
      %817 = vxpose.xlu0.b32.cont [9/16] %v752, 128
      %818 = vxpose.xlu0.b32.cont [10/16] %v753, 128
      %819 = vxpose.xlu0.b32.cont [11/16] %v754, 128
      %820 = vxpose.xlu0.b32.cont [12/16] %v755, 128
      %821 = vxpose.xlu0.b32.cont [13/16] %v756, 128
      %822 = vxpose.xlu0.b32.cont [14/16] %v757, 128
      %823 = vxpose.xlu0.b32.cont [15/16] %v758, 128
      %824 = vxpose.xlu0.b32.end [16/16] %v759, 128
      %v825 = vpop.trf.xlu0
      %v826 = vpop.trf.xlu0
      %v827 = vpop.trf.xlu0
      %v828 = vpop.trf.xlu0
      %v829 = vpop.trf.xlu0
      %v830 = vpop.trf.xlu0
      %v831 = vpop.trf.xlu0
      %v832 = vpop.trf.xlu0
      %v833 = vpop.trf.xlu0
      %v834 = vpop.trf.xlu0
      %v835 = vpop.trf.xlu0
      %v836 = vpop.trf.xlu0
      %v837 = vpop.trf.xlu0
      %v838 = vpop.trf.xlu0
      %v839 = vpop.trf.xlu0
      %v840 = vpop.trf.xlu0
      %841 = vxpose.xlu0.b32.start [1/16] %v760, 128
      %842 = vxpose.xlu0.b32.cont [2/16] %v761, 128
      %843 = vxpose.xlu0.b32.cont [3/16] %v762, 128
      %844 = vxpose.xlu0.b32.cont [4/16] %v763, 128
      %845 = vxpose.xlu0.b32.cont [5/16] %v764, 128
      %846 = vxpose.xlu0.b32.cont [6/16] %v765, 128
      %847 = vxpose.xlu0.b32.cont [7/16] %v766, 128
      %848 = vxpose.xlu0.b32.cont [8/16] %v767, 128
      %849 = vxpose.xlu0.b32.cont [9/16] %v768, 128
      %850 = vxpose.xlu0.b32.cont [10/16] %v769, 128
      %851 = vxpose.xlu0.b32.cont [11/16] %v770, 128
      %852 = vxpose.xlu0.b32.cont [12/16] %v771, 128
      %853 = vxpose.xlu0.b32.cont [13/16] %v772, 128
      %854 = vxpose.xlu0.b32.cont [14/16] %v773, 128
      %855 = vxpose.xlu0.b32.cont [15/16] %v774, 128
      %856 = vxpose.xlu0.b32.end [16/16] %v775, 128
      %v857 = vpop.trf.xlu0
      %v858 = vpop.trf.xlu0
      %v859 = vpop.trf.xlu0
      %v860 = vpop.trf.xlu0
      %v861 = vpop.trf.xlu0
      %v862 = vpop.trf.xlu0
      %v863 = vpop.trf.xlu0
      %v864 = vpop.trf.xlu0
      %v865 = vpop.trf.xlu0
      %v866 = vpop.trf.xlu0
      %v867 = vpop.trf.xlu0
      %v868 = vpop.trf.xlu0
      %v869 = vpop.trf.xlu0
      %v870 = vpop.trf.xlu0
      %v871 = vpop.trf.xlu0
      %v872 = vpop.trf.xlu0
      %873 = vxpose.xlu0.b32.start [1/16] %v776, 128
      %874 = vxpose.xlu0.b32.cont [2/16] %v777, 128
      %875 = vxpose.xlu0.b32.cont [3/16] %v778, 128
      %876 = vxpose.xlu0.b32.cont [4/16] %v779, 128
      %877 = vxpose.xlu0.b32.cont [5/16] %v780, 128
      %878 = vxpose.xlu0.b32.cont [6/16] %v781, 128
      %879 = vxpose.xlu0.b32.cont [7/16] %v782, 128
      %880 = vxpose.xlu0.b32.cont [8/16] %v783, 128
      %881 = vxpose.xlu0.b32.cont [9/16] %v784, 128
      %882 = vxpose.xlu0.b32.cont [10/16] %v785, 128
      %883 = vxpose.xlu0.b32.cont [11/16] %v786, 128
      %884 = vxpose.xlu0.b32.cont [12/16] %v787, 128
      %885 = vxpose.xlu0.b32.cont [13/16] %v788, 128
      %886 = vxpose.xlu0.b32.cont [14/16] %v789, 128
      %887 = vxpose.xlu0.b32.cont [15/16] %v790, 128
      %888 = vxpose.xlu0.b32.end [16/16] %v791, 128
      %v889 = vpop.trf.xlu0
      %v890 = vpop.trf.xlu0
      %v891 = vpop.trf.xlu0
      %v892 = vpop.trf.xlu0
      %v893 = vpop.trf.xlu0
      %v894 = vpop.trf.xlu0
      %v895 = vpop.trf.xlu0
      %v896 = vpop.trf.xlu0
      %v897 = vpop.trf.xlu0
      %v898 = vpop.trf.xlu0
      %v899 = vpop.trf.xlu0
      %v900 = vpop.trf.xlu0
      %v901 = vpop.trf.xlu0
      %v902 = vpop.trf.xlu0
      %v903 = vpop.trf.xlu0
      %v904 = vpop.trf.xlu0
      %905 = vxpose.xlu0.b32.start [1/16] %v792, 128
      %906 = vxpose.xlu0.b32.cont [2/16] %v793, 128
      %907 = vxpose.xlu0.b32.cont [3/16] %v794, 128
      %908 = vxpose.xlu0.b32.cont [4/16] %v795, 128
      %909 = vxpose.xlu0.b32.cont [5/16] %v796, 128
      %910 = vxpose.xlu0.b32.cont [6/16] %v797, 128
      %911 = vxpose.xlu0.b32.cont [7/16] %v798, 128
      %912 = vxpose.xlu0.b32.cont [8/16] %v799, 128
      %913 = vxpose.xlu0.b32.cont [9/16] %v800, 128
      %914 = vxpose.xlu0.b32.cont [10/16] %v801, 128
      %915 = vxpose.xlu0.b32.cont [11/16] %v802, 128
      %916 = vxpose.xlu0.b32.cont [12/16] %v803, 128
      %917 = vxpose.xlu0.b32.cont [13/16] %v804, 128
      %918 = vxpose.xlu0.b32.cont [14/16] %v805, 128
      %919 = vxpose.xlu0.b32.cont [15/16] %v806, 128
      %920 = vxpose.xlu0.b32.end [16/16] %v807, 128
      %v921 = vpop.trf.xlu0
      %v922 = vpop.trf.xlu0
      %v923 = vpop.trf.xlu0
      %v924 = vpop.trf.xlu0
      %v925 = vpop.trf.xlu0
      %v926 = vpop.trf.xlu0
      %v927 = vpop.trf.xlu0
      %v928 = vpop.trf.xlu0
      %v929 = vpop.trf.xlu0
      %v930 = vpop.trf.xlu0
      %v931 = vpop.trf.xlu0
      %v932 = vpop.trf.xlu0
      %v933 = vpop.trf.xlu0
      %v934 = vpop.trf.xlu0
      %v935 = vpop.trf.xlu0
      %v936 = vpop.trf.xlu0
      %937 = vmatprep.subr.mxu0 0.0
      %938 = vmatpush1.msra.mxu0 %v294
      %939 = vmatprep.subr.mxu0 0.0
      %940 = vmatpush1.msra.mxu0 %v295
      %941 = vmatprep.subr.mxu0 0.0
      %942 = vmatpush1.msra.mxu0 %v296
      %943 = vmatprep.subr.mxu0 0.0
      %944 = vmatpush1.msra.mxu0 %v297
      %945 = vmatprep.subr.mxu0 0.0
      %946 = vmatpush1.msra.mxu0 %v298
      %947 = vmatprep.subr.mxu0 0.0
      %948 = vmatpush1.msra.mxu0 %v299
      %949 = vmatprep.subr.mxu0 0.0
      %950 = vmatpush1.msra.mxu0 %v300
      %951 = vmatprep.subr.mxu0 0.0
      %952 = vmatpush1.msra.mxu0 %v301
      %953 = vmatprep.subr.mxu0 0.0
      %954 = vmatpush1.msra.mxu0 %v302
      %955 = vmatprep.subr.mxu0 0.0
      %956 = vmatpush1.msra.mxu0 %v303
      %957 = vmatprep.subr.mxu0 0.0
      %958 = vmatpush1.msra.mxu0 %v304
      %959 = vmatprep.subr.mxu0 0.0
      %960 = vmatpush1.msra.mxu0 %v305
      %961 = vmatprep.subr.mxu0 0.0
      %962 = vmatpush1.msra.mxu0 %v306
      %963 = vmatprep.subr.mxu0 0.0
      %964 = vmatpush1.msra.mxu0 %v307
      %965 = vmatprep.subr.mxu0 0.0
      %966 = vmatpush1.msra.mxu0 %v308
      %967 = vmatprep.subr.mxu0 0.0
      %968 = vmatpush1.msra.mxu0 %v309
      %969 = vmatprep.subr.mxu0 0.0
      %970 = vmatpush1.msra.mxu0 %v310
      %971 = vmatprep.subr.mxu0 0.0
      %972 = vmatpush1.msra.mxu0 %v311
      %973 = vmatprep.subr.mxu0 0.0
      %974 = vmatpush1.msra.mxu0 %v312
      %975 = vmatprep.subr.mxu0 0.0
      %976 = vmatpush1.msra.mxu0 %v313
      %977 = vmatprep.subr.mxu0 0.0
      %978 = vmatpush1.msra.mxu0 %v314
      %979 = vmatprep.subr.mxu0 0.0
      %980 = vmatpush1.msra.mxu0 %v315
      %981 = vmatprep.subr.mxu0 0.0
      %982 = vmatpush1.msra.mxu0 %v316
      %983 = vmatprep.subr.mxu0 0.0
      %984 = vmatpush1.msra.mxu0 %v317
      %985 = vmatprep.subr.mxu0 0.0
      %986 = vmatpush1.msra.mxu0 %v318
      %987 = vmatprep.subr.mxu0 0.0
      %988 = vmatpush1.msra.mxu0 %v319
      %989 = vmatprep.subr.mxu0 0.0
      %990 = vmatpush1.msra.mxu0 %v320
      %991 = vmatprep.subr.mxu0 0.0
      %992 = vmatpush1.msra.mxu0 %v321
      %993 = vmatprep.subr.mxu0 0.0
      %994 = vmatpush1.msra.mxu0 %v322
      %995 = vmatprep.subr.mxu0 0.0
      %996 = vmatpush1.msra.mxu0 %v323
      %997 = vmatprep.subr.mxu0 0.0
      %998 = vmatpush1.msra.mxu0 %v324
      %999 = vmatprep.subr.mxu0 0.0
      %1000 = vmatpush1.msra.mxu0 %v325
      %1001 = vmatprep.mubr.f32.mxu0 %v857
      %1002 = vmatmul.mubr.f32.gmra.mrb[0].mxu0 %v825
      %v1003 = vpop.f32.mrb[0].mxu0
      %v1004 = vadd.f32 0.0, %v1003
      %v1005 = vpop.f32.mrb[0].mxu0
      %1006 = vdwg.mxu0
      %1007 = vmatprep.subr.mxu0 0.0
      %1008 = vmatpush1.msra.mxu0 %v326
      %1009 = vmatprep.subr.mxu0 0.0
      %1010 = vmatpush1.msra.mxu0 %v327
      %1011 = vmatprep.subr.mxu0 0.0
      %1012 = vmatpush1.msra.mxu0 %v328
      %1013 = vmatprep.subr.mxu0 0.0
      %1014 = vmatpush1.msra.mxu0 %v329
      %1015 = vmatprep.subr.mxu0 0.0
      %1016 = vmatpush1.msra.mxu0 %v330
      %1017 = vmatprep.subr.mxu0 0.0
      %1018 = vmatpush1.msra.mxu0 %v331
      %1019 = vmatprep.subr.mxu0 0.0
      %1020 = vmatpush1.msra.mxu0 %v332
      %1021 = vmatprep.subr.mxu0 0.0
      %1022 = vmatpush1.msra.mxu0 %v333
      %1023 = vmatprep.subr.mxu0 0.0
      %1024 = vmatpush1.msra.mxu0 %v334
      %1025 = vmatprep.subr.mxu0 0.0
      %1026 = vmatpush1.msra.mxu0 %v335
      %1027 = vmatprep.subr.mxu0 0.0
      %1028 = vmatpush1.msra.mxu0 %v336
      %1029 = vmatprep.subr.mxu0 0.0
      %1030 = vmatpush1.msra.mxu0 %v337
      %1031 = vmatprep.subr.mxu0 0.0
      %1032 = vmatpush1.msra.mxu0 %v338
      %1033 = vmatprep.subr.mxu0 0.0
      %1034 = vmatpush1.msra.mxu0 %v339
      %1035 = vmatprep.subr.mxu0 0.0
      %1036 = vmatpush1.msra.mxu0 %v340
      %1037 = vmatprep.subr.mxu0 0.0
      %1038 = vmatpush1.msra.mxu0 %v341
      %1039 = vmatprep.subr.mxu0 0.0
      %1040 = vmatpush1.msra.mxu0 %v342
      %1041 = vmatprep.subr.mxu0 0.0
      %1042 = vmatpush1.msra.mxu0 %v343
      %1043 = vmatprep.subr.mxu0 0.0
      %1044 = vmatpush1.msra.mxu0 %v344
      %1045 = vmatprep.subr.mxu0 0.0
      %1046 = vmatpush1.msra.mxu0 %v345
      %1047 = vmatprep.subr.mxu0 0.0
      %1048 = vmatpush1.msra.mxu0 %v346
      %1049 = vmatprep.subr.mxu0 0.0
      %1050 = vmatpush1.msra.mxu0 %v347
      %1051 = vmatprep.subr.mxu0 0.0
      %1052 = vmatpush1.msra.mxu0 %v348
      %1053 = vmatprep.subr.mxu0 0.0
      %1054 = vmatpush1.msra.mxu0 %v349
      %1055 = vmatprep.subr.mxu0 0.0
      %1056 = vmatpush1.msra.mxu0 %v350
      %1057 = vmatprep.subr.mxu0 0.0
      %1058 = vmatpush1.msra.mxu0 %v351
      %1059 = vmatprep.subr.mxu0 0.0
      %1060 = vmatpush1.msra.mxu0 %v352
      %1061 = vmatprep.subr.mxu0 0.0
      %1062 = vmatpush1.msra.mxu0 %v353
      %1063 = vmatprep.subr.mxu0 0.0
      %1064 = vmatpush1.msra.mxu0 %v354
      %1065 = vmatprep.subr.mxu0 0.0
      %1066 = vmatpush1.msra.mxu0 %v355
      %1067 = vmatprep.subr.mxu0 0.0
      %1068 = vmatpush1.msra.mxu0 %v356
      %1069 = vmatprep.subr.mxu0 0.0
      %1070 = vmatpush1.msra.mxu0 %v357
      %1071 = vmatprep.mubr.f32.mxu0 %v921
      %1072 = vmatmul.mubr.f32.gmra.mrb[0].mxu0 %v889
      %v1073 = vpop.f32.mrb[0].mxu0
      %v1074 = vadd.f32 %v1004, %v1073
      %v1075 = vpop.f32.mrb[0].mxu0
      %1076 = vdwg.mxu0
      %v1077 = vadd.f32 %v808, %v1074
      %1078 = vst [vmem:[#allocation2] sm:$0xff] %v1077
      %vm1079 = vcmp.eq.s32.totalorder %v358, 0
      %vm1080 = vcmp.eq.s32.totalorder %v359, 0
      %vm1081 = vcmp.eq.s32.totalorder %v360, 0
      %vm1082 = vcmp.eq.s32.totalorder %v361, 0
      %vm1083 = vcmp.eq.s32.totalorder %v362, 0
      %vm1084 = vcmp.eq.s32.totalorder %v363, 0
      %vm1085 = vcmp.eq.s32.totalorder %v364, 0
      %vm1086 = vcmp.eq.s32.totalorder %v365, 0
      %vm1087 = vcmp.eq.s32.totalorder %v366, 0
      %vm1088 = vcmp.eq.s32.totalorder %v367, 0
      %vm1089 = vcmp.eq.s32.totalorder %v368, 0
      %vm1090 = vcmp.eq.s32.totalorder %v369, 0
      %vm1091 = vcmp.eq.s32.totalorder %v370, 0
      %vm1092 = vcmp.eq.s32.totalorder %v371, 0
      %vm1093 = vcmp.eq.s32.totalorder %v372, 0
      %vm1094 = vcmp.eq.s32.totalorder %v373, 0
      %vm1095 = vcmp.eq.s32.totalorder %v374, 0
      %vm1096 = vcmp.eq.s32.totalorder %v375, 0
      %vm1097 = vcmp.eq.s32.totalorder %v376, 0
      %vm1098 = vcmp.eq.s32.totalorder %v377, 0
      %vm1099 = vcmp.eq.s32.totalorder %v378, 0
      %vm1100 = vcmp.eq.s32.totalorder %v379, 0
      %vm1101 = vcmp.eq.s32.totalorder %v380, 0
      %vm1102 = vcmp.eq.s32.totalorder %v381, 0
      %vm1103 = vcmp.eq.s32.totalorder %v382, 0
      %vm1104 = vcmp.eq.s32.totalorder %v383, 0
      %vm1105 = vcmp.eq.s32.totalorder %v384, 0
      %vm1106 = vcmp.eq.s32.totalorder %v385, 0
      %vm1107 = vcmp.eq.s32.totalorder %v386, 0
      %vm1108 = vcmp.eq.s32.totalorder %v387, 0
      %vm1109 = vcmp.eq.s32.totalorder %v388, 0
      %vm1110 = vcmp.eq.s32.totalorder %v389, 0
      %vm1111 = vcmp.eq.s32.totalorder %v390, 0
      %vm1112 = vcmp.eq.s32.totalorder %v391, 0
      %vm1113 = vcmp.eq.s32.totalorder %v392, 0
      %vm1114 = vcmp.eq.s32.totalorder %v393, 0
      %vm1115 = vcmp.eq.s32.totalorder %v394, 0
      %vm1116 = vcmp.eq.s32.totalorder %v395, 0
      %vm1117 = vcmp.eq.s32.totalorder %v396, 0
      %vm1118 = vcmp.eq.s32.totalorder %v397, 0
      %vm1119 = vcmp.eq.s32.totalorder %v398, 0
      %vm1120 = vcmp.eq.s32.totalorder %v399, 0
      %vm1121 = vcmp.eq.s32.totalorder %v400, 0
      %vm1122 = vcmp.eq.s32.totalorder %v401, 0
      %vm1123 = vcmp.eq.s32.totalorder %v402, 0
      %vm1124 = vcmp.eq.s32.totalorder %v403, 0
      %vm1125 = vcmp.eq.s32.totalorder %v404, 0
      %vm1126 = vcmp.eq.s32.totalorder %v405, 0
      %vm1127 = vcmp.eq.s32.totalorder %v406, 0
      %vm1128 = vcmp.eq.s32.totalorder %v407, 0
      %vm1129 = vcmp.eq.s32.totalorder %v408, 0
      %vm1130 = vcmp.eq.s32.totalorder %v409, 0
      %vm1131 = vcmp.eq.s32.totalorder %v410, 0
      %vm1132 = vcmp.eq.s32.totalorder %v411, 0
      %vm1133 = vcmp.eq.s32.totalorder %v412, 0
      %vm1134 = vcmp.eq.s32.totalorder %v413, 0
      %vm1135 = vcmp.eq.s32.totalorder %v414, 0
      %vm1136 = vcmp.eq.s32.totalorder %v415, 0
      %vm1137 = vcmp.eq.s32.totalorder %v416, 0
      %vm1138 = vcmp.eq.s32.totalorder %v417, 0
      %vm1139 = vcmp.eq.s32.totalorder %v418, 0
      %vm1140 = vcmp.eq.s32.totalorder %v419, 0
      %vm1141 = vcmp.eq.s32.totalorder %v420, 0
      %vm1142 = vcmp.eq.s32.totalorder %v421, 0
      %v1143 = vsel %vm1079, 1, 0
      %v1144 = vsel %vm1080, 1, 0
      %v1145 = vsel %vm1081, 1, 0
      %v1146 = vsel %vm1082, 1, 0
      %v1147 = vsel %vm1083, 1, 0
      %v1148 = vsel %vm1084, 1, 0
      %v1149 = vsel %vm1085, 1, 0
      %v1150 = vsel %vm1086, 1, 0
      %v1151 = vsel %vm1087, 1, 0
      %v1152 = vsel %vm1088, 1, 0
      %v1153 = vsel %vm1089, 1, 0
      %v1154 = vsel %vm1090, 1, 0
      %v1155 = vsel %vm1091, 1, 0
      %v1156 = vsel %vm1092, 1, 0
      %v1157 = vsel %vm1093, 1, 0
      %v1158 = vsel %vm1094, 1, 0
      %v1159 = vsel %vm1095, 1, 0
      %v1160 = vsel %vm1096, 1, 0
      %v1161 = vsel %vm1097, 1, 0
      %v1162 = vsel %vm1098, 1, 0
      %v1163 = vsel %vm1099, 1, 0
      %v1164 = vsel %vm1100, 1, 0
      %v1165 = vsel %vm1101, 1, 0
      %v1166 = vsel %vm1102, 1, 0
      %v1167 = vsel %vm1103, 1, 0
      %v1168 = vsel %vm1104, 1, 0
      %v1169 = vsel %vm1105, 1, 0
      %v1170 = vsel %vm1106, 1, 0
      %v1171 = vsel %vm1107, 1, 0
      %v1172 = vsel %vm1108, 1, 0
      %v1173 = vsel %vm1109, 1, 0
      %v1174 = vsel %vm1110, 1, 0
      %v1175 = vsel %vm1111, 1, 0
      %v1176 = vsel %vm1112, 1, 0
      %v1177 = vsel %vm1113, 1, 0
      %v1178 = vsel %vm1114, 1, 0
      %v1179 = vsel %vm1115, 1, 0
      %v1180 = vsel %vm1116, 1, 0
      %v1181 = vsel %vm1117, 1, 0
      %v1182 = vsel %vm1118, 1, 0
      %v1183 = vsel %vm1119, 1, 0
      %v1184 = vsel %vm1120, 1, 0
      %v1185 = vsel %vm1121, 1, 0
      %v1186 = vsel %vm1122, 1, 0
      %v1187 = vsel %vm1123, 1, 0
      %v1188 = vsel %vm1124, 1, 0
      %v1189 = vsel %vm1125, 1, 0
      %v1190 = vsel %vm1126, 1, 0
      %v1191 = vsel %vm1127, 1, 0
      %v1192 = vsel %vm1128, 1, 0
      %v1193 = vsel %vm1129, 1, 0
      %v1194 = vsel %vm1130, 1, 0
      %v1195 = vsel %vm1131, 1, 0
      %v1196 = vsel %vm1132, 1, 0
      %v1197 = vsel %vm1133, 1, 0
      %v1198 = vsel %vm1134, 1, 0
      %v1199 = vsel %vm1135, 1, 0
      %v1200 = vsel %vm1136, 1, 0
      %v1201 = vsel %vm1137, 1, 0
      %v1202 = vsel %vm1138, 1, 0
      %v1203 = vsel %vm1139, 1, 0
      %v1204 = vsel %vm1140, 1, 0
      %v1205 = vsel %vm1141, 1, 0
      %v1206 = vsel %vm1142, 1, 0
      %1207 = vset.pattern.permute.xlu0 0
      %1208 = vperm.xlu0 %1207, %v1143
      %v1209 = vpop.permute.xlu0 %1208
      %1210 = vset.pattern.permute.xlu0 0
      %1211 = vperm.xlu0 %1210, %v1144
      %v1212 = vpop.permute.xlu0 %1211
      %1213 = vset.pattern.permute.xlu0 0
      %1214 = vperm.xlu0 %1213, %v1145
      %v1215 = vpop.permute.xlu0 %1214
      %1216 = vset.pattern.permute.xlu0 0
      %1217 = vperm.xlu0 %1216, %v1146
      %v1218 = vpop.permute.xlu0 %1217
      %1219 = vset.pattern.permute.xlu0 0
      %1220 = vperm.xlu0 %1219, %v1147
      %v1221 = vpop.permute.xlu0 %1220
      %1222 = vset.pattern.permute.xlu0 0
      %1223 = vperm.xlu0 %1222, %v1148
      %v1224 = vpop.permute.xlu0 %1223
      %1225 = vset.pattern.permute.xlu0 0
      %1226 = vperm.xlu0 %1225, %v1149
      %v1227 = vpop.permute.xlu0 %1226
      %1228 = vset.pattern.permute.xlu0 0
      %1229 = vperm.xlu0 %1228, %v1150
      %v1230 = vpop.permute.xlu0 %1229
      %1231 = vset.pattern.permute.xlu0 0
      %1232 = vperm.xlu0 %1231, %v1151
      %v1233 = vpop.permute.xlu0 %1232
      %1234 = vset.pattern.permute.xlu0 0
      %1235 = vperm.xlu0 %1234, %v1152
      %v1236 = vpop.permute.xlu0 %1235
      %1237 = vset.pattern.permute.xlu0 0
      %1238 = vperm.xlu0 %1237, %v1153
      %v1239 = vpop.permute.xlu0 %1238
      %1240 = vset.pattern.permute.xlu0 0
      %1241 = vperm.xlu0 %1240, %v1154
      %v1242 = vpop.permute.xlu0 %1241
      %1243 = vset.pattern.permute.xlu0 0
      %1244 = vperm.xlu0 %1243, %v1155
      %v1245 = vpop.permute.xlu0 %1244
      %1246 = vset.pattern.permute.xlu0 0
      %1247 = vperm.xlu0 %1246, %v1156
      %v1248 = vpop.permute.xlu0 %1247
      %1249 = vset.pattern.permute.xlu0 0
      %1250 = vperm.xlu0 %1249, %v1157
      %v1251 = vpop.permute.xlu0 %1250
      %1252 = vset.pattern.permute.xlu0 0
      %1253 = vperm.xlu0 %1252, %v1158
      %v1254 = vpop.permute.xlu0 %1253
      %1255 = vset.pattern.permute.xlu0 0
      %1256 = vperm.xlu0 %1255, %v1159
      %v1257 = vpop.permute.xlu0 %1256
      %1258 = vset.pattern.permute.xlu0 0
      %1259 = vperm.xlu0 %1258, %v1160
      %v1260 = vpop.permute.xlu0 %1259
      %1261 = vset.pattern.permute.xlu0 0
      %1262 = vperm.xlu0 %1261, %v1161
      %v1263 = vpop.permute.xlu0 %1262
      %1264 = vset.pattern.permute.xlu0 0
      %1265 = vperm.xlu0 %1264, %v1162
      %v1266 = vpop.permute.xlu0 %1265
      %1267 = vset.pattern.permute.xlu0 0
      %1268 = vperm.xlu0 %1267, %v1163
      %v1269 = vpop.permute.xlu0 %1268
      %1270 = vset.pattern.permute.xlu0 0
      %1271 = vperm.xlu0 %1270, %v1164
      %v1272 = vpop.permute.xlu0 %1271
      %1273 = vset.pattern.permute.xlu0 0
      %1274 = vperm.xlu0 %1273, %v1165
      %v1275 = vpop.permute.xlu0 %1274
      %1276 = vset.pattern.permute.xlu0 0
      %1277 = vperm.xlu0 %1276, %v1166
      %v1278 = vpop.permute.xlu0 %1277
      %1279 = vset.pattern.permute.xlu0 0
      %1280 = vperm.xlu0 %1279, %v1167
      %v1281 = vpop.permute.xlu0 %1280
      %1282 = vset.pattern.permute.xlu0 0
      %1283 = vperm.xlu0 %1282, %v1168
      %v1284 = vpop.permute.xlu0 %1283
      %1285 = vset.pattern.permute.xlu0 0
      %1286 = vperm.xlu0 %1285, %v1169
      %v1287 = vpop.permute.xlu0 %1286
      %1288 = vset.pattern.permute.xlu0 0
      %1289 = vperm.xlu0 %1288, %v1170
      %v1290 = vpop.permute.xlu0 %1289
      %1291 = vset.pattern.permute.xlu0 0
      %1292 = vperm.xlu0 %1291, %v1171
      %v1293 = vpop.permute.xlu0 %1292
      %1294 = vset.pattern.permute.xlu0 0
      %1295 = vperm.xlu0 %1294, %v1172
      %v1296 = vpop.permute.xlu0 %1295
      %1297 = vset.pattern.permute.xlu0 0
      %1298 = vperm.xlu0 %1297, %v1173
      %v1299 = vpop.permute.xlu0 %1298
      %1300 = vset.pattern.permute.xlu0 0
      %1301 = vperm.xlu0 %1300, %v1174
      %v1302 = vpop.permute.xlu0 %1301
      %1303 = vset.pattern.permute.xlu0 0
      %1304 = vperm.xlu0 %1303, %v1175
      %v1305 = vpop.permute.xlu0 %1304
      %1306 = vset.pattern.permute.xlu0 0
      %1307 = vperm.xlu0 %1306, %v1176
      %v1308 = vpop.permute.xlu0 %1307
      %1309 = vset.pattern.permute.xlu0 0
      %1310 = vperm.xlu0 %1309, %v1177
      %v1311 = vpop.permute.xlu0 %1310
      %1312 = vset.pattern.permute.xlu0 0
      %1313 = vperm.xlu0 %1312, %v1178
      %v1314 = vpop.permute.xlu0 %1313
      %1315 = vset.pattern.permute.xlu0 0
      %1316 = vperm.xlu0 %1315, %v1179
      %v1317 = vpop.permute.xlu0 %1316
      %1318 = vset.pattern.permute.xlu0 0
      %1319 = vperm.xlu0 %1318, %v1180
      %v1320 = vpop.permute.xlu0 %1319
      %1321 = vset.pattern.permute.xlu0 0
      %1322 = vperm.xlu0 %1321, %v1181
      %v1323 = vpop.permute.xlu0 %1322
      %1324 = vset.pattern.permute.xlu0 0
      %1325 = vperm.xlu0 %1324, %v1182
      %v1326 = vpop.permute.xlu0 %1325
      %1327 = vset.pattern.permute.xlu0 0
      %1328 = vperm.xlu0 %1327, %v1183
      %v1329 = vpop.permute.xlu0 %1328
      %1330 = vset.pattern.permute.xlu0 0
      %1331 = vperm.xlu0 %1330, %v1184
      %v1332 = vpop.permute.xlu0 %1331
      %1333 = vset.pattern.permute.xlu0 0
      %1334 = vperm.xlu0 %1333, %v1185
      %v1335 = vpop.permute.xlu0 %1334
      %1336 = vset.pattern.permute.xlu0 0
      %1337 = vperm.xlu0 %1336, %v1186
      %v1338 = vpop.permute.xlu0 %1337
      %1339 = vset.pattern.permute.xlu0 0
      %1340 = vperm.xlu0 %1339, %v1187
      %v1341 = vpop.permute.xlu0 %1340
      %1342 = vset.pattern.permute.xlu0 0
      %1343 = vperm.xlu0 %1342, %v1188
      %v1344 = vpop.permute.xlu0 %1343
      %1345 = vset.pattern.permute.xlu0 0
      %1346 = vperm.xlu0 %1345, %v1189
      %v1347 = vpop.permute.xlu0 %1346
      %1348 = vset.pattern.permute.xlu0 0
      %1349 = vperm.xlu0 %1348, %v1190
      %v1350 = vpop.permute.xlu0 %1349
      %1351 = vset.pattern.permute.xlu0 0
      %1352 = vperm.xlu0 %1351, %v1191
      %v1353 = vpop.permute.xlu0 %1352
      %1354 = vset.pattern.permute.xlu0 0
      %1355 = vperm.xlu0 %1354, %v1192
      %v1356 = vpop.permute.xlu0 %1355
      %1357 = vset.pattern.permute.xlu0 0
      %1358 = vperm.xlu0 %1357, %v1193
      %v1359 = vpop.permute.xlu0 %1358
      %1360 = vset.pattern.permute.xlu0 0
      %1361 = vperm.xlu0 %1360, %v1194
      %v1362 = vpop.permute.xlu0 %1361
      %1363 = vset.pattern.permute.xlu0 0
      %1364 = vperm.xlu0 %1363, %v1195
      %v1365 = vpop.permute.xlu0 %1364
      %1366 = vset.pattern.permute.xlu0 0
      %1367 = vperm.xlu0 %1366, %v1196
      %v1368 = vpop.permute.xlu0 %1367
      %1369 = vset.pattern.permute.xlu0 0
      %1370 = vperm.xlu0 %1369, %v1197
      %v1371 = vpop.permute.xlu0 %1370
      %1372 = vset.pattern.permute.xlu0 0
      %1373 = vperm.xlu0 %1372, %v1198
      %v1374 = vpop.permute.xlu0 %1373
      %1375 = vset.pattern.permute.xlu0 0
      %1376 = vperm.xlu0 %1375, %v1199
      %v1377 = vpop.permute.xlu0 %1376
      %1378 = vset.pattern.permute.xlu0 0
      %1379 = vperm.xlu0 %1378, %v1200
      %v1380 = vpop.permute.xlu0 %1379
      %1381 = vset.pattern.permute.xlu0 0
      %1382 = vperm.xlu0 %1381, %v1201
      %v1383 = vpop.permute.xlu0 %1382
      %1384 = vset.pattern.permute.xlu0 0
      %1385 = vperm.xlu0 %1384, %v1202
      %v1386 = vpop.permute.xlu0 %1385
      %1387 = vset.pattern.permute.xlu0 0
      %1388 = vperm.xlu0 %1387, %v1203
      %v1389 = vpop.permute.xlu0 %1388
      %1390 = vset.pattern.permute.xlu0 0
      %1391 = vperm.xlu0 %1390, %v1204
      %v1392 = vpop.permute.xlu0 %1391
      %1393 = vset.pattern.permute.xlu0 0
      %1394 = vperm.xlu0 %1393, %v1205
      %v1395 = vpop.permute.xlu0 %1394
      %1396 = vset.pattern.permute.xlu0 0
      %1397 = vperm.xlu0 %1396, %v1206
      %v1398 = vpop.permute.xlu0 %1397
      %vm1399 = vcmp.eq.s32.totalorder %v1209, 1
      %vm1400 = vcmp.eq.s32.totalorder %v1212, 1
      %vm1401 = vcmp.eq.s32.totalorder %v1215, 1
      %vm1402 = vcmp.eq.s32.totalorder %v1218, 1
      %vm1403 = vcmp.eq.s32.totalorder %v1221, 1
      %vm1404 = vcmp.eq.s32.totalorder %v1224, 1
      %vm1405 = vcmp.eq.s32.totalorder %v1227, 1
      %vm1406 = vcmp.eq.s32.totalorder %v1230, 1
      %vm1407 = vcmp.eq.s32.totalorder %v1233, 1
      %vm1408 = vcmp.eq.s32.totalorder %v1236, 1
      %vm1409 = vcmp.eq.s32.totalorder %v1239, 1
      %vm1410 = vcmp.eq.s32.totalorder %v1242, 1
      %vm1411 = vcmp.eq.s32.totalorder %v1245, 1
      %vm1412 = vcmp.eq.s32.totalorder %v1248, 1
      %vm1413 = vcmp.eq.s32.totalorder %v1251, 1
      %vm1414 = vcmp.eq.s32.totalorder %v1254, 1
      %vm1415 = vcmp.eq.s32.totalorder %v1257, 1
      %vm1416 = vcmp.eq.s32.totalorder %v1260, 1
      %vm1417 = vcmp.eq.s32.totalorder %v1263, 1
      %vm1418 = vcmp.eq.s32.totalorder %v1266, 1
      %vm1419 = vcmp.eq.s32.totalorder %v1269, 1
      %vm1420 = vcmp.eq.s32.totalorder %v1272, 1
      %vm1421 = vcmp.eq.s32.totalorder %v1275, 1
      %vm1422 = vcmp.eq.s32.totalorder %v1278, 1
      %vm1423 = vcmp.eq.s32.totalorder %v1281, 1
      %vm1424 = vcmp.eq.s32.totalorder %v1284, 1
      %vm1425 = vcmp.eq.s32.totalorder %v1287, 1
      %vm1426 = vcmp.eq.s32.totalorder %v1290, 1
      %vm1427 = vcmp.eq.s32.totalorder %v1293, 1
      %vm1428 = vcmp.eq.s32.totalorder %v1296, 1
      %vm1429 = vcmp.eq.s32.totalorder %v1299, 1
      %vm1430 = vcmp.eq.s32.totalorder %v1302, 1
      %vm1431 = vcmp.eq.s32.totalorder %v1305, 1
      %vm1432 = vcmp.eq.s32.totalorder %v1308, 1
      %vm1433 = vcmp.eq.s32.totalorder %v1311, 1
      %vm1434 = vcmp.eq.s32.totalorder %v1314, 1
      %vm1435 = vcmp.eq.s32.totalorder %v1317, 1
      %vm1436 = vcmp.eq.s32.totalorder %v1320, 1
      %vm1437 = vcmp.eq.s32.totalorder %v1323, 1
      %vm1438 = vcmp.eq.s32.totalorder %v1326, 1
      %vm1439 = vcmp.eq.s32.totalorder %v1329, 1
      %vm1440 = vcmp.eq.s32.totalorder %v1332, 1
      %vm1441 = vcmp.eq.s32.totalorder %v1335, 1
      %vm1442 = vcmp.eq.s32.totalorder %v1338, 1
      %vm1443 = vcmp.eq.s32.totalorder %v1341, 1
      %vm1444 = vcmp.eq.s32.totalorder %v1344, 1
      %vm1445 = vcmp.eq.s32.totalorder %v1347, 1
      %vm1446 = vcmp.eq.s32.totalorder %v1350, 1
      %vm1447 = vcmp.eq.s32.totalorder %v1353, 1
      %vm1448 = vcmp.eq.s32.totalorder %v1356, 1
      %vm1449 = vcmp.eq.s32.totalorder %v1359, 1
      %vm1450 = vcmp.eq.s32.totalorder %v1362, 1
      %vm1451 = vcmp.eq.s32.totalorder %v1365, 1
      %vm1452 = vcmp.eq.s32.totalorder %v1368, 1
      %vm1453 = vcmp.eq.s32.totalorder %v1371, 1
      %vm1454 = vcmp.eq.s32.totalorder %v1374, 1
      %vm1455 = vcmp.eq.s32.totalorder %v1377, 1
      %vm1456 = vcmp.eq.s32.totalorder %v1380, 1
      %vm1457 = vcmp.eq.s32.totalorder %v1383, 1
      %vm1458 = vcmp.eq.s32.totalorder %v1386, 1
      %vm1459 = vcmp.eq.s32.totalorder %v1389, 1
      %vm1460 = vcmp.eq.s32.totalorder %v1392, 1
      %vm1461 = vcmp.eq.s32.totalorder %v1395, 1
      %vm1462 = vcmp.eq.s32.totalorder %v1398, 1
      %v1463 = vsel %vm1399, %v294, -1e+30
      %v1464 = vsel %vm1400, %v295, -1e+30
      %v1465 = vsel %vm1401, %v296, -1e+30
      %v1466 = vsel %vm1402, %v297, -1e+30
      %v1467 = vsel %vm1403, %v298, -1e+30
      %v1468 = vsel %vm1404, %v299, -1e+30
      %v1469 = vsel %vm1405, %v300, -1e+30
      %v1470 = vsel %vm1406, %v301, -1e+30
      %v1471 = vsel %vm1407, %v302, -1e+30
      %v1472 = vsel %vm1408, %v303, -1e+30
      %v1473 = vsel %vm1409, %v304, -1e+30
      %v1474 = vsel %vm1410, %v305, -1e+30
      %v1475 = vsel %vm1411, %v306, -1e+30
      %v1476 = vsel %vm1412, %v307, -1e+30
      %v1477 = vsel %vm1413, %v308, -1e+30
      %v1478 = vsel %vm1414, %v309, -1e+30
      %v1479 = vsel %vm1415, %v310, -1e+30
      %v1480 = vsel %vm1416, %v311, -1e+30
      %v1481 = vsel %vm1417, %v312, -1e+30
      %v1482 = vsel %vm1418, %v313, -1e+30
      %v1483 = vsel %vm1419, %v314, -1e+30
      %v1484 = vsel %vm1420, %v315, -1e+30
      %v1485 = vsel %vm1421, %v316, -1e+30
      %v1486 = vsel %vm1422, %v317, -1e+30
      %v1487 = vsel %vm1423, %v318, -1e+30
      %v1488 = vsel %vm1424, %v319, -1e+30
      %v1489 = vsel %vm1425, %v320, -1e+30
      %v1490 = vsel %vm1426, %v321, -1e+30
      %v1491 = vsel %vm1427, %v322, -1e+30
      %v1492 = vsel %vm1428, %v323, -1e+30
      %v1493 = vsel %vm1429, %v324, -1e+30
      %v1494 = vsel %vm1430, %v325, -1e+30
      %v1495 = vsel %vm1431, %v326, -1e+30
      %v1496 = vsel %vm1432, %v327, -1e+30
      %v1497 = vsel %vm1433, %v328, -1e+30
      %v1498 = vsel %vm1434, %v329, -1e+30
      %v1499 = vsel %vm1435, %v330, -1e+30
      %v1500 = vsel %vm1436, %v331, -1e+30
      %v1501 = vsel %vm1437, %v332, -1e+30
      %v1502 = vsel %vm1438, %v333, -1e+30
      %v1503 = vsel %vm1439, %v334, -1e+30
      %v1504 = vsel %vm1440, %v335, -1e+30
      %v1505 = vsel %vm1441, %v336, -1e+30
      %v1506 = vsel %vm1442, %v337, -1e+30
      %v1507 = vsel %vm1443, %v338, -1e+30
      %v1508 = vsel %vm1444, %v339, -1e+30
      %v1509 = vsel %vm1445, %v340, -1e+30
      %v1510 = vsel %vm1446, %v341, -1e+30
      %v1511 = vsel %vm1447, %v342, -1e+30
      %v1512 = vsel %vm1448, %v343, -1e+30
      %v1513 = vsel %vm1449, %v344, -1e+30
      %v1514 = vsel %vm1450, %v345, -1e+30
      %v1515 = vsel %vm1451, %v346, -1e+30
      %v1516 = vsel %vm1452, %v347, -1e+30
      %v1517 = vsel %vm1453, %v348, -1e+30
      %v1518 = vsel %vm1454, %v349, -1e+30
      %v1519 = vsel %vm1455, %v350, -1e+30
      %v1520 = vsel %vm1456, %v351, -1e+30
      %v1521 = vsel %vm1457, %v352, -1e+30
      %v1522 = vsel %vm1458, %v353, -1e+30
      %v1523 = vsel %vm1459, %v354, -1e+30
      %v1524 = vsel %vm1460, %v355, -1e+30
      %v1525 = vsel %vm1461, %v356, -1e+30
      %v1526 = vsel %vm1462, %v357, -1e+30
      %v1527 = vmax.f32 %v1463, %v1467
      %v1528 = vmax.f32 %v1464, %v1468
      %v1529 = vmax.f32 %v1465, %v1469
      %v1530 = vmax.f32 %v1466, %v1470
      %v1531 = vmax.f32 %v1527, %v1471
      %v1532 = vmax.f32 %v1528, %v1472
      %v1533 = vmax.f32 %v1529, %v1473
      %v1534 = vmax.f32 %v1530, %v1474
      %v1535 = vmax.f32 %v1531, %v1475
      %v1536 = vmax.f32 %v1532, %v1476
      %v1537 = vmax.f32 %v1533, %v1477
      %v1538 = vmax.f32 %v1534, %v1478
      %v1539 = vmax.f32 %v1535, %v1479
      %v1540 = vmax.f32 %v1536, %v1480
      %v1541 = vmax.f32 %v1537, %v1481
      %v1542 = vmax.f32 %v1538, %v1482
      %v1543 = vmax.f32 %v1539, %v1483
      %v1544 = vmax.f32 %v1540, %v1484
      %v1545 = vmax.f32 %v1541, %v1485
      %v1546 = vmax.f32 %v1542, %v1486
      %v1547 = vmax.f32 %v1543, %v1487
      %v1548 = vmax.f32 %v1544, %v1488
      %v1549 = vmax.f32 %v1545, %v1489
      %v1550 = vmax.f32 %v1546, %v1490
      %v1551 = vmax.f32 %v1547, %v1491
      %v1552 = vmax.f32 %v1548, %v1492
      %v1553 = vmax.f32 %v1549, %v1493
      %v1554 = vmax.f32 %v1550, %v1494
      %v1555 = vmax.f32 %v1551, %v1495
      %v1556 = vmax.f32 %v1552, %v1496
      %v1557 = vmax.f32 %v1553, %v1497
      %v1558 = vmax.f32 %v1554, %v1498
      %v1559 = vmax.f32 %v1555, %v1499
      %v1560 = vmax.f32 %v1556, %v1500
      %v1561 = vmax.f32 %v1557, %v1501
      %v1562 = vmax.f32 %v1558, %v1502
      %v1563 = vmax.f32 %v1559, %v1503
      %v1564 = vmax.f32 %v1560, %v1504
      %v1565 = vmax.f32 %v1561, %v1505
      %v1566 = vmax.f32 %v1562, %v1506
      %v1567 = vmax.f32 %v1563, %v1507
      %v1568 = vmax.f32 %v1564, %v1508
      %v1569 = vmax.f32 %v1565, %v1509
      %v1570 = vmax.f32 %v1566, %v1510
      %v1571 = vmax.f32 %v1567, %v1511
      %v1572 = vmax.f32 %v1568, %v1512
      %v1573 = vmax.f32 %v1569, %v1513
      %v1574 = vmax.f32 %v1570, %v1514
      %v1575 = vmax.f32 %v1571, %v1515
      %v1576 = vmax.f32 %v1572, %v1516
      %v1577 = vmax.f32 %v1573, %v1517
      %v1578 = vmax.f32 %v1574, %v1518
      %v1579 = vmax.f32 %v1575, %v1519
      %v1580 = vmax.f32 %v1576, %v1520
      %v1581 = vmax.f32 %v1577, %v1521
      %v1582 = vmax.f32 %v1578, %v1522
      %v1583 = vmax.f32 %v1579, %v1523
      %v1584 = vmax.f32 %v1580, %v1524
      %v1585 = vmax.f32 %v1581, %v1525
      %v1586 = vmax.f32 %v1582, %v1526
      %v1587 = vmax.f32 %v1583, %v1584
      %v1588 = vmax.f32 %v1585, %v1586
      %v1589 = vmax.f32 %v1587, %v1588
      %v1590 = vrot.slane %v1589, 4
      %v1591 = vmax.f32 %v1589, %v1590
      %v1592 = vrot.slane %v1591, 2
      %v1593 = vmax.f32 %v1591, %v1592
      %v1594 = vrot.slane %v1593, 1
      %v1595 = vmax.f32 %v1593, %v1594
      %vm1596 = vcmp.eq.s32.totalorder %v358, 1
      %vm1597 = vcmp.eq.s32.totalorder %v359, 1
      %vm1598 = vcmp.eq.s32.totalorder %v360, 1
      %vm1599 = vcmp.eq.s32.totalorder %v361, 1
      %vm1600 = vcmp.eq.s32.totalorder %v362, 1
      %vm1601 = vcmp.eq.s32.totalorder %v363, 1
      %vm1602 = vcmp.eq.s32.totalorder %v364, 1
      %vm1603 = vcmp.eq.s32.totalorder %v365, 1
      %vm1604 = vcmp.eq.s32.totalorder %v366, 1
      %vm1605 = vcmp.eq.s32.totalorder %v367, 1
      %vm1606 = vcmp.eq.s32.totalorder %v368, 1
      %vm1607 = vcmp.eq.s32.totalorder %v369, 1
      %vm1608 = vcmp.eq.s32.totalorder %v370, 1
      %vm1609 = vcmp.eq.s32.totalorder %v371, 1
      %vm1610 = vcmp.eq.s32.totalorder %v372, 1
      %vm1611 = vcmp.eq.s32.totalorder %v373, 1
      %vm1612 = vcmp.eq.s32.totalorder %v374, 1
      %vm1613 = vcmp.eq.s32.totalorder %v375, 1
      %vm1614 = vcmp.eq.s32.totalorder %v376, 1
      %vm1615 = vcmp.eq.s32.totalorder %v377, 1
      %vm1616 = vcmp.eq.s32.totalorder %v378, 1
      %vm1617 = vcmp.eq.s32.totalorder %v379, 1
      %vm1618 = vcmp.eq.s32.totalorder %v380, 1
      %vm1619 = vcmp.eq.s32.totalorder %v381, 1
      %vm1620 = vcmp.eq.s32.totalorder %v382, 1
      %vm1621 = vcmp.eq.s32.totalorder %v383, 1
      %vm1622 = vcmp.eq.s32.totalorder %v384, 1
      %vm1623 = vcmp.eq.s32.totalorder %v385, 1
      %vm1624 = vcmp.eq.s32.totalorder %v386, 1
      %vm1625 = vcmp.eq.s32.totalorder %v387, 1
      %vm1626 = vcmp.eq.s32.totalorder %v388, 1
      %vm1627 = vcmp.eq.s32.totalorder %v389, 1
      %vm1628 = vcmp.eq.s32.totalorder %v390, 1
      %vm1629 = vcmp.eq.s32.totalorder %v391, 1
      %vm1630 = vcmp.eq.s32.totalorder %v392, 1
      %vm1631 = vcmp.eq.s32.totalorder %v393, 1
      %vm1632 = vcmp.eq.s32.totalorder %v394, 1
      %vm1633 = vcmp.eq.s32.totalorder %v395, 1
      %vm1634 = vcmp.eq.s32.totalorder %v396, 1
      %vm1635 = vcmp.eq.s32.totalorder %v397, 1
      %vm1636 = vcmp.eq.s32.totalorder %v398, 1
      %vm1637 = vcmp.eq.s32.totalorder %v399, 1
      %vm1638 = vcmp.eq.s32.totalorder %v400, 1
      %vm1639 = vcmp.eq.s32.totalorder %v401, 1
      %vm1640 = vcmp.eq.s32.totalorder %v402, 1
      %vm1641 = vcmp.eq.s32.totalorder %v403, 1
      %vm1642 = vcmp.eq.s32.totalorder %v404, 1
      %vm1643 = vcmp.eq.s32.totalorder %v405, 1
      %vm1644 = vcmp.eq.s32.totalorder %v406, 1
      %vm1645 = vcmp.eq.s32.totalorder %v407, 1
      %vm1646 = vcmp.eq.s32.totalorder %v408, 1
      %vm1647 = vcmp.eq.s32.totalorder %v409, 1
      %vm1648 = vcmp.eq.s32.totalorder %v410, 1
      %vm1649 = vcmp.eq.s32.totalorder %v411, 1
      %vm1650 = vcmp.eq.s32.totalorder %v412, 1
      %vm1651 = vcmp.eq.s32.totalorder %v413, 1
      %vm1652 = vcmp.eq.s32.totalorder %v414, 1
      %vm1653 = vcmp.eq.s32.totalorder %v415, 1
      %vm1654 = vcmp.eq.s32.totalorder %v416, 1
      %vm1655 = vcmp.eq.s32.totalorder %v417, 1
      %vm1656 = vcmp.eq.s32.totalorder %v418, 1
      %vm1657 = vcmp.eq.s32.totalorder %v419, 1
      %vm1658 = vcmp.eq.s32.totalorder %v420, 1
      %vm1659 = vcmp.eq.s32.totalorder %v421, 1
      %v1660 = vsel %vm1596, 1, 0
      %v1661 = vsel %vm1597, 1, 0
      %v1662 = vsel %vm1598, 1, 0
      %v1663 = vsel %vm1599, 1, 0
      %v1664 = vsel %vm1600, 1, 0
      %v1665 = vsel %vm1601, 1, 0
      %v1666 = vsel %vm1602, 1, 0
      %v1667 = vsel %vm1603, 1, 0
      %v1668 = vsel %vm1604, 1, 0
      %v1669 = vsel %vm1605, 1, 0
      %v1670 = vsel %vm1606, 1, 0
      %v1671 = vsel %vm1607, 1, 0
      %v1672 = vsel %vm1608, 1, 0
      %v1673 = vsel %vm1609, 1, 0
      %v1674 = vsel %vm1610, 1, 0
      %v1675 = vsel %vm1611, 1, 0
      %v1676 = vsel %vm1612, 1, 0
      %v1677 = vsel %vm1613, 1, 0
      %v1678 = vsel %vm1614, 1, 0
      %v1679 = vsel %vm1615, 1, 0
      %v1680 = vsel %vm1616, 1, 0
      %v1681 = vsel %vm1617, 1, 0
      %v1682 = vsel %vm1618, 1, 0
      %v1683 = vsel %vm1619, 1, 0
      %v1684 = vsel %vm1620, 1, 0
      %v1685 = vsel %vm1621, 1, 0
      %v1686 = vsel %vm1622, 1, 0
      %v1687 = vsel %vm1623, 1, 0
      %v1688 = vsel %vm1624, 1, 0
      %v1689 = vsel %vm1625, 1, 0
      %v1690 = vsel %vm1626, 1, 0
      %v1691 = vsel %vm1627, 1, 0
      %v1692 = vsel %vm1628, 1, 0
      %v1693 = vsel %vm1629, 1, 0
      %v1694 = vsel %vm1630, 1, 0
      %v1695 = vsel %vm1631, 1, 0
      %v1696 = vsel %vm1632, 1, 0
      %v1697 = vsel %vm1633, 1, 0
      %v1698 = vsel %vm1634, 1, 0
      %v1699 = vsel %vm1635, 1, 0
      %v1700 = vsel %vm1636, 1, 0
      %v1701 = vsel %vm1637, 1, 0
      %v1702 = vsel %vm1638, 1, 0
      %v1703 = vsel %vm1639, 1, 0
      %v1704 = vsel %vm1640, 1, 0
      %v1705 = vsel %vm1641, 1, 0
      %v1706 = vsel %vm1642, 1, 0
      %v1707 = vsel %vm1643, 1, 0
      %v1708 = vsel %vm1644, 1, 0
      %v1709 = vsel %vm1645, 1, 0
      %v1710 = vsel %vm1646, 1, 0
      %v1711 = vsel %vm1647, 1, 0
      %v1712 = vsel %vm1648, 1, 0
      %v1713 = vsel %vm1649, 1, 0
      %v1714 = vsel %vm1650, 1, 0
      %v1715 = vsel %vm1651, 1, 0
      %v1716 = vsel %vm1652, 1, 0
      %v1717 = vsel %vm1653, 1, 0
      %v1718 = vsel %vm1654, 1, 0
      %v1719 = vsel %vm1655, 1, 0
      %v1720 = vsel %vm1656, 1, 0
      %v1721 = vsel %vm1657, 1, 0
      %v1722 = vsel %vm1658, 1, 0
      %v1723 = vsel %vm1659, 1, 0
      %1724 = vset.pattern.permute.xlu0 0
      %1725 = vperm.xlu0 %1724, %v1660
      %v1726 = vpop.permute.xlu0 %1725
      %1727 = vset.pattern.permute.xlu0 0
      %1728 = vperm.xlu0 %1727, %v1661
      %v1729 = vpop.permute.xlu0 %1728
      %1730 = vset.pattern.permute.xlu0 0
      %1731 = vperm.xlu0 %1730, %v1662
      %v1732 = vpop.permute.xlu0 %1731
      %1733 = vset.pattern.permute.xlu0 0
      %1734 = vperm.xlu0 %1733, %v1663
      %v1735 = vpop.permute.xlu0 %1734
      %1736 = vset.pattern.permute.xlu0 0
      %1737 = vperm.xlu0 %1736, %v1664
      %v1738 = vpop.permute.xlu0 %1737
      %1739 = vset.pattern.permute.xlu0 0
      %1740 = vperm.xlu0 %1739, %v1665
      %v1741 = vpop.permute.xlu0 %1740
      %1742 = vset.pattern.permute.xlu0 0
      %1743 = vperm.xlu0 %1742, %v1666
      %v1744 = vpop.permute.xlu0 %1743
      %1745 = vset.pattern.permute.xlu0 0
      %1746 = vperm.xlu0 %1745, %v1667
      %v1747 = vpop.permute.xlu0 %1746
      %1748 = vset.pattern.permute.xlu0 0
      %1749 = vperm.xlu0 %1748, %v1668
      %v1750 = vpop.permute.xlu0 %1749
      %1751 = vset.pattern.permute.xlu0 0
      %1752 = vperm.xlu0 %1751, %v1669
      %v1753 = vpop.permute.xlu0 %1752
      %1754 = vset.pattern.permute.xlu0 0
      %1755 = vperm.xlu0 %1754, %v1670
      %v1756 = vpop.permute.xlu0 %1755
      %1757 = vset.pattern.permute.xlu0 0
      %1758 = vperm.xlu0 %1757, %v1671
      %v1759 = vpop.permute.xlu0 %1758
      %1760 = vset.pattern.permute.xlu0 0
      %1761 = vperm.xlu0 %1760, %v1672
      %v1762 = vpop.permute.xlu0 %1761
      %1763 = vset.pattern.permute.xlu0 0
      %1764 = vperm.xlu0 %1763, %v1673
      %v1765 = vpop.permute.xlu0 %1764
      %1766 = vset.pattern.permute.xlu0 0
      %1767 = vperm.xlu0 %1766, %v1674
      %v1768 = vpop.permute.xlu0 %1767
      %1769 = vset.pattern.permute.xlu0 0
      %1770 = vperm.xlu0 %1769, %v1675
      %v1771 = vpop.permute.xlu0 %1770
      %1772 = vset.pattern.permute.xlu0 0
      %1773 = vperm.xlu0 %1772, %v1676
      %v1774 = vpop.permute.xlu0 %1773
      %1775 = vset.pattern.permute.xlu0 0
      %1776 = vperm.xlu0 %1775, %v1677
      %v1777 = vpop.permute.xlu0 %1776
      %1778 = vset.pattern.permute.xlu0 0
      %1779 = vperm.xlu0 %1778, %v1678
      %v1780 = vpop.permute.xlu0 %1779
      %1781 = vset.pattern.permute.xlu0 0
      %1782 = vperm.xlu0 %1781, %v1679
      %v1783 = vpop.permute.xlu0 %1782
      %1784 = vset.pattern.permute.xlu0 0
      %1785 = vperm.xlu0 %1784, %v1680
      %v1786 = vpop.permute.xlu0 %1785
      %1787 = vset.pattern.permute.xlu0 0
      %1788 = vperm.xlu0 %1787, %v1681
      %v1789 = vpop.permute.xlu0 %1788
      %1790 = vset.pattern.permute.xlu0 0
      %1791 = vperm.xlu0 %1790, %v1682
      %v1792 = vpop.permute.xlu0 %1791
      %1793 = vset.pattern.permute.xlu0 0
      %1794 = vperm.xlu0 %1793, %v1683
      %v1795 = vpop.permute.xlu0 %1794
      %1796 = vset.pattern.permute.xlu0 0
      %1797 = vperm.xlu0 %1796, %v1684
      %v1798 = vpop.permute.xlu0 %1797
      %1799 = vset.pattern.permute.xlu0 0
      %1800 = vperm.xlu0 %1799, %v1685
      %v1801 = vpop.permute.xlu0 %1800
      %1802 = vset.pattern.permute.xlu0 0
      %1803 = vperm.xlu0 %1802, %v1686
      %v1804 = vpop.permute.xlu0 %1803
      %1805 = vset.pattern.permute.xlu0 0
      %1806 = vperm.xlu0 %1805, %v1687
      %v1807 = vpop.permute.xlu0 %1806
      %1808 = vset.pattern.permute.xlu0 0
      %1809 = vperm.xlu0 %1808, %v1688
      %v1810 = vpop.permute.xlu0 %1809
      %1811 = vset.pattern.permute.xlu0 0
      %1812 = vperm.xlu0 %1811, %v1689
      %v1813 = vpop.permute.xlu0 %1812
      %1814 = vset.pattern.permute.xlu0 0
      %1815 = vperm.xlu0 %1814, %v1690
      %v1816 = vpop.permute.xlu0 %1815
      %1817 = vset.pattern.permute.xlu0 0
      %1818 = vperm.xlu0 %1817, %v1691
      %v1819 = vpop.permute.xlu0 %1818
      %1820 = vset.pattern.permute.xlu0 0
      %1821 = vperm.xlu0 %1820, %v1692
      %v1822 = vpop.permute.xlu0 %1821
      %1823 = vset.pattern.permute.xlu0 0
      %1824 = vperm.xlu0 %1823, %v1693
      %v1825 = vpop.permute.xlu0 %1824
      %1826 = vset.pattern.permute.xlu0 0
      %1827 = vperm.xlu0 %1826, %v1694
      %v1828 = vpop.permute.xlu0 %1827
      %1829 = vset.pattern.permute.xlu0 0
      %1830 = vperm.xlu0 %1829, %v1695
      %v1831 = vpop.permute.xlu0 %1830
      %1832 = vset.pattern.permute.xlu0 0
      %1833 = vperm.xlu0 %1832, %v1696
      %v1834 = vpop.permute.xlu0 %1833
      %1835 = vset.pattern.permute.xlu0 0
      %1836 = vperm.xlu0 %1835, %v1697
      %v1837 = vpop.permute.xlu0 %1836
      %1838 = vset.pattern.permute.xlu0 0
      %1839 = vperm.xlu0 %1838, %v1698
      %v1840 = vpop.permute.xlu0 %1839
      %1841 = vset.pattern.permute.xlu0 0
      %1842 = vperm.xlu0 %1841, %v1699
      %v1843 = vpop.permute.xlu0 %1842
      %1844 = vset.pattern.permute.xlu0 0
      %1845 = vperm.xlu0 %1844, %v1700
      %v1846 = vpop.permute.xlu0 %1845
      %1847 = vset.pattern.permute.xlu0 0
      %1848 = vperm.xlu0 %1847, %v1701
      %v1849 = vpop.permute.xlu0 %1848
      %1850 = vset.pattern.permute.xlu0 0
      %1851 = vperm.xlu0 %1850, %v1702
      %v1852 = vpop.permute.xlu0 %1851
      %1853 = vset.pattern.permute.xlu0 0
      %1854 = vperm.xlu0 %1853, %v1703
      %v1855 = vpop.permute.xlu0 %1854
      %1856 = vset.pattern.permute.xlu0 0
      %1857 = vperm.xlu0 %1856, %v1704
      %v1858 = vpop.permute.xlu0 %1857
      %1859 = vset.pattern.permute.xlu0 0
      %1860 = vperm.xlu0 %1859, %v1705
      %v1861 = vpop.permute.xlu0 %1860
      %1862 = vset.pattern.permute.xlu0 0
      %1863 = vperm.xlu0 %1862, %v1706
      %v1864 = vpop.permute.xlu0 %1863
      %1865 = vset.pattern.permute.xlu0 0
      %1866 = vperm.xlu0 %1865, %v1707
      %v1867 = vpop.permute.xlu0 %1866
      %1868 = vset.pattern.permute.xlu0 0
      %1869 = vperm.xlu0 %1868, %v1708
      %v1870 = vpop.permute.xlu0 %1869
      %1871 = vset.pattern.permute.xlu0 0
      %1872 = vperm.xlu0 %1871, %v1709
      %v1873 = vpop.permute.xlu0 %1872
      %1874 = vset.pattern.permute.xlu0 0
      %1875 = vperm.xlu0 %1874, %v1710
      %v1876 = vpop.permute.xlu0 %1875
      %1877 = vset.pattern.permute.xlu0 0
      %1878 = vperm.xlu0 %1877, %v1711
      %v1879 = vpop.permute.xlu0 %1878
      %1880 = vset.pattern.permute.xlu0 0
      %1881 = vperm.xlu0 %1880, %v1712
      %v1882 = vpop.permute.xlu0 %1881
      %1883 = vset.pattern.permute.xlu0 0
      %1884 = vperm.xlu0 %1883, %v1713
      %v1885 = vpop.permute.xlu0 %1884
      %1886 = vset.pattern.permute.xlu0 0
      %1887 = vperm.xlu0 %1886, %v1714
      %v1888 = vpop.permute.xlu0 %1887
      %1889 = vset.pattern.permute.xlu0 0
      %1890 = vperm.xlu0 %1889, %v1715
      %v1891 = vpop.permute.xlu0 %1890
      %1892 = vset.pattern.permute.xlu0 0
      %1893 = vperm.xlu0 %1892, %v1716
      %v1894 = vpop.permute.xlu0 %1893
      %1895 = vset.pattern.permute.xlu0 0
      %1896 = vperm.xlu0 %1895, %v1717
      %v1897 = vpop.permute.xlu0 %1896
      %1898 = vset.pattern.permute.xlu0 0
      %1899 = vperm.xlu0 %1898, %v1718
      %v1900 = vpop.permute.xlu0 %1899
      %1901 = vset.pattern.permute.xlu0 0
      %1902 = vperm.xlu0 %1901, %v1719
      %v1903 = vpop.permute.xlu0 %1902
      %1904 = vset.pattern.permute.xlu0 0
      %1905 = vperm.xlu0 %1904, %v1720
      %v1906 = vpop.permute.xlu0 %1905
      %1907 = vset.pattern.permute.xlu0 0
      %1908 = vperm.xlu0 %1907, %v1721
      %v1909 = vpop.permute.xlu0 %1908
      %1910 = vset.pattern.permute.xlu0 0
      %1911 = vperm.xlu0 %1910, %v1722
      %v1912 = vpop.permute.xlu0 %1911
      %1913 = vset.pattern.permute.xlu0 0
      %1914 = vperm.xlu0 %1913, %v1723
      %v1915 = vpop.permute.xlu0 %1914
      %vm1916 = vcmp.eq.s32.totalorder %v1726, 1
      %vm1917 = vcmp.eq.s32.totalorder %v1729, 1
      %vm1918 = vcmp.eq.s32.totalorder %v1732, 1
      %vm1919 = vcmp.eq.s32.totalorder %v1735, 1
      %vm1920 = vcmp.eq.s32.totalorder %v1738, 1
      %vm1921 = vcmp.eq.s32.totalorder %v1741, 1
      %vm1922 = vcmp.eq.s32.totalorder %v1744, 1
      %vm1923 = vcmp.eq.s32.totalorder %v1747, 1
      %vm1924 = vcmp.eq.s32.totalorder %v1750, 1
      %vm1925 = vcmp.eq.s32.totalorder %v1753, 1
      %vm1926 = vcmp.eq.s32.totalorder %v1756, 1
      %vm1927 = vcmp.eq.s32.totalorder %v1759, 1
      %vm1928 = vcmp.eq.s32.totalorder %v1762, 1
      %vm1929 = vcmp.eq.s32.totalorder %v1765, 1
      %vm1930 = vcmp.eq.s32.totalorder %v1768, 1
      %vm1931 = vcmp.eq.s32.totalorder %v1771, 1
      %vm1932 = vcmp.eq.s32.totalorder %v1774, 1
      %vm1933 = vcmp.eq.s32.totalorder %v1777, 1
      %vm1934 = vcmp.eq.s32.totalorder %v1780, 1
      %vm1935 = vcmp.eq.s32.totalorder %v1783, 1
      %vm1936 = vcmp.eq.s32.totalorder %v1786, 1
      %vm1937 = vcmp.eq.s32.totalorder %v1789, 1
      %vm1938 = vcmp.eq.s32.totalorder %v1792, 1
      %vm1939 = vcmp.eq.s32.totalorder %v1795, 1
      %vm1940 = vcmp.eq.s32.totalorder %v1798, 1
      %vm1941 = vcmp.eq.s32.totalorder %v1801, 1
      %vm1942 = vcmp.eq.s32.totalorder %v1804, 1
      %vm1943 = vcmp.eq.s32.totalorder %v1807, 1
      %vm1944 = vcmp.eq.s32.totalorder %v1810, 1
      %vm1945 = vcmp.eq.s32.totalorder %v1813, 1
      %vm1946 = vcmp.eq.s32.totalorder %v1816, 1
      %vm1947 = vcmp.eq.s32.totalorder %v1819, 1
      %vm1948 = vcmp.eq.s32.totalorder %v1822, 1
      %vm1949 = vcmp.eq.s32.totalorder %v1825, 1
      %vm1950 = vcmp.eq.s32.totalorder %v1828, 1
      %vm1951 = vcmp.eq.s32.totalorder %v1831, 1
      %vm1952 = vcmp.eq.s32.totalorder %v1834, 1
      %vm1953 = vcmp.eq.s32.totalorder %v1837, 1
      %vm1954 = vcmp.eq.s32.totalorder %v1840, 1
      %vm1955 = vcmp.eq.s32.totalorder %v1843, 1
      %vm1956 = vcmp.eq.s32.totalorder %v1846, 1
      %vm1957 = vcmp.eq.s32.totalorder %v1849, 1
      %vm1958 = vcmp.eq.s32.totalorder %v1852, 1
      %vm1959 = vcmp.eq.s32.totalorder %v1855, 1
      %vm1960 = vcmp.eq.s32.totalorder %v1858, 1
      %vm1961 = vcmp.eq.s32.totalorder %v1861, 1
      %vm1962 = vcmp.eq.s32.totalorder %v1864, 1
      %vm1963 = vcmp.eq.s32.totalorder %v1867, 1
      %vm1964 = vcmp.eq.s32.totalorder %v1870, 1
      %vm1965 = vcmp.eq.s32.totalorder %v1873, 1
      %vm1966 = vcmp.eq.s32.totalorder %v1876, 1
      %vm1967 = vcmp.eq.s32.totalorder %v1879, 1
      %vm1968 = vcmp.eq.s32.totalorder %v1882, 1
      %vm1969 = vcmp.eq.s32.totalorder %v1885, 1
      %vm1970 = vcmp.eq.s32.totalorder %v1888, 1
      %vm1971 = vcmp.eq.s32.totalorder %v1891, 1
      %vm1972 = vcmp.eq.s32.totalorder %v1894, 1
      %vm1973 = vcmp.eq.s32.totalorder %v1897, 1
      %vm1974 = vcmp.eq.s32.totalorder %v1900, 1
      %vm1975 = vcmp.eq.s32.totalorder %v1903, 1
      %vm1976 = vcmp.eq.s32.totalorder %v1906, 1
      %vm1977 = vcmp.eq.s32.totalorder %v1909, 1
      %vm1978 = vcmp.eq.s32.totalorder %v1912, 1
      %vm1979 = vcmp.eq.s32.totalorder %v1915, 1
      %v1980 = vsel %vm1916, %v294, -1e+30
      %v1981 = vsel %vm1917, %v295, -1e+30
      %v1982 = vsel %vm1918, %v296, -1e+30
      %v1983 = vsel %vm1919, %v297, -1e+30
      %v1984 = vsel %vm1920, %v298, -1e+30
      %v1985 = vsel %vm1921, %v299, -1e+30
      %v1986 = vsel %vm1922, %v300, -1e+30
      %v1987 = vsel %vm1923, %v301, -1e+30
      %v1988 = vsel %vm1924, %v302, -1e+30
      %v1989 = vsel %vm1925, %v303, -1e+30
      %v1990 = vsel %vm1926, %v304, -1e+30
      %v1991 = vsel %vm1927, %v305, -1e+30
      %v1992 = vsel %vm1928, %v306, -1e+30
      %v1993 = vsel %vm1929, %v307, -1e+30
      %v1994 = vsel %vm1930, %v308, -1e+30
      %v1995 = vsel %vm1931, %v309, -1e+30
      %v1996 = vsel %vm1932, %v310, -1e+30
      %v1997 = vsel %vm1933, %v311, -1e+30
      %v1998 = vsel %vm1934, %v312, -1e+30
      %v1999 = vsel %vm1935, %v313, -1e+30
      %v2000 = vsel %vm1936, %v314, -1e+30
      %v2001 = vsel %vm1937, %v315, -1e+30
      %v2002 = vsel %vm1938, %v316, -1e+30
      %v2003 = vsel %vm1939, %v317, -1e+30
      %v2004 = vsel %vm1940, %v318, -1e+30
      %v2005 = vsel %vm1941, %v319, -1e+30
      %v2006 = vsel %vm1942, %v320, -1e+30
      %v2007 = vsel %vm1943, %v321, -1e+30
      %v2008 = vsel %vm1944, %v322, -1e+30
      %v2009 = vsel %vm1945, %v323, -1e+30
      %v2010 = vsel %vm1946, %v324, -1e+30
      %v2011 = vsel %vm1947, %v325, -1e+30
      %v2012 = vsel %vm1948, %v326, -1e+30
      %v2013 = vsel %vm1949, %v327, -1e+30
      %v2014 = vsel %vm1950, %v328, -1e+30
      %v2015 = vsel %vm1951, %v329, -1e+30
      %v2016 = vsel %vm1952, %v330, -1e+30
      %v2017 = vsel %vm1953, %v331, -1e+30
      %v2018 = vsel %vm1954, %v332, -1e+30
      %v2019 = vsel %vm1955, %v333, -1e+30
      %v2020 = vsel %vm1956, %v334, -1e+30
      %v2021 = vsel %vm1957, %v335, -1e+30
      %v2022 = vsel %vm1958, %v336, -1e+30
      %v2023 = vsel %vm1959, %v337, -1e+30
      %v2024 = vsel %vm1960, %v338, -1e+30
      %v2025 = vsel %vm1961, %v339, -1e+30
      %v2026 = vsel %vm1962, %v340, -1e+30
      %v2027 = vsel %vm1963, %v341, -1e+30
      %v2028 = vsel %vm1964, %v342, -1e+30
      %v2029 = vsel %vm1965, %v343, -1e+30
      %v2030 = vsel %vm1966, %v344, -1e+30
      %v2031 = vsel %vm1967, %v345, -1e+30
      %v2032 = vsel %vm1968, %v346, -1e+30
      %v2033 = vsel %vm1969, %v347, -1e+30
      %v2034 = vsel %vm1970, %v348, -1e+30
      %v2035 = vsel %vm1971, %v349, -1e+30
      %v2036 = vsel %vm1972, %v350, -1e+30
      %v2037 = vsel %vm1973, %v351, -1e+30
      %v2038 = vsel %vm1974, %v352, -1e+30
      %v2039 = vsel %vm1975, %v353, -1e+30
      %v2040 = vsel %vm1976, %v354, -1e+30
      %v2041 = vsel %vm1977, %v355, -1e+30
      %v2042 = vsel %vm1978, %v356, -1e+30
      %v2043 = vsel %vm1979, %v357, -1e+30
      %v2044 = vmax.f32 %v1980, %v1984
      %v2045 = vmax.f32 %v1981, %v1985
      %v2046 = vmax.f32 %v1982, %v1986
      %v2047 = vmax.f32 %v1983, %v1987
      %v2048 = vmax.f32 %v2044, %v1988
      %v2049 = vmax.f32 %v2045, %v1989
      %v2050 = vmax.f32 %v2046, %v1990
      %v2051 = vmax.f32 %v2047, %v1991
      %v2052 = vmax.f32 %v2048, %v1992
      %v2053 = vmax.f32 %v2049, %v1993
      %v2054 = vmax.f32 %v2050, %v1994
      %v2055 = vmax.f32 %v2051, %v1995
      %v2056 = vmax.f32 %v2052, %v1996
      %v2057 = vmax.f32 %v2053, %v1997
      %v2058 = vmax.f32 %v2054, %v1998
      %v2059 = vmax.f32 %v2055, %v1999
      %v2060 = vmax.f32 %v2056, %v2000
      %v2061 = vmax.f32 %v2057, %v2001
      %v2062 = vmax.f32 %v2058, %v2002
      %v2063 = vmax.f32 %v2059, %v2003
      %v2064 = vmax.f32 %v2060, %v2004
      %v2065 = vmax.f32 %v2061, %v2005
      %v2066 = vmax.f32 %v2062, %v2006
      %v2067 = vmax.f32 %v2063, %v2007
      %v2068 = vmax.f32 %v2064, %v2008
      %v2069 = vmax.f32 %v2065, %v2009
      %v2070 = vmax.f32 %v2066, %v2010
      %v2071 = vmax.f32 %v2067, %v2011
      %v2072 = vmax.f32 %v2068, %v2012
      %v2073 = vmax.f32 %v2069, %v2013
      %v2074 = vmax.f32 %v2070, %v2014
      %v2075 = vmax.f32 %v2071, %v2015
      %v2076 = vmax.f32 %v2072, %v2016
      %v2077 = vmax.f32 %v2073, %v2017
      %v2078 = vmax.f32 %v2074, %v2018
      %v2079 = vmax.f32 %v2075, %v2019
      %v2080 = vmax.f32 %v2076, %v2020
      %v2081 = vmax.f32 %v2077, %v2021
      %v2082 = vmax.f32 %v2078, %v2022
      %v2083 = vmax.f32 %v2079, %v2023
      %v2084 = vmax.f32 %v2080, %v2024
      %v2085 = vmax.f32 %v2081, %v2025
      %v2086 = vmax.f32 %v2082, %v2026
      %v2087 = vmax.f32 %v2083, %v2027
      %v2088 = vmax.f32 %v2084, %v2028
      %v2089 = vmax.f32 %v2085, %v2029
      %v2090 = vmax.f32 %v2086, %v2030
      %v2091 = vmax.f32 %v2087, %v2031
      %v2092 = vmax.f32 %v2088, %v2032
      %v2093 = vmax.f32 %v2089, %v2033
      %v2094 = vmax.f32 %v2090, %v2034
      %v2095 = vmax.f32 %v2091, %v2035
      %v2096 = vmax.f32 %v2092, %v2036
      %v2097 = vmax.f32 %v2093, %v2037
      %v2098 = vmax.f32 %v2094, %v2038
      %v2099 = vmax.f32 %v2095, %v2039
      %v2100 = vmax.f32 %v2096, %v2040
      %v2101 = vmax.f32 %v2097, %v2041
      %v2102 = vmax.f32 %v2098, %v2042
      %v2103 = vmax.f32 %v2099, %v2043
      %v2104 = vmax.f32 %v2100, %v2101
      %v2105 = vmax.f32 %v2102, %v2103
      %v2106 = vmax.f32 %v2104, %v2105
      %v2107 = vrot.slane %v2106, 4
      %v2108 = vmax.f32 %v2106, %v2107
      %v2109 = vrot.slane %v2108, 2
      %v2110 = vmax.f32 %v2108, %v2109
      %v2111 = vrot.slane %v2110, 1
      %v2112 = vmax.f32 %v2110, %v2111
      %vm2113 = vcmp.eq.s32.totalorder %v358, 2
      %vm2114 = vcmp.eq.s32.totalorder %v359, 2
      %vm2115 = vcmp.eq.s32.totalorder %v360, 2
      %vm2116 = vcmp.eq.s32.totalorder %v361, 2
      %vm2117 = vcmp.eq.s32.totalorder %v362, 2
      %vm2118 = vcmp.eq.s32.totalorder %v363, 2
      %vm2119 = vcmp.eq.s32.totalorder %v364, 2
      %vm2120 = vcmp.eq.s32.totalorder %v365, 2
      %vm2121 = vcmp.eq.s32.totalorder %v366, 2
      %vm2122 = vcmp.eq.s32.totalorder %v367, 2
      %vm2123 = vcmp.eq.s32.totalorder %v368, 2
      %vm2124 = vcmp.eq.s32.totalorder %v369, 2
      %vm2125 = vcmp.eq.s32.totalorder %v370, 2
      %vm2126 = vcmp.eq.s32.totalorder %v371, 2
      %vm2127 = vcmp.eq.s32.totalorder %v372, 2
      %vm2128 = vcmp.eq.s32.totalorder %v373, 2
      %vm2129 = vcmp.eq.s32.totalorder %v374, 2
      %vm2130 = vcmp.eq.s32.totalorder %v375, 2
      %vm2131 = vcmp.eq.s32.totalorder %v376, 2
      %vm2132 = vcmp.eq.s32.totalorder %v377, 2
      %vm2133 = vcmp.eq.s32.totalorder %v378, 2
      %vm2134 = vcmp.eq.s32.totalorder %v379, 2
      %vm2135 = vcmp.eq.s32.totalorder %v380, 2
      %vm2136 = vcmp.eq.s32.totalorder %v381, 2
      %vm2137 = vcmp.eq.s32.totalorder %v382, 2
      %vm2138 = vcmp.eq.s32.totalorder %v383, 2
      %vm2139 = vcmp.eq.s32.totalorder %v384, 2
      %vm2140 = vcmp.eq.s32.totalorder %v385, 2
      %vm2141 = vcmp.eq.s32.totalorder %v386, 2
      %vm2142 = vcmp.eq.s32.totalorder %v387, 2
      %vm2143 = vcmp.eq.s32.totalorder %v388, 2
      %vm2144 = vcmp.eq.s32.totalorder %v389, 2
      %vm2145 = vcmp.eq.s32.totalorder %v390, 2
      %vm2146 = vcmp.eq.s32.totalorder %v391, 2
      %vm2147 = vcmp.eq.s32.totalorder %v392, 2
      %vm2148 = vcmp.eq.s32.totalorder %v393, 2
      %vm2149 = vcmp.eq.s32.totalorder %v394, 2
      %vm2150 = vcmp.eq.s32.totalorder %v395, 2
      %vm2151 = vcmp.eq.s32.totalorder %v396, 2
      %vm2152 = vcmp.eq.s32.totalorder %v397, 2
      %vm2153 = vcmp.eq.s32.totalorder %v398, 2
      %vm2154 = vcmp.eq.s32.totalorder %v399, 2
      %vm2155 = vcmp.eq.s32.totalorder %v400, 2
      %vm2156 = vcmp.eq.s32.totalorder %v401, 2
      %vm2157 = vcmp.eq.s32.totalorder %v402, 2
      %vm2158 = vcmp.eq.s32.totalorder %v403, 2
      %vm2159 = vcmp.eq.s32.totalorder %v404, 2
      %vm2160 = vcmp.eq.s32.totalorder %v405, 2
      %vm2161 = vcmp.eq.s32.totalorder %v406, 2
      %vm2162 = vcmp.eq.s32.totalorder %v407, 2
      %vm2163 = vcmp.eq.s32.totalorder %v408, 2
      %vm2164 = vcmp.eq.s32.totalorder %v409, 2
      %vm2165 = vcmp.eq.s32.totalorder %v410, 2
      %vm2166 = vcmp.eq.s32.totalorder %v411, 2
      %vm2167 = vcmp.eq.s32.totalorder %v412, 2
      %vm2168 = vcmp.eq.s32.totalorder %v413, 2
      %vm2169 = vcmp.eq.s32.totalorder %v414, 2
      %vm2170 = vcmp.eq.s32.totalorder %v415, 2
      %vm2171 = vcmp.eq.s32.totalorder %v416, 2
      %vm2172 = vcmp.eq.s32.totalorder %v417, 2
      %vm2173 = vcmp.eq.s32.totalorder %v418, 2
      %vm2174 = vcmp.eq.s32.totalorder %v419, 2
      %vm2175 = vcmp.eq.s32.totalorder %v420, 2
      %vm2176 = vcmp.eq.s32.totalorder %v421, 2
      %v2177 = vsel %vm2113, 1, 0
      %v2178 = vsel %vm2114, 1, 0
      %v2179 = vsel %vm2115, 1, 0
      %v2180 = vsel %vm2116, 1, 0
      %v2181 = vsel %vm2117, 1, 0
      %v2182 = vsel %vm2118, 1, 0
      %v2183 = vsel %vm2119, 1, 0
      %v2184 = vsel %vm2120, 1, 0
      %v2185 = vsel %vm2121, 1, 0
      %v2186 = vsel %vm2122, 1, 0
      %v2187 = vsel %vm2123, 1, 0
      %v2188 = vsel %vm2124, 1, 0
      %v2189 = vsel %vm2125, 1, 0
      %v2190 = vsel %vm2126, 1, 0
      %v2191 = vsel %vm2127, 1, 0
      %v2192 = vsel %vm2128, 1, 0
      %v2193 = vsel %vm2129, 1, 0
      %v2194 = vsel %vm2130, 1, 0
      %v2195 = vsel %vm2131, 1, 0
      %v2196 = vsel %vm2132, 1, 0
      %v2197 = vsel %vm2133, 1, 0
      %v2198 = vsel %vm2134, 1, 0
      %v2199 = vsel %vm2135, 1, 0
      %v2200 = vsel %vm2136, 1, 0
      %v2201 = vsel %vm2137, 1, 0
      %v2202 = vsel %vm2138, 1, 0
      %v2203 = vsel %vm2139, 1, 0
      %v2204 = vsel %vm2140, 1, 0
      %v2205 = vsel %vm2141, 1, 0
      %v2206 = vsel %vm2142, 1, 0
      %v2207 = vsel %vm2143, 1, 0
      %v2208 = vsel %vm2144, 1, 0
      %v2209 = vsel %vm2145, 1, 0
      %v2210 = vsel %vm2146, 1, 0
      %v2211 = vsel %vm2147, 1, 0
      %v2212 = vsel %vm2148, 1, 0
      %v2213 = vsel %vm2149, 1, 0
      %v2214 = vsel %vm2150, 1, 0
      %v2215 = vsel %vm2151, 1, 0
      %v2216 = vsel %vm2152, 1, 0
      %v2217 = vsel %vm2153, 1, 0
      %v2218 = vsel %vm2154, 1, 0
      %v2219 = vsel %vm2155, 1, 0
      %v2220 = vsel %vm2156, 1, 0
      %v2221 = vsel %vm2157, 1, 0
      %v2222 = vsel %vm2158, 1, 0
      %v2223 = vsel %vm2159, 1, 0
      %v2224 = vsel %vm2160, 1, 0
      %v2225 = vsel %vm2161, 1, 0
      %v2226 = vsel %vm2162, 1, 0
      %v2227 = vsel %vm2163, 1, 0
      %v2228 = vsel %vm2164, 1, 0
      %v2229 = vsel %vm2165, 1, 0
      %v2230 = vsel %vm2166, 1, 0
      %v2231 = vsel %vm2167, 1, 0
      %v2232 = vsel %vm2168, 1, 0
      %v2233 = vsel %vm2169, 1, 0
      %v2234 = vsel %vm2170, 1, 0
      %v2235 = vsel %vm2171, 1, 0
      %v2236 = vsel %vm2172, 1, 0
      %v2237 = vsel %vm2173, 1, 0
      %v2238 = vsel %vm2174, 1, 0
      %v2239 = vsel %vm2175, 1, 0
      %v2240 = vsel %vm2176, 1, 0
      %2241 = vset.pattern.permute.xlu0 0
      %2242 = vperm.xlu0 %2241, %v2177
      %v2243 = vpop.permute.xlu0 %2242
      %2244 = vset.pattern.permute.xlu0 0
      %2245 = vperm.xlu0 %2244, %v2178
      %v2246 = vpop.permute.xlu0 %2245
      %2247 = vset.pattern.permute.xlu0 0
      %2248 = vperm.xlu0 %2247, %v2179
      %v2249 = vpop.permute.xlu0 %2248
      %2250 = vset.pattern.permute.xlu0 0
      %2251 = vperm.xlu0 %2250, %v2180
      %v2252 = vpop.permute.xlu0 %2251
      %2253 = vset.pattern.permute.xlu0 0
      %2254 = vperm.xlu0 %2253, %v2181
      %v2255 = vpop.permute.xlu0 %2254
      %2256 = vset.pattern.permute.xlu0 0
      %2257 = vperm.xlu0 %2256, %v2182
      %v2258 = vpop.permute.xlu0 %2257
      %2259 = vset.pattern.permute.xlu0 0
      %2260 = vperm.xlu0 %2259, %v2183
      %v2261 = vpop.permute.xlu0 %2260
      %2262 = vset.pattern.permute.xlu0 0
      %2263 = vperm.xlu0 %2262, %v2184
      %v2264 = vpop.permute.xlu0 %2263
      %2265 = vset.pattern.permute.xlu0 0
      %2266 = vperm.xlu0 %2265, %v2185
      %v2267 = vpop.permute.xlu0 %2266
      %2268 = vset.pattern.permute.xlu0 0
      %2269 = vperm.xlu0 %2268, %v2186
      %v2270 = vpop.permute.xlu0 %2269
      %2271 = vset.pattern.permute.xlu0 0
      %2272 = vperm.xlu0 %2271, %v2187
      %v2273 = vpop.permute.xlu0 %2272
      %2274 = vset.pattern.permute.xlu0 0
      %2275 = vperm.xlu0 %2274, %v2188
      %v2276 = vpop.permute.xlu0 %2275
      %2277 = vset.pattern.permute.xlu0 0
      %2278 = vperm.xlu0 %2277, %v2189
      %v2279 = vpop.permute.xlu0 %2278
      %2280 = vset.pattern.permute.xlu0 0
      %2281 = vperm.xlu0 %2280, %v2190
      %v2282 = vpop.permute.xlu0 %2281
      %2283 = vset.pattern.permute.xlu0 0
      %2284 = vperm.xlu0 %2283, %v2191
      %v2285 = vpop.permute.xlu0 %2284
      %2286 = vset.pattern.permute.xlu0 0
      %2287 = vperm.xlu0 %2286, %v2192
      %v2288 = vpop.permute.xlu0 %2287
      %2289 = vset.pattern.permute.xlu0 0
      %2290 = vperm.xlu0 %2289, %v2193
      %v2291 = vpop.permute.xlu0 %2290
      %2292 = vset.pattern.permute.xlu0 0
      %2293 = vperm.xlu0 %2292, %v2194
      %v2294 = vpop.permute.xlu0 %2293
      %2295 = vset.pattern.permute.xlu0 0
      %2296 = vperm.xlu0 %2295, %v2195
      %v2297 = vpop.permute.xlu0 %2296
      %2298 = vset.pattern.permute.xlu0 0
      %2299 = vperm.xlu0 %2298, %v2196
      %v2300 = vpop.permute.xlu0 %2299
      %2301 = vset.pattern.permute.xlu0 0
      %2302 = vperm.xlu0 %2301, %v2197
      %v2303 = vpop.permute.xlu0 %2302
      %2304 = vset.pattern.permute.xlu0 0
      %2305 = vperm.xlu0 %2304, %v2198
      %v2306 = vpop.permute.xlu0 %2305
      %2307 = vset.pattern.permute.xlu0 0
      %2308 = vperm.xlu0 %2307, %v2199
      %v2309 = vpop.permute.xlu0 %2308
      %2310 = vset.pattern.permute.xlu0 0
      %2311 = vperm.xlu0 %2310, %v2200
      %v2312 = vpop.permute.xlu0 %2311
      %2313 = vset.pattern.permute.xlu0 0
      %2314 = vperm.xlu0 %2313, %v2201
      %v2315 = vpop.permute.xlu0 %2314
      %2316 = vset.pattern.permute.xlu0 0
      %2317 = vperm.xlu0 %2316, %v2202
      %v2318 = vpop.permute.xlu0 %2317
      %2319 = vset.pattern.permute.xlu0 0
      %2320 = vperm.xlu0 %2319, %v2203
      %v2321 = vpop.permute.xlu0 %2320
      %2322 = vset.pattern.permute.xlu0 0
      %2323 = vperm.xlu0 %2322, %v2204
      %v2324 = vpop.permute.xlu0 %2323
      %2325 = vset.pattern.permute.xlu0 0
      %2326 = vperm.xlu0 %2325, %v2205
      %v2327 = vpop.permute.xlu0 %2326
      %2328 = vset.pattern.permute.xlu0 0
      %2329 = vperm.xlu0 %2328, %v2206
      %v2330 = vpop.permute.xlu0 %2329
      %2331 = vset.pattern.permute.xlu0 0
      %2332 = vperm.xlu0 %2331, %v2207
      %v2333 = vpop.permute.xlu0 %2332
      %2334 = vset.pattern.permute.xlu0 0
      %2335 = vperm.xlu0 %2334, %v2208
      %v2336 = vpop.permute.xlu0 %2335
      %2337 = vset.pattern.permute.xlu0 0
      %2338 = vperm.xlu0 %2337, %v2209
      %v2339 = vpop.permute.xlu0 %2338
      %2340 = vset.pattern.permute.xlu0 0
      %2341 = vperm.xlu0 %2340, %v2210
      %v2342 = vpop.permute.xlu0 %2341
      %2343 = vset.pattern.permute.xlu0 0
      %2344 = vperm.xlu0 %2343, %v2211
      %v2345 = vpop.permute.xlu0 %2344
      %2346 = vset.pattern.permute.xlu0 0
      %2347 = vperm.xlu0 %2346, %v2212
      %v2348 = vpop.permute.xlu0 %2347
      %2349 = vset.pattern.permute.xlu0 0
      %2350 = vperm.xlu0 %2349, %v2213
      %v2351 = vpop.permute.xlu0 %2350
      %2352 = vset.pattern.permute.xlu0 0
      %2353 = vperm.xlu0 %2352, %v2214
      %v2354 = vpop.permute.xlu0 %2353
      %2355 = vset.pattern.permute.xlu0 0
      %2356 = vperm.xlu0 %2355, %v2215
      %v2357 = vpop.permute.xlu0 %2356
      %2358 = vset.pattern.permute.xlu0 0
      %2359 = vperm.xlu0 %2358, %v2216
      %v2360 = vpop.permute.xlu0 %2359
      %2361 = vset.pattern.permute.xlu0 0
      %2362 = vperm.xlu0 %2361, %v2217
      %v2363 = vpop.permute.xlu0 %2362
      %2364 = vset.pattern.permute.xlu0 0
      %2365 = vperm.xlu0 %2364, %v2218
      %v2366 = vpop.permute.xlu0 %2365
      %2367 = vset.pattern.permute.xlu0 0
      %2368 = vperm.xlu0 %2367, %v2219
      %v2369 = vpop.permute.xlu0 %2368
      %2370 = vset.pattern.permute.xlu0 0
      %2371 = vperm.xlu0 %2370, %v2220
      %v2372 = vpop.permute.xlu0 %2371
      %2373 = vset.pattern.permute.xlu0 0
      %2374 = vperm.xlu0 %2373, %v2221
      %v2375 = vpop.permute.xlu0 %2374
      %2376 = vset.pattern.permute.xlu0 0
      %2377 = vperm.xlu0 %2376, %v2222
      %v2378 = vpop.permute.xlu0 %2377
      %2379 = vset.pattern.permute.xlu0 0
      %2380 = vperm.xlu0 %2379, %v2223
      %v2381 = vpop.permute.xlu0 %2380
      %2382 = vset.pattern.permute.xlu0 0
      %2383 = vperm.xlu0 %2382, %v2224
      %v2384 = vpop.permute.xlu0 %2383
      %2385 = vset.pattern.permute.xlu0 0
      %2386 = vperm.xlu0 %2385, %v2225
      %v2387 = vpop.permute.xlu0 %2386
      %2388 = vset.pattern.permute.xlu0 0
      %2389 = vperm.xlu0 %2388, %v2226
      %v2390 = vpop.permute.xlu0 %2389
      %2391 = vset.pattern.permute.xlu0 0
      %2392 = vperm.xlu0 %2391, %v2227
      %v2393 = vpop.permute.xlu0 %2392
      %2394 = vset.pattern.permute.xlu0 0
      %2395 = vperm.xlu0 %2394, %v2228
      %v2396 = vpop.permute.xlu0 %2395
      %2397 = vset.pattern.permute.xlu0 0
      %2398 = vperm.xlu0 %2397, %v2229
      %v2399 = vpop.permute.xlu0 %2398
      %2400 = vset.pattern.permute.xlu0 0
      %2401 = vperm.xlu0 %2400, %v2230
      %v2402 = vpop.permute.xlu0 %2401
      %2403 = vset.pattern.permute.xlu0 0
      %2404 = vperm.xlu0 %2403, %v2231
      %v2405 = vpop.permute.xlu0 %2404
      %2406 = vset.pattern.permute.xlu0 0
      %2407 = vperm.xlu0 %2406, %v2232
      %v2408 = vpop.permute.xlu0 %2407
      %2409 = vset.pattern.permute.xlu0 0
      %2410 = vperm.xlu0 %2409, %v2233
      %v2411 = vpop.permute.xlu0 %2410
      %2412 = vset.pattern.permute.xlu0 0
      %2413 = vperm.xlu0 %2412, %v2234
      %v2414 = vpop.permute.xlu0 %2413
      %2415 = vset.pattern.permute.xlu0 0
      %2416 = vperm.xlu0 %2415, %v2235
      %v2417 = vpop.permute.xlu0 %2416
      %2418 = vset.pattern.permute.xlu0 0
      %2419 = vperm.xlu0 %2418, %v2236
      %v2420 = vpop.permute.xlu0 %2419
      %2421 = vset.pattern.permute.xlu0 0
      %2422 = vperm.xlu0 %2421, %v2237
      %v2423 = vpop.permute.xlu0 %2422
      %2424 = vset.pattern.permute.xlu0 0
      %2425 = vperm.xlu0 %2424, %v2238
      %v2426 = vpop.permute.xlu0 %2425
      %2427 = vset.pattern.permute.xlu0 0
      %2428 = vperm.xlu0 %2427, %v2239
      %v2429 = vpop.permute.xlu0 %2428
      %2430 = vset.pattern.permute.xlu0 0
      %2431 = vperm.xlu0 %2430, %v2240
      %v2432 = vpop.permute.xlu0 %2431
      %vm2433 = vcmp.eq.s32.totalorder %v2243, 1
      %vm2434 = vcmp.eq.s32.totalorder %v2246, 1
      %vm2435 = vcmp.eq.s32.totalorder %v2249, 1
      %vm2436 = vcmp.eq.s32.totalorder %v2252, 1
      %vm2437 = vcmp.eq.s32.totalorder %v2255, 1
      %vm2438 = vcmp.eq.s32.totalorder %v2258, 1
      %vm2439 = vcmp.eq.s32.totalorder %v2261, 1
      %vm2440 = vcmp.eq.s32.totalorder %v2264, 1
      %vm2441 = vcmp.eq.s32.totalorder %v2267, 1
      %vm2442 = vcmp.eq.s32.totalorder %v2270, 1
      %vm2443 = vcmp.eq.s32.totalorder %v2273, 1
      %vm2444 = vcmp.eq.s32.totalorder %v2276, 1
      %vm2445 = vcmp.eq.s32.totalorder %v2279, 1
      %vm2446 = vcmp.eq.s32.totalorder %v2282, 1
      %vm2447 = vcmp.eq.s32.totalorder %v2285, 1
      %vm2448 = vcmp.eq.s32.totalorder %v2288, 1
      %vm2449 = vcmp.eq.s32.totalorder %v2291, 1
      %vm2450 = vcmp.eq.s32.totalorder %v2294, 1
      %vm2451 = vcmp.eq.s32.totalorder %v2297, 1
      %vm2452 = vcmp.eq.s32.totalorder %v2300, 1
      %vm2453 = vcmp.eq.s32.totalorder %v2303, 1
      %vm2454 = vcmp.eq.s32.totalorder %v2306, 1
      %vm2455 = vcmp.eq.s32.totalorder %v2309, 1
      %vm2456 = vcmp.eq.s32.totalorder %v2312, 1
      %vm2457 = vcmp.eq.s32.totalorder %v2315, 1
      %vm2458 = vcmp.eq.s32.totalorder %v2318, 1
      %vm2459 = vcmp.eq.s32.totalorder %v2321, 1
      %vm2460 = vcmp.eq.s32.totalorder %v2324, 1
      %vm2461 = vcmp.eq.s32.totalorder %v2327, 1
      %vm2462 = vcmp.eq.s32.totalorder %v2330, 1
      %vm2463 = vcmp.eq.s32.totalorder %v2333, 1
      %vm2464 = vcmp.eq.s32.totalorder %v2336, 1
      %vm2465 = vcmp.eq.s32.totalorder %v2339, 1
      %vm2466 = vcmp.eq.s32.totalorder %v2342, 1
      %vm2467 = vcmp.eq.s32.totalorder %v2345, 1
      %vm2468 = vcmp.eq.s32.totalorder %v2348, 1
      %vm2469 = vcmp.eq.s32.totalorder %v2351, 1
      %vm2470 = vcmp.eq.s32.totalorder %v2354, 1
      %vm2471 = vcmp.eq.s32.totalorder %v2357, 1
      %vm2472 = vcmp.eq.s32.totalorder %v2360, 1
      %vm2473 = vcmp.eq.s32.totalorder %v2363, 1
      %vm2474 = vcmp.eq.s32.totalorder %v2366, 1
      %vm2475 = vcmp.eq.s32.totalorder %v2369, 1
      %vm2476 = vcmp.eq.s32.totalorder %v2372, 1
      %vm2477 = vcmp.eq.s32.totalorder %v2375, 1
      %vm2478 = vcmp.eq.s32.totalorder %v2378, 1
      %vm2479 = vcmp.eq.s32.totalorder %v2381, 1
      %vm2480 = vcmp.eq.s32.totalorder %v2384, 1
      %vm2481 = vcmp.eq.s32.totalorder %v2387, 1
      %vm2482 = vcmp.eq.s32.totalorder %v2390, 1
      %vm2483 = vcmp.eq.s32.totalorder %v2393, 1
      %vm2484 = vcmp.eq.s32.totalorder %v2396, 1
      %vm2485 = vcmp.eq.s32.totalorder %v2399, 1
      %vm2486 = vcmp.eq.s32.totalorder %v2402, 1
      %vm2487 = vcmp.eq.s32.totalorder %v2405, 1
      %vm2488 = vcmp.eq.s32.totalorder %v2408, 1
      %vm2489 = vcmp.eq.s32.totalorder %v2411, 1
      %vm2490 = vcmp.eq.s32.totalorder %v2414, 1
      %vm2491 = vcmp.eq.s32.totalorder %v2417, 1
      %vm2492 = vcmp.eq.s32.totalorder %v2420, 1
      %vm2493 = vcmp.eq.s32.totalorder %v2423, 1
      %vm2494 = vcmp.eq.s32.totalorder %v2426, 1
      %vm2495 = vcmp.eq.s32.totalorder %v2429, 1
      %vm2496 = vcmp.eq.s32.totalorder %v2432, 1
      %v2497 = vsel %vm2433, %v294, -1e+30
      %v2498 = vsel %vm2434, %v295, -1e+30
      %v2499 = vsel %vm2435, %v296, -1e+30
      %v2500 = vsel %vm2436, %v297, -1e+30
      %v2501 = vsel %vm2437, %v298, -1e+30
      %v2502 = vsel %vm2438, %v299, -1e+30
      %v2503 = vsel %vm2439, %v300, -1e+30
      %v2504 = vsel %vm2440, %v301, -1e+30
      %v2505 = vsel %vm2441, %v302, -1e+30
      %v2506 = vsel %vm2442, %v303, -1e+30
      %v2507 = vsel %vm2443, %v304, -1e+30
      %v2508 = vsel %vm2444, %v305, -1e+30
      %v2509 = vsel %vm2445, %v306, -1e+30
      %v2510 = vsel %vm2446, %v307, -1e+30
      %v2511 = vsel %vm2447, %v308, -1e+30
      %v2512 = vsel %vm2448, %v309, -1e+30
      %v2513 = vsel %vm2449, %v310, -1e+30
      %v2514 = vsel %vm2450, %v311, -1e+30
      %v2515 = vsel %vm2451, %v312, -1e+30
      %v2516 = vsel %vm2452, %v313, -1e+30
      %v2517 = vsel %vm2453, %v314, -1e+30
      %v2518 = vsel %vm2454, %v315, -1e+30
      %v2519 = vsel %vm2455, %v316, -1e+30
      %v2520 = vsel %vm2456, %v317, -1e+30
      %v2521 = vsel %vm2457, %v318, -1e+30
      %v2522 = vsel %vm2458, %v319, -1e+30
      %v2523 = vsel %vm2459, %v320, -1e+30
      %v2524 = vsel %vm2460, %v321, -1e+30
      %v2525 = vsel %vm2461, %v322, -1e+30
      %v2526 = vsel %vm2462, %v323, -1e+30
      %v2527 = vsel %vm2463, %v324, -1e+30
      %v2528 = vsel %vm2464, %v325, -1e+30
      %v2529 = vsel %vm2465, %v326, -1e+30
      %v2530 = vsel %vm2466, %v327, -1e+30
      %v2531 = vsel %vm2467, %v328, -1e+30
      %v2532 = vsel %vm2468, %v329, -1e+30
      %v2533 = vsel %vm2469, %v330, -1e+30
      %v2534 = vsel %vm2470, %v331, -1e+30
      %v2535 = vsel %vm2471, %v332, -1e+30
      %v2536 = vsel %vm2472, %v333, -1e+30
      %v2537 = vsel %vm2473, %v334, -1e+30
      %v2538 = vsel %vm2474, %v335, -1e+30
      %v2539 = vsel %vm2475, %v336, -1e+30
      %v2540 = vsel %vm2476, %v337, -1e+30
      %v2541 = vsel %vm2477, %v338, -1e+30
      %v2542 = vsel %vm2478, %v339, -1e+30
      %v2543 = vsel %vm2479, %v340, -1e+30
      %v2544 = vsel %vm2480, %v341, -1e+30
      %v2545 = vsel %vm2481, %v342, -1e+30
      %v2546 = vsel %vm2482, %v343, -1e+30
      %v2547 = vsel %vm2483, %v344, -1e+30
      %v2548 = vsel %vm2484, %v345, -1e+30
      %v2549 = vsel %vm2485, %v346, -1e+30
      %v2550 = vsel %vm2486, %v347, -1e+30
      %v2551 = vsel %vm2487, %v348, -1e+30
      %v2552 = vsel %vm2488, %v349, -1e+30
      %v2553 = vsel %vm2489, %v350, -1e+30
      %v2554 = vsel %vm2490, %v351, -1e+30
      %v2555 = vsel %vm2491, %v352, -1e+30
      %v2556 = vsel %vm2492, %v353, -1e+30
      %v2557 = vsel %vm2493, %v354, -1e+30
      %v2558 = vsel %vm2494, %v355, -1e+30
      %v2559 = vsel %vm2495, %v356, -1e+30
      %v2560 = vsel %vm2496, %v357, -1e+30
      %v2561 = vmax.f32 %v2497, %v2501
      %v2562 = vmax.f32 %v2498, %v2502
      %v2563 = vmax.f32 %v2499, %v2503
      %v2564 = vmax.f32 %v2500, %v2504
      %v2565 = vmax.f32 %v2561, %v2505
      %v2566 = vmax.f32 %v2562, %v2506
      %v2567 = vmax.f32 %v2563, %v2507
      %v2568 = vmax.f32 %v2564, %v2508
      %v2569 = vmax.f32 %v2565, %v2509
      %v2570 = vmax.f32 %v2566, %v2510
      %v2571 = vmax.f32 %v2567, %v2511
      %v2572 = vmax.f32 %v2568, %v2512
      %v2573 = vmax.f32 %v2569, %v2513
      %v2574 = vmax.f32 %v2570, %v2514
      %v2575 = vmax.f32 %v2571, %v2515
      %v2576 = vmax.f32 %v2572, %v2516
      %v2577 = vmax.f32 %v2573, %v2517
      %v2578 = vmax.f32 %v2574, %v2518
      %v2579 = vmax.f32 %v2575, %v2519
      %v2580 = vmax.f32 %v2576, %v2520
      %v2581 = vmax.f32 %v2577, %v2521
      %v2582 = vmax.f32 %v2578, %v2522
      %v2583 = vmax.f32 %v2579, %v2523
      %v2584 = vmax.f32 %v2580, %v2524
      %v2585 = vmax.f32 %v2581, %v2525
      %v2586 = vmax.f32 %v2582, %v2526
      %v2587 = vmax.f32 %v2583, %v2527
      %v2588 = vmax.f32 %v2584, %v2528
      %v2589 = vmax.f32 %v2585, %v2529
      %v2590 = vmax.f32 %v2586, %v2530
      %v2591 = vmax.f32 %v2587, %v2531
      %v2592 = vmax.f32 %v2588, %v2532
      %v2593 = vmax.f32 %v2589, %v2533
      %v2594 = vmax.f32 %v2590, %v2534
      %v2595 = vmax.f32 %v2591, %v2535
      %v2596 = vmax.f32 %v2592, %v2536
      %v2597 = vmax.f32 %v2593, %v2537
      %v2598 = vmax.f32 %v2594, %v2538
      %v2599 = vmax.f32 %v2595, %v2539
      %v2600 = vmax.f32 %v2596, %v2540
      %v2601 = vmax.f32 %v2597, %v2541
      %v2602 = vmax.f32 %v2598, %v2542
      %v2603 = vmax.f32 %v2599, %v2543
      %v2604 = vmax.f32 %v2600, %v2544
      %v2605 = vmax.f32 %v2601, %v2545
      %v2606 = vmax.f32 %v2602, %v2546
      %v2607 = vmax.f32 %v2603, %v2547
      %v2608 = vmax.f32 %v2604, %v2548
      %v2609 = vmax.f32 %v2605, %v2549
      %v2610 = vmax.f32 %v2606, %v2550
      %v2611 = vmax.f32 %v2607, %v2551
      %v2612 = vmax.f32 %v2608, %v2552
      %v2613 = vmax.f32 %v2609, %v2553
      %v2614 = vmax.f32 %v2610, %v2554
      %v2615 = vmax.f32 %v2611, %v2555
      %v2616 = vmax.f32 %v2612, %v2556
      %v2617 = vmax.f32 %v2613, %v2557
      %v2618 = vmax.f32 %v2614, %v2558
      %v2619 = vmax.f32 %v2615, %v2559
      %v2620 = vmax.f32 %v2616, %v2560
      %v2621 = vmax.f32 %v2617, %v2618
      %v2622 = vmax.f32 %v2619, %v2620
      %v2623 = vmax.f32 %v2621, %v2622
      %v2624 = vrot.slane %v2623, 4
      %v2625 = vmax.f32 %v2623, %v2624
      %v2626 = vrot.slane %v2625, 2
      %v2627 = vmax.f32 %v2625, %v2626
      %v2628 = vrot.slane %v2627, 1
      %v2629 = vmax.f32 %v2627, %v2628
      %vm2630 = vcmp.eq.s32.totalorder %v358, 3
      %vm2631 = vcmp.eq.s32.totalorder %v359, 3
      %vm2632 = vcmp.eq.s32.totalorder %v360, 3
      %vm2633 = vcmp.eq.s32.totalorder %v361, 3
      %vm2634 = vcmp.eq.s32.totalorder %v362, 3
      %vm2635 = vcmp.eq.s32.totalorder %v363, 3
      %vm2636 = vcmp.eq.s32.totalorder %v364, 3
      %vm2637 = vcmp.eq.s32.totalorder %v365, 3
      %vm2638 = vcmp.eq.s32.totalorder %v366, 3
      %vm2639 = vcmp.eq.s32.totalorder %v367, 3
      %vm2640 = vcmp.eq.s32.totalorder %v368, 3
      %vm2641 = vcmp.eq.s32.totalorder %v369, 3
      %vm2642 = vcmp.eq.s32.totalorder %v370, 3
      %vm2643 = vcmp.eq.s32.totalorder %v371, 3
      %vm2644 = vcmp.eq.s32.totalorder %v372, 3
      %vm2645 = vcmp.eq.s32.totalorder %v373, 3
      %vm2646 = vcmp.eq.s32.totalorder %v374, 3
      %vm2647 = vcmp.eq.s32.totalorder %v375, 3
      %vm2648 = vcmp.eq.s32.totalorder %v376, 3
      %vm2649 = vcmp.eq.s32.totalorder %v377, 3
      %vm2650 = vcmp.eq.s32.totalorder %v378, 3
      %vm2651 = vcmp.eq.s32.totalorder %v379, 3
      %vm2652 = vcmp.eq.s32.totalorder %v380, 3
      %vm2653 = vcmp.eq.s32.totalorder %v381, 3
      %vm2654 = vcmp.eq.s32.totalorder %v382, 3
      %vm2655 = vcmp.eq.s32.totalorder %v383, 3
      %vm2656 = vcmp.eq.s32.totalorder %v384, 3
      %vm2657 = vcmp.eq.s32.totalorder %v385, 3
      %vm2658 = vcmp.eq.s32.totalorder %v386, 3
      %vm2659 = vcmp.eq.s32.totalorder %v387, 3
      %vm2660 = vcmp.eq.s32.totalorder %v388, 3
      %vm2661 = vcmp.eq.s32.totalorder %v389, 3
      %vm2662 = vcmp.eq.s32.totalorder %v390, 3
      %vm2663 = vcmp.eq.s32.totalorder %v391, 3
      %vm2664 = vcmp.eq.s32.totalorder %v392, 3
      %vm2665 = vcmp.eq.s32.totalorder %v393, 3
      %vm2666 = vcmp.eq.s32.totalorder %v394, 3
      %vm2667 = vcmp.eq.s32.totalorder %v395, 3
      %vm2668 = vcmp.eq.s32.totalorder %v396, 3
      %vm2669 = vcmp.eq.s32.totalorder %v397, 3
      %vm2670 = vcmp.eq.s32.totalorder %v398, 3
      %vm2671 = vcmp.eq.s32.totalorder %v399, 3
      %vm2672 = vcmp.eq.s32.totalorder %v400, 3
      %vm2673 = vcmp.eq.s32.totalorder %v401, 3
      %vm2674 = vcmp.eq.s32.totalorder %v402, 3
      %vm2675 = vcmp.eq.s32.totalorder %v403, 3
      %vm2676 = vcmp.eq.s32.totalorder %v404, 3
      %vm2677 = vcmp.eq.s32.totalorder %v405, 3
      %vm2678 = vcmp.eq.s32.totalorder %v406, 3
      %vm2679 = vcmp.eq.s32.totalorder %v407, 3
      %vm2680 = vcmp.eq.s32.totalorder %v408, 3
      %vm2681 = vcmp.eq.s32.totalorder %v409, 3
      %vm2682 = vcmp.eq.s32.totalorder %v410, 3
      %vm2683 = vcmp.eq.s32.totalorder %v411, 3
      %vm2684 = vcmp.eq.s32.totalorder %v412, 3
      %vm2685 = vcmp.eq.s32.totalorder %v413, 3
      %vm2686 = vcmp.eq.s32.totalorder %v414, 3
      %vm2687 = vcmp.eq.s32.totalorder %v415, 3
      %vm2688 = vcmp.eq.s32.totalorder %v416, 3
      %vm2689 = vcmp.eq.s32.totalorder %v417, 3
      %vm2690 = vcmp.eq.s32.totalorder %v418, 3
      %vm2691 = vcmp.eq.s32.totalorder %v419, 3
      %vm2692 = vcmp.eq.s32.totalorder %v420, 3
      %vm2693 = vcmp.eq.s32.totalorder %v421, 3
      %v2694 = vsel %vm2630, 1, 0
      %v2695 = vsel %vm2631, 1, 0
      %v2696 = vsel %vm2632, 1, 0
      %v2697 = vsel %vm2633, 1, 0
      %v2698 = vsel %vm2634, 1, 0
      %v2699 = vsel %vm2635, 1, 0
      %v2700 = vsel %vm2636, 1, 0
      %v2701 = vsel %vm2637, 1, 0
      %v2702 = vsel %vm2638, 1, 0
      %v2703 = vsel %vm2639, 1, 0
      %v2704 = vsel %vm2640, 1, 0
      %v2705 = vsel %vm2641, 1, 0
      %v2706 = vsel %vm2642, 1, 0
      %v2707 = vsel %vm2643, 1, 0
      %v2708 = vsel %vm2644, 1, 0
      %v2709 = vsel %vm2645, 1, 0
      %v2710 = vsel %vm2646, 1, 0
      %v2711 = vsel %vm2647, 1, 0
      %v2712 = vsel %vm2648, 1, 0
      %v2713 = vsel %vm2649, 1, 0
      %v2714 = vsel %vm2650, 1, 0
      %v2715 = vsel %vm2651, 1, 0
      %v2716 = vsel %vm2652, 1, 0
      %v2717 = vsel %vm2653, 1, 0
      %v2718 = vsel %vm2654, 1, 0
      %v2719 = vsel %vm2655, 1, 0
      %v2720 = vsel %vm2656, 1, 0
      %v2721 = vsel %vm2657, 1, 0
      %v2722 = vsel %vm2658, 1, 0
      %v2723 = vsel %vm2659, 1, 0
      %v2724 = vsel %vm2660, 1, 0
      %v2725 = vsel %vm2661, 1, 0
      %v2726 = vsel %vm2662, 1, 0
      %v2727 = vsel %vm2663, 1, 0
      %v2728 = vsel %vm2664, 1, 0
      %v2729 = vsel %vm2665, 1, 0
      %v2730 = vsel %vm2666, 1, 0
      %v2731 = vsel %vm2667, 1, 0
      %v2732 = vsel %vm2668, 1, 0
      %v2733 = vsel %vm2669, 1, 0
      %v2734 = vsel %vm2670, 1, 0
      %v2735 = vsel %vm2671, 1, 0
      %v2736 = vsel %vm2672, 1, 0
      %v2737 = vsel %vm2673, 1, 0
      %v2738 = vsel %vm2674, 1, 0
      %v2739 = vsel %vm2675, 1, 0
      %v2740 = vsel %vm2676, 1, 0
      %v2741 = vsel %vm2677, 1, 0
      %v2742 = vsel %vm2678, 1, 0
      %v2743 = vsel %vm2679, 1, 0
      %v2744 = vsel %vm2680, 1, 0
      %v2745 = vsel %vm2681, 1, 0
      %v2746 = vsel %vm2682, 1, 0
      %v2747 = vsel %vm2683, 1, 0
      %v2748 = vsel %vm2684, 1, 0
      %v2749 = vsel %vm2685, 1, 0
      %v2750 = vsel %vm2686, 1, 0
      %v2751 = vsel %vm2687, 1, 0
      %v2752 = vsel %vm2688, 1, 0
      %v2753 = vsel %vm2689, 1, 0
      %v2754 = vsel %vm2690, 1, 0
      %v2755 = vsel %vm2691, 1, 0
      %v2756 = vsel %vm2692, 1, 0
      %v2757 = vsel %vm2693, 1, 0
      %2758 = vset.pattern.permute.xlu0 0
      %2759 = vperm.xlu0 %2758, %v2694
      %v2760 = vpop.permute.xlu0 %2759
      %2761 = vset.pattern.permute.xlu0 0
      %2762 = vperm.xlu0 %2761, %v2695
      %v2763 = vpop.permute.xlu0 %2762
      %2764 = vset.pattern.permute.xlu0 0
      %2765 = vperm.xlu0 %2764, %v2696
      %v2766 = vpop.permute.xlu0 %2765
      %2767 = vset.pattern.permute.xlu0 0
      %2768 = vperm.xlu0 %2767, %v2697
      %v2769 = vpop.permute.xlu0 %2768
      %2770 = vset.pattern.permute.xlu0 0
      %2771 = vperm.xlu0 %2770, %v2698
      %v2772 = vpop.permute.xlu0 %2771
      %2773 = vset.pattern.permute.xlu0 0
      %2774 = vperm.xlu0 %2773, %v2699
      %v2775 = vpop.permute.xlu0 %2774
      %2776 = vset.pattern.permute.xlu0 0
      %2777 = vperm.xlu0 %2776, %v2700
      %v2778 = vpop.permute.xlu0 %2777
      %2779 = vset.pattern.permute.xlu0 0
      %2780 = vperm.xlu0 %2779, %v2701
      %v2781 = vpop.permute.xlu0 %2780
      %2782 = vset.pattern.permute.xlu0 0
      %2783 = vperm.xlu0 %2782, %v2702
      %v2784 = vpop.permute.xlu0 %2783
      %2785 = vset.pattern.permute.xlu0 0
      %2786 = vperm.xlu0 %2785, %v2703
      %v2787 = vpop.permute.xlu0 %2786
      %2788 = vset.pattern.permute.xlu0 0
      %2789 = vperm.xlu0 %2788, %v2704
      %v2790 = vpop.permute.xlu0 %2789
      %2791 = vset.pattern.permute.xlu0 0
      %2792 = vperm.xlu0 %2791, %v2705
      %v2793 = vpop.permute.xlu0 %2792
      %2794 = vset.pattern.permute.xlu0 0
      %2795 = vperm.xlu0 %2794, %v2706
      %v2796 = vpop.permute.xlu0 %2795
      %2797 = vset.pattern.permute.xlu0 0
      %2798 = vperm.xlu0 %2797, %v2707
      %v2799 = vpop.permute.xlu0 %2798
      %2800 = vset.pattern.permute.xlu0 0
      %2801 = vperm.xlu0 %2800, %v2708
      %v2802 = vpop.permute.xlu0 %2801
      %2803 = vset.pattern.permute.xlu0 0
      %2804 = vperm.xlu0 %2803, %v2709
      %v2805 = vpop.permute.xlu0 %2804
      %2806 = vset.pattern.permute.xlu0 0
      %2807 = vperm.xlu0 %2806, %v2710
      %v2808 = vpop.permute.xlu0 %2807
      %2809 = vset.pattern.permute.xlu0 0
      %2810 = vperm.xlu0 %2809, %v2711
      %v2811 = vpop.permute.xlu0 %2810
      %2812 = vset.pattern.permute.xlu0 0
      %2813 = vperm.xlu0 %2812, %v2712
      %v2814 = vpop.permute.xlu0 %2813
      %2815 = vset.pattern.permute.xlu0 0
      %2816 = vperm.xlu0 %2815, %v2713
      %v2817 = vpop.permute.xlu0 %2816
      %2818 = vset.pattern.permute.xlu0 0
      %2819 = vperm.xlu0 %2818, %v2714
      %v2820 = vpop.permute.xlu0 %2819
      %2821 = vset.pattern.permute.xlu0 0
      %2822 = vperm.xlu0 %2821, %v2715
      %v2823 = vpop.permute.xlu0 %2822
      %2824 = vset.pattern.permute.xlu0 0
      %2825 = vperm.xlu0 %2824, %v2716
      %v2826 = vpop.permute.xlu0 %2825
      %2827 = vset.pattern.permute.xlu0 0
      %2828 = vperm.xlu0 %2827, %v2717
      %v2829 = vpop.permute.xlu0 %2828
      %2830 = vset.pattern.permute.xlu0 0
      %2831 = vperm.xlu0 %2830, %v2718
      %v2832 = vpop.permute.xlu0 %2831
      %2833 = vset.pattern.permute.xlu0 0
      %2834 = vperm.xlu0 %2833, %v2719
      %v2835 = vpop.permute.xlu0 %2834
      %2836 = vset.pattern.permute.xlu0 0
      %2837 = vperm.xlu0 %2836, %v2720
      %v2838 = vpop.permute.xlu0 %2837
      %2839 = vset.pattern.permute.xlu0 0
      %2840 = vperm.xlu0 %2839, %v2721
      %v2841 = vpop.permute.xlu0 %2840
      %2842 = vset.pattern.permute.xlu0 0
      %2843 = vperm.xlu0 %2842, %v2722
      %v2844 = vpop.permute.xlu0 %2843
      %2845 = vset.pattern.permute.xlu0 0
      %2846 = vperm.xlu0 %2845, %v2723
      %v2847 = vpop.permute.xlu0 %2846
      %2848 = vset.pattern.permute.xlu0 0
      %2849 = vperm.xlu0 %2848, %v2724
      %v2850 = vpop.permute.xlu0 %2849
      %2851 = vset.pattern.permute.xlu0 0
      %2852 = vperm.xlu0 %2851, %v2725
      %v2853 = vpop.permute.xlu0 %2852
      %2854 = vset.pattern.permute.xlu0 0
      %2855 = vperm.xlu0 %2854, %v2726
      %v2856 = vpop.permute.xlu0 %2855
      %2857 = vset.pattern.permute.xlu0 0
      %2858 = vperm.xlu0 %2857, %v2727
      %v2859 = vpop.permute.xlu0 %2858
      %2860 = vset.pattern.permute.xlu0 0
      %2861 = vperm.xlu0 %2860, %v2728
      %v2862 = vpop.permute.xlu0 %2861
      %2863 = vset.pattern.permute.xlu0 0
      %2864 = vperm.xlu0 %2863, %v2729
      %v2865 = vpop.permute.xlu0 %2864
      %2866 = vset.pattern.permute.xlu0 0
      %2867 = vperm.xlu0 %2866, %v2730
      %v2868 = vpop.permute.xlu0 %2867
      %2869 = vset.pattern.permute.xlu0 0
      %2870 = vperm.xlu0 %2869, %v2731
      %v2871 = vpop.permute.xlu0 %2870
      %2872 = vset.pattern.permute.xlu0 0
      %2873 = vperm.xlu0 %2872, %v2732
      %v2874 = vpop.permute.xlu0 %2873
      %2875 = vset.pattern.permute.xlu0 0
      %2876 = vperm.xlu0 %2875, %v2733
      %v2877 = vpop.permute.xlu0 %2876
      %2878 = vset.pattern.permute.xlu0 0
      %2879 = vperm.xlu0 %2878, %v2734
      %v2880 = vpop.permute.xlu0 %2879
      %2881 = vset.pattern.permute.xlu0 0
      %2882 = vperm.xlu0 %2881, %v2735
      %v2883 = vpop.permute.xlu0 %2882
      %2884 = vset.pattern.permute.xlu0 0
      %2885 = vperm.xlu0 %2884, %v2736
      %v2886 = vpop.permute.xlu0 %2885
      %2887 = vset.pattern.permute.xlu0 0
      %2888 = vperm.xlu0 %2887, %v2737
      %v2889 = vpop.permute.xlu0 %2888
      %2890 = vset.pattern.permute.xlu0 0
      %2891 = vperm.xlu0 %2890, %v2738
      %v2892 = vpop.permute.xlu0 %2891
      %2893 = vset.pattern.permute.xlu0 0
      %2894 = vperm.xlu0 %2893, %v2739
      %v2895 = vpop.permute.xlu0 %2894
      %2896 = vset.pattern.permute.xlu0 0
      %2897 = vperm.xlu0 %2896, %v2740
      %v2898 = vpop.permute.xlu0 %2897
      %2899 = vset.pattern.permute.xlu0 0
      %2900 = vperm.xlu0 %2899, %v2741
      %v2901 = vpop.permute.xlu0 %2900
      %2902 = vset.pattern.permute.xlu0 0
      %2903 = vperm.xlu0 %2902, %v2742
      %v2904 = vpop.permute.xlu0 %2903
      %2905 = vset.pattern.permute.xlu0 0
      %2906 = vperm.xlu0 %2905, %v2743
      %v2907 = vpop.permute.xlu0 %2906
      %2908 = vset.pattern.permute.xlu0 0
      %2909 = vperm.xlu0 %2908, %v2744
      %v2910 = vpop.permute.xlu0 %2909
      %2911 = vset.pattern.permute.xlu0 0
      %2912 = vperm.xlu0 %2911, %v2745
      %v2913 = vpop.permute.xlu0 %2912
      %2914 = vset.pattern.permute.xlu0 0
      %2915 = vperm.xlu0 %2914, %v2746
      %v2916 = vpop.permute.xlu0 %2915
      %2917 = vset.pattern.permute.xlu0 0
      %2918 = vperm.xlu0 %2917, %v2747
      %v2919 = vpop.permute.xlu0 %2918
      %2920 = vset.pattern.permute.xlu0 0
      %2921 = vperm.xlu0 %2920, %v2748
      %v2922 = vpop.permute.xlu0 %2921
      %2923 = vset.pattern.permute.xlu0 0
      %2924 = vperm.xlu0 %2923, %v2749
      %v2925 = vpop.permute.xlu0 %2924
      %2926 = vset.pattern.permute.xlu0 0
      %2927 = vperm.xlu0 %2926, %v2750
      %v2928 = vpop.permute.xlu0 %2927
      %2929 = vset.pattern.permute.xlu0 0
      %2930 = vperm.xlu0 %2929, %v2751
      %v2931 = vpop.permute.xlu0 %2930
      %2932 = vset.pattern.permute.xlu0 0
      %2933 = vperm.xlu0 %2932, %v2752
      %v2934 = vpop.permute.xlu0 %2933
      %2935 = vset.pattern.permute.xlu0 0
      %2936 = vperm.xlu0 %2935, %v2753
      %v2937 = vpop.permute.xlu0 %2936
      %2938 = vset.pattern.permute.xlu0 0
      %2939 = vperm.xlu0 %2938, %v2754
      %v2940 = vpop.permute.xlu0 %2939
      %2941 = vset.pattern.permute.xlu0 0
      %2942 = vperm.xlu0 %2941, %v2755
      %v2943 = vpop.permute.xlu0 %2942
      %2944 = vset.pattern.permute.xlu0 0
      %2945 = vperm.xlu0 %2944, %v2756
      %v2946 = vpop.permute.xlu0 %2945
      %2947 = vset.pattern.permute.xlu0 0
      %2948 = vperm.xlu0 %2947, %v2757
      %v2949 = vpop.permute.xlu0 %2948
      %vm2950 = vcmp.eq.s32.totalorder %v2760, 1
      %vm2951 = vcmp.eq.s32.totalorder %v2763, 1
      %vm2952 = vcmp.eq.s32.totalorder %v2766, 1
      %vm2953 = vcmp.eq.s32.totalorder %v2769, 1
      %vm2954 = vcmp.eq.s32.totalorder %v2772, 1
      %vm2955 = vcmp.eq.s32.totalorder %v2775, 1
      %vm2956 = vcmp.eq.s32.totalorder %v2778, 1
      %vm2957 = vcmp.eq.s32.totalorder %v2781, 1
      %vm2958 = vcmp.eq.s32.totalorder %v2784, 1
      %vm2959 = vcmp.eq.s32.totalorder %v2787, 1
      %vm2960 = vcmp.eq.s32.totalorder %v2790, 1
      %vm2961 = vcmp.eq.s32.totalorder %v2793, 1
      %vm2962 = vcmp.eq.s32.totalorder %v2796, 1
      %vm2963 = vcmp.eq.s32.totalorder %v2799, 1
      %vm2964 = vcmp.eq.s32.totalorder %v2802, 1
      %vm2965 = vcmp.eq.s32.totalorder %v2805, 1
      %vm2966 = vcmp.eq.s32.totalorder %v2808, 1
      %vm2967 = vcmp.eq.s32.totalorder %v2811, 1
      %vm2968 = vcmp.eq.s32.totalorder %v2814, 1
      %vm2969 = vcmp.eq.s32.totalorder %v2817, 1
      %vm2970 = vcmp.eq.s32.totalorder %v2820, 1
      %vm2971 = vcmp.eq.s32.totalorder %v2823, 1
      %vm2972 = vcmp.eq.s32.totalorder %v2826, 1
      %vm2973 = vcmp.eq.s32.totalorder %v2829, 1
      %vm2974 = vcmp.eq.s32.totalorder %v2832, 1
      %vm2975 = vcmp.eq.s32.totalorder %v2835, 1
      %vm2976 = vcmp.eq.s32.totalorder %v2838, 1
      %vm2977 = vcmp.eq.s32.totalorder %v2841, 1
      %vm2978 = vcmp.eq.s32.totalorder %v2844, 1
      %vm2979 = vcmp.eq.s32.totalorder %v2847, 1
      %vm2980 = vcmp.eq.s32.totalorder %v2850, 1
      %vm2981 = vcmp.eq.s32.totalorder %v2853, 1
      %vm2982 = vcmp.eq.s32.totalorder %v2856, 1
      %vm2983 = vcmp.eq.s32.totalorder %v2859, 1
      %vm2984 = vcmp.eq.s32.totalorder %v2862, 1
      %vm2985 = vcmp.eq.s32.totalorder %v2865, 1
      %vm2986 = vcmp.eq.s32.totalorder %v2868, 1
      %vm2987 = vcmp.eq.s32.totalorder %v2871, 1
      %vm2988 = vcmp.eq.s32.totalorder %v2874, 1
      %vm2989 = vcmp.eq.s32.totalorder %v2877, 1
      %vm2990 = vcmp.eq.s32.totalorder %v2880, 1
      %vm2991 = vcmp.eq.s32.totalorder %v2883, 1
      %vm2992 = vcmp.eq.s32.totalorder %v2886, 1
      %vm2993 = vcmp.eq.s32.totalorder %v2889, 1
      %vm2994 = vcmp.eq.s32.totalorder %v2892, 1
      %vm2995 = vcmp.eq.s32.totalorder %v2895, 1
      %vm2996 = vcmp.eq.s32.totalorder %v2898, 1
      %vm2997 = vcmp.eq.s32.totalorder %v2901, 1
      %vm2998 = vcmp.eq.s32.totalorder %v2904, 1
      %vm2999 = vcmp.eq.s32.totalorder %v2907, 1
      %vm3000 = vcmp.eq.s32.totalorder %v2910, 1
      %vm3001 = vcmp.eq.s32.totalorder %v2913, 1
      %vm3002 = vcmp.eq.s32.totalorder %v2916, 1
      %vm3003 = vcmp.eq.s32.totalorder %v2919, 1
      %vm3004 = vcmp.eq.s32.totalorder %v2922, 1
      %vm3005 = vcmp.eq.s32.totalorder %v2925, 1
      %vm3006 = vcmp.eq.s32.totalorder %v2928, 1
      %vm3007 = vcmp.eq.s32.totalorder %v2931, 1
      %vm3008 = vcmp.eq.s32.totalorder %v2934, 1
      %vm3009 = vcmp.eq.s32.totalorder %v2937, 1
      %vm3010 = vcmp.eq.s32.totalorder %v2940, 1
      %vm3011 = vcmp.eq.s32.totalorder %v2943, 1
      %vm3012 = vcmp.eq.s32.totalorder %v2946, 1
      %vm3013 = vcmp.eq.s32.totalorder %v2949, 1
      %v3014 = vsel %vm2950, %v294, -1e+30
      %v3015 = vsel %vm2951, %v295, -1e+30
      %v3016 = vsel %vm2952, %v296, -1e+30
      %v3017 = vsel %vm2953, %v297, -1e+30
      %v3018 = vsel %vm2954, %v298, -1e+30
      %v3019 = vsel %vm2955, %v299, -1e+30
      %v3020 = vsel %vm2956, %v300, -1e+30
      %v3021 = vsel %vm2957, %v301, -1e+30
      %v3022 = vsel %vm2958, %v302, -1e+30
      %v3023 = vsel %vm2959, %v303, -1e+30
      %v3024 = vsel %vm2960, %v304, -1e+30
      %v3025 = vsel %vm2961, %v305, -1e+30
      %v3026 = vsel %vm2962, %v306, -1e+30
      %v3027 = vsel %vm2963, %v307, -1e+30
      %v3028 = vsel %vm2964, %v308, -1e+30
      %v3029 = vsel %vm2965, %v309, -1e+30
      %v3030 = vsel %vm2966, %v310, -1e+30
      %v3031 = vsel %vm2967, %v311, -1e+30
      %v3032 = vsel %vm2968, %v312, -1e+30
      %v3033 = vsel %vm2969, %v313, -1e+30
      %v3034 = vsel %vm2970, %v314, -1e+30
      %v3035 = vsel %vm2971, %v315, -1e+30
      %v3036 = vsel %vm2972, %v316, -1e+30
      %v3037 = vsel %vm2973, %v317, -1e+30
      %v3038 = vsel %vm2974, %v318, -1e+30
      %v3039 = vsel %vm2975, %v319, -1e+30
      %v3040 = vsel %vm2976, %v320, -1e+30
      %v3041 = vsel %vm2977, %v321, -1e+30
      %v3042 = vsel %vm2978, %v322, -1e+30
      %v3043 = vsel %vm2979, %v323, -1e+30
      %v3044 = vsel %vm2980, %v324, -1e+30
      %v3045 = vsel %vm2981, %v325, -1e+30
      %v3046 = vsel %vm2982, %v326, -1e+30
      %v3047 = vsel %vm2983, %v327, -1e+30
      %v3048 = vsel %vm2984, %v328, -1e+30
      %v3049 = vsel %vm2985, %v329, -1e+30
      %v3050 = vsel %vm2986, %v330, -1e+30
      %v3051 = vsel %vm2987, %v331, -1e+30
      %v3052 = vsel %vm2988, %v332, -1e+30
      %v3053 = vsel %vm2989, %v333, -1e+30
      %v3054 = vsel %vm2990, %v334, -1e+30
      %v3055 = vsel %vm2991, %v335, -1e+30
      %v3056 = vsel %vm2992, %v336, -1e+30
      %v3057 = vsel %vm2993, %v337, -1e+30
      %v3058 = vsel %vm2994, %v338, -1e+30
      %v3059 = vsel %vm2995, %v339, -1e+30
      %v3060 = vsel %vm2996, %v340, -1e+30
      %v3061 = vsel %vm2997, %v341, -1e+30
      %v3062 = vsel %vm2998, %v342, -1e+30
      %v3063 = vsel %vm2999, %v343, -1e+30
      %v3064 = vsel %vm3000, %v344, -1e+30
      %v3065 = vsel %vm3001, %v345, -1e+30
      %v3066 = vsel %vm3002, %v346, -1e+30
      %v3067 = vsel %vm3003, %v347, -1e+30
      %v3068 = vsel %vm3004, %v348, -1e+30
      %v3069 = vsel %vm3005, %v349, -1e+30
      %v3070 = vsel %vm3006, %v350, -1e+30
      %v3071 = vsel %vm3007, %v351, -1e+30
      %v3072 = vsel %vm3008, %v352, -1e+30
      %v3073 = vsel %vm3009, %v353, -1e+30
      %v3074 = vsel %vm3010, %v354, -1e+30
      %v3075 = vsel %vm3011, %v355, -1e+30
      %v3076 = vsel %vm3012, %v356, -1e+30
      %v3077 = vsel %vm3013, %v357, -1e+30
      %v3078 = vmax.f32 %v3014, %v3018
      %v3079 = vmax.f32 %v3015, %v3019
      %v3080 = vmax.f32 %v3016, %v3020
      %v3081 = vmax.f32 %v3017, %v3021
      %v3082 = vmax.f32 %v3078, %v3022
      %v3083 = vmax.f32 %v3079, %v3023
      %v3084 = vmax.f32 %v3080, %v3024
      %v3085 = vmax.f32 %v3081, %v3025
      %v3086 = vmax.f32 %v3082, %v3026
      %v3087 = vmax.f32 %v3083, %v3027
      %v3088 = vmax.f32 %v3084, %v3028
      %v3089 = vmax.f32 %v3085, %v3029
      %v3090 = vmax.f32 %v3086, %v3030
      %v3091 = vmax.f32 %v3087, %v3031
      %v3092 = vmax.f32 %v3088, %v3032
      %v3093 = vmax.f32 %v3089, %v3033
      %v3094 = vmax.f32 %v3090, %v3034
      %v3095 = vmax.f32 %v3091, %v3035
      %v3096 = vmax.f32 %v3092, %v3036
      %v3097 = vmax.f32 %v3093, %v3037
      %v3098 = vmax.f32 %v3094, %v3038
      %v3099 = vmax.f32 %v3095, %v3039
      %v3100 = vmax.f32 %v3096, %v3040
      %v3101 = vmax.f32 %v3097, %v3041
      %v3102 = vmax.f32 %v3098, %v3042
      %v3103 = vmax.f32 %v3099, %v3043
      %v3104 = vmax.f32 %v3100, %v3044
      %v3105 = vmax.f32 %v3101, %v3045
      %v3106 = vmax.f32 %v3102, %v3046
      %v3107 = vmax.f32 %v3103, %v3047
      %v3108 = vmax.f32 %v3104, %v3048
      %v3109 = vmax.f32 %v3105, %v3049
      %v3110 = vmax.f32 %v3106, %v3050
      %v3111 = vmax.f32 %v3107, %v3051
      %v3112 = vmax.f32 %v3108, %v3052
      %v3113 = vmax.f32 %v3109, %v3053
      %v3114 = vmax.f32 %v3110, %v3054
      %v3115 = vmax.f32 %v3111, %v3055
      %v3116 = vmax.f32 %v3112, %v3056
      %v3117 = vmax.f32 %v3113, %v3057
      %v3118 = vmax.f32 %v3114, %v3058
      %v3119 = vmax.f32 %v3115, %v3059
      %v3120 = vmax.f32 %v3116, %v3060
      %v3121 = vmax.f32 %v3117, %v3061
      %v3122 = vmax.f32 %v3118, %v3062
      %v3123 = vmax.f32 %v3119, %v3063
      %v3124 = vmax.f32 %v3120, %v3064
      %v3125 = vmax.f32 %v3121, %v3065
      %v3126 = vmax.f32 %v3122, %v3066
      %v3127 = vmax.f32 %v3123, %v3067
      %v3128 = vmax.f32 %v3124, %v3068
      %v3129 = vmax.f32 %v3125, %v3069
      %v3130 = vmax.f32 %v3126, %v3070
      %v3131 = vmax.f32 %v3127, %v3071
      %v3132 = vmax.f32 %v3128, %v3072
      %v3133 = vmax.f32 %v3129, %v3073
      %v3134 = vmax.f32 %v3130, %v3074
      %v3135 = vmax.f32 %v3131, %v3075
      %v3136 = vmax.f32 %v3132, %v3076
      %v3137 = vmax.f32 %v3133, %v3077
      %v3138 = vmax.f32 %v3134, %v3135
      %v3139 = vmax.f32 %v3136, %v3137
      %v3140 = vmax.f32 %v3138, %v3139
      %v3141 = vrot.slane %v3140, 4
      %v3142 = vmax.f32 %v3140, %v3141
      %v3143 = vrot.slane %v3142, 2
      %v3144 = vmax.f32 %v3142, %v3143
      %v3145 = vrot.slane %v3144, 1
      %v3146 = vmax.f32 %v3144, %v3145
      %vm3147 = vcmp.eq.s32.totalorder %v358, 4
      %vm3148 = vcmp.eq.s32.totalorder %v359, 4
      %vm3149 = vcmp.eq.s32.totalorder %v360, 4
      %vm3150 = vcmp.eq.s32.totalorder %v361, 4
      %vm3151 = vcmp.eq.s32.totalorder %v362, 4
      %vm3152 = vcmp.eq.s32.totalorder %v363, 4
      %vm3153 = vcmp.eq.s32.totalorder %v364, 4
      %vm3154 = vcmp.eq.s32.totalorder %v365, 4
      %vm3155 = vcmp.eq.s32.totalorder %v366, 4
      %vm3156 = vcmp.eq.s32.totalorder %v367, 4
      %vm3157 = vcmp.eq.s32.totalorder %v368, 4
      %vm3158 = vcmp.eq.s32.totalorder %v369, 4
      %vm3159 = vcmp.eq.s32.totalorder %v370, 4
      %vm3160 = vcmp.eq.s32.totalorder %v371, 4
      %vm3161 = vcmp.eq.s32.totalorder %v372, 4
      %vm3162 = vcmp.eq.s32.totalorder %v373, 4
      %vm3163 = vcmp.eq.s32.totalorder %v374, 4
      %vm3164 = vcmp.eq.s32.totalorder %v375, 4
      %vm3165 = vcmp.eq.s32.totalorder %v376, 4
      %vm3166 = vcmp.eq.s32.totalorder %v377, 4
      %vm3167 = vcmp.eq.s32.totalorder %v378, 4
      %vm3168 = vcmp.eq.s32.totalorder %v379, 4
      %vm3169 = vcmp.eq.s32.totalorder %v380, 4
      %vm3170 = vcmp.eq.s32.totalorder %v381, 4
      %vm3171 = vcmp.eq.s32.totalorder %v382, 4
      %vm3172 = vcmp.eq.s32.totalorder %v383, 4
      %vm3173 = vcmp.eq.s32.totalorder %v384, 4
      %vm3174 = vcmp.eq.s32.totalorder %v385, 4
      %vm3175 = vcmp.eq.s32.totalorder %v386, 4
      %vm3176 = vcmp.eq.s32.totalorder %v387, 4
      %vm3177 = vcmp.eq.s32.totalorder %v388, 4
      %vm3178 = vcmp.eq.s32.totalorder %v389, 4
      %vm3179 = vcmp.eq.s32.totalorder %v390, 4
      %vm3180 = vcmp.eq.s32.totalorder %v391, 4
      %vm3181 = vcmp.eq.s32.totalorder %v392, 4
      %vm3182 = vcmp.eq.s32.totalorder %v393, 4
      %vm3183 = vcmp.eq.s32.totalorder %v394, 4
      %vm3184 = vcmp.eq.s32.totalorder %v395, 4
      %vm3185 = vcmp.eq.s32.totalorder %v396, 4
      %vm3186 = vcmp.eq.s32.totalorder %v397, 4
      %vm3187 = vcmp.eq.s32.totalorder %v398, 4
      %vm3188 = vcmp.eq.s32.totalorder %v399, 4
      %vm3189 = vcmp.eq.s32.totalorder %v400, 4
      %vm3190 = vcmp.eq.s32.totalorder %v401, 4
      %vm3191 = vcmp.eq.s32.totalorder %v402, 4
      %vm3192 = vcmp.eq.s32.totalorder %v403, 4
      %vm3193 = vcmp.eq.s32.totalorder %v404, 4
      %vm3194 = vcmp.eq.s32.totalorder %v405, 4
      %vm3195 = vcmp.eq.s32.totalorder %v406, 4
      %vm3196 = vcmp.eq.s32.totalorder %v407, 4
      %vm3197 = vcmp.eq.s32.totalorder %v408, 4
      %vm3198 = vcmp.eq.s32.totalorder %v409, 4
      %vm3199 = vcmp.eq.s32.totalorder %v410, 4
      %vm3200 = vcmp.eq.s32.totalorder %v411, 4
      %vm3201 = vcmp.eq.s32.totalorder %v412, 4
      %vm3202 = vcmp.eq.s32.totalorder %v413, 4
      %vm3203 = vcmp.eq.s32.totalorder %v414, 4
      %vm3204 = vcmp.eq.s32.totalorder %v415, 4
      %vm3205 = vcmp.eq.s32.totalorder %v416, 4
      %vm3206 = vcmp.eq.s32.totalorder %v417, 4
      %vm3207 = vcmp.eq.s32.totalorder %v418, 4
      %vm3208 = vcmp.eq.s32.totalorder %v419, 4
      %vm3209 = vcmp.eq.s32.totalorder %v420, 4
      %vm3210 = vcmp.eq.s32.totalorder %v421, 4
      %v3211 = vsel %vm3147, 1, 0
      %v3212 = vsel %vm3148, 1, 0
      %v3213 = vsel %vm3149, 1, 0
      %v3214 = vsel %vm3150, 1, 0
      %v3215 = vsel %vm3151, 1, 0
      %v3216 = vsel %vm3152, 1, 0
      %v3217 = vsel %vm3153, 1, 0
      %v3218 = vsel %vm3154, 1, 0
      %v3219 = vsel %vm3155, 1, 0
      %v3220 = vsel %vm3156, 1, 0
      %v3221 = vsel %vm3157, 1, 0
      %v3222 = vsel %vm3158, 1, 0
      %v3223 = vsel %vm3159, 1, 0
      %v3224 = vsel %vm3160, 1, 0
      %v3225 = vsel %vm3161, 1, 0
      %v3226 = vsel %vm3162, 1, 0
      %v3227 = vsel %vm3163, 1, 0
      %v3228 = vsel %vm3164, 1, 0
      %v3229 = vsel %vm3165, 1, 0
      %v3230 = vsel %vm3166, 1, 0
      %v3231 = vsel %vm3167, 1, 0
      %v3232 = vsel %vm3168, 1, 0
      %v3233 = vsel %vm3169, 1, 0
      %v3234 = vsel %vm3170, 1, 0
      %v3235 = vsel %vm3171, 1, 0
      %v3236 = vsel %vm3172, 1, 0
      %v3237 = vsel %vm3173, 1, 0
      %v3238 = vsel %vm3174, 1, 0
      %v3239 = vsel %vm3175, 1, 0
      %v3240 = vsel %vm3176, 1, 0
      %v3241 = vsel %vm3177, 1, 0
      %v3242 = vsel %vm3178, 1, 0
      %v3243 = vsel %vm3179, 1, 0
      %v3244 = vsel %vm3180, 1, 0
      %v3245 = vsel %vm3181, 1, 0
      %v3246 = vsel %vm3182, 1, 0
      %v3247 = vsel %vm3183, 1, 0
      %v3248 = vsel %vm3184, 1, 0
      %v3249 = vsel %vm3185, 1, 0
      %v3250 = vsel %vm3186, 1, 0
      %v3251 = vsel %vm3187, 1, 0
      %v3252 = vsel %vm3188, 1, 0
      %v3253 = vsel %vm3189, 1, 0
      %v3254 = vsel %vm3190, 1, 0
      %v3255 = vsel %vm3191, 1, 0
      %v3256 = vsel %vm3192, 1, 0
      %v3257 = vsel %vm3193, 1, 0
      %v3258 = vsel %vm3194, 1, 0
      %v3259 = vsel %vm3195, 1, 0
      %v3260 = vsel %vm3196, 1, 0
      %v3261 = vsel %vm3197, 1, 0
      %v3262 = vsel %vm3198, 1, 0
      %v3263 = vsel %vm3199, 1, 0
      %v3264 = vsel %vm3200, 1, 0
      %v3265 = vsel %vm3201, 1, 0
      %v3266 = vsel %vm3202, 1, 0
      %v3267 = vsel %vm3203, 1, 0
      %v3268 = vsel %vm3204, 1, 0
      %v3269 = vsel %vm3205, 1, 0
      %v3270 = vsel %vm3206, 1, 0
      %v3271 = vsel %vm3207, 1, 0
      %v3272 = vsel %vm3208, 1, 0
      %v3273 = vsel %vm3209, 1, 0
      %v3274 = vsel %vm3210, 1, 0
      %3275 = vset.pattern.permute.xlu0 0
      %3276 = vperm.xlu0 %3275, %v3211
      %v3277 = vpop.permute.xlu0 %3276
      %3278 = vset.pattern.permute.xlu0 0
      %3279 = vperm.xlu0 %3278, %v3212
      %v3280 = vpop.permute.xlu0 %3279
      %3281 = vset.pattern.permute.xlu0 0
      %3282 = vperm.xlu0 %3281, %v3213
      %v3283 = vpop.permute.xlu0 %3282
      %3284 = vset.pattern.permute.xlu0 0
      %3285 = vperm.xlu0 %3284, %v3214
      %v3286 = vpop.permute.xlu0 %3285
      %3287 = vset.pattern.permute.xlu0 0
      %3288 = vperm.xlu0 %3287, %v3215
      %v3289 = vpop.permute.xlu0 %3288
      %3290 = vset.pattern.permute.xlu0 0
      %3291 = vperm.xlu0 %3290, %v3216
      %v3292 = vpop.permute.xlu0 %3291
      %3293 = vset.pattern.permute.xlu0 0
      %3294 = vperm.xlu0 %3293, %v3217
      %v3295 = vpop.permute.xlu0 %3294
      %3296 = vset.pattern.permute.xlu0 0
      %3297 = vperm.xlu0 %3296, %v3218
      %v3298 = vpop.permute.xlu0 %3297
      %3299 = vset.pattern.permute.xlu0 0
      %3300 = vperm.xlu0 %3299, %v3219
      %v3301 = vpop.permute.xlu0 %3300
      %3302 = vset.pattern.permute.xlu0 0
      %3303 = vperm.xlu0 %3302, %v3220
      %v3304 = vpop.permute.xlu0 %3303
      %3305 = vset.pattern.permute.xlu0 0
      %3306 = vperm.xlu0 %3305, %v3221
      %v3307 = vpop.permute.xlu0 %3306
      %3308 = vset.pattern.permute.xlu0 0
      %3309 = vperm.xlu0 %3308, %v3222
      %v3310 = vpop.permute.xlu0 %3309
      %3311 = vset.pattern.permute.xlu0 0
      %3312 = vperm.xlu0 %3311, %v3223
      %v3313 = vpop.permute.xlu0 %3312
      %3314 = vset.pattern.permute.xlu0 0
      %3315 = vperm.xlu0 %3314, %v3224
      %v3316 = vpop.permute.xlu0 %3315
      %3317 = vset.pattern.permute.xlu0 0
      %3318 = vperm.xlu0 %3317, %v3225
      %v3319 = vpop.permute.xlu0 %3318
      %3320 = vset.pattern.permute.xlu0 0
      %3321 = vperm.xlu0 %3320, %v3226
      %v3322 = vpop.permute.xlu0 %3321
      %3323 = vset.pattern.permute.xlu0 0
      %3324 = vperm.xlu0 %3323, %v3227
      %v3325 = vpop.permute.xlu0 %3324
      %3326 = vset.pattern.permute.xlu0 0
      %3327 = vperm.xlu0 %3326, %v3228
      %v3328 = vpop.permute.xlu0 %3327
      %3329 = vset.pattern.permute.xlu0 0
      %3330 = vperm.xlu0 %3329, %v3229
      %v3331 = vpop.permute.xlu0 %3330
      %3332 = vset.pattern.permute.xlu0 0
      %3333 = vperm.xlu0 %3332, %v3230
      %v3334 = vpop.permute.xlu0 %3333
      %3335 = vset.pattern.permute.xlu0 0
      %3336 = vperm.xlu0 %3335, %v3231
      %v3337 = vpop.permute.xlu0 %3336
      %3338 = vset.pattern.permute.xlu0 0
      %3339 = vperm.xlu0 %3338, %v3232
      %v3340 = vpop.permute.xlu0 %3339
      %3341 = vset.pattern.permute.xlu0 0
      %3342 = vperm.xlu0 %3341, %v3233
      %v3343 = vpop.permute.xlu0 %3342
      %3344 = vset.pattern.permute.xlu0 0
      %3345 = vperm.xlu0 %3344, %v3234
      %v3346 = vpop.permute.xlu0 %3345
      %3347 = vset.pattern.permute.xlu0 0
      %3348 = vperm.xlu0 %3347, %v3235
      %v3349 = vpop.permute.xlu0 %3348
      %3350 = vset.pattern.permute.xlu0 0
      %3351 = vperm.xlu0 %3350, %v3236
      %v3352 = vpop.permute.xlu0 %3351
      %3353 = vset.pattern.permute.xlu0 0
      %3354 = vperm.xlu0 %3353, %v3237
      %v3355 = vpop.permute.xlu0 %3354
      %3356 = vset.pattern.permute.xlu0 0
      %3357 = vperm.xlu0 %3356, %v3238
      %v3358 = vpop.permute.xlu0 %3357
      %3359 = vset.pattern.permute.xlu0 0
      %3360 = vperm.xlu0 %3359, %v3239
      %v3361 = vpop.permute.xlu0 %3360
      %3362 = vset.pattern.permute.xlu0 0
      %3363 = vperm.xlu0 %3362, %v3240
      %v3364 = vpop.permute.xlu0 %3363
      %3365 = vset.pattern.permute.xlu0 0
      %3366 = vperm.xlu0 %3365, %v3241
      %v3367 = vpop.permute.xlu0 %3366
      %3368 = vset.pattern.permute.xlu0 0
      %3369 = vperm.xlu0 %3368, %v3242
      %v3370 = vpop.permute.xlu0 %3369
      %3371 = vset.pattern.permute.xlu0 0
      %3372 = vperm.xlu0 %3371, %v3243
      %v3373 = vpop.permute.xlu0 %3372
      %3374 = vset.pattern.permute.xlu0 0
      %3375 = vperm.xlu0 %3374, %v3244
      %v3376 = vpop.permute.xlu0 %3375
      %3377 = vset.pattern.permute.xlu0 0
      %3378 = vperm.xlu0 %3377, %v3245
      %v3379 = vpop.permute.xlu0 %3378
      %3380 = vset.pattern.permute.xlu0 0
      %3381 = vperm.xlu0 %3380, %v3246
      %v3382 = vpop.permute.xlu0 %3381
      %3383 = vset.pattern.permute.xlu0 0
      %3384 = vperm.xlu0 %3383, %v3247
      %v3385 = vpop.permute.xlu0 %3384
      %3386 = vset.pattern.permute.xlu0 0
      %3387 = vperm.xlu0 %3386, %v3248
      %v3388 = vpop.permute.xlu0 %3387
      %3389 = vset.pattern.permute.xlu0 0
      %3390 = vperm.xlu0 %3389, %v3249
      %v3391 = vpop.permute.xlu0 %3390
      %3392 = vset.pattern.permute.xlu0 0
      %3393 = vperm.xlu0 %3392, %v3250
      %v3394 = vpop.permute.xlu0 %3393
      %3395 = vset.pattern.permute.xlu0 0
      %3396 = vperm.xlu0 %3395, %v3251
      %v3397 = vpop.permute.xlu0 %3396
      %3398 = vset.pattern.permute.xlu0 0
      %3399 = vperm.xlu0 %3398, %v3252
      %v3400 = vpop.permute.xlu0 %3399
      %3401 = vset.pattern.permute.xlu0 0
      %3402 = vperm.xlu0 %3401, %v3253
      %v3403 = vpop.permute.xlu0 %3402
      %3404 = vset.pattern.permute.xlu0 0
      %3405 = vperm.xlu0 %3404, %v3254
      %v3406 = vpop.permute.xlu0 %3405
      %3407 = vset.pattern.permute.xlu0 0
      %3408 = vperm.xlu0 %3407, %v3255
      %v3409 = vpop.permute.xlu0 %3408
      %3410 = vset.pattern.permute.xlu0 0
      %3411 = vperm.xlu0 %3410, %v3256
      %v3412 = vpop.permute.xlu0 %3411
      %3413 = vset.pattern.permute.xlu0 0
      %3414 = vperm.xlu0 %3413, %v3257
      %v3415 = vpop.permute.xlu0 %3414
      %3416 = vset.pattern.permute.xlu0 0
      %3417 = vperm.xlu0 %3416, %v3258
      %v3418 = vpop.permute.xlu0 %3417
      %3419 = vset.pattern.permute.xlu0 0
      %3420 = vperm.xlu0 %3419, %v3259
      %v3421 = vpop.permute.xlu0 %3420
      %3422 = vset.pattern.permute.xlu0 0
      %3423 = vperm.xlu0 %3422, %v3260
      %v3424 = vpop.permute.xlu0 %3423
      %3425 = vset.pattern.permute.xlu0 0
      %3426 = vperm.xlu0 %3425, %v3261
      %v3427 = vpop.permute.xlu0 %3426
      %3428 = vset.pattern.permute.xlu0 0
      %3429 = vperm.xlu0 %3428, %v3262
      %v3430 = vpop.permute.xlu0 %3429
      %3431 = vset.pattern.permute.xlu0 0
      %3432 = vperm.xlu0 %3431, %v3263
      %v3433 = vpop.permute.xlu0 %3432
      %3434 = vset.pattern.permute.xlu0 0
      %3435 = vperm.xlu0 %3434, %v3264
      %v3436 = vpop.permute.xlu0 %3435
      %3437 = vset.pattern.permute.xlu0 0
      %3438 = vperm.xlu0 %3437, %v3265
      %v3439 = vpop.permute.xlu0 %3438
      %3440 = vset.pattern.permute.xlu0 0
      %3441 = vperm.xlu0 %3440, %v3266
      %v3442 = vpop.permute.xlu0 %3441
      %3443 = vset.pattern.permute.xlu0 0
      %3444 = vperm.xlu0 %3443, %v3267
      %v3445 = vpop.permute.xlu0 %3444
      %3446 = vset.pattern.permute.xlu0 0
      %3447 = vperm.xlu0 %3446, %v3268
      %v3448 = vpop.permute.xlu0 %3447
      %3449 = vset.pattern.permute.xlu0 0
      %3450 = vperm.xlu0 %3449, %v3269
      %v3451 = vpop.permute.xlu0 %3450
      %3452 = vset.pattern.permute.xlu0 0
      %3453 = vperm.xlu0 %3452, %v3270
      %v3454 = vpop.permute.xlu0 %3453
      %3455 = vset.pattern.permute.xlu0 0
      %3456 = vperm.xlu0 %3455, %v3271
      %v3457 = vpop.permute.xlu0 %3456
      %3458 = vset.pattern.permute.xlu0 0
      %3459 = vperm.xlu0 %3458, %v3272
      %v3460 = vpop.permute.xlu0 %3459
      %3461 = vset.pattern.permute.xlu0 0
      %3462 = vperm.xlu0 %3461, %v3273
      %v3463 = vpop.permute.xlu0 %3462
      %3464 = vset.pattern.permute.xlu0 0
      %3465 = vperm.xlu0 %3464, %v3274
      %v3466 = vpop.permute.xlu0 %3465
      %vm3467 = vcmp.eq.s32.totalorder %v3277, 1
      %vm3468 = vcmp.eq.s32.totalorder %v3280, 1
      %vm3469 = vcmp.eq.s32.totalorder %v3283, 1
      %vm3470 = vcmp.eq.s32.totalorder %v3286, 1
      %vm3471 = vcmp.eq.s32.totalorder %v3289, 1
      %vm3472 = vcmp.eq.s32.totalorder %v3292, 1
      %vm3473 = vcmp.eq.s32.totalorder %v3295, 1
      %vm3474 = vcmp.eq.s32.totalorder %v3298, 1
      %vm3475 = vcmp.eq.s32.totalorder %v3301, 1
      %vm3476 = vcmp.eq.s32.totalorder %v3304, 1
      %vm3477 = vcmp.eq.s32.totalorder %v3307, 1
      %vm3478 = vcmp.eq.s32.totalorder %v3310, 1
      %vm3479 = vcmp.eq.s32.totalorder %v3313, 1
      %vm3480 = vcmp.eq.s32.totalorder %v3316, 1
      %vm3481 = vcmp.eq.s32.totalorder %v3319, 1
      %vm3482 = vcmp.eq.s32.totalorder %v3322, 1
      %vm3483 = vcmp.eq.s32.totalorder %v3325, 1
      %vm3484 = vcmp.eq.s32.totalorder %v3328, 1
      %vm3485 = vcmp.eq.s32.totalorder %v3331, 1
      %vm3486 = vcmp.eq.s32.totalorder %v3334, 1
      %vm3487 = vcmp.eq.s32.totalorder %v3337, 1
      %vm3488 = vcmp.eq.s32.totalorder %v3340, 1
      %vm3489 = vcmp.eq.s32.totalorder %v3343, 1
      %vm3490 = vcmp.eq.s32.totalorder %v3346, 1
      %vm3491 = vcmp.eq.s32.totalorder %v3349, 1
      %vm3492 = vcmp.eq.s32.totalorder %v3352, 1
      %vm3493 = vcmp.eq.s32.totalorder %v3355, 1
      %vm3494 = vcmp.eq.s32.totalorder %v3358, 1
      %vm3495 = vcmp.eq.s32.totalorder %v3361, 1
      %vm3496 = vcmp.eq.s32.totalorder %v3364, 1
      %vm3497 = vcmp.eq.s32.totalorder %v3367, 1
      %vm3498 = vcmp.eq.s32.totalorder %v3370, 1
      %vm3499 = vcmp.eq.s32.totalorder %v3373, 1
      %vm3500 = vcmp.eq.s32.totalorder %v3376, 1
      %vm3501 = vcmp.eq.s32.totalorder %v3379, 1
      %vm3502 = vcmp.eq.s32.totalorder %v3382, 1
      %vm3503 = vcmp.eq.s32.totalorder %v3385, 1
      %vm3504 = vcmp.eq.s32.totalorder %v3388, 1
      %vm3505 = vcmp.eq.s32.totalorder %v3391, 1
      %vm3506 = vcmp.eq.s32.totalorder %v3394, 1
      %vm3507 = vcmp.eq.s32.totalorder %v3397, 1
      %vm3508 = vcmp.eq.s32.totalorder %v3400, 1
      %vm3509 = vcmp.eq.s32.totalorder %v3403, 1
      %vm3510 = vcmp.eq.s32.totalorder %v3406, 1
      %vm3511 = vcmp.eq.s32.totalorder %v3409, 1
      %vm3512 = vcmp.eq.s32.totalorder %v3412, 1
      %vm3513 = vcmp.eq.s32.totalorder %v3415, 1
      %vm3514 = vcmp.eq.s32.totalorder %v3418, 1
      %vm3515 = vcmp.eq.s32.totalorder %v3421, 1
      %vm3516 = vcmp.eq.s32.totalorder %v3424, 1
      %vm3517 = vcmp.eq.s32.totalorder %v3427, 1
      %vm3518 = vcmp.eq.s32.totalorder %v3430, 1
      %vm3519 = vcmp.eq.s32.totalorder %v3433, 1
      %vm3520 = vcmp.eq.s32.totalorder %v3436, 1
      %vm3521 = vcmp.eq.s32.totalorder %v3439, 1
      %vm3522 = vcmp.eq.s32.totalorder %v3442, 1
      %vm3523 = vcmp.eq.s32.totalorder %v3445, 1
      %vm3524 = vcmp.eq.s32.totalorder %v3448, 1
      %vm3525 = vcmp.eq.s32.totalorder %v3451, 1
      %vm3526 = vcmp.eq.s32.totalorder %v3454, 1
      %vm3527 = vcmp.eq.s32.totalorder %v3457, 1
      %vm3528 = vcmp.eq.s32.totalorder %v3460, 1
      %vm3529 = vcmp.eq.s32.totalorder %v3463, 1
      %vm3530 = vcmp.eq.s32.totalorder %v3466, 1
      %v3531 = vsel %vm3467, %v294, -1e+30
      %v3532 = vsel %vm3468, %v295, -1e+30
      %v3533 = vsel %vm3469, %v296, -1e+30
      %v3534 = vsel %vm3470, %v297, -1e+30
      %v3535 = vsel %vm3471, %v298, -1e+30
      %v3536 = vsel %vm3472, %v299, -1e+30
      %v3537 = vsel %vm3473, %v300, -1e+30
      %v3538 = vsel %vm3474, %v301, -1e+30
      %v3539 = vsel %vm3475, %v302, -1e+30
      %v3540 = vsel %vm3476, %v303, -1e+30
      %v3541 = vsel %vm3477, %v304, -1e+30
      %v3542 = vsel %vm3478, %v305, -1e+30
      %v3543 = vsel %vm3479, %v306, -1e+30
      %v3544 = vsel %vm3480, %v307, -1e+30
      %v3545 = vsel %vm3481, %v308, -1e+30
      %v3546 = vsel %vm3482, %v309, -1e+30
      %v3547 = vsel %vm3483, %v310, -1e+30
      %v3548 = vsel %vm3484, %v311, -1e+30
      %v3549 = vsel %vm3485, %v312, -1e+30
      %v3550 = vsel %vm3486, %v313, -1e+30
      %v3551 = vsel %vm3487, %v314, -1e+30
      %v3552 = vsel %vm3488, %v315, -1e+30
      %v3553 = vsel %vm3489, %v316, -1e+30
      %v3554 = vsel %vm3490, %v317, -1e+30
      %v3555 = vsel %vm3491, %v318, -1e+30
      %v3556 = vsel %vm3492, %v319, -1e+30
      %v3557 = vsel %vm3493, %v320, -1e+30
      %v3558 = vsel %vm3494, %v321, -1e+30
      %v3559 = vsel %vm3495, %v322, -1e+30
      %v3560 = vsel %vm3496, %v323, -1e+30
      %v3561 = vsel %vm3497, %v324, -1e+30
      %v3562 = vsel %vm3498, %v325, -1e+30
      %v3563 = vsel %vm3499, %v326, -1e+30
      %v3564 = vsel %vm3500, %v327, -1e+30
      %v3565 = vsel %vm3501, %v328, -1e+30
      %v3566 = vsel %vm3502, %v329, -1e+30
      %v3567 = vsel %vm3503, %v330, -1e+30
      %v3568 = vsel %vm3504, %v331, -1e+30
      %v3569 = vsel %vm3505, %v332, -1e+30
      %v3570 = vsel %vm3506, %v333, -1e+30
      %v3571 = vsel %vm3507, %v334, -1e+30
      %v3572 = vsel %vm3508, %v335, -1e+30
      %v3573 = vsel %vm3509, %v336, -1e+30
      %v3574 = vsel %vm3510, %v337, -1e+30
      %v3575 = vsel %vm3511, %v338, -1e+30
      %v3576 = vsel %vm3512, %v339, -1e+30
      %v3577 = vsel %vm3513, %v340, -1e+30
      %v3578 = vsel %vm3514, %v341, -1e+30
      %v3579 = vsel %vm3515, %v342, -1e+30
      %v3580 = vsel %vm3516, %v343, -1e+30
      %v3581 = vsel %vm3517, %v344, -1e+30
      %v3582 = vsel %vm3518, %v345, -1e+30
      %v3583 = vsel %vm3519, %v346, -1e+30
      %v3584 = vsel %vm3520, %v347, -1e+30
      %v3585 = vsel %vm3521, %v348, -1e+30
      %v3586 = vsel %vm3522, %v349, -1e+30
      %v3587 = vsel %vm3523, %v350, -1e+30
      %v3588 = vsel %vm3524, %v351, -1e+30
      %v3589 = vsel %vm3525, %v352, -1e+30
      %v3590 = vsel %vm3526, %v353, -1e+30
      %v3591 = vsel %vm3527, %v354, -1e+30
      %v3592 = vsel %vm3528, %v355, -1e+30
      %v3593 = vsel %vm3529, %v356, -1e+30
      %v3594 = vsel %vm3530, %v357, -1e+30
      %v3595 = vmax.f32 %v3531, %v3535
      %v3596 = vmax.f32 %v3532, %v3536
      %v3597 = vmax.f32 %v3533, %v3537
      %v3598 = vmax.f32 %v3534, %v3538
      %v3599 = vmax.f32 %v3595, %v3539
      %v3600 = vmax.f32 %v3596, %v3540
      %v3601 = vmax.f32 %v3597, %v3541
      %v3602 = vmax.f32 %v3598, %v3542
      %v3603 = vmax.f32 %v3599, %v3543
      %v3604 = vmax.f32 %v3600, %v3544
      %v3605 = vmax.f32 %v3601, %v3545
      %v3606 = vmax.f32 %v3602, %v3546
      %v3607 = vmax.f32 %v3603, %v3547
      %v3608 = vmax.f32 %v3604, %v3548
      %v3609 = vmax.f32 %v3605, %v3549
      %v3610 = vmax.f32 %v3606, %v3550
      %v3611 = vmax.f32 %v3607, %v3551
      %v3612 = vmax.f32 %v3608, %v3552
      %v3613 = vmax.f32 %v3609, %v3553
      %v3614 = vmax.f32 %v3610, %v3554
      %v3615 = vmax.f32 %v3611, %v3555
      %v3616 = vmax.f32 %v3612, %v3556
      %v3617 = vmax.f32 %v3613, %v3557
      %v3618 = vmax.f32 %v3614, %v3558
      %v3619 = vmax.f32 %v3615, %v3559
      %v3620 = vmax.f32 %v3616, %v3560
      %v3621 = vmax.f32 %v3617, %v3561
      %v3622 = vmax.f32 %v3618, %v3562
      %v3623 = vmax.f32 %v3619, %v3563
      %v3624 = vmax.f32 %v3620, %v3564
      %v3625 = vmax.f32 %v3621, %v3565
      %v3626 = vmax.f32 %v3622, %v3566
      %v3627 = vmax.f32 %v3623, %v3567
      %v3628 = vmax.f32 %v3624, %v3568
      %v3629 = vmax.f32 %v3625, %v3569
      %v3630 = vmax.f32 %v3626, %v3570
      %v3631 = vmax.f32 %v3627, %v3571
      %v3632 = vmax.f32 %v3628, %v3572
      %v3633 = vmax.f32 %v3629, %v3573
      %v3634 = vmax.f32 %v3630, %v3574
      %v3635 = vmax.f32 %v3631, %v3575
      %v3636 = vmax.f32 %v3632, %v3576
      %v3637 = vmax.f32 %v3633, %v3577
      %v3638 = vmax.f32 %v3634, %v3578
      %v3639 = vmax.f32 %v3635, %v3579
      %v3640 = vmax.f32 %v3636, %v3580
      %v3641 = vmax.f32 %v3637, %v3581
      %v3642 = vmax.f32 %v3638, %v3582
      %v3643 = vmax.f32 %v3639, %v3583
      %v3644 = vmax.f32 %v3640, %v3584
      %v3645 = vmax.f32 %v3641, %v3585
      %v3646 = vmax.f32 %v3642, %v3586
      %v3647 = vmax.f32 %v3643, %v3587
      %v3648 = vmax.f32 %v3644, %v3588
      %v3649 = vmax.f32 %v3645, %v3589
      %v3650 = vmax.f32 %v3646, %v3590
      %v3651 = vmax.f32 %v3647, %v3591
      %v3652 = vmax.f32 %v3648, %v3592
      %v3653 = vmax.f32 %v3649, %v3593
      %v3654 = vmax.f32 %v3650, %v3594
      %v3655 = vmax.f32 %v3651, %v3652
      %v3656 = vmax.f32 %v3653, %v3654
      %v3657 = vmax.f32 %v3655, %v3656
      %v3658 = vrot.slane %v3657, 4
      %v3659 = vmax.f32 %v3657, %v3658
      %v3660 = vrot.slane %v3659, 2
      %v3661 = vmax.f32 %v3659, %v3660
      %v3662 = vrot.slane %v3661, 1
      %v3663 = vmax.f32 %v3661, %v3662
      %vm3664 = vcmp.eq.s32.totalorder %v358, 5
      %vm3665 = vcmp.eq.s32.totalorder %v359, 5
      %vm3666 = vcmp.eq.s32.totalorder %v360, 5
      %vm3667 = vcmp.eq.s32.totalorder %v361, 5
      %vm3668 = vcmp.eq.s32.totalorder %v362, 5
      %vm3669 = vcmp.eq.s32.totalorder %v363, 5
      %vm3670 = vcmp.eq.s32.totalorder %v364, 5
      %vm3671 = vcmp.eq.s32.totalorder %v365, 5
      %vm3672 = vcmp.eq.s32.totalorder %v366, 5
      %vm3673 = vcmp.eq.s32.totalorder %v367, 5
      %vm3674 = vcmp.eq.s32.totalorder %v368, 5
      %vm3675 = vcmp.eq.s32.totalorder %v369, 5
      %vm3676 = vcmp.eq.s32.totalorder %v370, 5
      %vm3677 = vcmp.eq.s32.totalorder %v371, 5
      %vm3678 = vcmp.eq.s32.totalorder %v372, 5
      %vm3679 = vcmp.eq.s32.totalorder %v373, 5
      %vm3680 = vcmp.eq.s32.totalorder %v374, 5
      %vm3681 = vcmp.eq.s32.totalorder %v375, 5
      %vm3682 = vcmp.eq.s32.totalorder %v376, 5
      %vm3683 = vcmp.eq.s32.totalorder %v377, 5
      %vm3684 = vcmp.eq.s32.totalorder %v378, 5
      %vm3685 = vcmp.eq.s32.totalorder %v379, 5
      %vm3686 = vcmp.eq.s32.totalorder %v380, 5
      %vm3687 = vcmp.eq.s32.totalorder %v381, 5
      %vm3688 = vcmp.eq.s32.totalorder %v382, 5
      %vm3689 = vcmp.eq.s32.totalorder %v383, 5
      %vm3690 = vcmp.eq.s32.totalorder %v384, 5
      %vm3691 = vcmp.eq.s32.totalorder %v385, 5
      %vm3692 = vcmp.eq.s32.totalorder %v386, 5
      %vm3693 = vcmp.eq.s32.totalorder %v387, 5
      %vm3694 = vcmp.eq.s32.totalorder %v388, 5
      %vm3695 = vcmp.eq.s32.totalorder %v389, 5
      %vm3696 = vcmp.eq.s32.totalorder %v390, 5
      %vm3697 = vcmp.eq.s32.totalorder %v391, 5
      %vm3698 = vcmp.eq.s32.totalorder %v392, 5
      %vm3699 = vcmp.eq.s32.totalorder %v393, 5
      %vm3700 = vcmp.eq.s32.totalorder %v394, 5
      %vm3701 = vcmp.eq.s32.totalorder %v395, 5
      %vm3702 = vcmp.eq.s32.totalorder %v396, 5
      %vm3703 = vcmp.eq.s32.totalorder %v397, 5
      %vm3704 = vcmp.eq.s32.totalorder %v398, 5
      %vm3705 = vcmp.eq.s32.totalorder %v399, 5
      %vm3706 = vcmp.eq.s32.totalorder %v400, 5
      %vm3707 = vcmp.eq.s32.totalorder %v401, 5
      %vm3708 = vcmp.eq.s32.totalorder %v402, 5
      %vm3709 = vcmp.eq.s32.totalorder %v403, 5
      %vm3710 = vcmp.eq.s32.totalorder %v404, 5
      %vm3711 = vcmp.eq.s32.totalorder %v405, 5
      %vm3712 = vcmp.eq.s32.totalorder %v406, 5
      %vm3713 = vcmp.eq.s32.totalorder %v407, 5
      %vm3714 = vcmp.eq.s32.totalorder %v408, 5
      %vm3715 = vcmp.eq.s32.totalorder %v409, 5
      %vm3716 = vcmp.eq.s32.totalorder %v410, 5
      %vm3717 = vcmp.eq.s32.totalorder %v411, 5
      %vm3718 = vcmp.eq.s32.totalorder %v412, 5
      %vm3719 = vcmp.eq.s32.totalorder %v413, 5
      %vm3720 = vcmp.eq.s32.totalorder %v414, 5
      %vm3721 = vcmp.eq.s32.totalorder %v415, 5
      %vm3722 = vcmp.eq.s32.totalorder %v416, 5
      %vm3723 = vcmp.eq.s32.totalorder %v417, 5
      %vm3724 = vcmp.eq.s32.totalorder %v418, 5
      %vm3725 = vcmp.eq.s32.totalorder %v419, 5
      %vm3726 = vcmp.eq.s32.totalorder %v420, 5
      %vm3727 = vcmp.eq.s32.totalorder %v421, 5
      %v3728 = vsel %vm3664, 1, 0
      %v3729 = vsel %vm3665, 1, 0
      %v3730 = vsel %vm3666, 1, 0
      %v3731 = vsel %vm3667, 1, 0
      %v3732 = vsel %vm3668, 1, 0
      %v3733 = vsel %vm3669, 1, 0
      %v3734 = vsel %vm3670, 1, 0
      %v3735 = vsel %vm3671, 1, 0
      %v3736 = vsel %vm3672, 1, 0
      %v3737 = vsel %vm3673, 1, 0
      %v3738 = vsel %vm3674, 1, 0
      %v3739 = vsel %vm3675, 1, 0
      %v3740 = vsel %vm3676, 1, 0
      %v3741 = vsel %vm3677, 1, 0
      %v3742 = vsel %vm3678, 1, 0
      %v3743 = vsel %vm3679, 1, 0
      %v3744 = vsel %vm3680, 1, 0
      %v3745 = vsel %vm3681, 1, 0
      %v3746 = vsel %vm3682, 1, 0
      %v3747 = vsel %vm3683, 1, 0
      %v3748 = vsel %vm3684, 1, 0
      %v3749 = vsel %vm3685, 1, 0
      %v3750 = vsel %vm3686, 1, 0
      %v3751 = vsel %vm3687, 1, 0
      %v3752 = vsel %vm3688, 1, 0
      %v3753 = vsel %vm3689, 1, 0
      %v3754 = vsel %vm3690, 1, 0
      %v3755 = vsel %vm3691, 1, 0
      %v3756 = vsel %vm3692, 1, 0
      %v3757 = vsel %vm3693, 1, 0
      %v3758 = vsel %vm3694, 1, 0
      %v3759 = vsel %vm3695, 1, 0
      %v3760 = vsel %vm3696, 1, 0
      %v3761 = vsel %vm3697, 1, 0
      %v3762 = vsel %vm3698, 1, 0
      %v3763 = vsel %vm3699, 1, 0
      %v3764 = vsel %vm3700, 1, 0
      %v3765 = vsel %vm3701, 1, 0
      %v3766 = vsel %vm3702, 1, 0
      %v3767 = vsel %vm3703, 1, 0
      %v3768 = vsel %vm3704, 1, 0
      %v3769 = vsel %vm3705, 1, 0
      %v3770 = vsel %vm3706, 1, 0
      %v3771 = vsel %vm3707, 1, 0
      %v3772 = vsel %vm3708, 1, 0
      %v3773 = vsel %vm3709, 1, 0
      %v3774 = vsel %vm3710, 1, 0
      %v3775 = vsel %vm3711, 1, 0
      %v3776 = vsel %vm3712, 1, 0
      %v3777 = vsel %vm3713, 1, 0
      %v3778 = vsel %vm3714, 1, 0
      %v3779 = vsel %vm3715, 1, 0
      %v3780 = vsel %vm3716, 1, 0
      %v3781 = vsel %vm3717, 1, 0
      %v3782 = vsel %vm3718, 1, 0
      %v3783 = vsel %vm3719, 1, 0
      %v3784 = vsel %vm3720, 1, 0
      %v3785 = vsel %vm3721, 1, 0
      %v3786 = vsel %vm3722, 1, 0
      %v3787 = vsel %vm3723, 1, 0
      %v3788 = vsel %vm3724, 1, 0
      %v3789 = vsel %vm3725, 1, 0
      %v3790 = vsel %vm3726, 1, 0
      %v3791 = vsel %vm3727, 1, 0
      %3792 = vset.pattern.permute.xlu0 0
      %3793 = vperm.xlu0 %3792, %v3728
      %v3794 = vpop.permute.xlu0 %3793
      %3795 = vset.pattern.permute.xlu0 0
      %3796 = vperm.xlu0 %3795, %v3729
      %v3797 = vpop.permute.xlu0 %3796
      %3798 = vset.pattern.permute.xlu0 0
      %3799 = vperm.xlu0 %3798, %v3730
      %v3800 = vpop.permute.xlu0 %3799
      %3801 = vset.pattern.permute.xlu0 0
      %3802 = vperm.xlu0 %3801, %v3731
      %v3803 = vpop.permute.xlu0 %3802
      %3804 = vset.pattern.permute.xlu0 0
      %3805 = vperm.xlu0 %3804, %v3732
      %v3806 = vpop.permute.xlu0 %3805
      %3807 = vset.pattern.permute.xlu0 0
      %3808 = vperm.xlu0 %3807, %v3733
      %v3809 = vpop.permute.xlu0 %3808
      %3810 = vset.pattern.permute.xlu0 0
      %3811 = vperm.xlu0 %3810, %v3734
      %v3812 = vpop.permute.xlu0 %3811
      %3813 = vset.pattern.permute.xlu0 0
      %3814 = vperm.xlu0 %3813, %v3735
      %v3815 = vpop.permute.xlu0 %3814
      %3816 = vset.pattern.permute.xlu0 0
      %3817 = vperm.xlu0 %3816, %v3736
      %v3818 = vpop.permute.xlu0 %3817
      %3819 = vset.pattern.permute.xlu0 0
      %3820 = vperm.xlu0 %3819, %v3737
      %v3821 = vpop.permute.xlu0 %3820
      %3822 = vset.pattern.permute.xlu0 0
      %3823 = vperm.xlu0 %3822, %v3738
      %v3824 = vpop.permute.xlu0 %3823
      %3825 = vset.pattern.permute.xlu0 0
      %3826 = vperm.xlu0 %3825, %v3739
      %v3827 = vpop.permute.xlu0 %3826
      %3828 = vset.pattern.permute.xlu0 0
      %3829 = vperm.xlu0 %3828, %v3740
      %v3830 = vpop.permute.xlu0 %3829
      %3831 = vset.pattern.permute.xlu0 0
      %3832 = vperm.xlu0 %3831, %v3741
      %v3833 = vpop.permute.xlu0 %3832
      %3834 = vset.pattern.permute.xlu0 0
      %3835 = vperm.xlu0 %3834, %v3742
      %v3836 = vpop.permute.xlu0 %3835
      %3837 = vset.pattern.permute.xlu0 0
      %3838 = vperm.xlu0 %3837, %v3743
      %v3839 = vpop.permute.xlu0 %3838
      %3840 = vset.pattern.permute.xlu0 0
      %3841 = vperm.xlu0 %3840, %v3744
      %v3842 = vpop.permute.xlu0 %3841
      %3843 = vset.pattern.permute.xlu0 0
      %3844 = vperm.xlu0 %3843, %v3745
      %v3845 = vpop.permute.xlu0 %3844
      %3846 = vset.pattern.permute.xlu0 0
      %3847 = vperm.xlu0 %3846, %v3746
      %v3848 = vpop.permute.xlu0 %3847
      %3849 = vset.pattern.permute.xlu0 0
      %3850 = vperm.xlu0 %3849, %v3747
      %v3851 = vpop.permute.xlu0 %3850
      %3852 = vset.pattern.permute.xlu0 0
      %3853 = vperm.xlu0 %3852, %v3748
      %v3854 = vpop.permute.xlu0 %3853
      %3855 = vset.pattern.permute.xlu0 0
      %3856 = vperm.xlu0 %3855, %v3749
      %v3857 = vpop.permute.xlu0 %3856
      %3858 = vset.pattern.permute.xlu0 0
      %3859 = vperm.xlu0 %3858, %v3750
      %v3860 = vpop.permute.xlu0 %3859
      %3861 = vset.pattern.permute.xlu0 0
      %3862 = vperm.xlu0 %3861, %v3751
      %v3863 = vpop.permute.xlu0 %3862
      %3864 = vset.pattern.permute.xlu0 0
      %3865 = vperm.xlu0 %3864, %v3752
      %v3866 = vpop.permute.xlu0 %3865
      %3867 = vset.pattern.permute.xlu0 0
      %3868 = vperm.xlu0 %3867, %v3753
      %v3869 = vpop.permute.xlu0 %3868
      %3870 = vset.pattern.permute.xlu0 0
      %3871 = vperm.xlu0 %3870, %v3754
      %v3872 = vpop.permute.xlu0 %3871
      %3873 = vset.pattern.permute.xlu0 0
      %3874 = vperm.xlu0 %3873, %v3755
      %v3875 = vpop.permute.xlu0 %3874
      %3876 = vset.pattern.permute.xlu0 0
      %3877 = vperm.xlu0 %3876, %v3756
      %v3878 = vpop.permute.xlu0 %3877
      %3879 = vset.pattern.permute.xlu0 0
      %3880 = vperm.xlu0 %3879, %v3757
      %v3881 = vpop.permute.xlu0 %3880
      %3882 = vset.pattern.permute.xlu0 0
      %3883 = vperm.xlu0 %3882, %v3758
      %v3884 = vpop.permute.xlu0 %3883
      %3885 = vset.pattern.permute.xlu0 0
      %3886 = vperm.xlu0 %3885, %v3759
      %v3887 = vpop.permute.xlu0 %3886
      %3888 = vset.pattern.permute.xlu0 0
      %3889 = vperm.xlu0 %3888, %v3760
      %v3890 = vpop.permute.xlu0 %3889
      %3891 = vset.pattern.permute.xlu0 0
      %3892 = vperm.xlu0 %3891, %v3761
      %v3893 = vpop.permute.xlu0 %3892
      %3894 = vset.pattern.permute.xlu0 0
      %3895 = vperm.xlu0 %3894, %v3762
      %v3896 = vpop.permute.xlu0 %3895
      %3897 = vset.pattern.permute.xlu0 0
      %3898 = vperm.xlu0 %3897, %v3763
      %v3899 = vpop.permute.xlu0 %3898
      %3900 = vset.pattern.permute.xlu0 0
      %3901 = vperm.xlu0 %3900, %v3764
      %v3902 = vpop.permute.xlu0 %3901
      %3903 = vset.pattern.permute.xlu0 0
      %3904 = vperm.xlu0 %3903, %v3765
      %v3905 = vpop.permute.xlu0 %3904
      %3906 = vset.pattern.permute.xlu0 0
      %3907 = vperm.xlu0 %3906, %v3766
      %v3908 = vpop.permute.xlu0 %3907
      %3909 = vset.pattern.permute.xlu0 0
      %3910 = vperm.xlu0 %3909, %v3767
      %v3911 = vpop.permute.xlu0 %3910
      %3912 = vset.pattern.permute.xlu0 0
      %3913 = vperm.xlu0 %3912, %v3768
      %v3914 = vpop.permute.xlu0 %3913
      %3915 = vset.pattern.permute.xlu0 0
      %3916 = vperm.xlu0 %3915, %v3769
      %v3917 = vpop.permute.xlu0 %3916
      %3918 = vset.pattern.permute.xlu0 0
      %3919 = vperm.xlu0 %3918, %v3770
      %v3920 = vpop.permute.xlu0 %3919
      %3921 = vset.pattern.permute.xlu0 0
      %3922 = vperm.xlu0 %3921, %v3771
      %v3923 = vpop.permute.xlu0 %3922
      %3924 = vset.pattern.permute.xlu0 0
      %3925 = vperm.xlu0 %3924, %v3772
      %v3926 = vpop.permute.xlu0 %3925
      %3927 = vset.pattern.permute.xlu0 0
      %3928 = vperm.xlu0 %3927, %v3773
      %v3929 = vpop.permute.xlu0 %3928
      %3930 = vset.pattern.permute.xlu0 0
      %3931 = vperm.xlu0 %3930, %v3774
      %v3932 = vpop.permute.xlu0 %3931
      %3933 = vset.pattern.permute.xlu0 0
      %3934 = vperm.xlu0 %3933, %v3775
      %v3935 = vpop.permute.xlu0 %3934
      %3936 = vset.pattern.permute.xlu0 0
      %3937 = vperm.xlu0 %3936, %v3776
      %v3938 = vpop.permute.xlu0 %3937
      %3939 = vset.pattern.permute.xlu0 0
      %3940 = vperm.xlu0 %3939, %v3777
      %v3941 = vpop.permute.xlu0 %3940
      %3942 = vset.pattern.permute.xlu0 0
      %3943 = vperm.xlu0 %3942, %v3778
      %v3944 = vpop.permute.xlu0 %3943
      %3945 = vset.pattern.permute.xlu0 0
      %3946 = vperm.xlu0 %3945, %v3779
      %v3947 = vpop.permute.xlu0 %3946
      %3948 = vset.pattern.permute.xlu0 0
      %3949 = vperm.xlu0 %3948, %v3780
      %v3950 = vpop.permute.xlu0 %3949
      %3951 = vset.pattern.permute.xlu0 0
      %3952 = vperm.xlu0 %3951, %v3781
      %v3953 = vpop.permute.xlu0 %3952
      %3954 = vset.pattern.permute.xlu0 0
      %3955 = vperm.xlu0 %3954, %v3782
      %v3956 = vpop.permute.xlu0 %3955
      %3957 = vset.pattern.permute.xlu0 0
      %3958 = vperm.xlu0 %3957, %v3783
      %v3959 = vpop.permute.xlu0 %3958
      %3960 = vset.pattern.permute.xlu0 0
      %3961 = vperm.xlu0 %3960, %v3784
      %v3962 = vpop.permute.xlu0 %3961
      %3963 = vset.pattern.permute.xlu0 0
      %3964 = vperm.xlu0 %3963, %v3785
      %v3965 = vpop.permute.xlu0 %3964
      %3966 = vset.pattern.permute.xlu0 0
      %3967 = vperm.xlu0 %3966, %v3786
      %v3968 = vpop.permute.xlu0 %3967
      %3969 = vset.pattern.permute.xlu0 0
      %3970 = vperm.xlu0 %3969, %v3787
      %v3971 = vpop.permute.xlu0 %3970
      %3972 = vset.pattern.permute.xlu0 0
      %3973 = vperm.xlu0 %3972, %v3788
      %v3974 = vpop.permute.xlu0 %3973
      %3975 = vset.pattern.permute.xlu0 0
      %3976 = vperm.xlu0 %3975, %v3789
      %v3977 = vpop.permute.xlu0 %3976
      %3978 = vset.pattern.permute.xlu0 0
      %3979 = vperm.xlu0 %3978, %v3790
      %v3980 = vpop.permute.xlu0 %3979
      %3981 = vset.pattern.permute.xlu0 0
      %3982 = vperm.xlu0 %3981, %v3791
      %v3983 = vpop.permute.xlu0 %3982
      %vm3984 = vcmp.eq.s32.totalorder %v3794, 1
      %vm3985 = vcmp.eq.s32.totalorder %v3797, 1
      %vm3986 = vcmp.eq.s32.totalorder %v3800, 1
      %vm3987 = vcmp.eq.s32.totalorder %v3803, 1
      %vm3988 = vcmp.eq.s32.totalorder %v3806, 1
      %vm3989 = vcmp.eq.s32.totalorder %v3809, 1
      %vm3990 = vcmp.eq.s32.totalorder %v3812, 1
      %vm3991 = vcmp.eq.s32.totalorder %v3815, 1
      %vm3992 = vcmp.eq.s32.totalorder %v3818, 1
      %vm3993 = vcmp.eq.s32.totalorder %v3821, 1
      %vm3994 = vcmp.eq.s32.totalorder %v3824, 1
      %vm3995 = vcmp.eq.s32.totalorder %v3827, 1
      %vm3996 = vcmp.eq.s32.totalorder %v3830, 1
      %vm3997 = vcmp.eq.s32.totalorder %v3833, 1
      %vm3998 = vcmp.eq.s32.totalorder %v3836, 1
      %vm3999 = vcmp.eq.s32.totalorder %v3839, 1
      %vm4000 = vcmp.eq.s32.totalorder %v3842, 1
      %vm4001 = vcmp.eq.s32.totalorder %v3845, 1
      %vm4002 = vcmp.eq.s32.totalorder %v3848, 1
      %vm4003 = vcmp.eq.s32.totalorder %v3851, 1
      %vm4004 = vcmp.eq.s32.totalorder %v3854, 1
      %vm4005 = vcmp.eq.s32.totalorder %v3857, 1
      %vm4006 = vcmp.eq.s32.totalorder %v3860, 1
      %vm4007 = vcmp.eq.s32.totalorder %v3863, 1
      %vm4008 = vcmp.eq.s32.totalorder %v3866, 1
      %vm4009 = vcmp.eq.s32.totalorder %v3869, 1
      %vm4010 = vcmp.eq.s32.totalorder %v3872, 1
      %vm4011 = vcmp.eq.s32.totalorder %v3875, 1
      %vm4012 = vcmp.eq.s32.totalorder %v3878, 1
      %vm4013 = vcmp.eq.s32.totalorder %v3881, 1
      %vm4014 = vcmp.eq.s32.totalorder %v3884, 1
      %vm4015 = vcmp.eq.s32.totalorder %v3887, 1
      %vm4016 = vcmp.eq.s32.totalorder %v3890, 1
      %vm4017 = vcmp.eq.s32.totalorder %v3893, 1
      %vm4018 = vcmp.eq.s32.totalorder %v3896, 1
      %vm4019 = vcmp.eq.s32.totalorder %v3899, 1
      %vm4020 = vcmp.eq.s32.totalorder %v3902, 1
      %vm4021 = vcmp.eq.s32.totalorder %v3905, 1
      %vm4022 = vcmp.eq.s32.totalorder %v3908, 1
      %vm4023 = vcmp.eq.s32.totalorder %v3911, 1
      %vm4024 = vcmp.eq.s32.totalorder %v3914, 1
      %vm4025 = vcmp.eq.s32.totalorder %v3917, 1
      %vm4026 = vcmp.eq.s32.totalorder %v3920, 1
      %vm4027 = vcmp.eq.s32.totalorder %v3923, 1
      %vm4028 = vcmp.eq.s32.totalorder %v3926, 1
      %vm4029 = vcmp.eq.s32.totalorder %v3929, 1
      %vm4030 = vcmp.eq.s32.totalorder %v3932, 1
      %vm4031 = vcmp.eq.s32.totalorder %v3935, 1
      %vm4032 = vcmp.eq.s32.totalorder %v3938, 1
      %vm4033 = vcmp.eq.s32.totalorder %v3941, 1
      %vm4034 = vcmp.eq.s32.totalorder %v3944, 1
      %vm4035 = vcmp.eq.s32.totalorder %v3947, 1
      %vm4036 = vcmp.eq.s32.totalorder %v3950, 1
      %vm4037 = vcmp.eq.s32.totalorder %v3953, 1
      %vm4038 = vcmp.eq.s32.totalorder %v3956, 1
      %vm4039 = vcmp.eq.s32.totalorder %v3959, 1
      %vm4040 = vcmp.eq.s32.totalorder %v3962, 1
      %vm4041 = vcmp.eq.s32.totalorder %v3965, 1
      %vm4042 = vcmp.eq.s32.totalorder %v3968, 1
      %vm4043 = vcmp.eq.s32.totalorder %v3971, 1
      %vm4044 = vcmp.eq.s32.totalorder %v3974, 1
      %vm4045 = vcmp.eq.s32.totalorder %v3977, 1
      %vm4046 = vcmp.eq.s32.totalorder %v3980, 1
      %vm4047 = vcmp.eq.s32.totalorder %v3983, 1
      %v4048 = vsel %vm3984, %v294, -1e+30
      %v4049 = vsel %vm3985, %v295, -1e+30
      %v4050 = vsel %vm3986, %v296, -1e+30
      %v4051 = vsel %vm3987, %v297, -1e+30
      %v4052 = vsel %vm3988, %v298, -1e+30
      %v4053 = vsel %vm3989, %v299, -1e+30
      %v4054 = vsel %vm3990, %v300, -1e+30
      %v4055 = vsel %vm3991, %v301, -1e+30
      %v4056 = vsel %vm3992, %v302, -1e+30
      %v4057 = vsel %vm3993, %v303, -1e+30
      %v4058 = vsel %vm3994, %v304, -1e+30
      %v4059 = vsel %vm3995, %v305, -1e+30
      %v4060 = vsel %vm3996, %v306, -1e+30
      %v4061 = vsel %vm3997, %v307, -1e+30
      %v4062 = vsel %vm3998, %v308, -1e+30
      %v4063 = vsel %vm3999, %v309, -1e+30
      %v4064 = vsel %vm4000, %v310, -1e+30
      %v4065 = vsel %vm4001, %v311, -1e+30
      %v4066 = vsel %vm4002, %v312, -1e+30
      %v4067 = vsel %vm4003, %v313, -1e+30
      %v4068 = vsel %vm4004, %v314, -1e+30
      %v4069 = vsel %vm4005, %v315, -1e+30
      %v4070 = vsel %vm4006, %v316, -1e+30
      %v4071 = vsel %vm4007, %v317, -1e+30
      %v4072 = vsel %vm4008, %v318, -1e+30
      %v4073 = vsel %vm4009, %v319, -1e+30
      %v4074 = vsel %vm4010, %v320, -1e+30
      %v4075 = vsel %vm4011, %v321, -1e+30
      %v4076 = vsel %vm4012, %v322, -1e+30
      %v4077 = vsel %vm4013, %v323, -1e+30
      %v4078 = vsel %vm4014, %v324, -1e+30
      %v4079 = vsel %vm4015, %v325, -1e+30
      %v4080 = vsel %vm4016, %v326, -1e+30
      %v4081 = vsel %vm4017, %v327, -1e+30
      %v4082 = vsel %vm4018, %v328, -1e+30
      %v4083 = vsel %vm4019, %v329, -1e+30
      %v4084 = vsel %vm4020, %v330, -1e+30
      %v4085 = vsel %vm4021, %v331, -1e+30
      %v4086 = vsel %vm4022, %v332, -1e+30
      %v4087 = vsel %vm4023, %v333, -1e+30
      %v4088 = vsel %vm4024, %v334, -1e+30
      %v4089 = vsel %vm4025, %v335, -1e+30
      %v4090 = vsel %vm4026, %v336, -1e+30
      %v4091 = vsel %vm4027, %v337, -1e+30
      %v4092 = vsel %vm4028, %v338, -1e+30
      %v4093 = vsel %vm4029, %v339, -1e+30
      %v4094 = vsel %vm4030, %v340, -1e+30
      %v4095 = vsel %vm4031, %v341, -1e+30
      %v4096 = vsel %vm4032, %v342, -1e+30
      %v4097 = vsel %vm4033, %v343, -1e+30
      %v4098 = vsel %vm4034, %v344, -1e+30
      %v4099 = vsel %vm4035, %v345, -1e+30
      %v4100 = vsel %vm4036, %v346, -1e+30
      %v4101 = vsel %vm4037, %v347, -1e+30
      %v4102 = vsel %vm4038, %v348, -1e+30
      %v4103 = vsel %vm4039, %v349, -1e+30
      %v4104 = vsel %vm4040, %v350, -1e+30
      %v4105 = vsel %vm4041, %v351, -1e+30
      %v4106 = vsel %vm4042, %v352, -1e+30
      %v4107 = vsel %vm4043, %v353, -1e+30
      %v4108 = vsel %vm4044, %v354, -1e+30
      %v4109 = vsel %vm4045, %v355, -1e+30
      %v4110 = vsel %vm4046, %v356, -1e+30
      %v4111 = vsel %vm4047, %v357, -1e+30
      %v4112 = vmax.f32 %v4048, %v4052
      %v4113 = vmax.f32 %v4049, %v4053
      %v4114 = vmax.f32 %v4050, %v4054
      %v4115 = vmax.f32 %v4051, %v4055
      %v4116 = vmax.f32 %v4112, %v4056
      %v4117 = vmax.f32 %v4113, %v4057
      %v4118 = vmax.f32 %v4114, %v4058
      %v4119 = vmax.f32 %v4115, %v4059
      %v4120 = vmax.f32 %v4116, %v4060
      %v4121 = vmax.f32 %v4117, %v4061
      %v4122 = vmax.f32 %v4118, %v4062
      %v4123 = vmax.f32 %v4119, %v4063
      %v4124 = vmax.f32 %v4120, %v4064
      %v4125 = vmax.f32 %v4121, %v4065
      %v4126 = vmax.f32 %v4122, %v4066
      %v4127 = vmax.f32 %v4123, %v4067
      %v4128 = vmax.f32 %v4124, %v4068
      %v4129 = vmax.f32 %v4125, %v4069
      %v4130 = vmax.f32 %v4126, %v4070
      %v4131 = vmax.f32 %v4127, %v4071
      %v4132 = vmax.f32 %v4128, %v4072
      %v4133 = vmax.f32 %v4129, %v4073
      %v4134 = vmax.f32 %v4130, %v4074
      %v4135 = vmax.f32 %v4131, %v4075
      %v4136 = vmax.f32 %v4132, %v4076
      %v4137 = vmax.f32 %v4133, %v4077
      %v4138 = vmax.f32 %v4134, %v4078
      %v4139 = vmax.f32 %v4135, %v4079
      %v4140 = vmax.f32 %v4136, %v4080
      %v4141 = vmax.f32 %v4137, %v4081
      %v4142 = vmax.f32 %v4138, %v4082
      %v4143 = vmax.f32 %v4139, %v4083
      %v4144 = vmax.f32 %v4140, %v4084
      %v4145 = vmax.f32 %v4141, %v4085
      %v4146 = vmax.f32 %v4142, %v4086
      %v4147 = vmax.f32 %v4143, %v4087
      %v4148 = vmax.f32 %v4144, %v4088
      %v4149 = vmax.f32 %v4145, %v4089
      %v4150 = vmax.f32 %v4146, %v4090
      %v4151 = vmax.f32 %v4147, %v4091
      %v4152 = vmax.f32 %v4148, %v4092
      %v4153 = vmax.f32 %v4149, %v4093
      %v4154 = vmax.f32 %v4150, %v4094
      %v4155 = vmax.f32 %v4151, %v4095
      %v4156 = vmax.f32 %v4152, %v4096
      %v4157 = vmax.f32 %v4153, %v4097
      %v4158 = vmax.f32 %v4154, %v4098
      %v4159 = vmax.f32 %v4155, %v4099
      %v4160 = vmax.f32 %v4156, %v4100
      %v4161 = vmax.f32 %v4157, %v4101
      %v4162 = vmax.f32 %v4158, %v4102
      %v4163 = vmax.f32 %v4159, %v4103
      %v4164 = vmax.f32 %v4160, %v4104
      %v4165 = vmax.f32 %v4161, %v4105
      %v4166 = vmax.f32 %v4162, %v4106
      %v4167 = vmax.f32 %v4163, %v4107
      %v4168 = vmax.f32 %v4164, %v4108
      %v4169 = vmax.f32 %v4165, %v4109
      %v4170 = vmax.f32 %v4166, %v4110
      %v4171 = vmax.f32 %v4167, %v4111
      %v4172 = vmax.f32 %v4168, %v4169
      %v4173 = vmax.f32 %v4170, %v4171
      %v4174 = vmax.f32 %v4172, %v4173
      %v4175 = vrot.slane %v4174, 4
      %v4176 = vmax.f32 %v4174, %v4175
      %v4177 = vrot.slane %v4176, 2
      %v4178 = vmax.f32 %v4176, %v4177
      %v4179 = vrot.slane %v4178, 1
      %v4180 = vmax.f32 %v4178, %v4179
      %vm4181 = vcmp.eq.s32.totalorder %v358, 6
      %vm4182 = vcmp.eq.s32.totalorder %v359, 6
      %vm4183 = vcmp.eq.s32.totalorder %v360, 6
      %vm4184 = vcmp.eq.s32.totalorder %v361, 6
      %vm4185 = vcmp.eq.s32.totalorder %v362, 6
      %vm4186 = vcmp.eq.s32.totalorder %v363, 6
      %vm4187 = vcmp.eq.s32.totalorder %v364, 6
      %vm4188 = vcmp.eq.s32.totalorder %v365, 6
      %vm4189 = vcmp.eq.s32.totalorder %v366, 6
      %vm4190 = vcmp.eq.s32.totalorder %v367, 6
      %vm4191 = vcmp.eq.s32.totalorder %v368, 6
      %vm4192 = vcmp.eq.s32.totalorder %v369, 6
      %vm4193 = vcmp.eq.s32.totalorder %v370, 6
      %vm4194 = vcmp.eq.s32.totalorder %v371, 6
      %vm4195 = vcmp.eq.s32.totalorder %v372, 6
      %vm4196 = vcmp.eq.s32.totalorder %v373, 6
      %vm4197 = vcmp.eq.s32.totalorder %v374, 6
      %vm4198 = vcmp.eq.s32.totalorder %v375, 6
      %vm4199 = vcmp.eq.s32.totalorder %v376, 6
      %vm4200 = vcmp.eq.s32.totalorder %v377, 6
      %vm4201 = vcmp.eq.s32.totalorder %v378, 6
      %vm4202 = vcmp.eq.s32.totalorder %v379, 6
      %vm4203 = vcmp.eq.s32.totalorder %v380, 6
      %vm4204 = vcmp.eq.s32.totalorder %v381, 6
      %vm4205 = vcmp.eq.s32.totalorder %v382, 6
      %vm4206 = vcmp.eq.s32.totalorder %v383, 6
      %vm4207 = vcmp.eq.s32.totalorder %v384, 6
      %vm4208 = vcmp.eq.s32.totalorder %v385, 6
      %vm4209 = vcmp.eq.s32.totalorder %v386, 6
      %vm4210 = vcmp.eq.s32.totalorder %v387, 6
      %vm4211 = vcmp.eq.s32.totalorder %v388, 6
      %vm4212 = vcmp.eq.s32.totalorder %v389, 6
      %vm4213 = vcmp.eq.s32.totalorder %v390, 6
      %vm4214 = vcmp.eq.s32.totalorder %v391, 6
      %vm4215 = vcmp.eq.s32.totalorder %v392, 6
      %vm4216 = vcmp.eq.s32.totalorder %v393, 6
      %vm4217 = vcmp.eq.s32.totalorder %v394, 6
      %vm4218 = vcmp.eq.s32.totalorder %v395, 6
      %vm4219 = vcmp.eq.s32.totalorder %v396, 6
      %vm4220 = vcmp.eq.s32.totalorder %v397, 6
      %vm4221 = vcmp.eq.s32.totalorder %v398, 6
      %vm4222 = vcmp.eq.s32.totalorder %v399, 6
      %vm4223 = vcmp.eq.s32.totalorder %v400, 6
      %vm4224 = vcmp.eq.s32.totalorder %v401, 6
      %vm4225 = vcmp.eq.s32.totalorder %v402, 6
      %vm4226 = vcmp.eq.s32.totalorder %v403, 6
      %vm4227 = vcmp.eq.s32.totalorder %v404, 6
      %vm4228 = vcmp.eq.s32.totalorder %v405, 6
      %vm4229 = vcmp.eq.s32.totalorder %v406, 6
      %vm4230 = vcmp.eq.s32.totalorder %v407, 6
      %vm4231 = vcmp.eq.s32.totalorder %v408, 6
      %vm4232 = vcmp.eq.s32.totalorder %v409, 6
      %vm4233 = vcmp.eq.s32.totalorder %v410, 6
      %vm4234 = vcmp.eq.s32.totalorder %v411, 6
      %vm4235 = vcmp.eq.s32.totalorder %v412, 6
      %vm4236 = vcmp.eq.s32.totalorder %v413, 6
      %vm4237 = vcmp.eq.s32.totalorder %v414, 6
      %vm4238 = vcmp.eq.s32.totalorder %v415, 6
      %vm4239 = vcmp.eq.s32.totalorder %v416, 6
      %vm4240 = vcmp.eq.s32.totalorder %v417, 6
      %vm4241 = vcmp.eq.s32.totalorder %v418, 6
      %vm4242 = vcmp.eq.s32.totalorder %v419, 6
      %vm4243 = vcmp.eq.s32.totalorder %v420, 6
      %vm4244 = vcmp.eq.s32.totalorder %v421, 6
      %v4245 = vsel %vm4181, 1, 0
      %v4246 = vsel %vm4182, 1, 0
      %v4247 = vsel %vm4183, 1, 0
      %v4248 = vsel %vm4184, 1, 0
      %v4249 = vsel %vm4185, 1, 0
      %v4250 = vsel %vm4186, 1, 0
      %v4251 = vsel %vm4187, 1, 0
      %v4252 = vsel %vm4188, 1, 0
      %v4253 = vsel %vm4189, 1, 0
      %v4254 = vsel %vm4190, 1, 0
      %v4255 = vsel %vm4191, 1, 0
      %v4256 = vsel %vm4192, 1, 0
      %v4257 = vsel %vm4193, 1, 0
      %v4258 = vsel %vm4194, 1, 0
      %v4259 = vsel %vm4195, 1, 0
      %v4260 = vsel %vm4196, 1, 0
      %v4261 = vsel %vm4197, 1, 0
      %v4262 = vsel %vm4198, 1, 0
      %v4263 = vsel %vm4199, 1, 0
      %v4264 = vsel %vm4200, 1, 0
      %v4265 = vsel %vm4201, 1, 0
      %v4266 = vsel %vm4202, 1, 0
      %v4267 = vsel %vm4203, 1, 0
      %v4268 = vsel %vm4204, 1, 0
      %v4269 = vsel %vm4205, 1, 0
      %v4270 = vsel %vm4206, 1, 0
      %v4271 = vsel %vm4207, 1, 0
      %v4272 = vsel %vm4208, 1, 0
      %v4273 = vsel %vm4209, 1, 0
      %v4274 = vsel %vm4210, 1, 0
      %v4275 = vsel %vm4211, 1, 0
      %v4276 = vsel %vm4212, 1, 0
      %v4277 = vsel %vm4213, 1, 0
      %v4278 = vsel %vm4214, 1, 0
      %v4279 = vsel %vm4215, 1, 0
      %v4280 = vsel %vm4216, 1, 0
      %v4281 = vsel %vm4217, 1, 0
      %v4282 = vsel %vm4218, 1, 0
      %v4283 = vsel %vm4219, 1, 0
      %v4284 = vsel %vm4220, 1, 0
      %v4285 = vsel %vm4221, 1, 0
      %v4286 = vsel %vm4222, 1, 0
      %v4287 = vsel %vm4223, 1, 0
      %v4288 = vsel %vm4224, 1, 0
      %v4289 = vsel %vm4225, 1, 0
      %v4290 = vsel %vm4226, 1, 0
      %v4291 = vsel %vm4227, 1, 0
      %v4292 = vsel %vm4228, 1, 0
      %v4293 = vsel %vm4229, 1, 0
      %v4294 = vsel %vm4230, 1, 0
      %v4295 = vsel %vm4231, 1, 0
      %v4296 = vsel %vm4232, 1, 0
      %v4297 = vsel %vm4233, 1, 0
      %v4298 = vsel %vm4234, 1, 0
      %v4299 = vsel %vm4235, 1, 0
      %v4300 = vsel %vm4236, 1, 0
      %v4301 = vsel %vm4237, 1, 0
      %v4302 = vsel %vm4238, 1, 0
      %v4303 = vsel %vm4239, 1, 0
      %v4304 = vsel %vm4240, 1, 0
      %v4305 = vsel %vm4241, 1, 0
      %v4306 = vsel %vm4242, 1, 0
      %v4307 = vsel %vm4243, 1, 0
      %v4308 = vsel %vm4244, 1, 0
      %4309 = vset.pattern.permute.xlu0 0
      %4310 = vperm.xlu0 %4309, %v4245
      %v4311 = vpop.permute.xlu0 %4310
      %4312 = vset.pattern.permute.xlu0 0
      %4313 = vperm.xlu0 %4312, %v4246
      %v4314 = vpop.permute.xlu0 %4313
      %4315 = vset.pattern.permute.xlu0 0
      %4316 = vperm.xlu0 %4315, %v4247
      %v4317 = vpop.permute.xlu0 %4316
      %4318 = vset.pattern.permute.xlu0 0
      %4319 = vperm.xlu0 %4318, %v4248
      %v4320 = vpop.permute.xlu0 %4319
      %4321 = vset.pattern.permute.xlu0 0
      %4322 = vperm.xlu0 %4321, %v4249
      %v4323 = vpop.permute.xlu0 %4322
      %4324 = vset.pattern.permute.xlu0 0
      %4325 = vperm.xlu0 %4324, %v4250
      %v4326 = vpop.permute.xlu0 %4325
      %4327 = vset.pattern.permute.xlu0 0
      %4328 = vperm.xlu0 %4327, %v4251
      %v4329 = vpop.permute.xlu0 %4328
      %4330 = vset.pattern.permute.xlu0 0
      %4331 = vperm.xlu0 %4330, %v4252
      %v4332 = vpop.permute.xlu0 %4331
      %4333 = vset.pattern.permute.xlu0 0
      %4334 = vperm.xlu0 %4333, %v4253
      %v4335 = vpop.permute.xlu0 %4334
      %4336 = vset.pattern.permute.xlu0 0
      %4337 = vperm.xlu0 %4336, %v4254
      %v4338 = vpop.permute.xlu0 %4337
      %4339 = vset.pattern.permute.xlu0 0
      %4340 = vperm.xlu0 %4339, %v4255
      %v4341 = vpop.permute.xlu0 %4340
      %4342 = vset.pattern.permute.xlu0 0
      %4343 = vperm.xlu0 %4342, %v4256
      %v4344 = vpop.permute.xlu0 %4343
      %4345 = vset.pattern.permute.xlu0 0
      %4346 = vperm.xlu0 %4345, %v4257
      %v4347 = vpop.permute.xlu0 %4346
      %4348 = vset.pattern.permute.xlu0 0
      %4349 = vperm.xlu0 %4348, %v4258
      %v4350 = vpop.permute.xlu0 %4349
      %4351 = vset.pattern.permute.xlu0 0
      %4352 = vperm.xlu0 %4351, %v4259
      %v4353 = vpop.permute.xlu0 %4352
      %4354 = vset.pattern.permute.xlu0 0
      %4355 = vperm.xlu0 %4354, %v4260
      %v4356 = vpop.permute.xlu0 %4355
      %4357 = vset.pattern.permute.xlu0 0
      %4358 = vperm.xlu0 %4357, %v4261
      %v4359 = vpop.permute.xlu0 %4358
      %4360 = vset.pattern.permute.xlu0 0
      %4361 = vperm.xlu0 %4360, %v4262
      %v4362 = vpop.permute.xlu0 %4361
      %4363 = vset.pattern.permute.xlu0 0
      %4364 = vperm.xlu0 %4363, %v4263
      %v4365 = vpop.permute.xlu0 %4364
      %4366 = vset.pattern.permute.xlu0 0
      %4367 = vperm.xlu0 %4366, %v4264
      %v4368 = vpop.permute.xlu0 %4367
      %4369 = vset.pattern.permute.xlu0 0
      %4370 = vperm.xlu0 %4369, %v4265
      %v4371 = vpop.permute.xlu0 %4370
      %4372 = vset.pattern.permute.xlu0 0
      %4373 = vperm.xlu0 %4372, %v4266
      %v4374 = vpop.permute.xlu0 %4373
      %4375 = vset.pattern.permute.xlu0 0
      %4376 = vperm.xlu0 %4375, %v4267
      %v4377 = vpop.permute.xlu0 %4376
      %4378 = vset.pattern.permute.xlu0 0
      %4379 = vperm.xlu0 %4378, %v4268
      %v4380 = vpop.permute.xlu0 %4379
      %4381 = vset.pattern.permute.xlu0 0
      %4382 = vperm.xlu0 %4381, %v4269
      %v4383 = vpop.permute.xlu0 %4382
      %4384 = vset.pattern.permute.xlu0 0
      %4385 = vperm.xlu0 %4384, %v4270
      %v4386 = vpop.permute.xlu0 %4385
      %4387 = vset.pattern.permute.xlu0 0
      %4388 = vperm.xlu0 %4387, %v4271
      %v4389 = vpop.permute.xlu0 %4388
      %4390 = vset.pattern.permute.xlu0 0
      %4391 = vperm.xlu0 %4390, %v4272
      %v4392 = vpop.permute.xlu0 %4391
      %4393 = vset.pattern.permute.xlu0 0
      %4394 = vperm.xlu0 %4393, %v4273
      %v4395 = vpop.permute.xlu0 %4394
      %4396 = vset.pattern.permute.xlu0 0
      %4397 = vperm.xlu0 %4396, %v4274
      %v4398 = vpop.permute.xlu0 %4397
      %4399 = vset.pattern.permute.xlu0 0
      %4400 = vperm.xlu0 %4399, %v4275
      %v4401 = vpop.permute.xlu0 %4400
      %4402 = vset.pattern.permute.xlu0 0
      %4403 = vperm.xlu0 %4402, %v4276
      %v4404 = vpop.permute.xlu0 %4403
      %4405 = vset.pattern.permute.xlu0 0
      %4406 = vperm.xlu0 %4405, %v4277
      %v4407 = vpop.permute.xlu0 %4406
      %4408 = vset.pattern.permute.xlu0 0
      %4409 = vperm.xlu0 %4408, %v4278
      %v4410 = vpop.permute.xlu0 %4409
      %4411 = vset.pattern.permute.xlu0 0
      %4412 = vperm.xlu0 %4411, %v4279
      %v4413 = vpop.permute.xlu0 %4412
      %4414 = vset.pattern.permute.xlu0 0
      %4415 = vperm.xlu0 %4414, %v4280
      %v4416 = vpop.permute.xlu0 %4415
      %4417 = vset.pattern.permute.xlu0 0
      %4418 = vperm.xlu0 %4417, %v4281
      %v4419 = vpop.permute.xlu0 %4418
      %4420 = vset.pattern.permute.xlu0 0
      %4421 = vperm.xlu0 %4420, %v4282
      %v4422 = vpop.permute.xlu0 %4421
      %4423 = vset.pattern.permute.xlu0 0
      %4424 = vperm.xlu0 %4423, %v4283
      %v4425 = vpop.permute.xlu0 %4424
      %4426 = vset.pattern.permute.xlu0 0
      %4427 = vperm.xlu0 %4426, %v4284
      %v4428 = vpop.permute.xlu0 %4427
      %4429 = vset.pattern.permute.xlu0 0
      %4430 = vperm.xlu0 %4429, %v4285
      %v4431 = vpop.permute.xlu0 %4430
      %4432 = vset.pattern.permute.xlu0 0
      %4433 = vperm.xlu0 %4432, %v4286
      %v4434 = vpop.permute.xlu0 %4433
      %4435 = vset.pattern.permute.xlu0 0
      %4436 = vperm.xlu0 %4435, %v4287
      %v4437 = vpop.permute.xlu0 %4436
      %4438 = vset.pattern.permute.xlu0 0
      %4439 = vperm.xlu0 %4438, %v4288
      %v4440 = vpop.permute.xlu0 %4439
      %4441 = vset.pattern.permute.xlu0 0
      %4442 = vperm.xlu0 %4441, %v4289
      %v4443 = vpop.permute.xlu0 %4442
      %4444 = vset.pattern.permute.xlu0 0
      %4445 = vperm.xlu0 %4444, %v4290
      %v4446 = vpop.permute.xlu0 %4445
      %4447 = vset.pattern.permute.xlu0 0
      %4448 = vperm.xlu0 %4447, %v4291
      %v4449 = vpop.permute.xlu0 %4448
      %4450 = vset.pattern.permute.xlu0 0
      %4451 = vperm.xlu0 %4450, %v4292
      %v4452 = vpop.permute.xlu0 %4451
      %4453 = vset.pattern.permute.xlu0 0
      %4454 = vperm.xlu0 %4453, %v4293
      %v4455 = vpop.permute.xlu0 %4454
      %4456 = vset.pattern.permute.xlu0 0
      %4457 = vperm.xlu0 %4456, %v4294
      %v4458 = vpop.permute.xlu0 %4457
      %4459 = vset.pattern.permute.xlu0 0
      %4460 = vperm.xlu0 %4459, %v4295
      %v4461 = vpop.permute.xlu0 %4460
      %4462 = vset.pattern.permute.xlu0 0
      %4463 = vperm.xlu0 %4462, %v4296
      %v4464 = vpop.permute.xlu0 %4463
      %4465 = vset.pattern.permute.xlu0 0
      %4466 = vperm.xlu0 %4465, %v4297
      %v4467 = vpop.permute.xlu0 %4466
      %4468 = vset.pattern.permute.xlu0 0
      %4469 = vperm.xlu0 %4468, %v4298
      %v4470 = vpop.permute.xlu0 %4469
      %4471 = vset.pattern.permute.xlu0 0
      %4472 = vperm.xlu0 %4471, %v4299
      %v4473 = vpop.permute.xlu0 %4472
      %4474 = vset.pattern.permute.xlu0 0
      %4475 = vperm.xlu0 %4474, %v4300
      %v4476 = vpop.permute.xlu0 %4475
      %4477 = vset.pattern.permute.xlu0 0
      %4478 = vperm.xlu0 %4477, %v4301
      %v4479 = vpop.permute.xlu0 %4478
      %4480 = vset.pattern.permute.xlu0 0
      %4481 = vperm.xlu0 %4480, %v4302
      %v4482 = vpop.permute.xlu0 %4481
      %4483 = vset.pattern.permute.xlu0 0
      %4484 = vperm.xlu0 %4483, %v4303
      %v4485 = vpop.permute.xlu0 %4484
      %4486 = vset.pattern.permute.xlu0 0
      %4487 = vperm.xlu0 %4486, %v4304
      %v4488 = vpop.permute.xlu0 %4487
      %4489 = vset.pattern.permute.xlu0 0
      %4490 = vperm.xlu0 %4489, %v4305
      %v4491 = vpop.permute.xlu0 %4490
      %4492 = vset.pattern.permute.xlu0 0
      %4493 = vperm.xlu0 %4492, %v4306
      %v4494 = vpop.permute.xlu0 %4493
      %4495 = vset.pattern.permute.xlu0 0
      %4496 = vperm.xlu0 %4495, %v4307
      %v4497 = vpop.permute.xlu0 %4496
      %4498 = vset.pattern.permute.xlu0 0
      %4499 = vperm.xlu0 %4498, %v4308
      %v4500 = vpop.permute.xlu0 %4499
      %vm4501 = vcmp.eq.s32.totalorder %v4311, 1
      %vm4502 = vcmp.eq.s32.totalorder %v4314, 1
      %vm4503 = vcmp.eq.s32.totalorder %v4317, 1
      %vm4504 = vcmp.eq.s32.totalorder %v4320, 1
      %vm4505 = vcmp.eq.s32.totalorder %v4323, 1
      %vm4506 = vcmp.eq.s32.totalorder %v4326, 1
      %vm4507 = vcmp.eq.s32.totalorder %v4329, 1
      %vm4508 = vcmp.eq.s32.totalorder %v4332, 1
      %vm4509 = vcmp.eq.s32.totalorder %v4335, 1
      %vm4510 = vcmp.eq.s32.totalorder %v4338, 1
      %vm4511 = vcmp.eq.s32.totalorder %v4341, 1
      %vm4512 = vcmp.eq.s32.totalorder %v4344, 1
      %vm4513 = vcmp.eq.s32.totalorder %v4347, 1
      %vm4514 = vcmp.eq.s32.totalorder %v4350, 1
      %vm4515 = vcmp.eq.s32.totalorder %v4353, 1
      %vm4516 = vcmp.eq.s32.totalorder %v4356, 1
      %vm4517 = vcmp.eq.s32.totalorder %v4359, 1
      %vm4518 = vcmp.eq.s32.totalorder %v4362, 1
      %vm4519 = vcmp.eq.s32.totalorder %v4365, 1
      %vm4520 = vcmp.eq.s32.totalorder %v4368, 1
      %vm4521 = vcmp.eq.s32.totalorder %v4371, 1
      %vm4522 = vcmp.eq.s32.totalorder %v4374, 1
      %vm4523 = vcmp.eq.s32.totalorder %v4377, 1
      %vm4524 = vcmp.eq.s32.totalorder %v4380, 1
      %vm4525 = vcmp.eq.s32.totalorder %v4383, 1
      %vm4526 = vcmp.eq.s32.totalorder %v4386, 1
      %vm4527 = vcmp.eq.s32.totalorder %v4389, 1
      %vm4528 = vcmp.eq.s32.totalorder %v4392, 1
      %vm4529 = vcmp.eq.s32.totalorder %v4395, 1
      %vm4530 = vcmp.eq.s32.totalorder %v4398, 1
      %vm4531 = vcmp.eq.s32.totalorder %v4401, 1
      %vm4532 = vcmp.eq.s32.totalorder %v4404, 1
      %vm4533 = vcmp.eq.s32.totalorder %v4407, 1
      %vm4534 = vcmp.eq.s32.totalorder %v4410, 1
      %vm4535 = vcmp.eq.s32.totalorder %v4413, 1
      %vm4536 = vcmp.eq.s32.totalorder %v4416, 1
      %vm4537 = vcmp.eq.s32.totalorder %v4419, 1
      %vm4538 = vcmp.eq.s32.totalorder %v4422, 1
      %vm4539 = vcmp.eq.s32.totalorder %v4425, 1
      %vm4540 = vcmp.eq.s32.totalorder %v4428, 1
      %vm4541 = vcmp.eq.s32.totalorder %v4431, 1
      %vm4542 = vcmp.eq.s32.totalorder %v4434, 1
      %vm4543 = vcmp.eq.s32.totalorder %v4437, 1
      %vm4544 = vcmp.eq.s32.totalorder %v4440, 1
      %vm4545 = vcmp.eq.s32.totalorder %v4443, 1
      %vm4546 = vcmp.eq.s32.totalorder %v4446, 1
      %vm4547 = vcmp.eq.s32.totalorder %v4449, 1
      %vm4548 = vcmp.eq.s32.totalorder %v4452, 1
      %vm4549 = vcmp.eq.s32.totalorder %v4455, 1
      %vm4550 = vcmp.eq.s32.totalorder %v4458, 1
      %vm4551 = vcmp.eq.s32.totalorder %v4461, 1
      %vm4552 = vcmp.eq.s32.totalorder %v4464, 1
      %vm4553 = vcmp.eq.s32.totalorder %v4467, 1
      %vm4554 = vcmp.eq.s32.totalorder %v4470, 1
      %vm4555 = vcmp.eq.s32.totalorder %v4473, 1
      %vm4556 = vcmp.eq.s32.totalorder %v4476, 1
      %vm4557 = vcmp.eq.s32.totalorder %v4479, 1
      %vm4558 = vcmp.eq.s32.totalorder %v4482, 1
      %vm4559 = vcmp.eq.s32.totalorder %v4485, 1
      %vm4560 = vcmp.eq.s32.totalorder %v4488, 1
      %vm4561 = vcmp.eq.s32.totalorder %v4491, 1
      %vm4562 = vcmp.eq.s32.totalorder %v4494, 1
      %vm4563 = vcmp.eq.s32.totalorder %v4497, 1
      %vm4564 = vcmp.eq.s32.totalorder %v4500, 1
      %v4565 = vsel %vm4501, %v294, -1e+30
      %v4566 = vsel %vm4502, %v295, -1e+30
      %v4567 = vsel %vm4503, %v296, -1e+30
      %v4568 = vsel %vm4504, %v297, -1e+30
      %v4569 = vsel %vm4505, %v298, -1e+30
      %v4570 = vsel %vm4506, %v299, -1e+30
      %v4571 = vsel %vm4507, %v300, -1e+30
      %v4572 = vsel %vm4508, %v301, -1e+30
      %v4573 = vsel %vm4509, %v302, -1e+30
      %v4574 = vsel %vm4510, %v303, -1e+30
      %v4575 = vsel %vm4511, %v304, -1e+30
      %v4576 = vsel %vm4512, %v305, -1e+30
      %v4577 = vsel %vm4513, %v306, -1e+30
      %v4578 = vsel %vm4514, %v307, -1e+30
      %v4579 = vsel %vm4515, %v308, -1e+30
      %v4580 = vsel %vm4516, %v309, -1e+30
      %v4581 = vsel %vm4517, %v310, -1e+30
      %v4582 = vsel %vm4518, %v311, -1e+30
      %v4583 = vsel %vm4519, %v312, -1e+30
      %v4584 = vsel %vm4520, %v313, -1e+30
      %v4585 = vsel %vm4521, %v314, -1e+30
      %v4586 = vsel %vm4522, %v315, -1e+30
      %v4587 = vsel %vm4523, %v316, -1e+30
      %v4588 = vsel %vm4524, %v317, -1e+30
      %v4589 = vsel %vm4525, %v318, -1e+30
      %v4590 = vsel %vm4526, %v319, -1e+30
      %v4591 = vsel %vm4527, %v320, -1e+30
      %v4592 = vsel %vm4528, %v321, -1e+30
      %v4593 = vsel %vm4529, %v322, -1e+30
      %v4594 = vsel %vm4530, %v323, -1e+30
      %v4595 = vsel %vm4531, %v324, -1e+30
      %v4596 = vsel %vm4532, %v325, -1e+30
      %v4597 = vsel %vm4533, %v326, -1e+30
      %v4598 = vsel %vm4534, %v327, -1e+30
      %v4599 = vsel %vm4535, %v328, -1e+30
      %v4600 = vsel %vm4536, %v329, -1e+30
      %v4601 = vsel %vm4537, %v330, -1e+30
      %v4602 = vsel %vm4538, %v331, -1e+30
      %v4603 = vsel %vm4539, %v332, -1e+30
      %v4604 = vsel %vm4540, %v333, -1e+30
      %v4605 = vsel %vm4541, %v334, -1e+30
      %v4606 = vsel %vm4542, %v335, -1e+30
      %v4607 = vsel %vm4543, %v336, -1e+30
      %v4608 = vsel %vm4544, %v337, -1e+30
      %v4609 = vsel %vm4545, %v338, -1e+30
      %v4610 = vsel %vm4546, %v339, -1e+30
      %v4611 = vsel %vm4547, %v340, -1e+30
      %v4612 = vsel %vm4548, %v341, -1e+30
      %v4613 = vsel %vm4549, %v342, -1e+30
      %v4614 = vsel %vm4550, %v343, -1e+30
      %v4615 = vsel %vm4551, %v344, -1e+30
      %v4616 = vsel %vm4552, %v345, -1e+30
      %v4617 = vsel %vm4553, %v346, -1e+30
      %v4618 = vsel %vm4554, %v347, -1e+30
      %v4619 = vsel %vm4555, %v348, -1e+30
      %v4620 = vsel %vm4556, %v349, -1e+30
      %v4621 = vsel %vm4557, %v350, -1e+30
      %v4622 = vsel %vm4558, %v351, -1e+30
      %v4623 = vsel %vm4559, %v352, -1e+30
      %v4624 = vsel %vm4560, %v353, -1e+30
      %v4625 = vsel %vm4561, %v354, -1e+30
      %v4626 = vsel %vm4562, %v355, -1e+30
      %v4627 = vsel %vm4563, %v356, -1e+30
      %v4628 = vsel %vm4564, %v357, -1e+30
      %v4629 = vmax.f32 %v4565, %v4569
      %v4630 = vmax.f32 %v4566, %v4570
      %v4631 = vmax.f32 %v4567, %v4571
      %v4632 = vmax.f32 %v4568, %v4572
      %v4633 = vmax.f32 %v4629, %v4573
      %v4634 = vmax.f32 %v4630, %v4574
      %v4635 = vmax.f32 %v4631, %v4575
      %v4636 = vmax.f32 %v4632, %v4576
      %v4637 = vmax.f32 %v4633, %v4577
      %v4638 = vmax.f32 %v4634, %v4578
      %v4639 = vmax.f32 %v4635, %v4579
      %v4640 = vmax.f32 %v4636, %v4580
      %v4641 = vmax.f32 %v4637, %v4581
      %v4642 = vmax.f32 %v4638, %v4582
      %v4643 = vmax.f32 %v4639, %v4583
      %v4644 = vmax.f32 %v4640, %v4584
      %v4645 = vmax.f32 %v4641, %v4585
      %v4646 = vmax.f32 %v4642, %v4586
      %v4647 = vmax.f32 %v4643, %v4587
      %v4648 = vmax.f32 %v4644, %v4588
      %v4649 = vmax.f32 %v4645, %v4589
      %v4650 = vmax.f32 %v4646, %v4590
      %v4651 = vmax.f32 %v4647, %v4591
      %v4652 = vmax.f32 %v4648, %v4592
      %v4653 = vmax.f32 %v4649, %v4593
      %v4654 = vmax.f32 %v4650, %v4594
      %v4655 = vmax.f32 %v4651, %v4595
      %v4656 = vmax.f32 %v4652, %v4596
      %v4657 = vmax.f32 %v4653, %v4597
      %v4658 = vmax.f32 %v4654, %v4598
      %v4659 = vmax.f32 %v4655, %v4599
      %v4660 = vmax.f32 %v4656, %v4600
      %v4661 = vmax.f32 %v4657, %v4601
      %v4662 = vmax.f32 %v4658, %v4602
      %v4663 = vmax.f32 %v4659, %v4603
      %v4664 = vmax.f32 %v4660, %v4604
      %v4665 = vmax.f32 %v4661, %v4605
      %v4666 = vmax.f32 %v4662, %v4606
      %v4667 = vmax.f32 %v4663, %v4607
      %v4668 = vmax.f32 %v4664, %v4608
      %v4669 = vmax.f32 %v4665, %v4609
      %v4670 = vmax.f32 %v4666, %v4610
      %v4671 = vmax.f32 %v4667, %v4611
      %v4672 = vmax.f32 %v4668, %v4612
      %v4673 = vmax.f32 %v4669, %v4613
      %v4674 = vmax.f32 %v4670, %v4614
      %v4675 = vmax.f32 %v4671, %v4615
      %v4676 = vmax.f32 %v4672, %v4616
      %v4677 = vmax.f32 %v4673, %v4617
      %v4678 = vmax.f32 %v4674, %v4618
      %v4679 = vmax.f32 %v4675, %v4619
      %v4680 = vmax.f32 %v4676, %v4620
      %v4681 = vmax.f32 %v4677, %v4621
      %v4682 = vmax.f32 %v4678, %v4622
      %v4683 = vmax.f32 %v4679, %v4623
      %v4684 = vmax.f32 %v4680, %v4624
      %v4685 = vmax.f32 %v4681, %v4625
      %v4686 = vmax.f32 %v4682, %v4626
      %v4687 = vmax.f32 %v4683, %v4627
      %v4688 = vmax.f32 %v4684, %v4628
      %v4689 = vmax.f32 %v4685, %v4686
      %v4690 = vmax.f32 %v4687, %v4688
      %v4691 = vmax.f32 %v4689, %v4690
      %v4692 = vrot.slane %v4691, 4
      %v4693 = vmax.f32 %v4691, %v4692
      %v4694 = vrot.slane %v4693, 2
      %v4695 = vmax.f32 %v4693, %v4694
      %v4696 = vrot.slane %v4695, 1
      %v4697 = vmax.f32 %v4695, %v4696
      %vm4698 = vcmp.eq.s32.totalorder %v358, 7
      %vm4699 = vcmp.eq.s32.totalorder %v359, 7
      %vm4700 = vcmp.eq.s32.totalorder %v360, 7
      %vm4701 = vcmp.eq.s32.totalorder %v361, 7
      %vm4702 = vcmp.eq.s32.totalorder %v362, 7
      %vm4703 = vcmp.eq.s32.totalorder %v363, 7
      %vm4704 = vcmp.eq.s32.totalorder %v364, 7
      %vm4705 = vcmp.eq.s32.totalorder %v365, 7
      %vm4706 = vcmp.eq.s32.totalorder %v366, 7
      %vm4707 = vcmp.eq.s32.totalorder %v367, 7
      %vm4708 = vcmp.eq.s32.totalorder %v368, 7
      %vm4709 = vcmp.eq.s32.totalorder %v369, 7
      %vm4710 = vcmp.eq.s32.totalorder %v370, 7
      %vm4711 = vcmp.eq.s32.totalorder %v371, 7
      %vm4712 = vcmp.eq.s32.totalorder %v372, 7
      %vm4713 = vcmp.eq.s32.totalorder %v373, 7
      %vm4714 = vcmp.eq.s32.totalorder %v374, 7
      %vm4715 = vcmp.eq.s32.totalorder %v375, 7
      %vm4716 = vcmp.eq.s32.totalorder %v376, 7
      %vm4717 = vcmp.eq.s32.totalorder %v377, 7
      %vm4718 = vcmp.eq.s32.totalorder %v378, 7
      %vm4719 = vcmp.eq.s32.totalorder %v379, 7
      %vm4720 = vcmp.eq.s32.totalorder %v380, 7
      %vm4721 = vcmp.eq.s32.totalorder %v381, 7
      %vm4722 = vcmp.eq.s32.totalorder %v382, 7
      %vm4723 = vcmp.eq.s32.totalorder %v383, 7
      %vm4724 = vcmp.eq.s32.totalorder %v384, 7
      %vm4725 = vcmp.eq.s32.totalorder %v385, 7
      %vm4726 = vcmp.eq.s32.totalorder %v386, 7
      %vm4727 = vcmp.eq.s32.totalorder %v387, 7
      %vm4728 = vcmp.eq.s32.totalorder %v388, 7
      %vm4729 = vcmp.eq.s32.totalorder %v389, 7
      %vm4730 = vcmp.eq.s32.totalorder %v390, 7
      %vm4731 = vcmp.eq.s32.totalorder %v391, 7
      %vm4732 = vcmp.eq.s32.totalorder %v392, 7
      %vm4733 = vcmp.eq.s32.totalorder %v393, 7
      %vm4734 = vcmp.eq.s32.totalorder %v394, 7
      %vm4735 = vcmp.eq.s32.totalorder %v395, 7
      %vm4736 = vcmp.eq.s32.totalorder %v396, 7
      %vm4737 = vcmp.eq.s32.totalorder %v397, 7
      %vm4738 = vcmp.eq.s32.totalorder %v398, 7
      %vm4739 = vcmp.eq.s32.totalorder %v399, 7
      %vm4740 = vcmp.eq.s32.totalorder %v400, 7
      %vm4741 = vcmp.eq.s32.totalorder %v401, 7
      %vm4742 = vcmp.eq.s32.totalorder %v402, 7
      %vm4743 = vcmp.eq.s32.totalorder %v403, 7
      %vm4744 = vcmp.eq.s32.totalorder %v404, 7
      %vm4745 = vcmp.eq.s32.totalorder %v405, 7
      %vm4746 = vcmp.eq.s32.totalorder %v406, 7
      %vm4747 = vcmp.eq.s32.totalorder %v407, 7
      %vm4748 = vcmp.eq.s32.totalorder %v408, 7
      %vm4749 = vcmp.eq.s32.totalorder %v409, 7
      %vm4750 = vcmp.eq.s32.totalorder %v410, 7
      %vm4751 = vcmp.eq.s32.totalorder %v411, 7
      %vm4752 = vcmp.eq.s32.totalorder %v412, 7
      %vm4753 = vcmp.eq.s32.totalorder %v413, 7
      %vm4754 = vcmp.eq.s32.totalorder %v414, 7
      %vm4755 = vcmp.eq.s32.totalorder %v415, 7
      %vm4756 = vcmp.eq.s32.totalorder %v416, 7
      %vm4757 = vcmp.eq.s32.totalorder %v417, 7
      %vm4758 = vcmp.eq.s32.totalorder %v418, 7
      %vm4759 = vcmp.eq.s32.totalorder %v419, 7
      %vm4760 = vcmp.eq.s32.totalorder %v420, 7
      %vm4761 = vcmp.eq.s32.totalorder %v421, 7
      %v4762 = vsel %vm4698, 1, 0
      %v4763 = vsel %vm4699, 1, 0
      %v4764 = vsel %vm4700, 1, 0
      %v4765 = vsel %vm4701, 1, 0
      %v4766 = vsel %vm4702, 1, 0
      %v4767 = vsel %vm4703, 1, 0
      %v4768 = vsel %vm4704, 1, 0
      %v4769 = vsel %vm4705, 1, 0
      %v4770 = vsel %vm4706, 1, 0
      %v4771 = vsel %vm4707, 1, 0
      %v4772 = vsel %vm4708, 1, 0
      %v4773 = vsel %vm4709, 1, 0
      %v4774 = vsel %vm4710, 1, 0
      %v4775 = vsel %vm4711, 1, 0
      %v4776 = vsel %vm4712, 1, 0
      %v4777 = vsel %vm4713, 1, 0
      %v4778 = vsel %vm4714, 1, 0
      %v4779 = vsel %vm4715, 1, 0
      %v4780 = vsel %vm4716, 1, 0
      %v4781 = vsel %vm4717, 1, 0
      %v4782 = vsel %vm4718, 1, 0
      %v4783 = vsel %vm4719, 1, 0
      %v4784 = vsel %vm4720, 1, 0
      %v4785 = vsel %vm4721, 1, 0
      %v4786 = vsel %vm4722, 1, 0
      %v4787 = vsel %vm4723, 1, 0
      %v4788 = vsel %vm4724, 1, 0
      %v4789 = vsel %vm4725, 1, 0
      %v4790 = vsel %vm4726, 1, 0
      %v4791 = vsel %vm4727, 1, 0
      %v4792 = vsel %vm4728, 1, 0
      %v4793 = vsel %vm4729, 1, 0
      %v4794 = vsel %vm4730, 1, 0
      %v4795 = vsel %vm4731, 1, 0
      %v4796 = vsel %vm4732, 1, 0
      %v4797 = vsel %vm4733, 1, 0
      %v4798 = vsel %vm4734, 1, 0
      %v4799 = vsel %vm4735, 1, 0
      %v4800 = vsel %vm4736, 1, 0
      %v4801 = vsel %vm4737, 1, 0
      %v4802 = vsel %vm4738, 1, 0
      %v4803 = vsel %vm4739, 1, 0
      %v4804 = vsel %vm4740, 1, 0
      %v4805 = vsel %vm4741, 1, 0
      %v4806 = vsel %vm4742, 1, 0
      %v4807 = vsel %vm4743, 1, 0
      %v4808 = vsel %vm4744, 1, 0
      %v4809 = vsel %vm4745, 1, 0
      %v4810 = vsel %vm4746, 1, 0
      %v4811 = vsel %vm4747, 1, 0
      %v4812 = vsel %vm4748, 1, 0
      %v4813 = vsel %vm4749, 1, 0
      %v4814 = vsel %vm4750, 1, 0
      %v4815 = vsel %vm4751, 1, 0
      %v4816 = vsel %vm4752, 1, 0
      %v4817 = vsel %vm4753, 1, 0
      %v4818 = vsel %vm4754, 1, 0
      %v4819 = vsel %vm4755, 1, 0
      %v4820 = vsel %vm4756, 1, 0
      %v4821 = vsel %vm4757, 1, 0
      %v4822 = vsel %vm4758, 1, 0
      %v4823 = vsel %vm4759, 1, 0
      %v4824 = vsel %vm4760, 1, 0
      %v4825 = vsel %vm4761, 1, 0
      %4826 = vset.pattern.permute.xlu0 0
      %4827 = vperm.xlu0 %4826, %v4762
      %v4828 = vpop.permute.xlu0 %4827
      %4829 = vset.pattern.permute.xlu0 0
      %4830 = vperm.xlu0 %4829, %v4763
      %v4831 = vpop.permute.xlu0 %4830
      %4832 = vset.pattern.permute.xlu0 0
      %4833 = vperm.xlu0 %4832, %v4764
      %v4834 = vpop.permute.xlu0 %4833
      %4835 = vset.pattern.permute.xlu0 0
      %4836 = vperm.xlu0 %4835, %v4765
      %v4837 = vpop.permute.xlu0 %4836
      %4838 = vset.pattern.permute.xlu0 0
      %4839 = vperm.xlu0 %4838, %v4766
      %v4840 = vpop.permute.xlu0 %4839
      %4841 = vset.pattern.permute.xlu0 0
      %4842 = vperm.xlu0 %4841, %v4767
      %v4843 = vpop.permute.xlu0 %4842
      %4844 = vset.pattern.permute.xlu0 0
      %4845 = vperm.xlu0 %4844, %v4768
      %v4846 = vpop.permute.xlu0 %4845
      %4847 = vset.pattern.permute.xlu0 0
      %4848 = vperm.xlu0 %4847, %v4769
      %v4849 = vpop.permute.xlu0 %4848
      %4850 = vset.pattern.permute.xlu0 0
      %4851 = vperm.xlu0 %4850, %v4770
      %v4852 = vpop.permute.xlu0 %4851
      %4853 = vset.pattern.permute.xlu0 0
      %4854 = vperm.xlu0 %4853, %v4771
      %v4855 = vpop.permute.xlu0 %4854
      %4856 = vset.pattern.permute.xlu0 0
      %4857 = vperm.xlu0 %4856, %v4772
      %v4858 = vpop.permute.xlu0 %4857
      %4859 = vset.pattern.permute.xlu0 0
      %4860 = vperm.xlu0 %4859, %v4773
      %v4861 = vpop.permute.xlu0 %4860
      %4862 = vset.pattern.permute.xlu0 0
      %4863 = vperm.xlu0 %4862, %v4774
      %v4864 = vpop.permute.xlu0 %4863
      %4865 = vset.pattern.permute.xlu0 0
      %4866 = vperm.xlu0 %4865, %v4775
      %v4867 = vpop.permute.xlu0 %4866
      %4868 = vset.pattern.permute.xlu0 0
      %4869 = vperm.xlu0 %4868, %v4776
      %v4870 = vpop.permute.xlu0 %4869
      %4871 = vset.pattern.permute.xlu0 0
      %4872 = vperm.xlu0 %4871, %v4777
      %v4873 = vpop.permute.xlu0 %4872
      %4874 = vset.pattern.permute.xlu0 0
      %4875 = vperm.xlu0 %4874, %v4778
      %v4876 = vpop.permute.xlu0 %4875
      %4877 = vset.pattern.permute.xlu0 0
      %4878 = vperm.xlu0 %4877, %v4779
      %v4879 = vpop.permute.xlu0 %4878
      %4880 = vset.pattern.permute.xlu0 0
      %4881 = vperm.xlu0 %4880, %v4780
      %v4882 = vpop.permute.xlu0 %4881
      %4883 = vset.pattern.permute.xlu0 0
      %4884 = vperm.xlu0 %4883, %v4781
      %v4885 = vpop.permute.xlu0 %4884
      %4886 = vset.pattern.permute.xlu0 0
      %4887 = vperm.xlu0 %4886, %v4782
      %v4888 = vpop.permute.xlu0 %4887
      %4889 = vset.pattern.permute.xlu0 0
      %4890 = vperm.xlu0 %4889, %v4783
      %v4891 = vpop.permute.xlu0 %4890
      %4892 = vset.pattern.permute.xlu0 0
      %4893 = vperm.xlu0 %4892, %v4784
      %v4894 = vpop.permute.xlu0 %4893
      %4895 = vset.pattern.permute.xlu0 0
      %4896 = vperm.xlu0 %4895, %v4785
      %v4897 = vpop.permute.xlu0 %4896
      %4898 = vset.pattern.permute.xlu0 0
      %4899 = vperm.xlu0 %4898, %v4786
      %v4900 = vpop.permute.xlu0 %4899
      %4901 = vset.pattern.permute.xlu0 0
      %4902 = vperm.xlu0 %4901, %v4787
      %v4903 = vpop.permute.xlu0 %4902
      %4904 = vset.pattern.permute.xlu0 0
      %4905 = vperm.xlu0 %4904, %v4788
      %v4906 = vpop.permute.xlu0 %4905
      %4907 = vset.pattern.permute.xlu0 0
      %4908 = vperm.xlu0 %4907, %v4789
      %v4909 = vpop.permute.xlu0 %4908
      %4910 = vset.pattern.permute.xlu0 0
      %4911 = vperm.xlu0 %4910, %v4790
      %v4912 = vpop.permute.xlu0 %4911
      %4913 = vset.pattern.permute.xlu0 0
      %4914 = vperm.xlu0 %4913, %v4791
      %v4915 = vpop.permute.xlu0 %4914
      %4916 = vset.pattern.permute.xlu0 0
      %4917 = vperm.xlu0 %4916, %v4792
      %v4918 = vpop.permute.xlu0 %4917
      %4919 = vset.pattern.permute.xlu0 0
      %4920 = vperm.xlu0 %4919, %v4793
      %v4921 = vpop.permute.xlu0 %4920
      %4922 = vset.pattern.permute.xlu0 0
      %4923 = vperm.xlu0 %4922, %v4794
      %v4924 = vpop.permute.xlu0 %4923
      %4925 = vset.pattern.permute.xlu0 0
      %4926 = vperm.xlu0 %4925, %v4795
      %v4927 = vpop.permute.xlu0 %4926
      %4928 = vset.pattern.permute.xlu0 0
      %4929 = vperm.xlu0 %4928, %v4796
      %v4930 = vpop.permute.xlu0 %4929
      %4931 = vset.pattern.permute.xlu0 0
      %4932 = vperm.xlu0 %4931, %v4797
      %v4933 = vpop.permute.xlu0 %4932
      %4934 = vset.pattern.permute.xlu0 0
      %4935 = vperm.xlu0 %4934, %v4798
      %v4936 = vpop.permute.xlu0 %4935
      %4937 = vset.pattern.permute.xlu0 0
      %4938 = vperm.xlu0 %4937, %v4799
      %v4939 = vpop.permute.xlu0 %4938
      %4940 = vset.pattern.permute.xlu0 0
      %4941 = vperm.xlu0 %4940, %v4800
      %v4942 = vpop.permute.xlu0 %4941
      %4943 = vset.pattern.permute.xlu0 0
      %4944 = vperm.xlu0 %4943, %v4801
      %v4945 = vpop.permute.xlu0 %4944
      %4946 = vset.pattern.permute.xlu0 0
      %4947 = vperm.xlu0 %4946, %v4802
      %v4948 = vpop.permute.xlu0 %4947
      %4949 = vset.pattern.permute.xlu0 0
      %4950 = vperm.xlu0 %4949, %v4803
      %v4951 = vpop.permute.xlu0 %4950
      %4952 = vset.pattern.permute.xlu0 0
      %4953 = vperm.xlu0 %4952, %v4804
      %v4954 = vpop.permute.xlu0 %4953
      %4955 = vset.pattern.permute.xlu0 0
      %4956 = vperm.xlu0 %4955, %v4805
      %v4957 = vpop.permute.xlu0 %4956
      %4958 = vset.pattern.permute.xlu0 0
      %4959 = vperm.xlu0 %4958, %v4806
      %v4960 = vpop.permute.xlu0 %4959
      %4961 = vset.pattern.permute.xlu0 0
      %4962 = vperm.xlu0 %4961, %v4807
      %v4963 = vpop.permute.xlu0 %4962
      %4964 = vset.pattern.permute.xlu0 0
      %4965 = vperm.xlu0 %4964, %v4808
      %v4966 = vpop.permute.xlu0 %4965
      %4967 = vset.pattern.permute.xlu0 0
      %4968 = vperm.xlu0 %4967, %v4809
      %v4969 = vpop.permute.xlu0 %4968
      %4970 = vset.pattern.permute.xlu0 0
      %4971 = vperm.xlu0 %4970, %v4810
      %v4972 = vpop.permute.xlu0 %4971
      %4973 = vset.pattern.permute.xlu0 0
      %4974 = vperm.xlu0 %4973, %v4811
      %v4975 = vpop.permute.xlu0 %4974
      %4976 = vset.pattern.permute.xlu0 0
      %4977 = vperm.xlu0 %4976, %v4812
      %v4978 = vpop.permute.xlu0 %4977
      %4979 = vset.pattern.permute.xlu0 0
      %4980 = vperm.xlu0 %4979, %v4813
      %v4981 = vpop.permute.xlu0 %4980
      %4982 = vset.pattern.permute.xlu0 0
      %4983 = vperm.xlu0 %4982, %v4814
      %v4984 = vpop.permute.xlu0 %4983
      %4985 = vset.pattern.permute.xlu0 0
      %4986 = vperm.xlu0 %4985, %v4815
      %v4987 = vpop.permute.xlu0 %4986
      %4988 = vset.pattern.permute.xlu0 0
      %4989 = vperm.xlu0 %4988, %v4816
      %v4990 = vpop.permute.xlu0 %4989
      %4991 = vset.pattern.permute.xlu0 0
      %4992 = vperm.xlu0 %4991, %v4817
      %v4993 = vpop.permute.xlu0 %4992
      %4994 = vset.pattern.permute.xlu0 0
      %4995 = vperm.xlu0 %4994, %v4818
      %v4996 = vpop.permute.xlu0 %4995
      %4997 = vset.pattern.permute.xlu0 0
      %4998 = vperm.xlu0 %4997, %v4819
      %v4999 = vpop.permute.xlu0 %4998
      %5000 = vset.pattern.permute.xlu0 0
      %5001 = vperm.xlu0 %5000, %v4820
      %v5002 = vpop.permute.xlu0 %5001
      %5003 = vset.pattern.permute.xlu0 0
      %5004 = vperm.xlu0 %5003, %v4821
      %v5005 = vpop.permute.xlu0 %5004
      %5006 = vset.pattern.permute.xlu0 0
      %5007 = vperm.xlu0 %5006, %v4822
      %v5008 = vpop.permute.xlu0 %5007
      %5009 = vset.pattern.permute.xlu0 0
      %5010 = vperm.xlu0 %5009, %v4823
      %v5011 = vpop.permute.xlu0 %5010
      %5012 = vset.pattern.permute.xlu0 0
      %5013 = vperm.xlu0 %5012, %v4824
      %v5014 = vpop.permute.xlu0 %5013
      %5015 = vset.pattern.permute.xlu0 0
      %5016 = vperm.xlu0 %5015, %v4825
      %v5017 = vpop.permute.xlu0 %5016
      %vm5018 = vcmp.eq.s32.totalorder %v4828, 1
      %vm5019 = vcmp.eq.s32.totalorder %v4831, 1
      %vm5020 = vcmp.eq.s32.totalorder %v4834, 1
      %vm5021 = vcmp.eq.s32.totalorder %v4837, 1
      %vm5022 = vcmp.eq.s32.totalorder %v4840, 1
      %vm5023 = vcmp.eq.s32.totalorder %v4843, 1
      %vm5024 = vcmp.eq.s32.totalorder %v4846, 1
      %vm5025 = vcmp.eq.s32.totalorder %v4849, 1
      %vm5026 = vcmp.eq.s32.totalorder %v4852, 1
      %vm5027 = vcmp.eq.s32.totalorder %v4855, 1
      %vm5028 = vcmp.eq.s32.totalorder %v4858, 1
      %vm5029 = vcmp.eq.s32.totalorder %v4861, 1
      %vm5030 = vcmp.eq.s32.totalorder %v4864, 1
      %vm5031 = vcmp.eq.s32.totalorder %v4867, 1
      %vm5032 = vcmp.eq.s32.totalorder %v4870, 1
      %vm5033 = vcmp.eq.s32.totalorder %v4873, 1
      %vm5034 = vcmp.eq.s32.totalorder %v4876, 1
      %vm5035 = vcmp.eq.s32.totalorder %v4879, 1
      %vm5036 = vcmp.eq.s32.totalorder %v4882, 1
      %vm5037 = vcmp.eq.s32.totalorder %v4885, 1
      %vm5038 = vcmp.eq.s32.totalorder %v4888, 1
      %vm5039 = vcmp.eq.s32.totalorder %v4891, 1
      %vm5040 = vcmp.eq.s32.totalorder %v4894, 1
      %vm5041 = vcmp.eq.s32.totalorder %v4897, 1
      %vm5042 = vcmp.eq.s32.totalorder %v4900, 1
      %vm5043 = vcmp.eq.s32.totalorder %v4903, 1
      %vm5044 = vcmp.eq.s32.totalorder %v4906, 1
      %vm5045 = vcmp.eq.s32.totalorder %v4909, 1
      %vm5046 = vcmp.eq.s32.totalorder %v4912, 1
      %vm5047 = vcmp.eq.s32.totalorder %v4915, 1
      %vm5048 = vcmp.eq.s32.totalorder %v4918, 1
      %vm5049 = vcmp.eq.s32.totalorder %v4921, 1
      %vm5050 = vcmp.eq.s32.totalorder %v4924, 1
      %vm5051 = vcmp.eq.s32.totalorder %v4927, 1
      %vm5052 = vcmp.eq.s32.totalorder %v4930, 1
      %vm5053 = vcmp.eq.s32.totalorder %v4933, 1
      %vm5054 = vcmp.eq.s32.totalorder %v4936, 1
      %vm5055 = vcmp.eq.s32.totalorder %v4939, 1
      %vm5056 = vcmp.eq.s32.totalorder %v4942, 1
      %vm5057 = vcmp.eq.s32.totalorder %v4945, 1
      %vm5058 = vcmp.eq.s32.totalorder %v4948, 1
      %vm5059 = vcmp.eq.s32.totalorder %v4951, 1
      %vm5060 = vcmp.eq.s32.totalorder %v4954, 1
      %vm5061 = vcmp.eq.s32.totalorder %v4957, 1
      %vm5062 = vcmp.eq.s32.totalorder %v4960, 1
      %vm5063 = vcmp.eq.s32.totalorder %v4963, 1
      %vm5064 = vcmp.eq.s32.totalorder %v4966, 1
      %vm5065 = vcmp.eq.s32.totalorder %v4969, 1
      %vm5066 = vcmp.eq.s32.totalorder %v4972, 1
      %vm5067 = vcmp.eq.s32.totalorder %v4975, 1
      %vm5068 = vcmp.eq.s32.totalorder %v4978, 1
      %vm5069 = vcmp.eq.s32.totalorder %v4981, 1
      %vm5070 = vcmp.eq.s32.totalorder %v4984, 1
      %vm5071 = vcmp.eq.s32.totalorder %v4987, 1
      %vm5072 = vcmp.eq.s32.totalorder %v4990, 1
      %vm5073 = vcmp.eq.s32.totalorder %v4993, 1
      %vm5074 = vcmp.eq.s32.totalorder %v4996, 1
      %vm5075 = vcmp.eq.s32.totalorder %v4999, 1
      %vm5076 = vcmp.eq.s32.totalorder %v5002, 1
      %vm5077 = vcmp.eq.s32.totalorder %v5005, 1
      %vm5078 = vcmp.eq.s32.totalorder %v5008, 1
      %vm5079 = vcmp.eq.s32.totalorder %v5011, 1
      %vm5080 = vcmp.eq.s32.totalorder %v5014, 1
      %vm5081 = vcmp.eq.s32.totalorder %v5017, 1
      %v5082 = vsel %vm5018, %v294, -1e+30
      %v5083 = vsel %vm5019, %v295, -1e+30
      %v5084 = vsel %vm5020, %v296, -1e+30
      %v5085 = vsel %vm5021, %v297, -1e+30
      %v5086 = vsel %vm5022, %v298, -1e+30
      %v5087 = vsel %vm5023, %v299, -1e+30
      %v5088 = vsel %vm5024, %v300, -1e+30
      %v5089 = vsel %vm5025, %v301, -1e+30
      %v5090 = vsel %vm5026, %v302, -1e+30
      %v5091 = vsel %vm5027, %v303, -1e+30
      %v5092 = vsel %vm5028, %v304, -1e+30
      %v5093 = vsel %vm5029, %v305, -1e+30
      %v5094 = vsel %vm5030, %v306, -1e+30
      %v5095 = vsel %vm5031, %v307, -1e+30
      %v5096 = vsel %vm5032, %v308, -1e+30
      %v5097 = vsel %vm5033, %v309, -1e+30
      %v5098 = vsel %vm5034, %v310, -1e+30
      %v5099 = vsel %vm5035, %v311, -1e+30
      %v5100 = vsel %vm5036, %v312, -1e+30
      %v5101 = vsel %vm5037, %v313, -1e+30
      %v5102 = vsel %vm5038, %v314, -1e+30
      %v5103 = vsel %vm5039, %v315, -1e+30
      %v5104 = vsel %vm5040, %v316, -1e+30
      %v5105 = vsel %vm5041, %v317, -1e+30
      %v5106 = vsel %vm5042, %v318, -1e+30
      %v5107 = vsel %vm5043, %v319, -1e+30
      %v5108 = vsel %vm5044, %v320, -1e+30
      %v5109 = vsel %vm5045, %v321, -1e+30
      %v5110 = vsel %vm5046, %v322, -1e+30
      %v5111 = vsel %vm5047, %v323, -1e+30
      %v5112 = vsel %vm5048, %v324, -1e+30
      %v5113 = vsel %vm5049, %v325, -1e+30
      %v5114 = vsel %vm5050, %v326, -1e+30
      %v5115 = vsel %vm5051, %v327, -1e+30
      %v5116 = vsel %vm5052, %v328, -1e+30
      %v5117 = vsel %vm5053, %v329, -1e+30
      %v5118 = vsel %vm5054, %v330, -1e+30
      %v5119 = vsel %vm5055, %v331, -1e+30
      %v5120 = vsel %vm5056, %v332, -1e+30
      %v5121 = vsel %vm5057, %v333, -1e+30
      %v5122 = vsel %vm5058, %v334, -1e+30
      %v5123 = vsel %vm5059, %v335, -1e+30
      %v5124 = vsel %vm5060, %v336, -1e+30
      %v5125 = vsel %vm5061, %v337, -1e+30
      %v5126 = vsel %vm5062, %v338, -1e+30
      %v5127 = vsel %vm5063, %v339, -1e+30
      %v5128 = vsel %vm5064, %v340, -1e+30
      %v5129 = vsel %vm5065, %v341, -1e+30
      %v5130 = vsel %vm5066, %v342, -1e+30
      %v5131 = vsel %vm5067, %v343, -1e+30
      %v5132 = vsel %vm5068, %v344, -1e+30
      %v5133 = vsel %vm5069, %v345, -1e+30
      %v5134 = vsel %vm5070, %v346, -1e+30
      %v5135 = vsel %vm5071, %v347, -1e+30
      %v5136 = vsel %vm5072, %v348, -1e+30
      %v5137 = vsel %vm5073, %v349, -1e+30
      %v5138 = vsel %vm5074, %v350, -1e+30
      %v5139 = vsel %vm5075, %v351, -1e+30
      %v5140 = vsel %vm5076, %v352, -1e+30
      %v5141 = vsel %vm5077, %v353, -1e+30
      %v5142 = vsel %vm5078, %v354, -1e+30
      %v5143 = vsel %vm5079, %v355, -1e+30
      %v5144 = vsel %vm5080, %v356, -1e+30
      %v5145 = vsel %vm5081, %v357, -1e+30
      %v5146 = vmax.f32 %v5082, %v5086
      %v5147 = vmax.f32 %v5083, %v5087
      %v5148 = vmax.f32 %v5084, %v5088
      %v5149 = vmax.f32 %v5085, %v5089
      %v5150 = vmax.f32 %v5146, %v5090
      %v5151 = vmax.f32 %v5147, %v5091
      %v5152 = vmax.f32 %v5148, %v5092
      %v5153 = vmax.f32 %v5149, %v5093
      %v5154 = vmax.f32 %v5150, %v5094
      %v5155 = vmax.f32 %v5151, %v5095
      %v5156 = vmax.f32 %v5152, %v5096
      %v5157 = vmax.f32 %v5153, %v5097
      %v5158 = vmax.f32 %v5154, %v5098
      %v5159 = vmax.f32 %v5155, %v5099
      %v5160 = vmax.f32 %v5156, %v5100
      %v5161 = vmax.f32 %v5157, %v5101
      %v5162 = vmax.f32 %v5158, %v5102
      %v5163 = vmax.f32 %v5159, %v5103
      %v5164 = vmax.f32 %v5160, %v5104
      %v5165 = vmax.f32 %v5161, %v5105
      %v5166 = vmax.f32 %v5162, %v5106
      %v5167 = vmax.f32 %v5163, %v5107
      %v5168 = vmax.f32 %v5164, %v5108
      %v5169 = vmax.f32 %v5165, %v5109
      %v5170 = vmax.f32 %v5166, %v5110
      %v5171 = vmax.f32 %v5167, %v5111
      %v5172 = vmax.f32 %v5168, %v5112
      %v5173 = vmax.f32 %v5169, %v5113
      %v5174 = vmax.f32 %v5170, %v5114
      %v5175 = vmax.f32 %v5171, %v5115
      %v5176 = vmax.f32 %v5172, %v5116
      %v5177 = vmax.f32 %v5173, %v5117
      %v5178 = vmax.f32 %v5174, %v5118
      %v5179 = vmax.f32 %v5175, %v5119
      %v5180 = vmax.f32 %v5176, %v5120
      %v5181 = vmax.f32 %v5177, %v5121
      %v5182 = vmax.f32 %v5178, %v5122
      %v5183 = vmax.f32 %v5179, %v5123
      %v5184 = vmax.f32 %v5180, %v5124
      %v5185 = vmax.f32 %v5181, %v5125
      %v5186 = vmax.f32 %v5182, %v5126
      %v5187 = vmax.f32 %v5183, %v5127
      %v5188 = vmax.f32 %v5184, %v5128
      %v5189 = vmax.f32 %v5185, %v5129
      %v5190 = vmax.f32 %v5186, %v5130
      %v5191 = vmax.f32 %v5187, %v5131
      %v5192 = vmax.f32 %v5188, %v5132
      %v5193 = vmax.f32 %v5189, %v5133
      %v5194 = vmax.f32 %v5190, %v5134
      %v5195 = vmax.f32 %v5191, %v5135
      %v5196 = vmax.f32 %v5192, %v5136
      %v5197 = vmax.f32 %v5193, %v5137
      %v5198 = vmax.f32 %v5194, %v5138
      %v5199 = vmax.f32 %v5195, %v5139
      %v5200 = vmax.f32 %v5196, %v5140
      %v5201 = vmax.f32 %v5197, %v5141
      %v5202 = vmax.f32 %v5198, %v5142
      %v5203 = vmax.f32 %v5199, %v5143
      %v5204 = vmax.f32 %v5200, %v5144
      %v5205 = vmax.f32 %v5201, %v5145
      %v5206 = vmax.f32 %v5202, %v5203
      %v5207 = vmax.f32 %v5204, %v5205
      %v5208 = vmax.f32 %v5206, %v5207
      %v5209 = vrot.slane %v5208, 4
      %v5210 = vmax.f32 %v5208, %v5209
      %v5211 = vrot.slane %v5210, 2
      %v5212 = vmax.f32 %v5210, %v5211
      %v5213 = vrot.slane %v5212, 1
      %v5214 = vmax.f32 %v5212, %v5213
      %v5215 = vld [vmem:[#allocation3] sm:$0xff]
      %vm5216 = vcmask 1040384
      %v5217 = vsel %vm5216, %v1595, %v2112
      %vm5218 = vcmask 1041408
      %v5219 = vsel %vm5218, %v5217, %v2629
      %vm5220 = vcmask 1042432
      %v5221 = vsel %vm5220, %v5219, %v3146
      %vm5222 = vcmask 1043456
      %v5223 = vsel %vm5222, %v5221, %v3663
      %vm5224 = vcmask 1044480
      %v5225 = vsel %vm5224, %v5223, %v4180
      %vm5226 = vcmask 1045504
      %v5227 = vsel %vm5226, %v5225, %v4697
      %vm5228 = vcmask 1046528
      %v5229 = vsel %vm5228, %v5227, %v5214
      %v5230 = vmax.f32 %v5215, %v5229
      %5231 = vst [vmem:[#allocation3] sm:$0xff] %v5230
      %p5232 = scmp.eq.s32.totalorder %s18, 3
      // Predicated region
      $region53: #{channel_attention_forward.2} parent=47 // pred_check
        %p5233 = pneg %p5232
      $region54: #{channel_attention_forward.2} parent=47 // pred_check_branch
        %5235 = sbr.rel (%p5233) target = $region56
      $region55: #{channel_attention_forward.2} parent=47 // pred_region
        %v5236 = vld [vmem:[#allocation2] sm:$0xff]
        %v5237 = vld [vmem:[%s2] sm:$0xff]
        %5239 = vset.pattern.permute.xlu0 0
        %5240 = vperm.xlu0 %5239, %v5237
        %v5241 = vpop.permute.xlu0 %5240
        %v5243 = vmul.f32 %v5236, %v5241
        %v5244 = vld [vmem:[#allocation3] sm:$0xff]
        %v5245 = vld [vmem:[%s3] sm:$0xff]
        %v5246 = vld [vmem:[%s3 + $0x8] sm:$0xff]
        %v5247 = vld [vmem:[%s3 + $0x10] sm:$0xff]
        %v5248 = vld [vmem:[%s3 + $0x18] sm:$0xff]
        %v5249 = vld [vmem:[%s3 + $0x20] sm:$0xff]
        %v5250 = vld [vmem:[%s3 + $0x28] sm:$0xff]
        %v5251 = vld [vmem:[%s3 + $0x30] sm:$0xff]
        %v5252 = vld [vmem:[%s3 + $0x38] sm:$0xff]
        %v5253 = vld [vmem:[%s3 + $0x40] sm:$0xff]
        %v5254 = vld [vmem:[%s3 + $0x48] sm:$0xff]
        %v5255 = vld [vmem:[%s3 + $0x50] sm:$0xff]
        %v5256 = vld [vmem:[%s3 + $0x58] sm:$0xff]
        %v5257 = vld [vmem:[%s3 + $0x60] sm:$0xff]
        %v5258 = vld [vmem:[%s3 + $0x68] sm:$0xff]
        %v5259 = vld [vmem:[%s3 + $0x70] sm:$0xff]
        %v5260 = vld [vmem:[%s3 + $0x78] sm:$0xff]
        %v5261 = vld [vmem:[%s4] sm:$0x1]
        %v5263 = vlaneseq
        %v5264 = vshrl.u32 %v5263, 7
        %v5265 = vsub.s32 0, %v5264
        %v5266 = vrot.slane %v5261, %v5265
        %5268 = vmatprep.subr.mxu0 0.0
        %5269 = vmatpush1.msra.mxu0 %v5245
        %5270 = vmatprep.subr.mxu0 0.0
        %5271 = vmatpush1.msra.mxu0 %v5246
        %5272 = vmatprep.subr.mxu0 0.0
        %5273 = vmatpush1.msra.mxu0 %v5247
        %5274 = vmatprep.subr.mxu0 0.0
        %5275 = vmatpush1.msra.mxu0 %v5248
        %5276 = vmatprep.subr.mxu0 0.0
        %5277 = vmatpush1.msra.mxu0 %v5249
        %5278 = vmatprep.subr.mxu0 0.0
        %5279 = vmatpush1.msra.mxu0 %v5250
        %5280 = vmatprep.subr.mxu0 0.0
        %5281 = vmatpush1.msra.mxu0 %v5251
        %5282 = vmatprep.subr.mxu0 0.0
        %5283 = vmatpush1.msra.mxu0 %v5252
        %5284 = vmatprep.subr.mxu0 0.0
        %5285 = vmatpush1.msra.mxu0 %v5253
        %5286 = vmatprep.subr.mxu0 0.0
        %5287 = vmatpush1.msra.mxu0 %v5254
        %5288 = vmatprep.subr.mxu0 0.0
        %5289 = vmatpush1.msra.mxu0 %v5255
        %5290 = vmatprep.subr.mxu0 0.0
        %5291 = vmatpush1.msra.mxu0 %v5256
        %5292 = vmatprep.subr.mxu0 0.0
        %5293 = vmatpush1.msra.mxu0 %v5257
        %5294 = vmatprep.subr.mxu0 0.0
        %5295 = vmatpush1.msra.mxu0 %v5258
        %5296 = vmatprep.subr.mxu0 0.0
        %5297 = vmatpush1.msra.mxu0 %v5259
        %5298 = vmatprep.subr.mxu0 0.0
        %5299 = vmatpush1.msra.mxu0 %v5260
        %5300 = vmatprep.subr.mxu0 0.0
        %5301 = vmatpush1.msra.mxu0 0.0
        %5302 = vmatprep.subr.mxu0 0.0
        %5303 = vmatpush1.msra.mxu0 0.0
        %5304 = vmatprep.subr.mxu0 0.0
        %5305 = vmatpush1.msra.mxu0 0.0
        %5306 = vmatprep.subr.mxu0 0.0
        %5307 = vmatpush1.msra.mxu0 0.0
        %5308 = vmatprep.subr.mxu0 0.0
        %5309 = vmatpush1.msra.mxu0 0.0
        %5310 = vmatprep.subr.mxu0 0.0
        %5311 = vmatpush1.msra.mxu0 0.0
        %5312 = vmatprep.subr.mxu0 0.0
        %5313 = vmatpush1.msra.mxu0 0.0
        %5314 = vmatprep.subr.mxu0 0.0
        %5315 = vmatpush1.msra.mxu0 0.0
        %5316 = vmatprep.subr.mxu0 0.0
        %5317 = vmatpush1.msra.mxu0 0.0
        %5318 = vmatprep.subr.mxu0 0.0
        %5319 = vmatpush1.msra.mxu0 0.0
        %5320 = vmatprep.subr.mxu0 0.0
        %5321 = vmatpush1.msra.mxu0 0.0
        %5322 = vmatprep.subr.mxu0 0.0
        %5323 = vmatpush1.msra.mxu0 0.0
        %5324 = vmatprep.subr.mxu0 0.0
        %5325 = vmatpush1.msra.mxu0 0.0
        %5326 = vmatprep.subr.mxu0 0.0
        %5327 = vmatpush1.msra.mxu0 0.0
        %5328 = vmatprep.subr.mxu0 0.0
        %5329 = vmatpush1.msra.mxu0 0.0
        %5330 = vmatprep.subr.mxu0 0.0
        %5331 = vmatpush1.msra.mxu0 0.0
        %5332 = vmatprep.mubr.f32.mxu0 0.0
        %5333 = vmatmul.mubr.f32.gmra.mrb[0].mxu0 %v5243
        %v5334 = vpop.f32.mrb[0].mxu0
        %v5335 = vadd.f32 %v5266, %v5334
        %v5336 = vpop.f32.mrb[0].mxu0
        %5337 = vdwg.mxu0
        %v5338 = vmax.f32 %v5335, 0.0
        %v5339 = vld [vmem:[%s5] sm:$0xff]
        %v5340 = vld [vmem:[%s6] sm:$0x1]
        %v5342 = vlaneseq
        %v5343 = vshrl.u32 %v5342, 7
        %v5344 = vsub.s32 0, %v5343
        %v5345 = vrot.slane %v5340, %v5344
        %vm5347 = vcmask 64512
        %v5349 = vsel %vm5347, %v5338, 0
        %5351 = vmatprep.subr.mxu0 0.0
        %5352 = vmatpush1.msra.mxu0 %v5339
        %5353 = vmatprep.subr.mxu0 0.0
        %5354 = vmatpush1.msra.mxu0 0.0
        %5355 = vmatprep.subr.mxu0 0.0
        %5356 = vmatpush1.msra.mxu0 0.0
        %5357 = vmatprep.subr.mxu0 0.0
        %5358 = vmatpush1.msra.mxu0 0.0
        %5359 = vmatprep.subr.mxu0 0.0
        %5360 = vmatpush1.msra.mxu0 0.0
        %5361 = vmatprep.subr.mxu0 0.0
        %5362 = vmatpush1.msra.mxu0 0.0
        %5363 = vmatprep.subr.mxu0 0.0
        %5364 = vmatpush1.msra.mxu0 0.0
        %5365 = vmatprep.subr.mxu0 0.0
        %5366 = vmatpush1.msra.mxu0 0.0
        %5367 = vmatprep.subr.mxu0 0.0
        %5368 = vmatpush1.msra.mxu0 0.0
        %5369 = vmatprep.subr.mxu0 0.0
        %5370 = vmatpush1.msra.mxu0 0.0
        %5371 = vmatprep.subr.mxu0 0.0
        %5372 = vmatpush1.msra.mxu0 0.0
        %5373 = vmatprep.subr.mxu0 0.0
        %5374 = vmatpush1.msra.mxu0 0.0
        %5375 = vmatprep.subr.mxu0 0.0
        %5376 = vmatpush1.msra.mxu0 0.0
        %5377 = vmatprep.subr.mxu0 0.0
        %5378 = vmatpush1.msra.mxu0 0.0
        %5379 = vmatprep.subr.mxu0 0.0
        %5380 = vmatpush1.msra.mxu0 0.0
        %5381 = vmatprep.subr.mxu0 0.0
        %5382 = vmatpush1.msra.mxu0 0.0
        %5383 = vmatprep.subr.mxu0 0.0
        %5384 = vmatpush1.msra.mxu0 0.0
        %5385 = vmatprep.subr.mxu0 0.0
        %5386 = vmatpush1.msra.mxu0 0.0
        %5387 = vmatprep.subr.mxu0 0.0
        %5388 = vmatpush1.msra.mxu0 0.0
        %5389 = vmatprep.subr.mxu0 0.0
        %5390 = vmatpush1.msra.mxu0 0.0
        %5391 = vmatprep.subr.mxu0 0.0
        %5392 = vmatpush1.msra.mxu0 0.0
        %5393 = vmatprep.subr.mxu0 0.0
        %5394 = vmatpush1.msra.mxu0 0.0
        %5395 = vmatprep.subr.mxu0 0.0
        %5396 = vmatpush1.msra.mxu0 0.0
        %5397 = vmatprep.subr.mxu0 0.0
        %5398 = vmatpush1.msra.mxu0 0.0
        %5399 = vmatprep.subr.mxu0 0.0
        %5400 = vmatpush1.msra.mxu0 0.0
        %5401 = vmatprep.subr.mxu0 0.0
        %5402 = vmatpush1.msra.mxu0 0.0
        %5403 = vmatprep.subr.mxu0 0.0
        %5404 = vmatpush1.msra.mxu0 0.0
        %5405 = vmatprep.subr.mxu0 0.0
        %5406 = vmatpush1.msra.mxu0 0.0
        %5407 = vmatprep.subr.mxu0 0.0
        %5408 = vmatpush1.msra.mxu0 0.0
        %5409 = vmatprep.subr.mxu0 0.0
        %5410 = vmatpush1.msra.mxu0 0.0
        %5411 = vmatprep.subr.mxu0 0.0
        %5412 = vmatpush1.msra.mxu0 0.0
        %5413 = vmatprep.subr.mxu0 0.0
        %5414 = vmatpush1.msra.mxu0 0.0
        %5415 = vmatprep.mubr.f32.mxu0 0.0
        %5416 = vmatmul.mubr.f32.gmra.mrb[0].mxu0 %v5349
        %v5417 = vpop.f32.mrb[0].mxu0
        %v5418 = vadd.f32 %v5345, %v5417
        %v5419 = vpop.f32.mrb[0].mxu0
        %5420 = vdwg.mxu0
        %5421 = vmatprep.subr.mxu0 0.0
        %5422 = vmatpush1.msra.mxu0 %v5245
        %5423 = vmatprep.subr.mxu0 0.0
        %5424 = vmatpush1.msra.mxu0 %v5246
        %5425 = vmatprep.subr.mxu0 0.0
        %5426 = vmatpush1.msra.mxu0 %v5247
        %5427 = vmatprep.subr.mxu0 0.0
        %5428 = vmatpush1.msra.mxu0 %v5248
        %5429 = vmatprep.subr.mxu0 0.0
        %5430 = vmatpush1.msra.mxu0 %v5249
        %5431 = vmatprep.subr.mxu0 0.0
        %5432 = vmatpush1.msra.mxu0 %v5250
        %5433 = vmatprep.subr.mxu0 0.0
        %5434 = vmatpush1.msra.mxu0 %v5251
        %5435 = vmatprep.subr.mxu0 0.0
        %5436 = vmatpush1.msra.mxu0 %v5252
        %5437 = vmatprep.subr.mxu0 0.0
        %5438 = vmatpush1.msra.mxu0 %v5253
        %5439 = vmatprep.subr.mxu0 0.0
        %5440 = vmatpush1.msra.mxu0 %v5254
        %5441 = vmatprep.subr.mxu0 0.0
        %5442 = vmatpush1.msra.mxu0 %v5255
        %5443 = vmatprep.subr.mxu0 0.0
        %5444 = vmatpush1.msra.mxu0 %v5256
        %5445 = vmatprep.subr.mxu0 0.0
        %5446 = vmatpush1.msra.mxu0 %v5257
        %5447 = vmatprep.subr.mxu0 0.0
        %5448 = vmatpush1.msra.mxu0 %v5258
        %5449 = vmatprep.subr.mxu0 0.0
        %5450 = vmatpush1.msra.mxu0 %v5259
        %5451 = vmatprep.subr.mxu0 0.0
        %5452 = vmatpush1.msra.mxu0 %v5260
        %5453 = vmatprep.subr.mxu0 0.0
        %5454 = vmatpush1.msra.mxu0 0.0
        %5455 = vmatprep.subr.mxu0 0.0
        %5456 = vmatpush1.msra.mxu0 0.0
        %5457 = vmatprep.subr.mxu0 0.0
        %5458 = vmatpush1.msra.mxu0 0.0
        %5459 = vmatprep.subr.mxu0 0.0
        %5460 = vmatpush1.msra.mxu0 0.0
        %5461 = vmatprep.subr.mxu0 0.0
        %5462 = vmatpush1.msra.mxu0 0.0
        %5463 = vmatprep.subr.mxu0 0.0
        %5464 = vmatpush1.msra.mxu0 0.0
        %5465 = vmatprep.subr.mxu0 0.0
        %5466 = vmatpush1.msra.mxu0 0.0
        %5467 = vmatprep.subr.mxu0 0.0
        %5468 = vmatpush1.msra.mxu0 0.0
        %5469 = vmatprep.subr.mxu0 0.0
        %5470 = vmatpush1.msra.mxu0 0.0
        %5471 = vmatprep.subr.mxu0 0.0
        %5472 = vmatpush1.msra.mxu0 0.0
        %5473 = vmatprep.subr.mxu0 0.0
        %5474 = vmatpush1.msra.mxu0 0.0
        %5475 = vmatprep.subr.mxu0 0.0
        %5476 = vmatpush1.msra.mxu0 0.0
        %5477 = vmatprep.subr.mxu0 0.0
        %5478 = vmatpush1.msra.mxu0 0.0
        %5479 = vmatprep.subr.mxu0 0.0
        %5480 = vmatpush1.msra.mxu0 0.0
        %5481 = vmatprep.subr.mxu0 0.0
        %5482 = vmatpush1.msra.mxu0 0.0
        %5483 = vmatprep.subr.mxu0 0.0
        %5484 = vmatpush1.msra.mxu0 0.0
        %5485 = vmatprep.mubr.f32.mxu0 0.0
        %5486 = vmatmul.mubr.f32.gmra.mrb[0].mxu0 %v5244
        %v5487 = vpop.f32.mrb[0].mxu0
        %v5488 = vadd.f32 %v5266, %v5487
        %v5489 = vpop.f32.mrb[0].mxu0
        %5490 = vdwg.mxu0
        %v5491 = vmax.f32 %v5488, 0.0
        %v5493 = vsel %vm5347, %v5491, 0
        %5495 = vmatprep.subr.mxu0 0.0
        %5496 = vmatpush1.msra.mxu0 %v5339
        %5497 = vmatprep.subr.mxu0 0.0
        %5498 = vmatpush1.msra.mxu0 0.0
        %5499 = vmatprep.subr.mxu0 0.0
        %5500 = vmatpush1.msra.mxu0 0.0
        %5501 = vmatprep.subr.mxu0 0.0
        %5502 = vmatpush1.msra.mxu0 0.0
        %5503 = vmatprep.subr.mxu0 0.0
        %5504 = vmatpush1.msra.mxu0 0.0
        %5505 = vmatprep.subr.mxu0 0.0
        %5506 = vmatpush1.msra.mxu0 0.0
        %5507 = vmatprep.subr.mxu0 0.0
        %5508 = vmatpush1.msra.mxu0 0.0
        %5509 = vmatprep.subr.mxu0 0.0
        %5510 = vmatpush1.msra.mxu0 0.0
        %5511 = vmatprep.subr.mxu0 0.0
        %5512 = vmatpush1.msra.mxu0 0.0
        %5513 = vmatprep.subr.mxu0 0.0
        %5514 = vmatpush1.msra.mxu0 0.0
        %5515 = vmatprep.subr.mxu0 0.0
        %5516 = vmatpush1.msra.mxu0 0.0
        %5517 = vmatprep.subr.mxu0 0.0
        %5518 = vmatpush1.msra.mxu0 0.0
        %5519 = vmatprep.subr.mxu0 0.0
        %5520 = vmatpush1.msra.mxu0 0.0
        %5521 = vmatprep.subr.mxu0 0.0
        %5522 = vmatpush1.msra.mxu0 0.0
        %5523 = vmatprep.subr.mxu0 0.0
        %5524 = vmatpush1.msra.mxu0 0.0
        %5525 = vmatprep.subr.mxu0 0.0
        %5526 = vmatpush1.msra.mxu0 0.0
        %5527 = vmatprep.subr.mxu0 0.0
        %5528 = vmatpush1.msra.mxu0 0.0
        %5529 = vmatprep.subr.mxu0 0.0
        %5530 = vmatpush1.msra.mxu0 0.0
        %5531 = vmatprep.subr.mxu0 0.0
        %5532 = vmatpush1.msra.mxu0 0.0
        %5533 = vmatprep.subr.mxu0 0.0
        %5534 = vmatpush1.msra.mxu0 0.0
        %5535 = vmatprep.subr.mxu0 0.0
        %5536 = vmatpush1.msra.mxu0 0.0
        %5537 = vmatprep.subr.mxu0 0.0
        %5538 = vmatpush1.msra.mxu0 0.0
        %5539 = vmatprep.subr.mxu0 0.0
        %5540 = vmatpush1.msra.mxu0 0.0
        %5541 = vmatprep.subr.mxu0 0.0
        %5542 = vmatpush1.msra.mxu0 0.0
        %5543 = vmatprep.subr.mxu0 0.0
        %5544 = vmatpush1.msra.mxu0 0.0
        %5545 = vmatprep.subr.mxu0 0.0
        %5546 = vmatpush1.msra.mxu0 0.0
        %5547 = vmatprep.subr.mxu0 0.0
        %5548 = vmatpush1.msra.mxu0 0.0
        %5549 = vmatprep.subr.mxu0 0.0
        %5550 = vmatpush1.msra.mxu0 0.0
        %5551 = vmatprep.subr.mxu0 0.0
        %5552 = vmatpush1.msra.mxu0 0.0
        %5553 = vmatprep.subr.mxu0 0.0
        %5554 = vmatpush1.msra.mxu0 0.0
        %5555 = vmatprep.subr.mxu0 0.0
        %5556 = vmatpush1.msra.mxu0 0.0
        %5557 = vmatprep.subr.mxu0 0.0
        %5558 = vmatpush1.msra.mxu0 0.0
        %5559 = vmatprep.mubr.f32.mxu0 0.0
        %5560 = vmatmul.mubr.f32.gmra.mrb[0].mxu0 %v5493
        %v5561 = vpop.f32.mrb[0].mxu0
        %v5562 = vadd.f32 %v5345, %v5561
        %v5563 = vpop.f32.mrb[0].mxu0
        %5564 = vdwg.mxu0
        %v5565 = vadd.f32 %v5418, %v5562
        %v5566 = vsub.f32 0.0, %v5565
        %v5567 = vmul.f32 %v5566, 1.442695
        %v5568 = vpow.pop %v5567
        %v5569 = vadd.f32 %v5568, 1.0
        %v5570 = vrcp.pop %v5569
        %v5571 = vmul.f32 1.0, %v5570
        %5572 = vst [vmem:[%s7] sm:$0xff] %v5571
      $region56: #{channel_attention_forward.2} parent=47 // pred_fallthru
        _
      // Predicated region
      $region57: #{channel_attention_forward.2} parent=47 // pred_check
        %p5573 = pneg %p188
      $region58: #{channel_attention_forward.2} parent=47 // pred_check_branch
        %5575 = sbr.rel (%p5573) target = $region60
      $region59: #{channel_attention_forward.2} parent=47 // pred_region
        _
      $region60: #{channel_attention_forward.2} parent=47 // pred_fallthru
        _
      // Predicated region
      $region61: #{channel_attention_forward.2} parent=47 // pred_check
        %p5576 = pneg %p188
      $region62: #{channel_attention_forward.2} parent=47 // pred_check_branch
        %5578 = sbr.rel (%p5576) target = $region64
      $region63: #{channel_attention_forward.2} parent=47 // pred_region
        _
      $region64: #{channel_attention_forward.2} parent=47 // pred_fallthru
        _
    $region48: #{channel_attention_forward.2} parent=5 // pred_fallthru
      _
    %p5579 = scmp.le.s32.totalorder 2, %s13
    // Predicated region
    $region65: #{channel_attention_forward.2} parent=5 // pred_check
      %p5580 = pneg %p5579
    $region66: #{channel_attention_forward.2} parent=5 // pred_check_branch
      %5582 = sbr.rel (%p5580) target = $region68
    $region67: #{channel_attention_forward.2} parent=5 // pred_region
      %s5583 = ssub.s32 %s13, 2
    $region68: #{channel_attention_forward.2} parent=5 // pred_fallthru
      _
  $region6: #{channel_attention_forward.2} parent=0 // loop_footer
    %s17 = sadd.s32 1, %s13
  $region7: #{channel_attention_forward.2} parent=0 // loop_footer_branch
    %12 = sbr.rel target = $region3
  $region8: #{channel_attention_forward.2} parent=0 // loop_exit
    _

</llo_original>
